<compile_context>
chip_gen: v7x
topology: tpu7x:2x2x1
jax: 0.10.0
libtpu: 0.0.40
codegen_flags: <defaults>
</compile_context>

<pallas_src>
import functools

import jax
import jax.numpy as jnp
from jax.experimental import pallas as pl
from jax.experimental.pallas import tpu as pltpu


def _infonce_kernel(combined_ref, micro_t_ref, labels_col_ref, labels_row_ref,
                    out_ref, acc_ref, lt_ref,
                    *, inv_temperature, batch, col_tile, share_exp):
    j = pl.program_id(0)

    @pl.when(j == 0)
    def _init():
        lane0 = jax.lax.broadcasted_iota(jnp.int32, acc_ref.shape, 1)
        # lane 0: running row max (-inf), lane 1: running sum-exp (0),
        # lane 2: selected logit (0); other lanes unused.
        acc_ref[...] = jnp.where(lane0 == 0, -jnp.inf, 0.0)
        lt_ref[...] = jnp.zeros_like(lt_ref)

    c = combined_ref[...]                                  # (B, D)  input dtype
    mt = micro_t_ref[...]                                  # (D, TB) input dtype
    # Plain (B,D)@(D,TB) MXU matmul with f32 accumulation; scale the f32
    # logits afterwards (exact, and cheap VALU work).
    logits = jnp.dot(c, mt, preferred_element_type=jnp.float32) * inv_temperature

    labels_col = labels_col_ref[...]                       # (B, 1)  int32
    labels_row = labels_row_ref[...]                       # (1, TB) int32

    # ---- loss_i: flash-style online LSE across column tiles -----------------
    m_old = acc_ref[:, 0:1]                                # (B, 1)
    l_old = acc_ref[:, 1:2]
    sel_old = acc_ref[:, 2:3]

    blk_max = jnp.max(logits, axis=1, keepdims=True)       # (B, 1)
    m_new = jnp.maximum(m_old, blk_max)
    p = jnp.exp(logits - m_new)                            # the only (B,TB) exp
    alpha = jnp.exp(m_old - m_new)                         # (B, 1)
    l_new = alpha * l_old + jnp.sum(p, axis=1, keepdims=True)

    col_ids = j * col_tile + jax.lax.broadcasted_iota(jnp.int32, logits.shape, 1)
    sel_new = sel_old + jnp.sum(jnp.where(col_ids == labels_col, logits, 0.0),
                                axis=1, keepdims=True)

    acc_ref[:, 0:1] = m_new
    acc_ref[:, 1:2] = l_new
    acc_ref[:, 2:3] = sel_new

    # ---- loss_t: per-column CE (each column lives in exactly one tile) ------
    if share_exp:
        # Reuse p: sum_i exp(logits[i,t]) = exp(shift) * sum_i p[i,t]*w[i]
        # with shift = max_i m_new[i], w[i] = exp(m_new[i]-shift) <= 1.
        shift = jnp.max(m_new, axis=0, keepdims=True)      # (1, 1)
        w = jnp.exp(m_new - shift)                         # (B, 1): B exps
        col_sum = jnp.sum(p * w, axis=0, keepdims=True)    # (1, TB)
        col_lse = shift + jnp.log(col_sum)                 # (1, TB)
    else:
        # Safe fallback for unbounded logits (second full-tile exp).
        col_max = jnp.max(logits, axis=0, keepdims=True)
        col_lse = col_max + jnp.log(jnp.sum(jnp.exp(logits - col_max),
                                            axis=0, keepdims=True))

    row_ids = jax.lax.broadcasted_iota(jnp.int32, logits.shape, 0)
    sel_t = jnp.sum(jnp.where(row_ids == labels_row, logits, 0.0),
                    axis=0, keepdims=True)                 # (1, TB)
    lt_ref[...] += jnp.sum(col_lse - sel_t, axis=1, keepdims=True)   # (1, 1)

    # ---- finalize: lane-dense packed scalar output ---------------------------
    @pl.when(j == pl.num_programs(0) - 1)
    def _finish():
        m = acc_ref[:, 0:1]
        l = acc_ref[:, 1:2]
        sel = acc_ref[:, 2:3]
        lse_i = m + jnp.log(l)                                             # (B, 1)
        loss_i = jnp.sum(lse_i - sel, axis=0, keepdims=True) / batch       # (1, 1)
        loss_t = lt_ref[...] / batch                                       # (1, 1)
        loss = 0.5 * (loss_i + loss_t)
        lane = jax.lax.broadcasted_iota(jnp.int32, out_ref.shape, 1)       # (1, 128)
        out_ref[...] = (jnp.where(lane == 0, loss, 0.0)
                        + jnp.where(lane == 1, loss_i, 0.0)
                        + jnp.where(lane == 2, loss_t, 0.0))


def _pick_col_tile(batch, dim, itemsize, vmem_budget=40 << 20, target=1024):
    """Generation-aware tile: largest multiple of 256 dividing B that fits the
    VMEM budget (256-wide MXU on v6e/v7x); fall back to 128 (v5e), then B."""
    if batch % 128 != 0:
        return batch

    def fits(tb):
        fixed = (2 * batch * dim * itemsize      # resident combined (2 bufs, conservative)
                 + batch * 128 * 4 + 8 * 128 * 4)  # packed accumulator + loss_t scratch
        per_tile = (2 * tb * dim * itemsize        # double-buffered micro tile
                    + 4 * batch * tb * 4)          # f32 logits / exp / mask temporaries
        return fixed + per_tile <= vmem_budget

    best = None
    tb = 256
    while tb <= min(target, batch):
        if batch % tb == 0 and fits(tb):
            best = tb
        tb += 256
    if best is None and fits(128):
        best = 128
    if best is None:
        best = batch
    return best


def infonce_loss(combined_vec, micro_vec, labels, temperature,
                 col_tile=None, share_exp=True):
    """Returns (loss, loss_i, loss_t) matching PyTorch InfoNCELoss.forward.

    share_exp=True reuses the row-softmax exponentials for the column LSE
    (exact, but assumes bounded logits — e.g. normalized embeddings); set
    share_exp=False for the fully shift-safe two-exp path.
    """
    B, D = combined_vec.shape
    labels = labels.astype(jnp.int32)
    labels_col = labels.reshape(B, 1)
    labels_row = labels.reshape(1, B)
    micro_t = micro_vec.T                       # (D, B): MXU consumes (B,D)@(D,tb)

    itemsize = jnp.dtype(combined_vec.dtype).itemsize
    tb = _pick_col_tile(B, D, itemsize) if col_tile is None else int(col_tile)
    assert B % tb == 0, "col_tile must divide the batch size"
    n_blocks = B // tb

    kernel = functools.partial(
        _infonce_kernel,
        inv_temperature=1.0 / float(temperature),
        batch=float(B),
        col_tile=tb,
        share_exp=bool(share_exp),
    )

    cost = pl.CostEstimate(
        flops=2 * B * B * D,
        transcendentals=(1 if share_exp else 2) * B * B + 3 * B * n_blocks,
        bytes_accessed=2 * B * D * itemsize + 2 * B * 4 + 128 * 4,
    )

    # Explicit VMEM budget (v7x has 64 MiB physical / 32 MiB default scoped).
    est = (2 * B * D * itemsize + 2 * tb * D * itemsize
           + B * 128 * 4 + 8 * 128 * 4
           + 4 * B * tb * 4
           + 2 * B * 128 * 4)
    vmem_limit = int(min(max(2 * est, 32 << 20), 48 << 20))

    out = pl.pallas_call(
        kernel,
        grid=(n_blocks,),
        in_specs=[
            pl.BlockSpec((B, D), lambda j: (0, 0)),      # combined: resident rows
            pl.BlockSpec((D, tb), lambda j: (0, j)),     # micro^T: column tile, no RHS transpose
            pl.BlockSpec((B, 1), lambda j: (0, 0)),      # labels (row-CE view)
            pl.BlockSpec((1, tb), lambda j: (0, j)),     # labels (column-CE view)
        ],
        out_specs=pl.BlockSpec((1, 128), lambda j: (0, 0)),
        out_shape=jax.ShapeDtypeStruct((1, 128), jnp.float32),
        scratch_shapes=[
            pltpu.VMEM((B, 128), jnp.float32),   # packed: lane0=max, lane1=sumexp, lane2=sel
            pltpu.VMEM((1, 1), jnp.float32),     # accumulated loss_t numerator
        ],
        compiler_params=pltpu.CompilerParams(
            dimension_semantics=("arbitrary",),
            vmem_limit_bytes=vmem_limit,
        ),
        cost_estimate=cost,
    )(combined_vec, micro_t, labels_col, labels_row)

    return out[0, 0], out[0, 1], out[0, 2]


def _reference(combined_vec, micro_vec, labels, temperature):
    """Pure-JAX reference following the same dtype path as the kernel."""
    inv_t = 1.0 / float(temperature)
    logits = jnp.dot(combined_vec, micro_vec.T,
                     preferred_element_type=jnp.float32) * inv_t

    def ce(lg, lab):
        logp = jax.nn.log_softmax(lg, axis=-1)
        return -jnp.mean(jnp.take_along_axis(logp, lab[:, None], axis=-1))

    li = ce(logits, labels)
    lt = ce(logits.T, labels)
    return (li + lt) / 2.0, li, lt


if __name__ == "__main__":
    key = jax.random.PRNGKey(0)
    k1, k2 = jax.random.split(key)

    B, D = 512, 128
    temperature = 0.07

    combined_vec = jax.random.normal(k1, (B, D), dtype=jnp.float32)
    micro_vec = jax.random.normal(k2, (B, D), dtype=jnp.float32)
    combined_vec = combined_vec / jnp.linalg.norm(combined_vec, axis=-1, keepdims=True)
    micro_vec = micro_vec / jnp.linalg.norm(micro_vec, axis=-1, keepdims=True)
    labels = jnp.arange(B, dtype=jnp.int32)   # standard InfoNCE: diagonal positives

    ref_loss, ref_li, ref_lt = _reference(combined_vec, micro_vec, labels, temperature)

    # 1) f32, default (generation-aware) tile, shared-exp column LSE.
    loss, loss_i, loss_t = infonce_loss(combined_vec, micro_vec, labels, temperature)
    jax.block_until_ready((loss, loss_i, loss_t))
    assert jnp.allclose(loss, ref_loss, atol=1e-3, rtol=1e-3), (loss, ref_loss)
    assert jnp.allclose(loss_i, ref_li, atol=1e-3, rtol=1e-3), (loss_i, ref_li)
    assert jnp.allclose(loss_t, ref_lt, atol=1e-3, rtol=1e-3), (loss_t, ref_lt)

    # 2) f32, explicit 256-wide tile -> grid=(2,), exercises the online-LSE merge.
    l2, li2, lt2 = infonce_loss(combined_vec, micro_vec, labels, temperature,
                                col_tile=256)
    jax.block_until_ready((l2, li2, lt2))
    assert jnp.allclose(l2, ref_loss, atol=1e-3, rtol=1e-3), (l2, ref_loss)
    assert jnp.allclose(li2, ref_li, atol=1e-3, rtol=1e-3), (li2, ref_li)
    assert jnp.allclose(lt2, ref_lt, atol=1e-3, rtol=1e-3), (lt2, ref_lt)

    # 3) f32, safe fallback path (two-shift column LSE), 128-wide tiles -> grid=(4,).
    l3, li3, lt3 = infonce_loss(combined_vec, micro_vec, labels, temperature,
                                col_tile=128, share_exp=False)
    jax.block_until_ready((l3, li3, lt3))
    assert jnp.allclose(l3, ref_loss, atol=1e-3, rtol=1e-3), (l3, ref_loss)
    assert jnp.allclose(li3, ref_li, atol=1e-3, rtol=1e-3), (li3, ref_li)
    assert jnp.allclose(lt3, ref_lt, atol=1e-3, rtol=1e-3), (lt3, ref_lt)

    # 4) bf16 inputs (bf16-rate MXU, f32 accumulation, f32 temperature scaling).
    cb = combined_vec.astype(jnp.bfloat16)
    mb = micro_vec.astype(jnp.bfloat16)
    bl, bli, blt = infonce_loss(cb, mb, labels, temperature)
    jax.block_until_ready((bl, bli, blt))
    rbl, rbli, rblt = _reference(cb, mb, labels, temperature)
    assert jnp.allclose(bl, rbl, atol=1e-2, rtol=1e-2), (bl, rbl)
    assert jnp.allclose(bli, rbli, atol=1e-2, rtol=1e-2), (bli, rbli)
    assert jnp.allclose(blt, rblt, atol=1e-2, rtol=1e-2), (blt, rblt)

    print("KERNEL_OK")
</pallas_src>

<mosaic_0001>
module attributes {stable_mosaic.version = 11 : i64} {
  func.func @_infonce_kernel(%arg0: i32, %arg1: memref<512x128xf32, #tpu.memory_space<vmem>>, %arg2: memref<128x512xf32, #tpu.memory_space<vmem>>, %arg3: memref<512x1xi32, #tpu.memory_space<vmem>>, %arg4: memref<1x512xi32, #tpu.memory_space<vmem>>, %arg5: memref<1x128xf32, #tpu.memory_space<vmem>>, %arg6: memref<512x128xf32, #tpu.memory_space<vmem>>, %arg7: memref<1x1xf32, #tpu.memory_space<vmem>>) attributes {dimension_semantics = [#tpu.dimension_semantics<arbitrary>], iteration_bounds = array<i64: 1>, scalar_prefetch = 0 : i64, scratch_operands = 2 : i64, tpu.core_type = #tpu.core_type<tc>, window_params = [{pipeline_mode = #tpu.pipeline_mode<synchronous>, transform_indices = @transform_0, window_bounds = array<i64: 512, 128>}, {transform_indices = @transform_1, window_bounds = array<i64: 128, 512>}, {pipeline_mode = #tpu.pipeline_mode<synchronous>, transform_indices = @transform_2, window_bounds = array<i64: 512, 1>}, {transform_indices = @transform_3, window_bounds = array<i64: 1, 512>}, {pipeline_mode = #tpu.pipeline_mode<synchronous>, transform_indices = @transform_4, window_bounds = array<i64: 1, 128>}]} {
    %c0_i32 = arith.constant 0 : i32
    %0 = arith.cmpi eq, %arg0, %c0_i32 : i32
    %1 = arith.extui %0 : i1 to i32
    %c0_i32_0 = arith.constant 0 : i32
    %2 = arith.cmpi ne, %1, %c0_i32_0 : i32
    scf.if %2 {
      %67 = tpu.iota {dimensions = array<i32: 1>} : vector<512x128xi32>
      %c0_i32_34 = arith.constant 0 : i32
      %68 = vector.broadcast %c0_i32_34 : i32 to vector<512x128xi32>
      %69 = arith.cmpi eq, %67, %68 : vector<512x128xi32>
      %cst_35 = arith.constant 0xFF800000 : f32
      %cst_36 = arith.constant 0.000000e+00 : f32
      %70 = vector.broadcast %cst_35 : f32 to vector<512x128xf32>
      %71 = vector.broadcast %cst_36 : f32 to vector<512x128xf32>
      %72 = arith.select %69, %70, %71 : vector<512x128xi1>, vector<512x128xf32>
      %c0_37 = arith.constant 0 : index
      %c0_38 = arith.constant 0 : index
      %73 = vector.load %arg6[%c0_37, %c0_38] : memref<512x128xf32, #tpu.memory_space<vmem>>, vector<512x128xf32>
      tpu.vector_store %arg6[%c0_37, %c0_38], %72 {strides = array<i32>} : memref<512x128xf32, #tpu.memory_space<vmem>>, vector<512x128xf32>,
      %cst_39 = arith.constant 0.000000e+00 : f32
      %74 = vector.broadcast %cst_39 : f32 to vector<1x1xf32>
      %c0_40 = arith.constant 0 : index
      %c0_41 = arith.constant 0 : index
      %75 = vector.load %arg7[%c0_40, %c0_41] : memref<1x1xf32, #tpu.memory_space<vmem>>, vector<1x1xf32>
      tpu.vector_store %arg7[%c0_40, %c0_41], %74 {strides = array<i32>} : memref<1x1xf32, #tpu.memory_space<vmem>>, vector<1x1xf32>,
    } else {
    }
    %c0 = arith.constant 0 : index
    %c0_1 = arith.constant 0 : index
    %3 = vector.load %arg1[%c0, %c0_1] : memref<512x128xf32, #tpu.memory_space<vmem>>, vector<512x128xf32>
    %c0_2 = arith.constant 0 : index
    %c0_3 = arith.constant 0 : index
    %4 = vector.load %arg2[%c0_2, %c0_3] : memref<128x512xf32, #tpu.memory_space<vmem>>, vector<128x512xf32>
    %cst = arith.constant dense<0.000000e+00> : vector<512x512xf32>
    %5 = tpu.matmul %3, %4, %cst {dimension_numbers = #tpu.dot_dimension_numbers<[1], [0], [0], [1], [0, 0, 1, 1], [], []>} : vector<512x128xf32>, vector<128x512xf32>, vector<512x512xf32> -> vector<512x512xf32>
    %cst_4 = arith.constant 14.2857141 : f32
    %6 = vector.broadcast %cst_4 : f32 to vector<512x512xf32>
    %7 = arith.mulf %5, %6 : vector<512x512xf32>
    %c0_5 = arith.constant 0 : index
    %c0_6 = arith.constant 0 : index
    %8 = vector.load %arg3[%c0_5, %c0_6] : memref<512x1xi32, #tpu.memory_space<vmem>>, vector<512x1xi32>
    %c0_7 = arith.constant 0 : index
    %c0_8 = arith.constant 0 : index
    %9 = vector.load %arg4[%c0_7, %c0_8] : memref<1x512xi32, #tpu.memory_space<vmem>>, vector<1x512xi32>
    %c0_9 = arith.constant 0 : index
    %c0_10 = arith.constant 0 : index
    %10 = vector.load %arg6[%c0_9, %c0_10] : memref<512x128xf32, #tpu.memory_space<vmem>>, vector<512x1xf32>
    %c0_11 = arith.constant 0 : index
    %c1 = arith.constant 1 : index
    %11 = vector.load %arg6[%c0_11, %c1] : memref<512x128xf32, #tpu.memory_space<vmem>>, vector<512x1xf32>
    %c0_12 = arith.constant 0 : index
    %c2 = arith.constant 2 : index
    %12 = vector.load %arg6[%c0_12, %c2] : memref<512x128xf32, #tpu.memory_space<vmem>>, vector<512x1xf32>
    %cst_13 = arith.constant dense<0xFF800000> : vector<512xf32>
    %13 = vector.multi_reduction <maximumf>, %7, %cst_13 [1] : vector<512x512xf32> to vector<512xf32>
    %14 = vector.shape_cast %13 : vector<512xf32> to vector<512x1xf32>
    %15 = arith.maximumf %10, %14 : vector<512x1xf32>
    %16 = vector.broadcast %15 : vector<512x1xf32> to vector<512x512xf32>
    %17 = arith.subf %7, %16 : vector<512x512xf32>
    %18 = math.exp %17 : vector<512x512xf32>
    %19 = arith.subf %10, %15 : vector<512x1xf32>
    %20 = math.exp %19 : vector<512x1xf32>
    %21 = arith.mulf %20, %11 : vector<512x1xf32>
    %cst_14 = arith.constant dense<0.000000e+00> : vector<512xf32>
    %22 = vector.multi_reduction <add>, %18, %cst_14 [1] : vector<512x512xf32> to vector<512xf32>
    %23 = vector.shape_cast %22 : vector<512xf32> to vector<512x1xf32>
    %24 = arith.addf %21, %23 : vector<512x1xf32>
    %c512_i32 = arith.constant 512 : i32
    %25 = arith.muli %arg0, %c512_i32 : i32
    %26 = tpu.iota {dimensions = array<i32: 1>} : vector<512x512xi32>
    %27 = vector.broadcast %25 : i32 to vector<512x512xi32>
    %28 = arith.addi %27, %26 : vector<512x512xi32>
    %29 = vector.broadcast %8 : vector<512x1xi32> to vector<512x512xi32>
    %30 = arith.cmpi eq, %28, %29 : vector<512x512xi32>
    %cst_15 = arith.constant 0.000000e+00 : f32
    %31 = vector.broadcast %cst_15 : f32 to vector<512x512xf32>
    %32 = arith.select %30, %7, %31 : vector<512x512xi1>, vector<512x512xf32>
    %cst_16 = arith.constant dense<0.000000e+00> : vector<512xf32>
    %33 = vector.multi_reduction <add>, %32, %cst_16 [1] : vector<512x512xf32> to vector<512xf32>
    %34 = vector.shape_cast %33 : vector<512xf32> to vector<512x1xf32>
    %35 = arith.addf %12, %34 : vector<512x1xf32>
    %c0_17 = arith.constant 0 : index
    %c0_18 = arith.constant 0 : index
    %36 = vector.load %arg6[%c0_17, %c0_18] : memref<512x128xf32, #tpu.memory_space<vmem>>, vector<512x1xf32>
    tpu.vector_store %arg6[%c0_17, %c0_18], %15 {strides = array<i32>} : memref<512x128xf32, #tpu.memory_space<vmem>>, vector<512x1xf32>,
    %c0_19 = arith.constant 0 : index
    %c1_20 = arith.constant 1 : index
    %37 = vector.load %arg6[%c0_19, %c1_20] : memref<512x128xf32, #tpu.memory_space<vmem>>, vector<512x1xf32>
    tpu.vector_store %arg6[%c0_19, %c1_20], %24 {strides = array<i32>} : memref<512x128xf32, #tpu.memory_space<vmem>>, vector<512x1xf32>,
    %c0_21 = arith.constant 0 : index
    %c2_22 = arith.constant 2 : index
    %38 = vector.load %arg6[%c0_21, %c2_22] : memref<512x128xf32, #tpu.memory_space<vmem>>, vector<512x1xf32>
    tpu.vector_store %arg6[%c0_21, %c2_22], %35 {strides = array<i32>} : memref<512x128xf32, #tpu.memory_space<vmem>>, vector<512x1xf32>,
    %cst_23 = arith.constant dense<0xFF800000> : vector<1xf32>
    %39 = vector.multi_reduction <maximumf>, %15, %cst_23 [0] : vector<512x1xf32> to vector<1xf32>
    %40 = vector.shape_cast %39 : vector<1xf32> to vector<1x1xf32>
    %41 = vector.broadcast %40 : vector<1x1xf32> to vector<512x1xf32>
    %42 = arith.subf %15, %41 : vector<512x1xf32>
    %43 = math.exp %42 : vector<512x1xf32>
    %44 = vector.broadcast %43 : vector<512x1xf32> to vector<512x512xf32>
    %45 = arith.mulf %18, %44 : vector<512x512xf32>
    %cst_24 = arith.constant dense<0.000000e+00> : vector<512xf32>
    %46 = vector.multi_reduction <add>, %45, %cst_24 [0] : vector<512x512xf32> to vector<512xf32>
    %47 = vector.shape_cast %46 : vector<512xf32> to vector<1x512xf32>
    %48 = math.log %47 : vector<1x512xf32>
    %49 = vector.broadcast %40 : vector<1x1xf32> to vector<1x512xf32>
    %50 = arith.addf %49, %48 : vector<1x512xf32>
    %51 = tpu.iota {dimensions = array<i32: 0>} : vector<512x512xi32>
    %52 = vector.broadcast %9 : vector<1x512xi32> to vector<512x512xi32>
    %53 = arith.cmpi eq, %51, %52 : vector<512x512xi32>
    %cst_25 = arith.constant 0.000000e+00 : f32
    %54 = vector.broadcast %cst_25 : f32 to vector<512x512xf32>
    %55 = arith.select %53, %7, %54 : vector<512x512xi1>, vector<512x512xf32>
    %cst_26 = arith.constant dense<0.000000e+00> : vector<512xf32>
    %56 = vector.multi_reduction <add>, %55, %cst_26 [0] : vector<512x512xf32> to vector<512xf32>
    %57 = vector.shape_cast %56 : vector<512xf32> to vector<1x512xf32>
    %c0_27 = arith.constant 0 : index
    %c0_28 = arith.constant 0 : index
    %58 = vector.load %arg7[%c0_27, %c0_28] : memref<1x1xf32, #tpu.memory_space<vmem>>, vector<1x1xf32>
    %59 = arith.subf %50, %57 : vector<1x512xf32>
    %cst_29 = arith.constant dense<0.000000e+00> : vector<1xf32>
    %60 = vector.multi_reduction <add>, %59, %cst_29 [1] : vector<1x512xf32> to vector<1xf32>
    %61 = vector.shape_cast %60 : vector<1xf32> to vector<1x1xf32>
    %62 = arith.addf %58, %61 : vector<1x1xf32>
    %c0_30 = arith.constant 0 : index
    %c0_31 = arith.constant 0 : index
    %63 = vector.load %arg7[%c0_30, %c0_31] : memref<1x1xf32, #tpu.memory_space<vmem>>, vector<1x1xf32>
    tpu.vector_store %arg7[%c0_30, %c0_31], %62 {strides = array<i32>} : memref<1x1xf32, #tpu.memory_space<vmem>>, vector<1x1xf32>,
    %c0_i32_32 = arith.constant 0 : i32
    %64 = arith.cmpi eq, %arg0, %c0_i32_32 : i32
    %65 = arith.extui %64 : i1 to i32
    %c0_i32_33 = arith.constant 0 : i32
    %66 = arith.cmpi ne, %65, %c0_i32_33 : i32
    scf.if %66 {
      %c0_34 = arith.constant 0 : index
      %c0_35 = arith.constant 0 : index
      %67 = vector.load %arg6[%c0_34, %c0_35] : memref<512x128xf32, #tpu.memory_space<vmem>>, vector<512x1xf32>
      %c0_36 = arith.constant 0 : index
      %c1_37 = arith.constant 1 : index
      %68 = vector.load %arg6[%c0_36, %c1_37] : memref<512x128xf32, #tpu.memory_space<vmem>>, vector<512x1xf32>
      %c0_38 = arith.constant 0 : index
      %c2_39 = arith.constant 2 : index
      %69 = vector.load %arg6[%c0_38, %c2_39] : memref<512x128xf32, #tpu.memory_space<vmem>>, vector<512x1xf32>
      %70 = math.log %68 : vector<512x1xf32>
      %71 = arith.addf %67, %70 : vector<512x1xf32>
      %72 = arith.subf %71, %69 : vector<512x1xf32>
      %cst_40 = arith.constant dense<0.000000e+00> : vector<1xf32>
      %73 = vector.multi_reduction <add>, %72, %cst_40 [0] : vector<512x1xf32> to vector<1xf32>
      %74 = vector.shape_cast %73 : vector<1xf32> to vector<1x1xf32>
      %cst_41 = arith.constant 5.120000e+02 : f32
      %75 = vector.broadcast %cst_41 : f32 to vector<1x1xf32>
      %76 = arith.divf %74, %75 : vector<1x1xf32>
      %c0_42 = arith.constant 0 : index
      %c0_43 = arith.constant 0 : index
      %77 = vector.load %arg7[%c0_42, %c0_43] : memref<1x1xf32, #tpu.memory_space<vmem>>, vector<1x1xf32>
      %cst_44 = arith.constant 5.120000e+02 : f32
      %78 = vector.broadcast %cst_44 : f32 to vector<1x1xf32>
      %79 = arith.divf %77, %78 : vector<1x1xf32>
      %80 = arith.addf %76, %79 : vector<1x1xf32>
      %cst_45 = arith.constant 5.000000e-01 : f32
      %81 = vector.broadcast %cst_45 : f32 to vector<1x1xf32>
      %82 = arith.mulf %81, %80 : vector<1x1xf32>
      %83 = tpu.iota {dimensions = array<i32: 1>} : vector<1x128xi32>
      %c0_i32_46 = arith.constant 0 : i32
      %84 = vector.broadcast %c0_i32_46 : i32 to vector<1x128xi32>
      %85 = arith.cmpi eq, %83, %84 : vector<1x128xi32>
      %cst_47 = arith.constant 0.000000e+00 : f32
      %86 = vector.shape_cast %82 : vector<1x1xf32> to vector<1x1xf32>
      %87 = vector.broadcast %86 : vector<1x1xf32> to vector<1x128xf32>
      %88 = vector.broadcast %cst_47 : f32 to vector<1x128xf32>
      %89 = arith.select %85, %87, %88 : vector<1x128xi1>, vector<1x128xf32>
      %c1_i32 = arith.constant 1 : i32
      %90 = vector.broadcast %c1_i32 : i32 to vector<1x128xi32>
      %91 = arith.cmpi eq, %83, %90 : vector<1x128xi32>
      %cst_48 = arith.constant 0.000000e+00 : f32
      %92 = vector.shape_cast %76 : vector<1x1xf32> to vector<1x1xf32>
      %93 = vector.broadcast %92 : vector<1x1xf32> to vector<1x128xf32>
      %94 = vector.broadcast %cst_48 : f32 to vector<1x128xf32>
      %95 = arith.select %91, %93, %94 : vector<1x128xi1>, vector<1x128xf32>
      %96 = arith.addf %89, %95 : vector<1x128xf32>
      %c2_i32 = arith.constant 2 : i32
      %97 = vector.broadcast %c2_i32 : i32 to vector<1x128xi32>
      %98 = arith.cmpi eq, %83, %97 : vector<1x128xi32>
      %cst_49 = arith.constant 0.000000e+00 : f32
      %99 = vector.shape_cast %79 : vector<1x1xf32> to vector<1x1xf32>
      %100 = vector.broadcast %99 : vector<1x1xf32> to vector<1x128xf32>
      %101 = vector.broadcast %cst_49 : f32 to vector<1x128xf32>
      %102 = arith.select %98, %100, %101 : vector<1x128xi1>, vector<1x128xf32>
      %103 = arith.addf %96, %102 : vector<1x128xf32>
      %c0_50 = arith.constant 0 : index
      %c0_51 = arith.constant 0 : index
      %104 = vector.load %arg5[%c0_50, %c0_51] : memref<1x128xf32, #tpu.memory_space<vmem>>, vector<1x128xf32>
      tpu.vector_store %arg5[%c0_50, %c0_51], %103 {strides = array<i32>} : memref<1x128xf32, #tpu.memory_space<vmem>>, vector<1x128xf32>,
    } else {
    }
    return
  }
  func.func @transform_0(%arg0: i32) -> (i32, i32) {
    %c0_i32 = arith.constant 0 : i32
    %c0_i32_0 = arith.constant 0 : i32
    %c0_i32_1 = arith.constant 0 : i32
    return %c0_i32, %c0_i32_0 : i32, i32
  }
  func.func @transform_1(%arg0: i32) -> (i32, i32) {
    %c0_i32 = arith.constant 0 : i32
    %c0_i32_0 = arith.constant 0 : i32
    return %c0_i32, %arg0 : i32, i32
  }
  func.func @transform_2(%arg0: i32) -> (i32, i32) {
    %c0_i32 = arith.constant 0 : i32
    %c0_i32_0 = arith.constant 0 : i32
    %c0_i32_1 = arith.constant 0 : i32
    return %c0_i32, %c0_i32_0 : i32, i32
  }
  func.func @transform_3(%arg0: i32) -> (i32, i32) {
    %c0_i32 = arith.constant 0 : i32
    %c0_i32_0 = arith.constant 0 : i32
    return %c0_i32, %arg0 : i32, i32
  }
  func.func @transform_4(%arg0: i32) -> (i32, i32) {
    %c0_i32 = arith.constant 0 : i32
    %c0_i32_0 = arith.constant 0 : i32
    %c0_i32_1 = arith.constant 0 : i32
    return %c0_i32, %c0_i32_0 : i32, i32
  }
}

</mosaic_0001>

<llo_original>
// kernel: tpu_custom_call.1
$region0: #{tpu_custom_call.1}
  #allocation0 [shape = 'u32[]', space=smem, size = 0x4, offset = 0x4, fixed_abs, tag = 'smem constant byte address 0x4 - core index']
  #allocation1 [shape = 'u32[144,128]{1,0:T(1,128)}', space=vmem, size = 0x12000, scoped, tag = 'internal scratch']
  #allocation2 [shape = 'f32[512,128]{1,0:T(8,128)}', space=vmem, size = 0x40000, scoped, tag = 'scratch operand']
  #allocation3 [shape = 'f32[1,1]{1,0:T(1,128)}', space=vmem, size = 0x200, scoped, tag = 'scratch operand']
  %s0 = inlined_call_operand.vmem [shape: f32[512,128], index: 0, kind: input, shape index: {}]
  %s1 = inlined_call_operand.hbm [shape: f32[128,512], index: 1, kind: input, shape index: {}]
  %s2 = inlined_call_operand.vmem [shape: s32[512,1], index: 2, kind: input, shape index: {}]
  %s3 = inlined_call_operand.vmem [shape: s32[1,512], index: 3, kind: input, shape index: {}]
  %s4 = inlined_call_operand.hbm [shape: f32[1,128], index: 4, kind: output, shape index: {}]
  %s5 = sld [smem:[#allocation0]]
  $region38: #{tpu_custom_call.1} parent=0
    _
  %s7 = ssub.s32 1, %s5
  %s8 = scalar_select 0, %s7, %s5
  $region1: #{tpu_custom_call.1} parent=0
    #allocation4 [shape = 'u8[262144]{0}', space=vmem, size = 0x40000, scoped, tag = 'input window, operand 1, single buffered']
    #allocation5 [shape = 's32[1]{0}', space=sflag, size = 0x4, scoped, tag = 'scoped memory for tpu_custom_call.1']
    #allocation6 [shape = 's32[1]{0}', space=sflag, size = 0x4, scoped, tag = 'scoped memory for tpu_custom_call.1']
    #allocation7 [shape = 'u8[512]{0}', space=vmem, size = 0x400, scoped, tag = 'output window, operand 0, single buffered']
    %9 = vsyncpa [#allocation5], 0
    %10 = vsyncpa [#allocation6], 0
    // Predicated region
    $region2: #{tpu_custom_call.1} parent=1 // pred_check
      _
    $region3: #{tpu_custom_call.1} parent=1 // pred_check_branch
      %12 = sbr.rel (0) target = $region5
    $region4: #{tpu_custom_call.1} parent=1 // pred_region
      _
    $region5: #{tpu_custom_call.1} parent=1 // pred_fallthru
      _
    // Predicated region
    $region6: #{tpu_custom_call.1} parent=1 // pred_check
      _
    $region7: #{tpu_custom_call.1} parent=1 // pred_check_branch
      %14 = sbr.rel (0) target = $region9
    $region8: #{tpu_custom_call.1} parent=1 // pred_region
      %s16 = ssub.s32 8192, 8192
      %17 = vsyncadd [#allocation5], %s16
      %s18 = sshll.u32 [#allocation4], 4
      %s19 = int_to_ptr.vmem [resolvable:$true] %s18
      %24 = dma.hbm_to_vmem [thread:$0]  %s1, 8192, %s19, [#allocation5], 512, 512, 32
    $region9: #{tpu_custom_call.1} parent=1 // pred_fallthru
      _
    // Predicated region
    $region10: #{tpu_custom_call.1} parent=1 // pred_check
      _
    $region11: #{tpu_custom_call.1} parent=1 // pred_check_branch
      %26 = sbr.rel (0) target = $region13
    $region12: #{tpu_custom_call.1} parent=1 // pred_region
      _
    $region13: #{tpu_custom_call.1} parent=1 // pred_fallthru
      _
    // Predicated region
    $region14: #{tpu_custom_call.1} parent=1 // pred_check
      _
    $region15: #{tpu_custom_call.1} parent=1 // pred_check_branch
      %28 = sbr.rel (0) target = $region17
    $region16: #{tpu_custom_call.1} parent=1 // pred_region
      _
    $region17: #{tpu_custom_call.1} parent=1 // pred_fallthru
      _
    // Predicated region
    $region18: #{tpu_custom_call.1} parent=1 // pred_check
      _
    $region19: #{tpu_custom_call.1} parent=1 // pred_check_branch
      %30 = sbr.rel (0) target = $region21
    $region20: #{tpu_custom_call.1} parent=1 // pred_region
      %31 = dma.done [#allocation5], 8192
    $region21: #{tpu_custom_call.1} parent=1 // pred_fallthru
      _
    %p32 = scmp.eq.s32.totalorder 0, 0
    // Predicated region
    $region22: #{tpu_custom_call.1} parent=1 // pred_check
      %p33 = pneg %p32
    $region23: #{tpu_custom_call.1} parent=1 // pred_check_branch
      %35 = sbr.rel (%p33) target = $region25
    $region24: #{tpu_custom_call.1} parent=1 // pred_region
      %v36 = vlaneseq
      %v37 = vand.u32 %v36, 127
      %vm38 = vcmp.eq.s32.totalorder %v37, 0
      %v39 = vsel %vm38, -inf, 0.0
      %40 = vst [vmem:[#allocation2] sm:$0xff] %v39
      %41 = vst [vmem:[#allocation2 + $0x8] sm:$0xff] %v39
      %42 = vst [vmem:[#allocation2 + $0x10] sm:$0xff] %v39
      %43 = vst [vmem:[#allocation2 + $0x18] sm:$0xff] %v39
      %44 = vst [vmem:[#allocation2 + $0x20] sm:$0xff] %v39
      %45 = vst [vmem:[#allocation2 + $0x28] sm:$0xff] %v39
      %46 = vst [vmem:[#allocation2 + $0x30] sm:$0xff] %v39
      %47 = vst [vmem:[#allocation2 + $0x38] sm:$0xff] %v39
      %48 = vst [vmem:[#allocation2 + $0x40] sm:$0xff] %v39
      %49 = vst [vmem:[#allocation2 + $0x48] sm:$0xff] %v39
      %50 = vst [vmem:[#allocation2 + $0x50] sm:$0xff] %v39
      %51 = vst [vmem:[#allocation2 + $0x58] sm:$0xff] %v39
      %52 = vst [vmem:[#allocation2 + $0x60] sm:$0xff] %v39
      %53 = vst [vmem:[#allocation2 + $0x68] sm:$0xff] %v39
      %54 = vst [vmem:[#allocation2 + $0x70] sm:$0xff] %v39
      %55 = vst [vmem:[#allocation2 + $0x78] sm:$0xff] %v39
      %56 = vst [vmem:[#allocation2 + $0x80] sm:$0xff] %v39
      %57 = vst [vmem:[#allocation2 + $0x88] sm:$0xff] %v39
      %58 = vst [vmem:[#allocation2 + $0x90] sm:$0xff] %v39
      %59 = vst [vmem:[#allocation2 + $0x98] sm:$0xff] %v39
      %60 = vst [vmem:[#allocation2 + $0xa0] sm:$0xff] %v39
      %61 = vst [vmem:[#allocation2 + $0xa8] sm:$0xff] %v39
      %62 = vst [vmem:[#allocation2 + $0xb0] sm:$0xff] %v39
      %63 = vst [vmem:[#allocation2 + $0xb8] sm:$0xff] %v39
      %64 = vst [vmem:[#allocation2 + $0xc0] sm:$0xff] %v39
      %65 = vst [vmem:[#allocation2 + $0xc8] sm:$0xff] %v39
      %66 = vst [vmem:[#allocation2 + $0xd0] sm:$0xff] %v39
      %67 = vst [vmem:[#allocation2 + $0xd8] sm:$0xff] %v39
      %68 = vst [vmem:[#allocation2 + $0xe0] sm:$0xff] %v39
      %69 = vst [vmem:[#allocation2 + $0xe8] sm:$0xff] %v39
      %70 = vst [vmem:[#allocation2 + $0xf0] sm:$0xff] %v39
      %71 = vst [vmem:[#allocation2 + $0xf8] sm:$0xff] %v39
      %72 = vst [vmem:[#allocation2 + $0x100] sm:$0xff] %v39
      %73 = vst [vmem:[#allocation2 + $0x108] sm:$0xff] %v39
      %74 = vst [vmem:[#allocation2 + $0x110] sm:$0xff] %v39
      %75 = vst [vmem:[#allocation2 + $0x118] sm:$0xff] %v39
      %76 = vst [vmem:[#allocation2 + $0x120] sm:$0xff] %v39
      %77 = vst [vmem:[#allocation2 + $0x128] sm:$0xff] %v39
      %78 = vst [vmem:[#allocation2 + $0x130] sm:$0xff] %v39
      %79 = vst [vmem:[#allocation2 + $0x138] sm:$0xff] %v39
      %80 = vst [vmem:[#allocation2 + $0x140] sm:$0xff] %v39
      %81 = vst [vmem:[#allocation2 + $0x148] sm:$0xff] %v39
      %82 = vst [vmem:[#allocation2 + $0x150] sm:$0xff] %v39
      %83 = vst [vmem:[#allocation2 + $0x158] sm:$0xff] %v39
      %84 = vst [vmem:[#allocation2 + $0x160] sm:$0xff] %v39
      %85 = vst [vmem:[#allocation2 + $0x168] sm:$0xff] %v39
      %86 = vst [vmem:[#allocation2 + $0x170] sm:$0xff] %v39
      %87 = vst [vmem:[#allocation2 + $0x178] sm:$0xff] %v39
      %88 = vst [vmem:[#allocation2 + $0x180] sm:$0xff] %v39
      %89 = vst [vmem:[#allocation2 + $0x188] sm:$0xff] %v39
      %90 = vst [vmem:[#allocation2 + $0x190] sm:$0xff] %v39
      %91 = vst [vmem:[#allocation2 + $0x198] sm:$0xff] %v39
      %92 = vst [vmem:[#allocation2 + $0x1a0] sm:$0xff] %v39
      %93 = vst [vmem:[#allocation2 + $0x1a8] sm:$0xff] %v39
      %94 = vst [vmem:[#allocation2 + $0x1b0] sm:$0xff] %v39
      %95 = vst [vmem:[#allocation2 + $0x1b8] sm:$0xff] %v39
      %96 = vst [vmem:[#allocation2 + $0x1c0] sm:$0xff] %v39
      %97 = vst [vmem:[#allocation2 + $0x1c8] sm:$0xff] %v39
      %98 = vst [vmem:[#allocation2 + $0x1d0] sm:$0xff] %v39
      %99 = vst [vmem:[#allocation2 + $0x1d8] sm:$0xff] %v39
      %100 = vst [vmem:[#allocation2 + $0x1e0] sm:$0xff] %v39
      %101 = vst [vmem:[#allocation2 + $0x1e8] sm:$0xff] %v39
      %102 = vst [vmem:[#allocation2 + $0x1f0] sm:$0xff] %v39
      %103 = vst [vmem:[#allocation2 + $0x1f8] sm:$0xff] %v39
      %vm104 = vcmask 0
      %105 = vst.msk [vmem:[#allocation3] sm:$0x1] %vm104, 0.0
    $region25: #{tpu_custom_call.1} parent=1 // pred_fallthru
      _
    %v106 = vld [vmem:[%s0] sm:$0xff]
    %v107 = vld [vmem:[%s0 + $0x8] sm:$0xff]
    %v108 = vld [vmem:[%s0 + $0x10] sm:$0xff]
    %v109 = vld [vmem:[%s0 + $0x18] sm:$0xff]
    %v110 = vld [vmem:[%s0 + $0x20] sm:$0xff]
    %v111 = vld [vmem:[%s0 + $0x28] sm:$0xff]
    %v112 = vld [vmem:[%s0 + $0x30] sm:$0xff]
    %v113 = vld [vmem:[%s0 + $0x38] sm:$0xff]
    %v114 = vld [vmem:[%s0 + $0x40] sm:$0xff]
    %v115 = vld [vmem:[%s0 + $0x48] sm:$0xff]
    %v116 = vld [vmem:[%s0 + $0x50] sm:$0xff]
    %v117 = vld [vmem:[%s0 + $0x58] sm:$0xff]
    %v118 = vld [vmem:[%s0 + $0x60] sm:$0xff]
    %v119 = vld [vmem:[%s0 + $0x68] sm:$0xff]
    %v120 = vld [vmem:[%s0 + $0x70] sm:$0xff]
    %v121 = vld [vmem:[%s0 + $0x78] sm:$0xff]
    %v122 = vld [vmem:[%s0 + $0x80] sm:$0xff]
    %v123 = vld [vmem:[%s0 + $0x88] sm:$0xff]
    %v124 = vld [vmem:[%s0 + $0x90] sm:$0xff]
    %v125 = vld [vmem:[%s0 + $0x98] sm:$0xff]
    %v126 = vld [vmem:[%s0 + $0xa0] sm:$0xff]
    %v127 = vld [vmem:[%s0 + $0xa8] sm:$0xff]
    %v128 = vld [vmem:[%s0 + $0xb0] sm:$0xff]
    %v129 = vld [vmem:[%s0 + $0xb8] sm:$0xff]
    %v130 = vld [vmem:[%s0 + $0xc0] sm:$0xff]
    %v131 = vld [vmem:[%s0 + $0xc8] sm:$0xff]
    %v132 = vld [vmem:[%s0 + $0xd0] sm:$0xff]
    %v133 = vld [vmem:[%s0 + $0xd8] sm:$0xff]
    %v134 = vld [vmem:[%s0 + $0xe0] sm:$0xff]
    %v135 = vld [vmem:[%s0 + $0xe8] sm:$0xff]
    %v136 = vld [vmem:[%s0 + $0xf0] sm:$0xff]
    %v137 = vld [vmem:[%s0 + $0xf8] sm:$0xff]
    %v138 = vld [vmem:[%s0 + $0x100] sm:$0xff]
    %v139 = vld [vmem:[%s0 + $0x108] sm:$0xff]
    %v140 = vld [vmem:[%s0 + $0x110] sm:$0xff]
    %v141 = vld [vmem:[%s0 + $0x118] sm:$0xff]
    %v142 = vld [vmem:[%s0 + $0x120] sm:$0xff]
    %v143 = vld [vmem:[%s0 + $0x128] sm:$0xff]
    %v144 = vld [vmem:[%s0 + $0x130] sm:$0xff]
    %v145 = vld [vmem:[%s0 + $0x138] sm:$0xff]
    %v146 = vld [vmem:[%s0 + $0x140] sm:$0xff]
    %v147 = vld [vmem:[%s0 + $0x148] sm:$0xff]
    %v148 = vld [vmem:[%s0 + $0x150] sm:$0xff]
    %v149 = vld [vmem:[%s0 + $0x158] sm:$0xff]
    %v150 = vld [vmem:[%s0 + $0x160] sm:$0xff]
    %v151 = vld [vmem:[%s0 + $0x168] sm:$0xff]
    %v152 = vld [vmem:[%s0 + $0x170] sm:$0xff]
    %v153 = vld [vmem:[%s0 + $0x178] sm:$0xff]
    %v154 = vld [vmem:[%s0 + $0x180] sm:$0xff]
    %v155 = vld [vmem:[%s0 + $0x188] sm:$0xff]
    %v156 = vld [vmem:[%s0 + $0x190] sm:$0xff]
    %v157 = vld [vmem:[%s0 + $0x198] sm:$0xff]
    %v158 = vld [vmem:[%s0 + $0x1a0] sm:$0xff]
    %v159 = vld [vmem:[%s0 + $0x1a8] sm:$0xff]
    %v160 = vld [vmem:[%s0 + $0x1b0] sm:$0xff]
    %v161 = vld [vmem:[%s0 + $0x1b8] sm:$0xff]
    %v162 = vld [vmem:[%s0 + $0x1c0] sm:$0xff]
    %v163 = vld [vmem:[%s0 + $0x1c8] sm:$0xff]
    %v164 = vld [vmem:[%s0 + $0x1d0] sm:$0xff]
    %v165 = vld [vmem:[%s0 + $0x1d8] sm:$0xff]
    %v166 = vld [vmem:[%s0 + $0x1e0] sm:$0xff]
    %v167 = vld [vmem:[%s0 + $0x1e8] sm:$0xff]
    %v168 = vld [vmem:[%s0 + $0x1f0] sm:$0xff]
    %v169 = vld [vmem:[%s0 + $0x1f8] sm:$0xff]
    %v170 = vld [vmem:[#allocation4] sm:$0xff]
    %v171 = vld [vmem:[#allocation4 + $0x8] sm:$0xff]
    %v172 = vld [vmem:[#allocation4 + $0x10] sm:$0xff]
    %v173 = vld [vmem:[#allocation4 + $0x18] sm:$0xff]
    %v174 = vld [vmem:[#allocation4 + $0x20] sm:$0xff]
    %v175 = vld [vmem:[#allocation4 + $0x28] sm:$0xff]
    %v176 = vld [vmem:[#allocation4 + $0x30] sm:$0xff]
    %v177 = vld [vmem:[#allocation4 + $0x38] sm:$0xff]
    %v178 = vld [vmem:[#allocation4 + $0x40] sm:$0xff]
    %v179 = vld [vmem:[#allocation4 + $0x48] sm:$0xff]
    %v180 = vld [vmem:[#allocation4 + $0x50] sm:$0xff]
    %v181 = vld [vmem:[#allocation4 + $0x58] sm:$0xff]
    %v182 = vld [vmem:[#allocation4 + $0x60] sm:$0xff]
    %v183 = vld [vmem:[#allocation4 + $0x68] sm:$0xff]
    %v184 = vld [vmem:[#allocation4 + $0x70] sm:$0xff]
    %v185 = vld [vmem:[#allocation4 + $0x78] sm:$0xff]
    %v186 = vld [vmem:[#allocation4 + $0x80] sm:$0xff]
    %v187 = vld [vmem:[#allocation4 + $0x88] sm:$0xff]
    %v188 = vld [vmem:[#allocation4 + $0x90] sm:$0xff]
    %v189 = vld [vmem:[#allocation4 + $0x98] sm:$0xff]
    %v190 = vld [vmem:[#allocation4 + $0xa0] sm:$0xff]
    %v191 = vld [vmem:[#allocation4 + $0xa8] sm:$0xff]
    %v192 = vld [vmem:[#allocation4 + $0xb0] sm:$0xff]
    %v193 = vld [vmem:[#allocation4 + $0xb8] sm:$0xff]
    %v194 = vld [vmem:[#allocation4 + $0xc0] sm:$0xff]
    %v195 = vld [vmem:[#allocation4 + $0xc8] sm:$0xff]
    %v196 = vld [vmem:[#allocation4 + $0xd0] sm:$0xff]
    %v197 = vld [vmem:[#allocation4 + $0xd8] sm:$0xff]
    %v198 = vld [vmem:[#allocation4 + $0xe0] sm:$0xff]
    %v199 = vld [vmem:[#allocation4 + $0xe8] sm:$0xff]
    %v200 = vld [vmem:[#allocation4 + $0xf0] sm:$0xff]
    %v201 = vld [vmem:[#allocation4 + $0xf8] sm:$0xff]
    %v202 = vld [vmem:[#allocation4 + $0x100] sm:$0xff]
    %v203 = vld [vmem:[#allocation4 + $0x108] sm:$0xff]
    %v204 = vld [vmem:[#allocation4 + $0x110] sm:$0xff]
    %v205 = vld [vmem:[#allocation4 + $0x118] sm:$0xff]
    %v206 = vld [vmem:[#allocation4 + $0x120] sm:$0xff]
    %v207 = vld [vmem:[#allocation4 + $0x128] sm:$0xff]
    %v208 = vld [vmem:[#allocation4 + $0x130] sm:$0xff]
    %v209 = vld [vmem:[#allocation4 + $0x138] sm:$0xff]
    %v210 = vld [vmem:[#allocation4 + $0x140] sm:$0xff]
    %v211 = vld [vmem:[#allocation4 + $0x148] sm:$0xff]
    %v212 = vld [vmem:[#allocation4 + $0x150] sm:$0xff]
    %v213 = vld [vmem:[#allocation4 + $0x158] sm:$0xff]
    %v214 = vld [vmem:[#allocation4 + $0x160] sm:$0xff]
    %v215 = vld [vmem:[#allocation4 + $0x168] sm:$0xff]
    %v216 = vld [vmem:[#allocation4 + $0x170] sm:$0xff]
    %v217 = vld [vmem:[#allocation4 + $0x178] sm:$0xff]
    %v218 = vld [vmem:[#allocation4 + $0x180] sm:$0xff]
    %v219 = vld [vmem:[#allocation4 + $0x188] sm:$0xff]
    %v220 = vld [vmem:[#allocation4 + $0x190] sm:$0xff]
    %v221 = vld [vmem:[#allocation4 + $0x198] sm:$0xff]
    %v222 = vld [vmem:[#allocation4 + $0x1a0] sm:$0xff]
    %v223 = vld [vmem:[#allocation4 + $0x1a8] sm:$0xff]
    %v224 = vld [vmem:[#allocation4 + $0x1b0] sm:$0xff]
    %v225 = vld [vmem:[#allocation4 + $0x1b8] sm:$0xff]
    %v226 = vld [vmem:[#allocation4 + $0x1c0] sm:$0xff]
    %v227 = vld [vmem:[#allocation4 + $0x1c8] sm:$0xff]
    %v228 = vld [vmem:[#allocation4 + $0x1d0] sm:$0xff]
    %v229 = vld [vmem:[#allocation4 + $0x1d8] sm:$0xff]
    %v230 = vld [vmem:[#allocation4 + $0x1e0] sm:$0xff]
    %v231 = vld [vmem:[#allocation4 + $0x1e8] sm:$0xff]
    %v232 = vld [vmem:[#allocation4 + $0x1f0] sm:$0xff]
    %v233 = vld [vmem:[#allocation4 + $0x1f8] sm:$0xff]
    %234 = vmatprep.subr.mxu0 %v171
    %235 = vmatpush1.msra.mxu0 %v170
    %236 = vmatprep.subr.mxu0 %v175
    %237 = vmatpush1.msra.mxu0 %v174
    %238 = vmatprep.subr.mxu0 %v179
    %239 = vmatpush1.msra.mxu0 %v178
    %240 = vmatprep.subr.mxu0 %v183
    %241 = vmatpush1.msra.mxu0 %v182
    %242 = vmatprep.subr.mxu0 %v187
    %243 = vmatpush1.msra.mxu0 %v186
    %244 = vmatprep.subr.mxu0 %v191
    %245 = vmatpush1.msra.mxu0 %v190
    %246 = vmatprep.subr.mxu0 %v195
    %247 = vmatpush1.msra.mxu0 %v194
    %248 = vmatprep.subr.mxu0 %v199
    %249 = vmatpush1.msra.mxu0 %v198
    %250 = vmatprep.subr.mxu0 %v203
    %251 = vmatpush1.msra.mxu0 %v202
    %252 = vmatprep.subr.mxu0 %v207
    %253 = vmatpush1.msra.mxu0 %v206
    %254 = vmatprep.subr.mxu0 %v211
    %255 = vmatpush1.msra.mxu0 %v210
    %256 = vmatprep.subr.mxu0 %v215
    %257 = vmatpush1.msra.mxu0 %v214
    %258 = vmatprep.subr.mxu0 %v219
    %259 = vmatpush1.msra.mxu0 %v218
    %260 = vmatprep.subr.mxu0 %v223
    %261 = vmatpush1.msra.mxu0 %v222
    %262 = vmatprep.subr.mxu0 %v227
    %263 = vmatpush1.msra.mxu0 %v226
    %264 = vmatprep.subr.mxu0 %v231
    %265 = vmatpush1.msra.mxu0 %v230
    %266 = vmatprep.subr.mxu0 0.0
    %267 = vmatpush1.msra.mxu0 0.0
    %268 = vmatprep.subr.mxu0 0.0
    %269 = vmatpush1.msra.mxu0 0.0
    %270 = vmatprep.subr.mxu0 0.0
    %271 = vmatpush1.msra.mxu0 0.0
    %272 = vmatprep.subr.mxu0 0.0
    %273 = vmatpush1.msra.mxu0 0.0
    %274 = vmatprep.subr.mxu0 0.0
    %275 = vmatpush1.msra.mxu0 0.0
    %276 = vmatprep.subr.mxu0 0.0
    %277 = vmatpush1.msra.mxu0 0.0
    %278 = vmatprep.subr.mxu0 0.0
    %279 = vmatpush1.msra.mxu0 0.0
    %280 = vmatprep.subr.mxu0 0.0
    %281 = vmatpush1.msra.mxu0 0.0
    %282 = vmatprep.subr.mxu0 0.0
    %283 = vmatpush1.msra.mxu0 0.0
    %284 = vmatprep.subr.mxu0 0.0
    %285 = vmatpush1.msra.mxu0 0.0
    %286 = vmatprep.subr.mxu0 0.0
    %287 = vmatpush1.msra.mxu0 0.0
    %288 = vmatprep.subr.mxu0 0.0
    %289 = vmatpush1.msra.mxu0 0.0
    %290 = vmatprep.subr.mxu0 0.0
    %291 = vmatpush1.msra.mxu0 0.0
    %292 = vmatprep.subr.mxu0 0.0
    %293 = vmatpush1.msra.mxu0 0.0
    %294 = vmatprep.subr.mxu0 0.0
    %295 = vmatpush1.msra.mxu0 0.0
    %296 = vmatprep.subr.mxu0 0.0
    %297 = vmatpush1.msra.mxu0 0.0
    %298 = vmatprep.mubr.f32.mxu0 0.0
    %299 = vmatmul.mubr.f32.gmra.mrb[0].mxu0 %v106
    %v300 = vpop.f32.mrb[0].mxu0
    %v301 = vadd.f32 0.0, %v300
    %v302 = vpop.f32.mrb[0].mxu0
    %v303 = vadd.f32 0.0, %v302
    %304 = vmatprep.mubr.f32.mxu0 0.0
    %305 = vmatmul.mubr.f32.gmra.mrb[0].mxu0 %v107
    %v306 = vpop.f32.mrb[0].mxu0
    %v307 = vadd.f32 0.0, %v306
    %v308 = vpop.f32.mrb[0].mxu0
    %v309 = vadd.f32 0.0, %v308
    %310 = vmatprep.mubr.f32.mxu0 0.0
    %311 = vmatmul.mubr.f32.gmra.mrb[0].mxu0 %v108
    %v312 = vpop.f32.mrb[0].mxu0
    %v313 = vadd.f32 0.0, %v312
    %v314 = vpop.f32.mrb[0].mxu0
    %v315 = vadd.f32 0.0, %v314
    %316 = vmatprep.mubr.f32.mxu0 0.0
    %317 = vmatmul.mubr.f32.gmra.mrb[0].mxu0 %v109
    %v318 = vpop.f32.mrb[0].mxu0
    %v319 = vadd.f32 0.0, %v318
    %v320 = vpop.f32.mrb[0].mxu0
    %v321 = vadd.f32 0.0, %v320
    %322 = vmatprep.mubr.f32.mxu0 0.0
    %323 = vmatmul.mubr.f32.gmra.mrb[0].mxu0 %v110
    %v324 = vpop.f32.mrb[0].mxu0
    %v325 = vadd.f32 0.0, %v324
    %v326 = vpop.f32.mrb[0].mxu0
    %v327 = vadd.f32 0.0, %v326
    %328 = vmatprep.mubr.f32.mxu0 0.0
    %329 = vmatmul.mubr.f32.gmra.mrb[0].mxu0 %v111
    %v330 = vpop.f32.mrb[0].mxu0
    %v331 = vadd.f32 0.0, %v330
    %v332 = vpop.f32.mrb[0].mxu0
    %v333 = vadd.f32 0.0, %v332
    %334 = vmatprep.mubr.f32.mxu0 0.0
    %335 = vmatmul.mubr.f32.gmra.mrb[0].mxu0 %v112
    %v336 = vpop.f32.mrb[0].mxu0
    %v337 = vadd.f32 0.0, %v336
    %v338 = vpop.f32.mrb[0].mxu0
    %v339 = vadd.f32 0.0, %v338
    %340 = vmatprep.mubr.f32.mxu0 0.0
    %341 = vmatmul.mubr.f32.gmra.mrb[0].mxu0 %v113
    %v342 = vpop.f32.mrb[0].mxu0
    %v343 = vadd.f32 0.0, %v342
    %v344 = vpop.f32.mrb[0].mxu0
    %v345 = vadd.f32 0.0, %v344
    %346 = vmatprep.mubr.f32.mxu0 0.0
    %347 = vmatmul.mubr.f32.gmra.mrb[0].mxu0 %v114
    %v348 = vpop.f32.mrb[0].mxu0
    %v349 = vadd.f32 0.0, %v348
    %v350 = vpop.f32.mrb[0].mxu0
    %v351 = vadd.f32 0.0, %v350
    %352 = vmatprep.mubr.f32.mxu0 0.0
    %353 = vmatmul.mubr.f32.gmra.mrb[0].mxu0 %v115
    %v354 = vpop.f32.mrb[0].mxu0
    %v355 = vadd.f32 0.0, %v354
    %v356 = vpop.f32.mrb[0].mxu0
    %v357 = vadd.f32 0.0, %v356
    %358 = vmatprep.mubr.f32.mxu0 0.0
    %359 = vmatmul.mubr.f32.gmra.mrb[0].mxu0 %v116
    %v360 = vpop.f32.mrb[0].mxu0
    %v361 = vadd.f32 0.0, %v360
    %v362 = vpop.f32.mrb[0].mxu0
    %v363 = vadd.f32 0.0, %v362
    %364 = vmatprep.mubr.f32.mxu0 0.0
    %365 = vmatmul.mubr.f32.gmra.mrb[0].mxu0 %v117
    %v366 = vpop.f32.mrb[0].mxu0
    %v367 = vadd.f32 0.0, %v366
    %v368 = vpop.f32.mrb[0].mxu0
    %v369 = vadd.f32 0.0, %v368
    %370 = vmatprep.mubr.f32.mxu0 0.0
    %371 = vmatmul.mubr.f32.gmra.mrb[0].mxu0 %v118
    %v372 = vpop.f32.mrb[0].mxu0
    %v373 = vadd.f32 0.0, %v372
    %v374 = vpop.f32.mrb[0].mxu0
    %v375 = vadd.f32 0.0, %v374
    %376 = vmatprep.mubr.f32.mxu0 0.0
    %377 = vmatmul.mubr.f32.gmra.mrb[0].mxu0 %v119
    %v378 = vpop.f32.mrb[0].mxu0
    %v379 = vadd.f32 0.0, %v378
    %v380 = vpop.f32.mrb[0].mxu0
    %v381 = vadd.f32 0.0, %v380
    %382 = vmatprep.mubr.f32.mxu0 0.0
    %383 = vmatmul.mubr.f32.gmra.mrb[0].mxu0 %v120
    %v384 = vpop.f32.mrb[0].mxu0
    %v385 = vadd.f32 0.0, %v384
    %v386 = vpop.f32.mrb[0].mxu0
    %v387 = vadd.f32 0.0, %v386
    %388 = vmatprep.mubr.f32.mxu0 0.0
    %389 = vmatmul.mubr.f32.gmra.mrb[0].mxu0 %v121
    %v390 = vpop.f32.mrb[0].mxu0
    %v391 = vadd.f32 0.0, %v390
    %v392 = vpop.f32.mrb[0].mxu0
    %v393 = vadd.f32 0.0, %v392
    %394 = vmatprep.mubr.f32.mxu0 0.0
    %395 = vmatmul.mubr.f32.gmra.mrb[0].mxu0 %v122
    %v396 = vpop.f32.mrb[0].mxu0
    %v397 = vadd.f32 0.0, %v396
    %v398 = vpop.f32.mrb[0].mxu0
    %v399 = vadd.f32 0.0, %v398
    %400 = vmatprep.mubr.f32.mxu0 0.0
    %401 = vmatmul.mubr.f32.gmra.mrb[0].mxu0 %v123
    %v402 = vpop.f32.mrb[0].mxu0
    %v403 = vadd.f32 0.0, %v402
    %v404 = vpop.f32.mrb[0].mxu0
    %v405 = vadd.f32 0.0, %v404
    %406 = vmatprep.mubr.f32.mxu0 0.0
    %407 = vmatmul.mubr.f32.gmra.mrb[0].mxu0 %v124
    %v408 = vpop.f32.mrb[0].mxu0
    %v409 = vadd.f32 0.0, %v408
    %v410 = vpop.f32.mrb[0].mxu0
    %v411 = vadd.f32 0.0, %v410
    %412 = vmatprep.mubr.f32.mxu0 0.0
    %413 = vmatmul.mubr.f32.gmra.mrb[0].mxu0 %v125
    %v414 = vpop.f32.mrb[0].mxu0
    %v415 = vadd.f32 0.0, %v414
    %v416 = vpop.f32.mrb[0].mxu0
    %v417 = vadd.f32 0.0, %v416
    %418 = vmatprep.mubr.f32.mxu0 0.0
    %419 = vmatmul.mubr.f32.gmra.mrb[0].mxu0 %v126
    %v420 = vpop.f32.mrb[0].mxu0
    %v421 = vadd.f32 0.0, %v420
    %v422 = vpop.f32.mrb[0].mxu0
    %v423 = vadd.f32 0.0, %v422
    %424 = vmatprep.mubr.f32.mxu0 0.0
    %425 = vmatmul.mubr.f32.gmra.mrb[0].mxu0 %v127
    %v426 = vpop.f32.mrb[0].mxu0
    %v427 = vadd.f32 0.0, %v426
    %v428 = vpop.f32.mrb[0].mxu0
    %v429 = vadd.f32 0.0, %v428
    %430 = vmatprep.mubr.f32.mxu0 0.0
    %431 = vmatmul.mubr.f32.gmra.mrb[0].mxu0 %v128
    %v432 = vpop.f32.mrb[0].mxu0
    %v433 = vadd.f32 0.0, %v432
    %v434 = vpop.f32.mrb[0].mxu0
    %v435 = vadd.f32 0.0, %v434
    %436 = vmatprep.mubr.f32.mxu0 0.0
    %437 = vmatmul.mubr.f32.gmra.mrb[0].mxu0 %v129
    %v438 = vpop.f32.mrb[0].mxu0
    %v439 = vadd.f32 0.0, %v438
    %v440 = vpop.f32.mrb[0].mxu0
    %v441 = vadd.f32 0.0, %v440
    %442 = vmatprep.mubr.f32.mxu0 0.0
    %443 = vmatmul.mubr.f32.gmra.mrb[0].mxu0 %v130
    %v444 = vpop.f32.mrb[0].mxu0
    %v445 = vadd.f32 0.0, %v444
    %v446 = vpop.f32.mrb[0].mxu0
    %v447 = vadd.f32 0.0, %v446
    %448 = vmatprep.mubr.f32.mxu0 0.0
    %449 = vmatmul.mubr.f32.gmra.mrb[0].mxu0 %v131
    %v450 = vpop.f32.mrb[0].mxu0
    %v451 = vadd.f32 0.0, %v450
    %v452 = vpop.f32.mrb[0].mxu0
    %v453 = vadd.f32 0.0, %v452
    %454 = vmatprep.mubr.f32.mxu0 0.0
    %455 = vmatmul.mubr.f32.gmra.mrb[0].mxu0 %v132
    %v456 = vpop.f32.mrb[0].mxu0
    %v457 = vadd.f32 0.0, %v456
    %v458 = vpop.f32.mrb[0].mxu0
    %v459 = vadd.f32 0.0, %v458
    %460 = vmatprep.mubr.f32.mxu0 0.0
    %461 = vmatmul.mubr.f32.gmra.mrb[0].mxu0 %v133
    %v462 = vpop.f32.mrb[0].mxu0
    %v463 = vadd.f32 0.0, %v462
    %v464 = vpop.f32.mrb[0].mxu0
    %v465 = vadd.f32 0.0, %v464
    %466 = vmatprep.mubr.f32.mxu0 0.0
    %467 = vmatmul.mubr.f32.gmra.mrb[0].mxu0 %v134
    %v468 = vpop.f32.mrb[0].mxu0
    %v469 = vadd.f32 0.0, %v468
    %v470 = vpop.f32.mrb[0].mxu0
    %v471 = vadd.f32 0.0, %v470
    %472 = vmatprep.mubr.f32.mxu0 0.0
    %473 = vmatmul.mubr.f32.gmra.mrb[0].mxu0 %v135
    %v474 = vpop.f32.mrb[0].mxu0
    %v475 = vadd.f32 0.0, %v474
    %v476 = vpop.f32.mrb[0].mxu0
    %v477 = vadd.f32 0.0, %v476
    %478 = vmatprep.mubr.f32.mxu0 0.0
    %479 = vmatmul.mubr.f32.gmra.mrb[0].mxu0 %v136
    %v480 = vpop.f32.mrb[0].mxu0
    %v481 = vadd.f32 0.0, %v480
    %v482 = vpop.f32.mrb[0].mxu0
    %v483 = vadd.f32 0.0, %v482
    %484 = vmatprep.mubr.f32.mxu0 0.0
    %485 = vmatmul.mubr.f32.gmra.mrb[0].mxu0 %v137
    %v486 = vpop.f32.mrb[0].mxu0
    %v487 = vadd.f32 0.0, %v486
    %v488 = vpop.f32.mrb[0].mxu0
    %v489 = vadd.f32 0.0, %v488
    %490 = vmatprep.mubr.f32.mxu0 0.0
    %491 = vmatmul.mubr.f32.gmra.mrb[0].mxu0 %v138
    %v492 = vpop.f32.mrb[0].mxu0
    %v493 = vadd.f32 0.0, %v492
    %v494 = vpop.f32.mrb[0].mxu0
    %v495 = vadd.f32 0.0, %v494
    %496 = vmatprep.mubr.f32.mxu0 0.0
    %497 = vmatmul.mubr.f32.gmra.mrb[0].mxu0 %v139
    %v498 = vpop.f32.mrb[0].mxu0
    %v499 = vadd.f32 0.0, %v498
    %v500 = vpop.f32.mrb[0].mxu0
    %v501 = vadd.f32 0.0, %v500
    %502 = vmatprep.mubr.f32.mxu0 0.0
    %503 = vmatmul.mubr.f32.gmra.mrb[0].mxu0 %v140
    %v504 = vpop.f32.mrb[0].mxu0
    %v505 = vadd.f32 0.0, %v504
    %v506 = vpop.f32.mrb[0].mxu0
    %v507 = vadd.f32 0.0, %v506
    %508 = vmatprep.mubr.f32.mxu0 0.0
    %509 = vmatmul.mubr.f32.gmra.mrb[0].mxu0 %v141
    %v510 = vpop.f32.mrb[0].mxu0
    %v511 = vadd.f32 0.0, %v510
    %v512 = vpop.f32.mrb[0].mxu0
    %v513 = vadd.f32 0.0, %v512
    %514 = vmatprep.mubr.f32.mxu0 0.0
    %515 = vmatmul.mubr.f32.gmra.mrb[0].mxu0 %v142
    %v516 = vpop.f32.mrb[0].mxu0
    %v517 = vadd.f32 0.0, %v516
    %v518 = vpop.f32.mrb[0].mxu0
    %v519 = vadd.f32 0.0, %v518
    %520 = vmatprep.mubr.f32.mxu0 0.0
    %521 = vmatmul.mubr.f32.gmra.mrb[0].mxu0 %v143
    %v522 = vpop.f32.mrb[0].mxu0
    %v523 = vadd.f32 0.0, %v522
    %v524 = vpop.f32.mrb[0].mxu0
    %v525 = vadd.f32 0.0, %v524
    %526 = vmatprep.mubr.f32.mxu0 0.0
    %527 = vmatmul.mubr.f32.gmra.mrb[0].mxu0 %v144
    %v528 = vpop.f32.mrb[0].mxu0
    %v529 = vadd.f32 0.0, %v528
    %v530 = vpop.f32.mrb[0].mxu0
    %v531 = vadd.f32 0.0, %v530
    %532 = vmatprep.mubr.f32.mxu0 0.0
    %533 = vmatmul.mubr.f32.gmra.mrb[0].mxu0 %v145
    %v534 = vpop.f32.mrb[0].mxu0
    %v535 = vadd.f32 0.0, %v534
    %v536 = vpop.f32.mrb[0].mxu0
    %v537 = vadd.f32 0.0, %v536
    %538 = vmatprep.mubr.f32.mxu0 0.0
    %539 = vmatmul.mubr.f32.gmra.mrb[0].mxu0 %v146
    %v540 = vpop.f32.mrb[0].mxu0
    %v541 = vadd.f32 0.0, %v540
    %v542 = vpop.f32.mrb[0].mxu0
    %v543 = vadd.f32 0.0, %v542
    %544 = vmatprep.mubr.f32.mxu0 0.0
    %545 = vmatmul.mubr.f32.gmra.mrb[0].mxu0 %v147
    %v546 = vpop.f32.mrb[0].mxu0
    %v547 = vadd.f32 0.0, %v546
    %v548 = vpop.f32.mrb[0].mxu0
    %v549 = vadd.f32 0.0, %v548
    %550 = vmatprep.mubr.f32.mxu0 0.0
    %551 = vmatmul.mubr.f32.gmra.mrb[0].mxu0 %v148
    %v552 = vpop.f32.mrb[0].mxu0
    %v553 = vadd.f32 0.0, %v552
    %v554 = vpop.f32.mrb[0].mxu0
    %v555 = vadd.f32 0.0, %v554
    %556 = vmatprep.mubr.f32.mxu0 0.0
    %557 = vmatmul.mubr.f32.gmra.mrb[0].mxu0 %v149
    %v558 = vpop.f32.mrb[0].mxu0
    %v559 = vadd.f32 0.0, %v558
    %v560 = vpop.f32.mrb[0].mxu0
    %v561 = vadd.f32 0.0, %v560
    %562 = vmatprep.mubr.f32.mxu0 0.0
    %563 = vmatmul.mubr.f32.gmra.mrb[0].mxu0 %v150
    %v564 = vpop.f32.mrb[0].mxu0
    %v565 = vadd.f32 0.0, %v564
    %v566 = vpop.f32.mrb[0].mxu0
    %v567 = vadd.f32 0.0, %v566
    %568 = vmatprep.mubr.f32.mxu0 0.0
    %569 = vmatmul.mubr.f32.gmra.mrb[0].mxu0 %v151
    %v570 = vpop.f32.mrb[0].mxu0
    %v571 = vadd.f32 0.0, %v570
    %v572 = vpop.f32.mrb[0].mxu0
    %v573 = vadd.f32 0.0, %v572
    %574 = vmatprep.mubr.f32.mxu0 0.0
    %575 = vmatmul.mubr.f32.gmra.mrb[0].mxu0 %v152
    %v576 = vpop.f32.mrb[0].mxu0
    %v577 = vadd.f32 0.0, %v576
    %v578 = vpop.f32.mrb[0].mxu0
    %v579 = vadd.f32 0.0, %v578
    %580 = vmatprep.mubr.f32.mxu0 0.0
    %581 = vmatmul.mubr.f32.gmra.mrb[0].mxu0 %v153
    %v582 = vpop.f32.mrb[0].mxu0
    %v583 = vadd.f32 0.0, %v582
    %v584 = vpop.f32.mrb[0].mxu0
    %v585 = vadd.f32 0.0, %v584
    %586 = vmatprep.mubr.f32.mxu0 0.0
    %587 = vmatmul.mubr.f32.gmra.mrb[0].mxu0 %v154
    %v588 = vpop.f32.mrb[0].mxu0
    %v589 = vadd.f32 0.0, %v588
    %v590 = vpop.f32.mrb[0].mxu0
    %v591 = vadd.f32 0.0, %v590
    %592 = vmatprep.mubr.f32.mxu0 0.0
    %593 = vmatmul.mubr.f32.gmra.mrb[0].mxu0 %v155
    %v594 = vpop.f32.mrb[0].mxu0
    %v595 = vadd.f32 0.0, %v594
    %v596 = vpop.f32.mrb[0].mxu0
    %v597 = vadd.f32 0.0, %v596
    %598 = vmatprep.mubr.f32.mxu0 0.0
    %599 = vmatmul.mubr.f32.gmra.mrb[0].mxu0 %v156
    %v600 = vpop.f32.mrb[0].mxu0
    %v601 = vadd.f32 0.0, %v600
    %v602 = vpop.f32.mrb[0].mxu0
    %v603 = vadd.f32 0.0, %v602
    %604 = vmatprep.mubr.f32.mxu0 0.0
    %605 = vmatmul.mubr.f32.gmra.mrb[0].mxu0 %v157
    %v606 = vpop.f32.mrb[0].mxu0
    %v607 = vadd.f32 0.0, %v606
    %v608 = vpop.f32.mrb[0].mxu0
    %v609 = vadd.f32 0.0, %v608
    %610 = vmatprep.mubr.f32.mxu0 0.0
    %611 = vmatmul.mubr.f32.gmra.mrb[0].mxu0 %v158
    %v612 = vpop.f32.mrb[0].mxu0
    %v613 = vadd.f32 0.0, %v612
    %v614 = vpop.f32.mrb[0].mxu0
    %v615 = vadd.f32 0.0, %v614
    %616 = vmatprep.mubr.f32.mxu0 0.0
    %617 = vmatmul.mubr.f32.gmra.mrb[0].mxu0 %v159
    %v618 = vpop.f32.mrb[0].mxu0
    %v619 = vadd.f32 0.0, %v618
    %v620 = vpop.f32.mrb[0].mxu0
    %v621 = vadd.f32 0.0, %v620
    %622 = vmatprep.mubr.f32.mxu0 0.0
    %623 = vmatmul.mubr.f32.gmra.mrb[0].mxu0 %v160
    %v624 = vpop.f32.mrb[0].mxu0
    %v625 = vadd.f32 0.0, %v624
    %v626 = vpop.f32.mrb[0].mxu0
    %v627 = vadd.f32 0.0, %v626
    %628 = vmatprep.mubr.f32.mxu0 0.0
    %629 = vmatmul.mubr.f32.gmra.mrb[0].mxu0 %v161
    %v630 = vpop.f32.mrb[0].mxu0
    %v631 = vadd.f32 0.0, %v630
    %v632 = vpop.f32.mrb[0].mxu0
    %v633 = vadd.f32 0.0, %v632
    %634 = vmatprep.mubr.f32.mxu0 0.0
    %635 = vmatmul.mubr.f32.gmra.mrb[0].mxu0 %v162
    %v636 = vpop.f32.mrb[0].mxu0
    %v637 = vadd.f32 0.0, %v636
    %v638 = vpop.f32.mrb[0].mxu0
    %v639 = vadd.f32 0.0, %v638
    %640 = vmatprep.mubr.f32.mxu0 0.0
    %641 = vmatmul.mubr.f32.gmra.mrb[0].mxu0 %v163
    %v642 = vpop.f32.mrb[0].mxu0
    %v643 = vadd.f32 0.0, %v642
    %v644 = vpop.f32.mrb[0].mxu0
    %v645 = vadd.f32 0.0, %v644
    %646 = vmatprep.mubr.f32.mxu0 0.0
    %647 = vmatmul.mubr.f32.gmra.mrb[0].mxu0 %v164
    %v648 = vpop.f32.mrb[0].mxu0
    %v649 = vadd.f32 0.0, %v648
    %v650 = vpop.f32.mrb[0].mxu0
    %v651 = vadd.f32 0.0, %v650
    %652 = vmatprep.mubr.f32.mxu0 0.0
    %653 = vmatmul.mubr.f32.gmra.mrb[0].mxu0 %v165
    %v654 = vpop.f32.mrb[0].mxu0
    %v655 = vadd.f32 0.0, %v654
    %v656 = vpop.f32.mrb[0].mxu0
    %v657 = vadd.f32 0.0, %v656
    %658 = vmatprep.mubr.f32.mxu0 0.0
    %659 = vmatmul.mubr.f32.gmra.mrb[0].mxu0 %v166
    %v660 = vpop.f32.mrb[0].mxu0
    %v661 = vadd.f32 0.0, %v660
    %v662 = vpop.f32.mrb[0].mxu0
    %v663 = vadd.f32 0.0, %v662
    %664 = vmatprep.mubr.f32.mxu0 0.0
    %665 = vmatmul.mubr.f32.gmra.mrb[0].mxu0 %v167
    %v666 = vpop.f32.mrb[0].mxu0
    %v667 = vadd.f32 0.0, %v666
    %v668 = vpop.f32.mrb[0].mxu0
    %v669 = vadd.f32 0.0, %v668
    %670 = vmatprep.mubr.f32.mxu0 0.0
    %671 = vmatmul.mubr.f32.gmra.mrb[0].mxu0 %v168
    %v672 = vpop.f32.mrb[0].mxu0
    %v673 = vadd.f32 0.0, %v672
    %v674 = vpop.f32.mrb[0].mxu0
    %v675 = vadd.f32 0.0, %v674
    %676 = vmatprep.mubr.f32.mxu0 0.0
    %677 = vmatmul.mubr.f32.gmra.mrb[0].mxu0 %v169
    %v678 = vpop.f32.mrb[0].mxu0
    %v679 = vadd.f32 0.0, %v678
    %v680 = vpop.f32.mrb[0].mxu0
    %v681 = vadd.f32 0.0, %v680
    %682 = vdwg.mxu0
    %683 = vmatprep.subr.mxu0 %v173
    %684 = vmatpush1.msra.mxu0 %v172
    %685 = vmatprep.subr.mxu0 %v177
    %686 = vmatpush1.msra.mxu0 %v176
    %687 = vmatprep.subr.mxu0 %v181
    %688 = vmatpush1.msra.mxu0 %v180
    %689 = vmatprep.subr.mxu0 %v185
    %690 = vmatpush1.msra.mxu0 %v184
    %691 = vmatprep.subr.mxu0 %v189
    %692 = vmatpush1.msra.mxu0 %v188
    %693 = vmatprep.subr.mxu0 %v193
    %694 = vmatpush1.msra.mxu0 %v192
    %695 = vmatprep.subr.mxu0 %v197
    %696 = vmatpush1.msra.mxu0 %v196
    %697 = vmatprep.subr.mxu0 %v201
    %698 = vmatpush1.msra.mxu0 %v200
    %699 = vmatprep.subr.mxu0 %v205
    %700 = vmatpush1.msra.mxu0 %v204
    %701 = vmatprep.subr.mxu0 %v209
    %702 = vmatpush1.msra.mxu0 %v208
    %703 = vmatprep.subr.mxu0 %v213
    %704 = vmatpush1.msra.mxu0 %v212
    %705 = vmatprep.subr.mxu0 %v217
    %706 = vmatpush1.msra.mxu0 %v216
    %707 = vmatprep.subr.mxu0 %v221
    %708 = vmatpush1.msra.mxu0 %v220
    %709 = vmatprep.subr.mxu0 %v225
    %710 = vmatpush1.msra.mxu0 %v224
    %711 = vmatprep.subr.mxu0 %v229
    %712 = vmatpush1.msra.mxu0 %v228
    %713 = vmatprep.subr.mxu0 %v233
    %714 = vmatpush1.msra.mxu0 %v232
    %715 = vmatprep.subr.mxu0 0.0
    %716 = vmatpush1.msra.mxu0 0.0
    %717 = vmatprep.subr.mxu0 0.0
    %718 = vmatpush1.msra.mxu0 0.0
    %719 = vmatprep.subr.mxu0 0.0
    %720 = vmatpush1.msra.mxu0 0.0
    %721 = vmatprep.subr.mxu0 0.0
    %722 = vmatpush1.msra.mxu0 0.0
    %723 = vmatprep.subr.mxu0 0.0
    %724 = vmatpush1.msra.mxu0 0.0
    %725 = vmatprep.subr.mxu0 0.0
    %726 = vmatpush1.msra.mxu0 0.0
    %727 = vmatprep.subr.mxu0 0.0
    %728 = vmatpush1.msra.mxu0 0.0
    %729 = vmatprep.subr.mxu0 0.0
    %730 = vmatpush1.msra.mxu0 0.0
    %731 = vmatprep.subr.mxu0 0.0
    %732 = vmatpush1.msra.mxu0 0.0
    %733 = vmatprep.subr.mxu0 0.0
    %734 = vmatpush1.msra.mxu0 0.0
    %735 = vmatprep.subr.mxu0 0.0
    %736 = vmatpush1.msra.mxu0 0.0
    %737 = vmatprep.subr.mxu0 0.0
    %738 = vmatpush1.msra.mxu0 0.0
    %739 = vmatprep.subr.mxu0 0.0
    %740 = vmatpush1.msra.mxu0 0.0
    %741 = vmatprep.subr.mxu0 0.0
    %742 = vmatpush1.msra.mxu0 0.0
    %743 = vmatprep.subr.mxu0 0.0
    %744 = vmatpush1.msra.mxu0 0.0
    %745 = vmatprep.subr.mxu0 0.0
    %746 = vmatpush1.msra.mxu0 0.0
    %747 = vmatprep.mubr.f32.mxu0 0.0
    %748 = vmatmul.mubr.f32.gmra.mrb[0].mxu0 %v106
    %v749 = vpop.f32.mrb[0].mxu0
    %v750 = vadd.f32 0.0, %v749
    %v751 = vpop.f32.mrb[0].mxu0
    %v752 = vadd.f32 0.0, %v751
    %753 = vmatprep.mubr.f32.mxu0 0.0
    %754 = vmatmul.mubr.f32.gmra.mrb[0].mxu0 %v107
    %v755 = vpop.f32.mrb[0].mxu0
    %v756 = vadd.f32 0.0, %v755
    %v757 = vpop.f32.mrb[0].mxu0
    %v758 = vadd.f32 0.0, %v757
    %759 = vmatprep.mubr.f32.mxu0 0.0
    %760 = vmatmul.mubr.f32.gmra.mrb[0].mxu0 %v108
    %v761 = vpop.f32.mrb[0].mxu0
    %v762 = vadd.f32 0.0, %v761
    %v763 = vpop.f32.mrb[0].mxu0
    %v764 = vadd.f32 0.0, %v763
    %765 = vmatprep.mubr.f32.mxu0 0.0
    %766 = vmatmul.mubr.f32.gmra.mrb[0].mxu0 %v109
    %v767 = vpop.f32.mrb[0].mxu0
    %v768 = vadd.f32 0.0, %v767
    %v769 = vpop.f32.mrb[0].mxu0
    %v770 = vadd.f32 0.0, %v769
    %771 = vmatprep.mubr.f32.mxu0 0.0
    %772 = vmatmul.mubr.f32.gmra.mrb[0].mxu0 %v110
    %v773 = vpop.f32.mrb[0].mxu0
    %v774 = vadd.f32 0.0, %v773
    %v775 = vpop.f32.mrb[0].mxu0
    %v776 = vadd.f32 0.0, %v775
    %777 = vmatprep.mubr.f32.mxu0 0.0
    %778 = vmatmul.mubr.f32.gmra.mrb[0].mxu0 %v111
    %v779 = vpop.f32.mrb[0].mxu0
    %v780 = vadd.f32 0.0, %v779
    %v781 = vpop.f32.mrb[0].mxu0
    %v782 = vadd.f32 0.0, %v781
    %783 = vmatprep.mubr.f32.mxu0 0.0
    %784 = vmatmul.mubr.f32.gmra.mrb[0].mxu0 %v112
    %v785 = vpop.f32.mrb[0].mxu0
    %v786 = vadd.f32 0.0, %v785
    %v787 = vpop.f32.mrb[0].mxu0
    %v788 = vadd.f32 0.0, %v787
    %789 = vmatprep.mubr.f32.mxu0 0.0
    %790 = vmatmul.mubr.f32.gmra.mrb[0].mxu0 %v113
    %v791 = vpop.f32.mrb[0].mxu0
    %v792 = vadd.f32 0.0, %v791
    %v793 = vpop.f32.mrb[0].mxu0
    %v794 = vadd.f32 0.0, %v793
    %795 = vmatprep.mubr.f32.mxu0 0.0
    %796 = vmatmul.mubr.f32.gmra.mrb[0].mxu0 %v114
    %v797 = vpop.f32.mrb[0].mxu0
    %v798 = vadd.f32 0.0, %v797
    %v799 = vpop.f32.mrb[0].mxu0
    %v800 = vadd.f32 0.0, %v799
    %801 = vmatprep.mubr.f32.mxu0 0.0
    %802 = vmatmul.mubr.f32.gmra.mrb[0].mxu0 %v115
    %v803 = vpop.f32.mrb[0].mxu0
    %v804 = vadd.f32 0.0, %v803
    %v805 = vpop.f32.mrb[0].mxu0
    %v806 = vadd.f32 0.0, %v805
    %807 = vmatprep.mubr.f32.mxu0 0.0
    %808 = vmatmul.mubr.f32.gmra.mrb[0].mxu0 %v116
    %v809 = vpop.f32.mrb[0].mxu0
    %v810 = vadd.f32 0.0, %v809
    %v811 = vpop.f32.mrb[0].mxu0
    %v812 = vadd.f32 0.0, %v811
    %813 = vmatprep.mubr.f32.mxu0 0.0
    %814 = vmatmul.mubr.f32.gmra.mrb[0].mxu0 %v117
    %v815 = vpop.f32.mrb[0].mxu0
    %v816 = vadd.f32 0.0, %v815
    %v817 = vpop.f32.mrb[0].mxu0
    %v818 = vadd.f32 0.0, %v817
    %819 = vmatprep.mubr.f32.mxu0 0.0
    %820 = vmatmul.mubr.f32.gmra.mrb[0].mxu0 %v118
    %v821 = vpop.f32.mrb[0].mxu0
    %v822 = vadd.f32 0.0, %v821
    %v823 = vpop.f32.mrb[0].mxu0
    %v824 = vadd.f32 0.0, %v823
    %825 = vmatprep.mubr.f32.mxu0 0.0
    %826 = vmatmul.mubr.f32.gmra.mrb[0].mxu0 %v119
    %v827 = vpop.f32.mrb[0].mxu0
    %v828 = vadd.f32 0.0, %v827
    %v829 = vpop.f32.mrb[0].mxu0
    %v830 = vadd.f32 0.0, %v829
    %831 = vmatprep.mubr.f32.mxu0 0.0
    %832 = vmatmul.mubr.f32.gmra.mrb[0].mxu0 %v120
    %v833 = vpop.f32.mrb[0].mxu0
    %v834 = vadd.f32 0.0, %v833
    %v835 = vpop.f32.mrb[0].mxu0
    %v836 = vadd.f32 0.0, %v835
    %837 = vmatprep.mubr.f32.mxu0 0.0
    %838 = vmatmul.mubr.f32.gmra.mrb[0].mxu0 %v121
    %v839 = vpop.f32.mrb[0].mxu0
    %v840 = vadd.f32 0.0, %v839
    %v841 = vpop.f32.mrb[0].mxu0
    %v842 = vadd.f32 0.0, %v841
    %843 = vmatprep.mubr.f32.mxu0 0.0
    %844 = vmatmul.mubr.f32.gmra.mrb[0].mxu0 %v122
    %v845 = vpop.f32.mrb[0].mxu0
    %v846 = vadd.f32 0.0, %v845
    %v847 = vpop.f32.mrb[0].mxu0
    %v848 = vadd.f32 0.0, %v847
    %849 = vmatprep.mubr.f32.mxu0 0.0
    %850 = vmatmul.mubr.f32.gmra.mrb[0].mxu0 %v123
    %v851 = vpop.f32.mrb[0].mxu0
    %v852 = vadd.f32 0.0, %v851
    %v853 = vpop.f32.mrb[0].mxu0
    %v854 = vadd.f32 0.0, %v853
    %855 = vmatprep.mubr.f32.mxu0 0.0
    %856 = vmatmul.mubr.f32.gmra.mrb[0].mxu0 %v124
    %v857 = vpop.f32.mrb[0].mxu0
    %v858 = vadd.f32 0.0, %v857
    %v859 = vpop.f32.mrb[0].mxu0
    %v860 = vadd.f32 0.0, %v859
    %861 = vmatprep.mubr.f32.mxu0 0.0
    %862 = vmatmul.mubr.f32.gmra.mrb[0].mxu0 %v125
    %v863 = vpop.f32.mrb[0].mxu0
    %v864 = vadd.f32 0.0, %v863
    %v865 = vpop.f32.mrb[0].mxu0
    %v866 = vadd.f32 0.0, %v865
    %867 = vmatprep.mubr.f32.mxu0 0.0
    %868 = vmatmul.mubr.f32.gmra.mrb[0].mxu0 %v126
    %v869 = vpop.f32.mrb[0].mxu0
    %v870 = vadd.f32 0.0, %v869
    %v871 = vpop.f32.mrb[0].mxu0
    %v872 = vadd.f32 0.0, %v871
    %873 = vmatprep.mubr.f32.mxu0 0.0
    %874 = vmatmul.mubr.f32.gmra.mrb[0].mxu0 %v127
    %v875 = vpop.f32.mrb[0].mxu0
    %v876 = vadd.f32 0.0, %v875
    %v877 = vpop.f32.mrb[0].mxu0
    %v878 = vadd.f32 0.0, %v877
    %879 = vmatprep.mubr.f32.mxu0 0.0
    %880 = vmatmul.mubr.f32.gmra.mrb[0].mxu0 %v128
    %v881 = vpop.f32.mrb[0].mxu0
    %v882 = vadd.f32 0.0, %v881
    %v883 = vpop.f32.mrb[0].mxu0
    %v884 = vadd.f32 0.0, %v883
    %885 = vmatprep.mubr.f32.mxu0 0.0
    %886 = vmatmul.mubr.f32.gmra.mrb[0].mxu0 %v129
    %v887 = vpop.f32.mrb[0].mxu0
    %v888 = vadd.f32 0.0, %v887
    %v889 = vpop.f32.mrb[0].mxu0
    %v890 = vadd.f32 0.0, %v889
    %891 = vmatprep.mubr.f32.mxu0 0.0
    %892 = vmatmul.mubr.f32.gmra.mrb[0].mxu0 %v130
    %v893 = vpop.f32.mrb[0].mxu0
    %v894 = vadd.f32 0.0, %v893
    %v895 = vpop.f32.mrb[0].mxu0
    %v896 = vadd.f32 0.0, %v895
    %897 = vmatprep.mubr.f32.mxu0 0.0
    %898 = vmatmul.mubr.f32.gmra.mrb[0].mxu0 %v131
    %v899 = vpop.f32.mrb[0].mxu0
    %v900 = vadd.f32 0.0, %v899
    %v901 = vpop.f32.mrb[0].mxu0
    %v902 = vadd.f32 0.0, %v901
    %903 = vmatprep.mubr.f32.mxu0 0.0
    %904 = vmatmul.mubr.f32.gmra.mrb[0].mxu0 %v132
    %v905 = vpop.f32.mrb[0].mxu0
    %v906 = vadd.f32 0.0, %v905
    %v907 = vpop.f32.mrb[0].mxu0
    %v908 = vadd.f32 0.0, %v907
    %909 = vmatprep.mubr.f32.mxu0 0.0
    %910 = vmatmul.mubr.f32.gmra.mrb[0].mxu0 %v133
    %v911 = vpop.f32.mrb[0].mxu0
    %v912 = vadd.f32 0.0, %v911
    %v913 = vpop.f32.mrb[0].mxu0
    %v914 = vadd.f32 0.0, %v913
    %915 = vmatprep.mubr.f32.mxu0 0.0
    %916 = vmatmul.mubr.f32.gmra.mrb[0].mxu0 %v134
    %v917 = vpop.f32.mrb[0].mxu0
    %v918 = vadd.f32 0.0, %v917
    %v919 = vpop.f32.mrb[0].mxu0
    %v920 = vadd.f32 0.0, %v919
    %921 = vmatprep.mubr.f32.mxu0 0.0
    %922 = vmatmul.mubr.f32.gmra.mrb[0].mxu0 %v135
    %v923 = vpop.f32.mrb[0].mxu0
    %v924 = vadd.f32 0.0, %v923
    %v925 = vpop.f32.mrb[0].mxu0
    %v926 = vadd.f32 0.0, %v925
    %927 = vmatprep.mubr.f32.mxu0 0.0
    %928 = vmatmul.mubr.f32.gmra.mrb[0].mxu0 %v136
    %v929 = vpop.f32.mrb[0].mxu0
    %v930 = vadd.f32 0.0, %v929
    %v931 = vpop.f32.mrb[0].mxu0
    %v932 = vadd.f32 0.0, %v931
    %933 = vmatprep.mubr.f32.mxu0 0.0
    %934 = vmatmul.mubr.f32.gmra.mrb[0].mxu0 %v137
    %v935 = vpop.f32.mrb[0].mxu0
    %v936 = vadd.f32 0.0, %v935
    %v937 = vpop.f32.mrb[0].mxu0
    %v938 = vadd.f32 0.0, %v937
    %939 = vmatprep.mubr.f32.mxu0 0.0
    %940 = vmatmul.mubr.f32.gmra.mrb[0].mxu0 %v138
    %v941 = vpop.f32.mrb[0].mxu0
    %v942 = vadd.f32 0.0, %v941
    %v943 = vpop.f32.mrb[0].mxu0
    %v944 = vadd.f32 0.0, %v943
    %945 = vmatprep.mubr.f32.mxu0 0.0
    %946 = vmatmul.mubr.f32.gmra.mrb[0].mxu0 %v139
    %v947 = vpop.f32.mrb[0].mxu0
    %v948 = vadd.f32 0.0, %v947
    %v949 = vpop.f32.mrb[0].mxu0
    %v950 = vadd.f32 0.0, %v949
    %951 = vmatprep.mubr.f32.mxu0 0.0
    %952 = vmatmul.mubr.f32.gmra.mrb[0].mxu0 %v140
    %v953 = vpop.f32.mrb[0].mxu0
    %v954 = vadd.f32 0.0, %v953
    %v955 = vpop.f32.mrb[0].mxu0
    %v956 = vadd.f32 0.0, %v955
    %957 = vmatprep.mubr.f32.mxu0 0.0
    %958 = vmatmul.mubr.f32.gmra.mrb[0].mxu0 %v141
    %v959 = vpop.f32.mrb[0].mxu0
    %v960 = vadd.f32 0.0, %v959
    %v961 = vpop.f32.mrb[0].mxu0
    %v962 = vadd.f32 0.0, %v961
    %963 = vmatprep.mubr.f32.mxu0 0.0
    %964 = vmatmul.mubr.f32.gmra.mrb[0].mxu0 %v142
    %v965 = vpop.f32.mrb[0].mxu0
    %v966 = vadd.f32 0.0, %v965
    %v967 = vpop.f32.mrb[0].mxu0
    %v968 = vadd.f32 0.0, %v967
    %969 = vmatprep.mubr.f32.mxu0 0.0
    %970 = vmatmul.mubr.f32.gmra.mrb[0].mxu0 %v143
    %v971 = vpop.f32.mrb[0].mxu0
    %v972 = vadd.f32 0.0, %v971
    %v973 = vpop.f32.mrb[0].mxu0
    %v974 = vadd.f32 0.0, %v973
    %975 = vmatprep.mubr.f32.mxu0 0.0
    %976 = vmatmul.mubr.f32.gmra.mrb[0].mxu0 %v144
    %v977 = vpop.f32.mrb[0].mxu0
    %v978 = vadd.f32 0.0, %v977
    %v979 = vpop.f32.mrb[0].mxu0
    %v980 = vadd.f32 0.0, %v979
    %981 = vmatprep.mubr.f32.mxu0 0.0
    %982 = vmatmul.mubr.f32.gmra.mrb[0].mxu0 %v145
    %v983 = vpop.f32.mrb[0].mxu0
    %v984 = vadd.f32 0.0, %v983
    %v985 = vpop.f32.mrb[0].mxu0
    %v986 = vadd.f32 0.0, %v985
    %987 = vmatprep.mubr.f32.mxu0 0.0
    %988 = vmatmul.mubr.f32.gmra.mrb[0].mxu0 %v146
    %v989 = vpop.f32.mrb[0].mxu0
    %v990 = vadd.f32 0.0, %v989
    %v991 = vpop.f32.mrb[0].mxu0
    %v992 = vadd.f32 0.0, %v991
    %993 = vmatprep.mubr.f32.mxu0 0.0
    %994 = vmatmul.mubr.f32.gmra.mrb[0].mxu0 %v147
    %v995 = vpop.f32.mrb[0].mxu0
    %v996 = vadd.f32 0.0, %v995
    %v997 = vpop.f32.mrb[0].mxu0
    %v998 = vadd.f32 0.0, %v997
    %999 = vmatprep.mubr.f32.mxu0 0.0
    %1000 = vmatmul.mubr.f32.gmra.mrb[0].mxu0 %v148
    %v1001 = vpop.f32.mrb[0].mxu0
    %v1002 = vadd.f32 0.0, %v1001
    %v1003 = vpop.f32.mrb[0].mxu0
    %v1004 = vadd.f32 0.0, %v1003
    %1005 = vmatprep.mubr.f32.mxu0 0.0
    %1006 = vmatmul.mubr.f32.gmra.mrb[0].mxu0 %v149
    %v1007 = vpop.f32.mrb[0].mxu0
    %v1008 = vadd.f32 0.0, %v1007
    %v1009 = vpop.f32.mrb[0].mxu0
    %v1010 = vadd.f32 0.0, %v1009
    %1011 = vmatprep.mubr.f32.mxu0 0.0
    %1012 = vmatmul.mubr.f32.gmra.mrb[0].mxu0 %v150
    %v1013 = vpop.f32.mrb[0].mxu0
    %v1014 = vadd.f32 0.0, %v1013
    %v1015 = vpop.f32.mrb[0].mxu0
    %v1016 = vadd.f32 0.0, %v1015
    %1017 = vmatprep.mubr.f32.mxu0 0.0
    %1018 = vmatmul.mubr.f32.gmra.mrb[0].mxu0 %v151
    %v1019 = vpop.f32.mrb[0].mxu0
    %v1020 = vadd.f32 0.0, %v1019
    %v1021 = vpop.f32.mrb[0].mxu0
    %v1022 = vadd.f32 0.0, %v1021
    %1023 = vmatprep.mubr.f32.mxu0 0.0
    %1024 = vmatmul.mubr.f32.gmra.mrb[0].mxu0 %v152
    %v1025 = vpop.f32.mrb[0].mxu0
    %v1026 = vadd.f32 0.0, %v1025
    %v1027 = vpop.f32.mrb[0].mxu0
    %v1028 = vadd.f32 0.0, %v1027
    %1029 = vmatprep.mubr.f32.mxu0 0.0
    %1030 = vmatmul.mubr.f32.gmra.mrb[0].mxu0 %v153
    %v1031 = vpop.f32.mrb[0].mxu0
    %v1032 = vadd.f32 0.0, %v1031
    %v1033 = vpop.f32.mrb[0].mxu0
    %v1034 = vadd.f32 0.0, %v1033
    %1035 = vmatprep.mubr.f32.mxu0 0.0
    %1036 = vmatmul.mubr.f32.gmra.mrb[0].mxu0 %v154
    %v1037 = vpop.f32.mrb[0].mxu0
    %v1038 = vadd.f32 0.0, %v1037
    %v1039 = vpop.f32.mrb[0].mxu0
    %v1040 = vadd.f32 0.0, %v1039
    %1041 = vmatprep.mubr.f32.mxu0 0.0
    %1042 = vmatmul.mubr.f32.gmra.mrb[0].mxu0 %v155
    %v1043 = vpop.f32.mrb[0].mxu0
    %v1044 = vadd.f32 0.0, %v1043
    %v1045 = vpop.f32.mrb[0].mxu0
    %v1046 = vadd.f32 0.0, %v1045
    %1047 = vmatprep.mubr.f32.mxu0 0.0
    %1048 = vmatmul.mubr.f32.gmra.mrb[0].mxu0 %v156
    %v1049 = vpop.f32.mrb[0].mxu0
    %v1050 = vadd.f32 0.0, %v1049
    %v1051 = vpop.f32.mrb[0].mxu0
    %v1052 = vadd.f32 0.0, %v1051
    %1053 = vmatprep.mubr.f32.mxu0 0.0
    %1054 = vmatmul.mubr.f32.gmra.mrb[0].mxu0 %v157
    %v1055 = vpop.f32.mrb[0].mxu0
    %v1056 = vadd.f32 0.0, %v1055
    %v1057 = vpop.f32.mrb[0].mxu0
    %v1058 = vadd.f32 0.0, %v1057
    %1059 = vmatprep.mubr.f32.mxu0 0.0
    %1060 = vmatmul.mubr.f32.gmra.mrb[0].mxu0 %v158
    %v1061 = vpop.f32.mrb[0].mxu0
    %v1062 = vadd.f32 0.0, %v1061
    %v1063 = vpop.f32.mrb[0].mxu0
    %v1064 = vadd.f32 0.0, %v1063
    %1065 = vmatprep.mubr.f32.mxu0 0.0
    %1066 = vmatmul.mubr.f32.gmra.mrb[0].mxu0 %v159
    %v1067 = vpop.f32.mrb[0].mxu0
    %v1068 = vadd.f32 0.0, %v1067
    %v1069 = vpop.f32.mrb[0].mxu0
    %v1070 = vadd.f32 0.0, %v1069
    %1071 = vmatprep.mubr.f32.mxu0 0.0
    %1072 = vmatmul.mubr.f32.gmra.mrb[0].mxu0 %v160
    %v1073 = vpop.f32.mrb[0].mxu0
    %v1074 = vadd.f32 0.0, %v1073
    %v1075 = vpop.f32.mrb[0].mxu0
    %v1076 = vadd.f32 0.0, %v1075
    %1077 = vmatprep.mubr.f32.mxu0 0.0
    %1078 = vmatmul.mubr.f32.gmra.mrb[0].mxu0 %v161
    %v1079 = vpop.f32.mrb[0].mxu0
    %v1080 = vadd.f32 0.0, %v1079
    %v1081 = vpop.f32.mrb[0].mxu0
    %v1082 = vadd.f32 0.0, %v1081
    %1083 = vmatprep.mubr.f32.mxu0 0.0
    %1084 = vmatmul.mubr.f32.gmra.mrb[0].mxu0 %v162
    %v1085 = vpop.f32.mrb[0].mxu0
    %v1086 = vadd.f32 0.0, %v1085
    %v1087 = vpop.f32.mrb[0].mxu0
    %v1088 = vadd.f32 0.0, %v1087
    %1089 = vmatprep.mubr.f32.mxu0 0.0
    %1090 = vmatmul.mubr.f32.gmra.mrb[0].mxu0 %v163
    %v1091 = vpop.f32.mrb[0].mxu0
    %v1092 = vadd.f32 0.0, %v1091
    %v1093 = vpop.f32.mrb[0].mxu0
    %v1094 = vadd.f32 0.0, %v1093
    %1095 = vmatprep.mubr.f32.mxu0 0.0
    %1096 = vmatmul.mubr.f32.gmra.mrb[0].mxu0 %v164
    %v1097 = vpop.f32.mrb[0].mxu0
    %v1098 = vadd.f32 0.0, %v1097
    %v1099 = vpop.f32.mrb[0].mxu0
    %v1100 = vadd.f32 0.0, %v1099
    %1101 = vmatprep.mubr.f32.mxu0 0.0
    %1102 = vmatmul.mubr.f32.gmra.mrb[0].mxu0 %v165
    %v1103 = vpop.f32.mrb[0].mxu0
    %v1104 = vadd.f32 0.0, %v1103
    %v1105 = vpop.f32.mrb[0].mxu0
    %v1106 = vadd.f32 0.0, %v1105
    %1107 = vmatprep.mubr.f32.mxu0 0.0
    %1108 = vmatmul.mubr.f32.gmra.mrb[0].mxu0 %v166
    %v1109 = vpop.f32.mrb[0].mxu0
    %v1110 = vadd.f32 0.0, %v1109
    %v1111 = vpop.f32.mrb[0].mxu0
    %v1112 = vadd.f32 0.0, %v1111
    %1113 = vmatprep.mubr.f32.mxu0 0.0
    %1114 = vmatmul.mubr.f32.gmra.mrb[0].mxu0 %v167
    %v1115 = vpop.f32.mrb[0].mxu0
    %v1116 = vadd.f32 0.0, %v1115
    %v1117 = vpop.f32.mrb[0].mxu0
    %v1118 = vadd.f32 0.0, %v1117
    %1119 = vmatprep.mubr.f32.mxu0 0.0
    %1120 = vmatmul.mubr.f32.gmra.mrb[0].mxu0 %v168
    %v1121 = vpop.f32.mrb[0].mxu0
    %v1122 = vadd.f32 0.0, %v1121
    %v1123 = vpop.f32.mrb[0].mxu0
    %v1124 = vadd.f32 0.0, %v1123
    %1125 = vmatprep.mubr.f32.mxu0 0.0
    %1126 = vmatmul.mubr.f32.gmra.mrb[0].mxu0 %v169
    %v1127 = vpop.f32.mrb[0].mxu0
    %v1128 = vadd.f32 0.0, %v1127
    %v1129 = vpop.f32.mrb[0].mxu0
    %v1130 = vadd.f32 0.0, %v1129
    %1131 = vdwg.mxu0
    %v1132 = vmul.f32 %v301, 14.285714
    %v1133 = vmul.f32 %v303, 14.285714
    %v1134 = vmul.f32 %v750, 14.285714
    %v1135 = vmul.f32 %v752, 14.285714
    %v1136 = vmul.f32 %v307, 14.285714
    %v1137 = vmul.f32 %v309, 14.285714
    %v1138 = vmul.f32 %v756, 14.285714
    %v1139 = vmul.f32 %v758, 14.285714
    %v1140 = vmul.f32 %v313, 14.285714
    %v1141 = vmul.f32 %v315, 14.285714
    %v1142 = vmul.f32 %v762, 14.285714
    %v1143 = vmul.f32 %v764, 14.285714
    %v1144 = vmul.f32 %v319, 14.285714
    %v1145 = vmul.f32 %v321, 14.285714
    %v1146 = vmul.f32 %v768, 14.285714
    %v1147 = vmul.f32 %v770, 14.285714
    %v1148 = vmul.f32 %v325, 14.285714
    %v1149 = vmul.f32 %v327, 14.285714
    %v1150 = vmul.f32 %v774, 14.285714
    %v1151 = vmul.f32 %v776, 14.285714
    %v1152 = vmul.f32 %v331, 14.285714
    %v1153 = vmul.f32 %v333, 14.285714
    %v1154 = vmul.f32 %v780, 14.285714
    %v1155 = vmul.f32 %v782, 14.285714
    %v1156 = vmul.f32 %v337, 14.285714
    %v1157 = vmul.f32 %v339, 14.285714
    %v1158 = vmul.f32 %v786, 14.285714
    %v1159 = vmul.f32 %v788, 14.285714
    %v1160 = vmul.f32 %v343, 14.285714
    %v1161 = vmul.f32 %v345, 14.285714
    %v1162 = vmul.f32 %v792, 14.285714
    %v1163 = vmul.f32 %v794, 14.285714
    %v1164 = vmul.f32 %v349, 14.285714
    %v1165 = vmul.f32 %v351, 14.285714
    %v1166 = vmul.f32 %v798, 14.285714
    %v1167 = vmul.f32 %v800, 14.285714
    %v1168 = vmul.f32 %v355, 14.285714
    %v1169 = vmul.f32 %v357, 14.285714
    %v1170 = vmul.f32 %v804, 14.285714
    %v1171 = vmul.f32 %v806, 14.285714
    %v1172 = vmul.f32 %v361, 14.285714
    %v1173 = vmul.f32 %v363, 14.285714
    %v1174 = vmul.f32 %v810, 14.285714
    %v1175 = vmul.f32 %v812, 14.285714
    %v1176 = vmul.f32 %v367, 14.285714
    %v1177 = vmul.f32 %v369, 14.285714
    %v1178 = vmul.f32 %v816, 14.285714
    %v1179 = vmul.f32 %v818, 14.285714
    %v1180 = vmul.f32 %v373, 14.285714
    %v1181 = vmul.f32 %v375, 14.285714
    %v1182 = vmul.f32 %v822, 14.285714
    %v1183 = vmul.f32 %v824, 14.285714
    %v1184 = vmul.f32 %v379, 14.285714
    %v1185 = vmul.f32 %v381, 14.285714
    %v1186 = vmul.f32 %v828, 14.285714
    %v1187 = vmul.f32 %v830, 14.285714
    %v1188 = vmul.f32 %v385, 14.285714
    %v1189 = vmul.f32 %v387, 14.285714
    %v1190 = vmul.f32 %v834, 14.285714
    %v1191 = vmul.f32 %v836, 14.285714
    %v1192 = vmul.f32 %v391, 14.285714
    %v1193 = vmul.f32 %v393, 14.285714
    %v1194 = vmul.f32 %v840, 14.285714
    %v1195 = vmul.f32 %v842, 14.285714
    %v1196 = vmul.f32 %v397, 14.285714
    %v1197 = vmul.f32 %v399, 14.285714
    %v1198 = vmul.f32 %v846, 14.285714
    %v1199 = vmul.f32 %v848, 14.285714
    %v1200 = vmul.f32 %v403, 14.285714
    %v1201 = vmul.f32 %v405, 14.285714
    %v1202 = vmul.f32 %v852, 14.285714
    %v1203 = vmul.f32 %v854, 14.285714
    %v1204 = vmul.f32 %v409, 14.285714
    %v1205 = vmul.f32 %v411, 14.285714
    %v1206 = vmul.f32 %v858, 14.285714
    %v1207 = vmul.f32 %v860, 14.285714
    %v1208 = vmul.f32 %v415, 14.285714
    %v1209 = vmul.f32 %v417, 14.285714
    %v1210 = vmul.f32 %v864, 14.285714
    %v1211 = vmul.f32 %v866, 14.285714
    %v1212 = vmul.f32 %v421, 14.285714
    %v1213 = vmul.f32 %v423, 14.285714
    %v1214 = vmul.f32 %v870, 14.285714
    %v1215 = vmul.f32 %v872, 14.285714
    %v1216 = vmul.f32 %v427, 14.285714
    %v1217 = vmul.f32 %v429, 14.285714
    %v1218 = vmul.f32 %v876, 14.285714
    %v1219 = vmul.f32 %v878, 14.285714
    %v1220 = vmul.f32 %v433, 14.285714
    %v1221 = vmul.f32 %v435, 14.285714
    %v1222 = vmul.f32 %v882, 14.285714
    %v1223 = vmul.f32 %v884, 14.285714
    %v1224 = vmul.f32 %v439, 14.285714
    %v1225 = vmul.f32 %v441, 14.285714
    %v1226 = vmul.f32 %v888, 14.285714
    %v1227 = vmul.f32 %v890, 14.285714
    %v1228 = vmul.f32 %v445, 14.285714
    %v1229 = vmul.f32 %v447, 14.285714
    %v1230 = vmul.f32 %v894, 14.285714
    %v1231 = vmul.f32 %v896, 14.285714
    %v1232 = vmul.f32 %v451, 14.285714
    %v1233 = vmul.f32 %v453, 14.285714
    %v1234 = vmul.f32 %v900, 14.285714
    %v1235 = vmul.f32 %v902, 14.285714
    %v1236 = vmul.f32 %v457, 14.285714
    %v1237 = vmul.f32 %v459, 14.285714
    %v1238 = vmul.f32 %v906, 14.285714
    %v1239 = vmul.f32 %v908, 14.285714
    %v1240 = vmul.f32 %v463, 14.285714
    %v1241 = vmul.f32 %v465, 14.285714
    %v1242 = vmul.f32 %v912, 14.285714
    %v1243 = vmul.f32 %v914, 14.285714
    %v1244 = vmul.f32 %v469, 14.285714
    %v1245 = vmul.f32 %v471, 14.285714
    %v1246 = vmul.f32 %v918, 14.285714
    %v1247 = vmul.f32 %v920, 14.285714
    %v1248 = vmul.f32 %v475, 14.285714
    %v1249 = vmul.f32 %v477, 14.285714
    %v1250 = vmul.f32 %v924, 14.285714
    %v1251 = vmul.f32 %v926, 14.285714
    %v1252 = vmul.f32 %v481, 14.285714
    %v1253 = vmul.f32 %v483, 14.285714
    %v1254 = vmul.f32 %v930, 14.285714
    %v1255 = vmul.f32 %v932, 14.285714
    %v1256 = vmul.f32 %v487, 14.285714
    %v1257 = vmul.f32 %v489, 14.285714
    %v1258 = vmul.f32 %v936, 14.285714
    %v1259 = vmul.f32 %v938, 14.285714
    %v1260 = vmul.f32 %v493, 14.285714
    %v1261 = vmul.f32 %v495, 14.285714
    %v1262 = vmul.f32 %v942, 14.285714
    %v1263 = vmul.f32 %v944, 14.285714
    %v1264 = vmul.f32 %v499, 14.285714
    %v1265 = vmul.f32 %v501, 14.285714
    %v1266 = vmul.f32 %v948, 14.285714
    %v1267 = vmul.f32 %v950, 14.285714
    %v1268 = vmul.f32 %v505, 14.285714
    %v1269 = vmul.f32 %v507, 14.285714
    %v1270 = vmul.f32 %v954, 14.285714
    %v1271 = vmul.f32 %v956, 14.285714
    %v1272 = vmul.f32 %v511, 14.285714
    %v1273 = vmul.f32 %v513, 14.285714
    %v1274 = vmul.f32 %v960, 14.285714
    %v1275 = vmul.f32 %v962, 14.285714
    %v1276 = vmul.f32 %v517, 14.285714
    %v1277 = vmul.f32 %v519, 14.285714
    %v1278 = vmul.f32 %v966, 14.285714
    %v1279 = vmul.f32 %v968, 14.285714
    %v1280 = vmul.f32 %v523, 14.285714
    %v1281 = vmul.f32 %v525, 14.285714
    %v1282 = vmul.f32 %v972, 14.285714
    %v1283 = vmul.f32 %v974, 14.285714
    %v1284 = vmul.f32 %v529, 14.285714
    %v1285 = vmul.f32 %v531, 14.285714
    %v1286 = vmul.f32 %v978, 14.285714
    %v1287 = vmul.f32 %v980, 14.285714
    %v1288 = vmul.f32 %v535, 14.285714
    %v1289 = vmul.f32 %v537, 14.285714
    %v1290 = vmul.f32 %v984, 14.285714
    %v1291 = vmul.f32 %v986, 14.285714
    %v1292 = vmul.f32 %v541, 14.285714
    %v1293 = vmul.f32 %v543, 14.285714
    %v1294 = vmul.f32 %v990, 14.285714
    %v1295 = vmul.f32 %v992, 14.285714
    %v1296 = vmul.f32 %v547, 14.285714
    %v1297 = vmul.f32 %v549, 14.285714
    %v1298 = vmul.f32 %v996, 14.285714
    %v1299 = vmul.f32 %v998, 14.285714
    %v1300 = vmul.f32 %v553, 14.285714
    %v1301 = vmul.f32 %v555, 14.285714
    %v1302 = vmul.f32 %v1002, 14.285714
    %v1303 = vmul.f32 %v1004, 14.285714
    %v1304 = vmul.f32 %v559, 14.285714
    %v1305 = vmul.f32 %v561, 14.285714
    %v1306 = vmul.f32 %v1008, 14.285714
    %v1307 = vmul.f32 %v1010, 14.285714
    %v1308 = vmul.f32 %v565, 14.285714
    %v1309 = vmul.f32 %v567, 14.285714
    %v1310 = vmul.f32 %v1014, 14.285714
    %v1311 = vmul.f32 %v1016, 14.285714
    %v1312 = vmul.f32 %v571, 14.285714
    %v1313 = vmul.f32 %v573, 14.285714
    %v1314 = vmul.f32 %v1020, 14.285714
    %v1315 = vmul.f32 %v1022, 14.285714
    %v1316 = vmul.f32 %v577, 14.285714
    %v1317 = vmul.f32 %v579, 14.285714
    %v1318 = vmul.f32 %v1026, 14.285714
    %v1319 = vmul.f32 %v1028, 14.285714
    %v1320 = vmul.f32 %v583, 14.285714
    %v1321 = vmul.f32 %v585, 14.285714
    %v1322 = vmul.f32 %v1032, 14.285714
    %v1323 = vmul.f32 %v1034, 14.285714
    %v1324 = vmul.f32 %v589, 14.285714
    %v1325 = vmul.f32 %v591, 14.285714
    %v1326 = vmul.f32 %v1038, 14.285714
    %v1327 = vmul.f32 %v1040, 14.285714
    %v1328 = vmul.f32 %v595, 14.285714
    %v1329 = vmul.f32 %v597, 14.285714
    %v1330 = vmul.f32 %v1044, 14.285714
    %v1331 = vmul.f32 %v1046, 14.285714
    %v1332 = vmul.f32 %v601, 14.285714
    %v1333 = vmul.f32 %v603, 14.285714
    %v1334 = vmul.f32 %v1050, 14.285714
    %v1335 = vmul.f32 %v1052, 14.285714
    %v1336 = vmul.f32 %v607, 14.285714
    %v1337 = vmul.f32 %v609, 14.285714
    %v1338 = vmul.f32 %v1056, 14.285714
    %v1339 = vmul.f32 %v1058, 14.285714
    %v1340 = vmul.f32 %v613, 14.285714
    %v1341 = vmul.f32 %v615, 14.285714
    %v1342 = vmul.f32 %v1062, 14.285714
    %v1343 = vmul.f32 %v1064, 14.285714
    %v1344 = vmul.f32 %v619, 14.285714
    %v1345 = vmul.f32 %v621, 14.285714
    %v1346 = vmul.f32 %v1068, 14.285714
    %v1347 = vmul.f32 %v1070, 14.285714
    %v1348 = vmul.f32 %v625, 14.285714
    %v1349 = vmul.f32 %v627, 14.285714
    %v1350 = vmul.f32 %v1074, 14.285714
    %v1351 = vmul.f32 %v1076, 14.285714
    %v1352 = vmul.f32 %v631, 14.285714
    %v1353 = vmul.f32 %v633, 14.285714
    %v1354 = vmul.f32 %v1080, 14.285714
    %v1355 = vmul.f32 %v1082, 14.285714
    %v1356 = vmul.f32 %v637, 14.285714
    %v1357 = vmul.f32 %v639, 14.285714
    %v1358 = vmul.f32 %v1086, 14.285714
    %v1359 = vmul.f32 %v1088, 14.285714
    %v1360 = vmul.f32 %v643, 14.285714
    %v1361 = vmul.f32 %v645, 14.285714
    %v1362 = vmul.f32 %v1092, 14.285714
    %v1363 = vmul.f32 %v1094, 14.285714
    %v1364 = vmul.f32 %v649, 14.285714
    %v1365 = vmul.f32 %v651, 14.285714
    %v1366 = vmul.f32 %v1098, 14.285714
    %v1367 = vmul.f32 %v1100, 14.285714
    %v1368 = vmul.f32 %v655, 14.285714
    %v1369 = vmul.f32 %v657, 14.285714
    %v1370 = vmul.f32 %v1104, 14.285714
    %v1371 = vmul.f32 %v1106, 14.285714
    %v1372 = vmul.f32 %v661, 14.285714
    %v1373 = vmul.f32 %v663, 14.285714
    %v1374 = vmul.f32 %v1110, 14.285714
    %v1375 = vmul.f32 %v1112, 14.285714
    %v1376 = vmul.f32 %v667, 14.285714
    %v1377 = vmul.f32 %v669, 14.285714
    %v1378 = vmul.f32 %v1116, 14.285714
    %v1379 = vmul.f32 %v1118, 14.285714
    %v1380 = vmul.f32 %v673, 14.285714
    %v1381 = vmul.f32 %v675, 14.285714
    %v1382 = vmul.f32 %v1122, 14.285714
    %v1383 = vmul.f32 %v1124, 14.285714
    %v1384 = vmul.f32 %v679, 14.285714
    %v1385 = vmul.f32 %v681, 14.285714
    %v1386 = vmul.f32 %v1128, 14.285714
    %v1387 = vmul.f32 %v1130, 14.285714
    %v1388 = vld [vmem:[%s2] sm:$0xff]
    %v1389 = vld [vmem:[%s2 + $0x8] sm:$0xff]
    %v1390 = vld [vmem:[%s2 + $0x10] sm:$0xff]
    %v1391 = vld [vmem:[%s2 + $0x18] sm:$0xff]
    %v1392 = vld [vmem:[%s2 + $0x20] sm:$0xff]
    %v1393 = vld [vmem:[%s2 + $0x28] sm:$0xff]
    %v1394 = vld [vmem:[%s2 + $0x30] sm:$0xff]
    %v1395 = vld [vmem:[%s2 + $0x38] sm:$0xff]
    %v1396 = vld [vmem:[%s2 + $0x40] sm:$0xff]
    %v1397 = vld [vmem:[%s2 + $0x48] sm:$0xff]
    %v1398 = vld [vmem:[%s2 + $0x50] sm:$0xff]
    %v1399 = vld [vmem:[%s2 + $0x58] sm:$0xff]
    %v1400 = vld [vmem:[%s2 + $0x60] sm:$0xff]
    %v1401 = vld [vmem:[%s2 + $0x68] sm:$0xff]
    %v1402 = vld [vmem:[%s2 + $0x70] sm:$0xff]
    %v1403 = vld [vmem:[%s2 + $0x78] sm:$0xff]
    %v1404 = vld [vmem:[%s2 + $0x80] sm:$0xff]
    %v1405 = vld [vmem:[%s2 + $0x88] sm:$0xff]
    %v1406 = vld [vmem:[%s2 + $0x90] sm:$0xff]
    %v1407 = vld [vmem:[%s2 + $0x98] sm:$0xff]
    %v1408 = vld [vmem:[%s2 + $0xa0] sm:$0xff]
    %v1409 = vld [vmem:[%s2 + $0xa8] sm:$0xff]
    %v1410 = vld [vmem:[%s2 + $0xb0] sm:$0xff]
    %v1411 = vld [vmem:[%s2 + $0xb8] sm:$0xff]
    %v1412 = vld [vmem:[%s2 + $0xc0] sm:$0xff]
    %v1413 = vld [vmem:[%s2 + $0xc8] sm:$0xff]
    %v1414 = vld [vmem:[%s2 + $0xd0] sm:$0xff]
    %v1415 = vld [vmem:[%s2 + $0xd8] sm:$0xff]
    %v1416 = vld [vmem:[%s2 + $0xe0] sm:$0xff]
    %v1417 = vld [vmem:[%s2 + $0xe8] sm:$0xff]
    %v1418 = vld [vmem:[%s2 + $0xf0] sm:$0xff]
    %v1419 = vld [vmem:[%s2 + $0xf8] sm:$0xff]
    %v1420 = vld [vmem:[%s2 + $0x100] sm:$0xff]
    %v1421 = vld [vmem:[%s2 + $0x108] sm:$0xff]
    %v1422 = vld [vmem:[%s2 + $0x110] sm:$0xff]
    %v1423 = vld [vmem:[%s2 + $0x118] sm:$0xff]
    %v1424 = vld [vmem:[%s2 + $0x120] sm:$0xff]
    %v1425 = vld [vmem:[%s2 + $0x128] sm:$0xff]
    %v1426 = vld [vmem:[%s2 + $0x130] sm:$0xff]
    %v1427 = vld [vmem:[%s2 + $0x138] sm:$0xff]
    %v1428 = vld [vmem:[%s2 + $0x140] sm:$0xff]
    %v1429 = vld [vmem:[%s2 + $0x148] sm:$0xff]
    %v1430 = vld [vmem:[%s2 + $0x150] sm:$0xff]
    %v1431 = vld [vmem:[%s2 + $0x158] sm:$0xff]
    %v1432 = vld [vmem:[%s2 + $0x160] sm:$0xff]
    %v1433 = vld [vmem:[%s2 + $0x168] sm:$0xff]
    %v1434 = vld [vmem:[%s2 + $0x170] sm:$0xff]
    %v1435 = vld [vmem:[%s2 + $0x178] sm:$0xff]
    %v1436 = vld [vmem:[%s2 + $0x180] sm:$0xff]
    %v1437 = vld [vmem:[%s2 + $0x188] sm:$0xff]
    %v1438 = vld [vmem:[%s2 + $0x190] sm:$0xff]
    %v1439 = vld [vmem:[%s2 + $0x198] sm:$0xff]
    %v1440 = vld [vmem:[%s2 + $0x1a0] sm:$0xff]
    %v1441 = vld [vmem:[%s2 + $0x1a8] sm:$0xff]
    %v1442 = vld [vmem:[%s2 + $0x1b0] sm:$0xff]
    %v1443 = vld [vmem:[%s2 + $0x1b8] sm:$0xff]
    %v1444 = vld [vmem:[%s2 + $0x1c0] sm:$0xff]
    %v1445 = vld [vmem:[%s2 + $0x1c8] sm:$0xff]
    %v1446 = vld [vmem:[%s2 + $0x1d0] sm:$0xff]
    %v1447 = vld [vmem:[%s2 + $0x1d8] sm:$0xff]
    %v1448 = vld [vmem:[%s2 + $0x1e0] sm:$0xff]
    %v1449 = vld [vmem:[%s2 + $0x1e8] sm:$0xff]
    %v1450 = vld [vmem:[%s2 + $0x1f0] sm:$0xff]
    %v1451 = vld [vmem:[%s2 + $0x1f8] sm:$0xff]
    %v1452 = vld [vmem:[%s3] sm:$0xf]
    %v1453 = vld [vmem:[#allocation2] sm:$0xff]
    %v1454 = vld [vmem:[#allocation2 + $0x8] sm:$0xff]
    %v1455 = vld [vmem:[#allocation2 + $0x10] sm:$0xff]
    %v1456 = vld [vmem:[#allocation2 + $0x18] sm:$0xff]
    %v1457 = vld [vmem:[#allocation2 + $0x20] sm:$0xff]
    %v1458 = vld [vmem:[#allocation2 + $0x28] sm:$0xff]
    %v1459 = vld [vmem:[#allocation2 + $0x30] sm:$0xff]
    %v1460 = vld [vmem:[#allocation2 + $0x38] sm:$0xff]
    %v1461 = vld [vmem:[#allocation2 + $0x40] sm:$0xff]
    %v1462 = vld [vmem:[#allocation2 + $0x48] sm:$0xff]
    %v1463 = vld [vmem:[#allocation2 + $0x50] sm:$0xff]
    %v1464 = vld [vmem:[#allocation2 + $0x58] sm:$0xff]
    %v1465 = vld [vmem:[#allocation2 + $0x60] sm:$0xff]
    %v1466 = vld [vmem:[#allocation2 + $0x68] sm:$0xff]
    %v1467 = vld [vmem:[#allocation2 + $0x70] sm:$0xff]
    %v1468 = vld [vmem:[#allocation2 + $0x78] sm:$0xff]
    %v1469 = vld [vmem:[#allocation2 + $0x80] sm:$0xff]
    %v1470 = vld [vmem:[#allocation2 + $0x88] sm:$0xff]
    %v1471 = vld [vmem:[#allocation2 + $0x90] sm:$0xff]
    %v1472 = vld [vmem:[#allocation2 + $0x98] sm:$0xff]
    %v1473 = vld [vmem:[#allocation2 + $0xa0] sm:$0xff]
    %v1474 = vld [vmem:[#allocation2 + $0xa8] sm:$0xff]
    %v1475 = vld [vmem:[#allocation2 + $0xb0] sm:$0xff]
    %v1476 = vld [vmem:[#allocation2 + $0xb8] sm:$0xff]
    %v1477 = vld [vmem:[#allocation2 + $0xc0] sm:$0xff]
    %v1478 = vld [vmem:[#allocation2 + $0xc8] sm:$0xff]
    %v1479 = vld [vmem:[#allocation2 + $0xd0] sm:$0xff]
    %v1480 = vld [vmem:[#allocation2 + $0xd8] sm:$0xff]
    %v1481 = vld [vmem:[#allocation2 + $0xe0] sm:$0xff]
    %v1482 = vld [vmem:[#allocation2 + $0xe8] sm:$0xff]
    %v1483 = vld [vmem:[#allocation2 + $0xf0] sm:$0xff]
    %v1484 = vld [vmem:[#allocation2 + $0xf8] sm:$0xff]
    %v1485 = vld [vmem:[#allocation2 + $0x100] sm:$0xff]
    %v1486 = vld [vmem:[#allocation2 + $0x108] sm:$0xff]
    %v1487 = vld [vmem:[#allocation2 + $0x110] sm:$0xff]
    %v1488 = vld [vmem:[#allocation2 + $0x118] sm:$0xff]
    %v1489 = vld [vmem:[#allocation2 + $0x120] sm:$0xff]
    %v1490 = vld [vmem:[#allocation2 + $0x128] sm:$0xff]
    %v1491 = vld [vmem:[#allocation2 + $0x130] sm:$0xff]
    %v1492 = vld [vmem:[#allocation2 + $0x138] sm:$0xff]
    %v1493 = vld [vmem:[#allocation2 + $0x140] sm:$0xff]
    %v1494 = vld [vmem:[#allocation2 + $0x148] sm:$0xff]
    %v1495 = vld [vmem:[#allocation2 + $0x150] sm:$0xff]
    %v1496 = vld [vmem:[#allocation2 + $0x158] sm:$0xff]
    %v1497 = vld [vmem:[#allocation2 + $0x160] sm:$0xff]
    %v1498 = vld [vmem:[#allocation2 + $0x168] sm:$0xff]
    %v1499 = vld [vmem:[#allocation2 + $0x170] sm:$0xff]
    %v1500 = vld [vmem:[#allocation2 + $0x178] sm:$0xff]
    %v1501 = vld [vmem:[#allocation2 + $0x180] sm:$0xff]
    %v1502 = vld [vmem:[#allocation2 + $0x188] sm:$0xff]
    %v1503 = vld [vmem:[#allocation2 + $0x190] sm:$0xff]
    %v1504 = vld [vmem:[#allocation2 + $0x198] sm:$0xff]
    %v1505 = vld [vmem:[#allocation2 + $0x1a0] sm:$0xff]
    %v1506 = vld [vmem:[#allocation2 + $0x1a8] sm:$0xff]
    %v1507 = vld [vmem:[#allocation2 + $0x1b0] sm:$0xff]
    %v1508 = vld [vmem:[#allocation2 + $0x1b8] sm:$0xff]
    %v1509 = vld [vmem:[#allocation2 + $0x1c0] sm:$0xff]
    %v1510 = vld [vmem:[#allocation2 + $0x1c8] sm:$0xff]
    %v1511 = vld [vmem:[#allocation2 + $0x1d0] sm:$0xff]
    %v1512 = vld [vmem:[#allocation2 + $0x1d8] sm:$0xff]
    %v1513 = vld [vmem:[#allocation2 + $0x1e0] sm:$0xff]
    %v1514 = vld [vmem:[#allocation2 + $0x1e8] sm:$0xff]
    %v1515 = vld [vmem:[#allocation2 + $0x1f0] sm:$0xff]
    %v1516 = vld [vmem:[#allocation2 + $0x1f8] sm:$0xff]
    %v1517 = vmax.f32 %v1132, %v1133
    %v1518 = vmax.f32 %v1517, %v1134
    %v1519 = vmax.f32 %v1518, %v1135
    %1520 = vmax.xlane.f32.xlu0 %v1519
    %v1521 = vpop.xlane.xlu0 %1520
    %v1522 = vmax.f32 %v1136, %v1137
    %v1523 = vmax.f32 %v1522, %v1138
    %v1524 = vmax.f32 %v1523, %v1139
    %1525 = vmax.xlane.f32.xlu0 %v1524
    %v1526 = vpop.xlane.xlu0 %1525
    %v1527 = vmax.f32 %v1140, %v1141
    %v1528 = vmax.f32 %v1527, %v1142
    %v1529 = vmax.f32 %v1528, %v1143
    %1530 = vmax.xlane.f32.xlu0 %v1529
    %v1531 = vpop.xlane.xlu0 %1530
    %v1532 = vmax.f32 %v1144, %v1145
    %v1533 = vmax.f32 %v1532, %v1146
    %v1534 = vmax.f32 %v1533, %v1147
    %1535 = vmax.xlane.f32.xlu0 %v1534
    %v1536 = vpop.xlane.xlu0 %1535
    %v1537 = vmax.f32 %v1148, %v1149
    %v1538 = vmax.f32 %v1537, %v1150
    %v1539 = vmax.f32 %v1538, %v1151
    %1540 = vmax.xlane.f32.xlu0 %v1539
    %v1541 = vpop.xlane.xlu0 %1540
    %v1542 = vmax.f32 %v1152, %v1153
    %v1543 = vmax.f32 %v1542, %v1154
    %v1544 = vmax.f32 %v1543, %v1155
    %1545 = vmax.xlane.f32.xlu0 %v1544
    %v1546 = vpop.xlane.xlu0 %1545
    %v1547 = vmax.f32 %v1156, %v1157
    %v1548 = vmax.f32 %v1547, %v1158
    %v1549 = vmax.f32 %v1548, %v1159
    %1550 = vmax.xlane.f32.xlu0 %v1549
    %v1551 = vpop.xlane.xlu0 %1550
    %v1552 = vmax.f32 %v1160, %v1161
    %v1553 = vmax.f32 %v1552, %v1162
    %v1554 = vmax.f32 %v1553, %v1163
    %1555 = vmax.xlane.f32.xlu0 %v1554
    %v1556 = vpop.xlane.xlu0 %1555
    %v1557 = vmax.f32 %v1164, %v1165
    %v1558 = vmax.f32 %v1557, %v1166
    %v1559 = vmax.f32 %v1558, %v1167
    %1560 = vmax.xlane.f32.xlu0 %v1559
    %v1561 = vpop.xlane.xlu0 %1560
    %v1562 = vmax.f32 %v1168, %v1169
    %v1563 = vmax.f32 %v1562, %v1170
    %v1564 = vmax.f32 %v1563, %v1171
    %1565 = vmax.xlane.f32.xlu0 %v1564
    %v1566 = vpop.xlane.xlu0 %1565
    %v1567 = vmax.f32 %v1172, %v1173
    %v1568 = vmax.f32 %v1567, %v1174
    %v1569 = vmax.f32 %v1568, %v1175
    %1570 = vmax.xlane.f32.xlu0 %v1569
    %v1571 = vpop.xlane.xlu0 %1570
    %v1572 = vmax.f32 %v1176, %v1177
    %v1573 = vmax.f32 %v1572, %v1178
    %v1574 = vmax.f32 %v1573, %v1179
    %1575 = vmax.xlane.f32.xlu0 %v1574
    %v1576 = vpop.xlane.xlu0 %1575
    %v1577 = vmax.f32 %v1180, %v1181
    %v1578 = vmax.f32 %v1577, %v1182
    %v1579 = vmax.f32 %v1578, %v1183
    %1580 = vmax.xlane.f32.xlu0 %v1579
    %v1581 = vpop.xlane.xlu0 %1580
    %v1582 = vmax.f32 %v1184, %v1185
    %v1583 = vmax.f32 %v1582, %v1186
    %v1584 = vmax.f32 %v1583, %v1187
    %1585 = vmax.xlane.f32.xlu0 %v1584
    %v1586 = vpop.xlane.xlu0 %1585
    %v1587 = vmax.f32 %v1188, %v1189
    %v1588 = vmax.f32 %v1587, %v1190
    %v1589 = vmax.f32 %v1588, %v1191
    %1590 = vmax.xlane.f32.xlu0 %v1589
    %v1591 = vpop.xlane.xlu0 %1590
    %v1592 = vmax.f32 %v1192, %v1193
    %v1593 = vmax.f32 %v1592, %v1194
    %v1594 = vmax.f32 %v1593, %v1195
    %1595 = vmax.xlane.f32.xlu0 %v1594
    %v1596 = vpop.xlane.xlu0 %1595
    %v1597 = vmax.f32 %v1196, %v1197
    %v1598 = vmax.f32 %v1597, %v1198
    %v1599 = vmax.f32 %v1598, %v1199
    %1600 = vmax.xlane.f32.xlu0 %v1599
    %v1601 = vpop.xlane.xlu0 %1600
    %v1602 = vmax.f32 %v1200, %v1201
    %v1603 = vmax.f32 %v1602, %v1202
    %v1604 = vmax.f32 %v1603, %v1203
    %1605 = vmax.xlane.f32.xlu0 %v1604
    %v1606 = vpop.xlane.xlu0 %1605
    %v1607 = vmax.f32 %v1204, %v1205
    %v1608 = vmax.f32 %v1607, %v1206
    %v1609 = vmax.f32 %v1608, %v1207
    %1610 = vmax.xlane.f32.xlu0 %v1609
    %v1611 = vpop.xlane.xlu0 %1610
    %v1612 = vmax.f32 %v1208, %v1209
    %v1613 = vmax.f32 %v1612, %v1210
    %v1614 = vmax.f32 %v1613, %v1211
    %1615 = vmax.xlane.f32.xlu0 %v1614
    %v1616 = vpop.xlane.xlu0 %1615
    %v1617 = vmax.f32 %v1212, %v1213
    %v1618 = vmax.f32 %v1617, %v1214
    %v1619 = vmax.f32 %v1618, %v1215
    %1620 = vmax.xlane.f32.xlu0 %v1619
    %v1621 = vpop.xlane.xlu0 %1620
    %v1622 = vmax.f32 %v1216, %v1217
    %v1623 = vmax.f32 %v1622, %v1218
    %v1624 = vmax.f32 %v1623, %v1219
    %1625 = vmax.xlane.f32.xlu0 %v1624
    %v1626 = vpop.xlane.xlu0 %1625
    %v1627 = vmax.f32 %v1220, %v1221
    %v1628 = vmax.f32 %v1627, %v1222
    %v1629 = vmax.f32 %v1628, %v1223
    %1630 = vmax.xlane.f32.xlu0 %v1629
    %v1631 = vpop.xlane.xlu0 %1630
    %v1632 = vmax.f32 %v1224, %v1225
    %v1633 = vmax.f32 %v1632, %v1226
    %v1634 = vmax.f32 %v1633, %v1227
    %1635 = vmax.xlane.f32.xlu0 %v1634
    %v1636 = vpop.xlane.xlu0 %1635
    %v1637 = vmax.f32 %v1228, %v1229
    %v1638 = vmax.f32 %v1637, %v1230
    %v1639 = vmax.f32 %v1638, %v1231
    %1640 = vmax.xlane.f32.xlu0 %v1639
    %v1641 = vpop.xlane.xlu0 %1640
    %v1642 = vmax.f32 %v1232, %v1233
    %v1643 = vmax.f32 %v1642, %v1234
    %v1644 = vmax.f32 %v1643, %v1235
    %1645 = vmax.xlane.f32.xlu0 %v1644
    %v1646 = vpop.xlane.xlu0 %1645
    %v1647 = vmax.f32 %v1236, %v1237
    %v1648 = vmax.f32 %v1647, %v1238
    %v1649 = vmax.f32 %v1648, %v1239
    %1650 = vmax.xlane.f32.xlu0 %v1649
    %v1651 = vpop.xlane.xlu0 %1650
    %v1652 = vmax.f32 %v1240, %v1241
    %v1653 = vmax.f32 %v1652, %v1242
    %v1654 = vmax.f32 %v1653, %v1243
    %1655 = vmax.xlane.f32.xlu0 %v1654
    %v1656 = vpop.xlane.xlu0 %1655
    %v1657 = vmax.f32 %v1244, %v1245
    %v1658 = vmax.f32 %v1657, %v1246
    %v1659 = vmax.f32 %v1658, %v1247
    %1660 = vmax.xlane.f32.xlu0 %v1659
    %v1661 = vpop.xlane.xlu0 %1660
    %v1662 = vmax.f32 %v1248, %v1249
    %v1663 = vmax.f32 %v1662, %v1250
    %v1664 = vmax.f32 %v1663, %v1251
    %1665 = vmax.xlane.f32.xlu0 %v1664
    %v1666 = vpop.xlane.xlu0 %1665
    %v1667 = vmax.f32 %v1252, %v1253
    %v1668 = vmax.f32 %v1667, %v1254
    %v1669 = vmax.f32 %v1668, %v1255
    %1670 = vmax.xlane.f32.xlu0 %v1669
    %v1671 = vpop.xlane.xlu0 %1670
    %v1672 = vmax.f32 %v1256, %v1257
    %v1673 = vmax.f32 %v1672, %v1258
    %v1674 = vmax.f32 %v1673, %v1259
    %1675 = vmax.xlane.f32.xlu0 %v1674
    %v1676 = vpop.xlane.xlu0 %1675
    %v1677 = vmax.f32 %v1260, %v1261
    %v1678 = vmax.f32 %v1677, %v1262
    %v1679 = vmax.f32 %v1678, %v1263
    %1680 = vmax.xlane.f32.xlu0 %v1679
    %v1681 = vpop.xlane.xlu0 %1680
    %v1682 = vmax.f32 %v1264, %v1265
    %v1683 = vmax.f32 %v1682, %v1266
    %v1684 = vmax.f32 %v1683, %v1267
    %1685 = vmax.xlane.f32.xlu0 %v1684
    %v1686 = vpop.xlane.xlu0 %1685
    %v1687 = vmax.f32 %v1268, %v1269
    %v1688 = vmax.f32 %v1687, %v1270
    %v1689 = vmax.f32 %v1688, %v1271
    %1690 = vmax.xlane.f32.xlu0 %v1689
    %v1691 = vpop.xlane.xlu0 %1690
    %v1692 = vmax.f32 %v1272, %v1273
    %v1693 = vmax.f32 %v1692, %v1274
    %v1694 = vmax.f32 %v1693, %v1275
    %1695 = vmax.xlane.f32.xlu0 %v1694
    %v1696 = vpop.xlane.xlu0 %1695
    %v1697 = vmax.f32 %v1276, %v1277
    %v1698 = vmax.f32 %v1697, %v1278
    %v1699 = vmax.f32 %v1698, %v1279
    %1700 = vmax.xlane.f32.xlu0 %v1699
    %v1701 = vpop.xlane.xlu0 %1700
    %v1702 = vmax.f32 %v1280, %v1281
    %v1703 = vmax.f32 %v1702, %v1282
    %v1704 = vmax.f32 %v1703, %v1283
    %1705 = vmax.xlane.f32.xlu0 %v1704
    %v1706 = vpop.xlane.xlu0 %1705
    %v1707 = vmax.f32 %v1284, %v1285
    %v1708 = vmax.f32 %v1707, %v1286
    %v1709 = vmax.f32 %v1708, %v1287
    %1710 = vmax.xlane.f32.xlu0 %v1709
    %v1711 = vpop.xlane.xlu0 %1710
    %v1712 = vmax.f32 %v1288, %v1289
    %v1713 = vmax.f32 %v1712, %v1290
    %v1714 = vmax.f32 %v1713, %v1291
    %1715 = vmax.xlane.f32.xlu0 %v1714
    %v1716 = vpop.xlane.xlu0 %1715
    %v1717 = vmax.f32 %v1292, %v1293
    %v1718 = vmax.f32 %v1717, %v1294
    %v1719 = vmax.f32 %v1718, %v1295
    %1720 = vmax.xlane.f32.xlu0 %v1719
    %v1721 = vpop.xlane.xlu0 %1720
    %v1722 = vmax.f32 %v1296, %v1297
    %v1723 = vmax.f32 %v1722, %v1298
    %v1724 = vmax.f32 %v1723, %v1299
    %1725 = vmax.xlane.f32.xlu0 %v1724
    %v1726 = vpop.xlane.xlu0 %1725
    %v1727 = vmax.f32 %v1300, %v1301
    %v1728 = vmax.f32 %v1727, %v1302
    %v1729 = vmax.f32 %v1728, %v1303
    %1730 = vmax.xlane.f32.xlu0 %v1729
    %v1731 = vpop.xlane.xlu0 %1730
    %v1732 = vmax.f32 %v1304, %v1305
    %v1733 = vmax.f32 %v1732, %v1306
    %v1734 = vmax.f32 %v1733, %v1307
    %1735 = vmax.xlane.f32.xlu0 %v1734
    %v1736 = vpop.xlane.xlu0 %1735
    %v1737 = vmax.f32 %v1308, %v1309
    %v1738 = vmax.f32 %v1737, %v1310
    %v1739 = vmax.f32 %v1738, %v1311
    %1740 = vmax.xlane.f32.xlu0 %v1739
    %v1741 = vpop.xlane.xlu0 %1740
    %v1742 = vmax.f32 %v1312, %v1313
    %v1743 = vmax.f32 %v1742, %v1314
    %v1744 = vmax.f32 %v1743, %v1315
    %1745 = vmax.xlane.f32.xlu0 %v1744
    %v1746 = vpop.xlane.xlu0 %1745
    %v1747 = vmax.f32 %v1316, %v1317
    %v1748 = vmax.f32 %v1747, %v1318
    %v1749 = vmax.f32 %v1748, %v1319
    %1750 = vmax.xlane.f32.xlu0 %v1749
    %v1751 = vpop.xlane.xlu0 %1750
    %v1752 = vmax.f32 %v1320, %v1321
    %v1753 = vmax.f32 %v1752, %v1322
    %v1754 = vmax.f32 %v1753, %v1323
    %1755 = vmax.xlane.f32.xlu0 %v1754
    %v1756 = vpop.xlane.xlu0 %1755
    %v1757 = vmax.f32 %v1324, %v1325
    %v1758 = vmax.f32 %v1757, %v1326
    %v1759 = vmax.f32 %v1758, %v1327
    %1760 = vmax.xlane.f32.xlu0 %v1759
    %v1761 = vpop.xlane.xlu0 %1760
    %v1762 = vmax.f32 %v1328, %v1329
    %v1763 = vmax.f32 %v1762, %v1330
    %v1764 = vmax.f32 %v1763, %v1331
    %1765 = vmax.xlane.f32.xlu0 %v1764
    %v1766 = vpop.xlane.xlu0 %1765
    %v1767 = vmax.f32 %v1332, %v1333
    %v1768 = vmax.f32 %v1767, %v1334
    %v1769 = vmax.f32 %v1768, %v1335
    %1770 = vmax.xlane.f32.xlu0 %v1769
    %v1771 = vpop.xlane.xlu0 %1770
    %v1772 = vmax.f32 %v1336, %v1337
    %v1773 = vmax.f32 %v1772, %v1338
    %v1774 = vmax.f32 %v1773, %v1339
    %1775 = vmax.xlane.f32.xlu0 %v1774
    %v1776 = vpop.xlane.xlu0 %1775
    %v1777 = vmax.f32 %v1340, %v1341
    %v1778 = vmax.f32 %v1777, %v1342
    %v1779 = vmax.f32 %v1778, %v1343
    %1780 = vmax.xlane.f32.xlu0 %v1779
    %v1781 = vpop.xlane.xlu0 %1780
    %v1782 = vmax.f32 %v1344, %v1345
    %v1783 = vmax.f32 %v1782, %v1346
    %v1784 = vmax.f32 %v1783, %v1347
    %1785 = vmax.xlane.f32.xlu0 %v1784
    %v1786 = vpop.xlane.xlu0 %1785
    %v1787 = vmax.f32 %v1348, %v1349
    %v1788 = vmax.f32 %v1787, %v1350
    %v1789 = vmax.f32 %v1788, %v1351
    %1790 = vmax.xlane.f32.xlu0 %v1789
    %v1791 = vpop.xlane.xlu0 %1790
    %v1792 = vmax.f32 %v1352, %v1353
    %v1793 = vmax.f32 %v1792, %v1354
    %v1794 = vmax.f32 %v1793, %v1355
    %1795 = vmax.xlane.f32.xlu0 %v1794
    %v1796 = vpop.xlane.xlu0 %1795
    %v1797 = vmax.f32 %v1356, %v1357
    %v1798 = vmax.f32 %v1797, %v1358
    %v1799 = vmax.f32 %v1798, %v1359
    %1800 = vmax.xlane.f32.xlu0 %v1799
    %v1801 = vpop.xlane.xlu0 %1800
    %v1802 = vmax.f32 %v1360, %v1361
    %v1803 = vmax.f32 %v1802, %v1362
    %v1804 = vmax.f32 %v1803, %v1363
    %1805 = vmax.xlane.f32.xlu0 %v1804
    %v1806 = vpop.xlane.xlu0 %1805
    %v1807 = vmax.f32 %v1364, %v1365
    %v1808 = vmax.f32 %v1807, %v1366
    %v1809 = vmax.f32 %v1808, %v1367
    %1810 = vmax.xlane.f32.xlu0 %v1809
    %v1811 = vpop.xlane.xlu0 %1810
    %v1812 = vmax.f32 %v1368, %v1369
    %v1813 = vmax.f32 %v1812, %v1370
    %v1814 = vmax.f32 %v1813, %v1371
    %1815 = vmax.xlane.f32.xlu0 %v1814
    %v1816 = vpop.xlane.xlu0 %1815
    %v1817 = vmax.f32 %v1372, %v1373
    %v1818 = vmax.f32 %v1817, %v1374
    %v1819 = vmax.f32 %v1818, %v1375
    %1820 = vmax.xlane.f32.xlu0 %v1819
    %v1821 = vpop.xlane.xlu0 %1820
    %v1822 = vmax.f32 %v1376, %v1377
    %v1823 = vmax.f32 %v1822, %v1378
    %v1824 = vmax.f32 %v1823, %v1379
    %1825 = vmax.xlane.f32.xlu0 %v1824
    %v1826 = vpop.xlane.xlu0 %1825
    %v1827 = vmax.f32 %v1380, %v1381
    %v1828 = vmax.f32 %v1827, %v1382
    %v1829 = vmax.f32 %v1828, %v1383
    %1830 = vmax.xlane.f32.xlu0 %v1829
    %v1831 = vpop.xlane.xlu0 %1830
    %v1832 = vmax.f32 %v1384, %v1385
    %v1833 = vmax.f32 %v1832, %v1386
    %v1834 = vmax.f32 %v1833, %v1387
    %1835 = vmax.xlane.f32.xlu0 %v1834
    %v1836 = vpop.xlane.xlu0 %1835
    %v1837 = vmax.f32 %v1453, %v1521
    %v1838 = vmax.f32 %v1454, %v1526
    %v1839 = vmax.f32 %v1455, %v1531
    %v1840 = vmax.f32 %v1456, %v1536
    %v1841 = vmax.f32 %v1457, %v1541
    %v1842 = vmax.f32 %v1458, %v1546
    %v1843 = vmax.f32 %v1459, %v1551
    %v1844 = vmax.f32 %v1460, %v1556
    %v1845 = vmax.f32 %v1461, %v1561
    %v1846 = vmax.f32 %v1462, %v1566
    %v1847 = vmax.f32 %v1463, %v1571
    %v1848 = vmax.f32 %v1464, %v1576
    %v1849 = vmax.f32 %v1465, %v1581
    %v1850 = vmax.f32 %v1466, %v1586
    %v1851 = vmax.f32 %v1467, %v1591
    %v1852 = vmax.f32 %v1468, %v1596
    %v1853 = vmax.f32 %v1469, %v1601
    %v1854 = vmax.f32 %v1470, %v1606
    %v1855 = vmax.f32 %v1471, %v1611
    %v1856 = vmax.f32 %v1472, %v1616
    %v1857 = vmax.f32 %v1473, %v1621
    %v1858 = vmax.f32 %v1474, %v1626
    %v1859 = vmax.f32 %v1475, %v1631
    %v1860 = vmax.f32 %v1476, %v1636
    %v1861 = vmax.f32 %v1477, %v1641
    %v1862 = vmax.f32 %v1478, %v1646
    %v1863 = vmax.f32 %v1479, %v1651
    %v1864 = vmax.f32 %v1480, %v1656
    %v1865 = vmax.f32 %v1481, %v1661
    %v1866 = vmax.f32 %v1482, %v1666
    %v1867 = vmax.f32 %v1483, %v1671
    %v1868 = vmax.f32 %v1484, %v1676
    %v1869 = vmax.f32 %v1485, %v1681
    %v1870 = vmax.f32 %v1486, %v1686
    %v1871 = vmax.f32 %v1487, %v1691
    %v1872 = vmax.f32 %v1488, %v1696
    %v1873 = vmax.f32 %v1489, %v1701
    %v1874 = vmax.f32 %v1490, %v1706
    %v1875 = vmax.f32 %v1491, %v1711
    %v1876 = vmax.f32 %v1492, %v1716
    %v1877 = vmax.f32 %v1493, %v1721
    %v1878 = vmax.f32 %v1494, %v1726
    %v1879 = vmax.f32 %v1495, %v1731
    %v1880 = vmax.f32 %v1496, %v1736
    %v1881 = vmax.f32 %v1497, %v1741
    %v1882 = vmax.f32 %v1498, %v1746
    %v1883 = vmax.f32 %v1499, %v1751
    %v1884 = vmax.f32 %v1500, %v1756
    %v1885 = vmax.f32 %v1501, %v1761
    %v1886 = vmax.f32 %v1502, %v1766
    %v1887 = vmax.f32 %v1503, %v1771
    %v1888 = vmax.f32 %v1504, %v1776
    %v1889 = vmax.f32 %v1505, %v1781
    %v1890 = vmax.f32 %v1506, %v1786
    %v1891 = vmax.f32 %v1507, %v1791
    %v1892 = vmax.f32 %v1508, %v1796
    %v1893 = vmax.f32 %v1509, %v1801
    %v1894 = vmax.f32 %v1510, %v1806
    %v1895 = vmax.f32 %v1511, %v1811
    %v1896 = vmax.f32 %v1512, %v1816
    %v1897 = vmax.f32 %v1513, %v1821
    %v1898 = vmax.f32 %v1514, %v1826
    %v1899 = vmax.f32 %v1515, %v1831
    %v1900 = vmax.f32 %v1516, %v1836
    %1902 = vset.pattern.permute.xlu0 0
    %1903 = vperm.xlu0 %1902, %v1837
    %v1904 = vpop.permute.xlu0 %1903
    %1907 = vset.pattern.permute.xlu0 0
    %1908 = vperm.xlu0 %1907, %v1838
    %v1909 = vpop.permute.xlu0 %1908
    %1912 = vset.pattern.permute.xlu0 0
    %1913 = vperm.xlu0 %1912, %v1839
    %v1914 = vpop.permute.xlu0 %1913
    %1917 = vset.pattern.permute.xlu0 0
    %1918 = vperm.xlu0 %1917, %v1840
    %v1919 = vpop.permute.xlu0 %1918
    %1922 = vset.pattern.permute.xlu0 0
    %1923 = vperm.xlu0 %1922, %v1841
    %v1924 = vpop.permute.xlu0 %1923
    %1927 = vset.pattern.permute.xlu0 0
    %1928 = vperm.xlu0 %1927, %v1842
    %v1929 = vpop.permute.xlu0 %1928
    %1932 = vset.pattern.permute.xlu0 0
    %1933 = vperm.xlu0 %1932, %v1843
    %v1934 = vpop.permute.xlu0 %1933
    %1937 = vset.pattern.permute.xlu0 0
    %1938 = vperm.xlu0 %1937, %v1844
    %v1939 = vpop.permute.xlu0 %1938
    %1942 = vset.pattern.permute.xlu0 0
    %1943 = vperm.xlu0 %1942, %v1845
    %v1944 = vpop.permute.xlu0 %1943
    %1947 = vset.pattern.permute.xlu0 0
    %1948 = vperm.xlu0 %1947, %v1846
    %v1949 = vpop.permute.xlu0 %1948
    %1952 = vset.pattern.permute.xlu0 0
    %1953 = vperm.xlu0 %1952, %v1847
    %v1954 = vpop.permute.xlu0 %1953
    %1957 = vset.pattern.permute.xlu0 0
    %1958 = vperm.xlu0 %1957, %v1848
    %v1959 = vpop.permute.xlu0 %1958
    %1962 = vset.pattern.permute.xlu0 0
    %1963 = vperm.xlu0 %1962, %v1849
    %v1964 = vpop.permute.xlu0 %1963
    %1967 = vset.pattern.permute.xlu0 0
    %1968 = vperm.xlu0 %1967, %v1850
    %v1969 = vpop.permute.xlu0 %1968
    %1972 = vset.pattern.permute.xlu0 0
    %1973 = vperm.xlu0 %1972, %v1851
    %v1974 = vpop.permute.xlu0 %1973
    %1977 = vset.pattern.permute.xlu0 0
    %1978 = vperm.xlu0 %1977, %v1852
    %v1979 = vpop.permute.xlu0 %1978
    %1982 = vset.pattern.permute.xlu0 0
    %1983 = vperm.xlu0 %1982, %v1853
    %v1984 = vpop.permute.xlu0 %1983
    %1987 = vset.pattern.permute.xlu0 0
    %1988 = vperm.xlu0 %1987, %v1854
    %v1989 = vpop.permute.xlu0 %1988
    %1992 = vset.pattern.permute.xlu0 0
    %1993 = vperm.xlu0 %1992, %v1855
    %v1994 = vpop.permute.xlu0 %1993
    %1997 = vset.pattern.permute.xlu0 0
    %1998 = vperm.xlu0 %1997, %v1856
    %v1999 = vpop.permute.xlu0 %1998
    %2002 = vset.pattern.permute.xlu0 0
    %2003 = vperm.xlu0 %2002, %v1857
    %v2004 = vpop.permute.xlu0 %2003
    %2007 = vset.pattern.permute.xlu0 0
    %2008 = vperm.xlu0 %2007, %v1858
    %v2009 = vpop.permute.xlu0 %2008
    %2012 = vset.pattern.permute.xlu0 0
    %2013 = vperm.xlu0 %2012, %v1859
    %v2014 = vpop.permute.xlu0 %2013
    %2017 = vset.pattern.permute.xlu0 0
    %2018 = vperm.xlu0 %2017, %v1860
    %v2019 = vpop.permute.xlu0 %2018
    %2022 = vset.pattern.permute.xlu0 0
    %2023 = vperm.xlu0 %2022, %v1861
    %v2024 = vpop.permute.xlu0 %2023
    %2027 = vset.pattern.permute.xlu0 0
    %2028 = vperm.xlu0 %2027, %v1862
    %v2029 = vpop.permute.xlu0 %2028
    %2032 = vset.pattern.permute.xlu0 0
    %2033 = vperm.xlu0 %2032, %v1863
    %v2034 = vpop.permute.xlu0 %2033
    %2037 = vset.pattern.permute.xlu0 0
    %2038 = vperm.xlu0 %2037, %v1864
    %v2039 = vpop.permute.xlu0 %2038
    %2042 = vset.pattern.permute.xlu0 0
    %2043 = vperm.xlu0 %2042, %v1865
    %v2044 = vpop.permute.xlu0 %2043
    %2047 = vset.pattern.permute.xlu0 0
    %2048 = vperm.xlu0 %2047, %v1866
    %v2049 = vpop.permute.xlu0 %2048
    %2052 = vset.pattern.permute.xlu0 0
    %2053 = vperm.xlu0 %2052, %v1867
    %v2054 = vpop.permute.xlu0 %2053
    %2057 = vset.pattern.permute.xlu0 0
    %2058 = vperm.xlu0 %2057, %v1868
    %v2059 = vpop.permute.xlu0 %2058
    %2062 = vset.pattern.permute.xlu0 0
    %2063 = vperm.xlu0 %2062, %v1869
    %v2064 = vpop.permute.xlu0 %2063
    %2067 = vset.pattern.permute.xlu0 0
    %2068 = vperm.xlu0 %2067, %v1870
    %v2069 = vpop.permute.xlu0 %2068
    %2072 = vset.pattern.permute.xlu0 0
    %2073 = vperm.xlu0 %2072, %v1871
    %v2074 = vpop.permute.xlu0 %2073
    %2077 = vset.pattern.permute.xlu0 0
    %2078 = vperm.xlu0 %2077, %v1872
    %v2079 = vpop.permute.xlu0 %2078
    %2082 = vset.pattern.permute.xlu0 0
    %2083 = vperm.xlu0 %2082, %v1873
    %v2084 = vpop.permute.xlu0 %2083
    %2087 = vset.pattern.permute.xlu0 0
    %2088 = vperm.xlu0 %2087, %v1874
    %v2089 = vpop.permute.xlu0 %2088
    %2092 = vset.pattern.permute.xlu0 0
    %2093 = vperm.xlu0 %2092, %v1875
    %v2094 = vpop.permute.xlu0 %2093
    %2097 = vset.pattern.permute.xlu0 0
    %2098 = vperm.xlu0 %2097, %v1876
    %v2099 = vpop.permute.xlu0 %2098
    %2102 = vset.pattern.permute.xlu0 0
    %2103 = vperm.xlu0 %2102, %v1877
    %v2104 = vpop.permute.xlu0 %2103
    %2107 = vset.pattern.permute.xlu0 0
    %2108 = vperm.xlu0 %2107, %v1878
    %v2109 = vpop.permute.xlu0 %2108
    %2112 = vset.pattern.permute.xlu0 0
    %2113 = vperm.xlu0 %2112, %v1879
    %v2114 = vpop.permute.xlu0 %2113
    %2117 = vset.pattern.permute.xlu0 0
    %2118 = vperm.xlu0 %2117, %v1880
    %v2119 = vpop.permute.xlu0 %2118
    %2122 = vset.pattern.permute.xlu0 0
    %2123 = vperm.xlu0 %2122, %v1881
    %v2124 = vpop.permute.xlu0 %2123
    %2127 = vset.pattern.permute.xlu0 0
    %2128 = vperm.xlu0 %2127, %v1882
    %v2129 = vpop.permute.xlu0 %2128
    %2132 = vset.pattern.permute.xlu0 0
    %2133 = vperm.xlu0 %2132, %v1883
    %v2134 = vpop.permute.xlu0 %2133
    %2137 = vset.pattern.permute.xlu0 0
    %2138 = vperm.xlu0 %2137, %v1884
    %v2139 = vpop.permute.xlu0 %2138
    %2142 = vset.pattern.permute.xlu0 0
    %2143 = vperm.xlu0 %2142, %v1885
    %v2144 = vpop.permute.xlu0 %2143
    %2147 = vset.pattern.permute.xlu0 0
    %2148 = vperm.xlu0 %2147, %v1886
    %v2149 = vpop.permute.xlu0 %2148
    %2152 = vset.pattern.permute.xlu0 0
    %2153 = vperm.xlu0 %2152, %v1887
    %v2154 = vpop.permute.xlu0 %2153
    %2157 = vset.pattern.permute.xlu0 0
    %2158 = vperm.xlu0 %2157, %v1888
    %v2159 = vpop.permute.xlu0 %2158
    %2162 = vset.pattern.permute.xlu0 0
    %2163 = vperm.xlu0 %2162, %v1889
    %v2164 = vpop.permute.xlu0 %2163
    %2167 = vset.pattern.permute.xlu0 0
    %2168 = vperm.xlu0 %2167, %v1890
    %v2169 = vpop.permute.xlu0 %2168
    %2172 = vset.pattern.permute.xlu0 0
    %2173 = vperm.xlu0 %2172, %v1891
    %v2174 = vpop.permute.xlu0 %2173
    %2177 = vset.pattern.permute.xlu0 0
    %2178 = vperm.xlu0 %2177, %v1892
    %v2179 = vpop.permute.xlu0 %2178
    %2182 = vset.pattern.permute.xlu0 0
    %2183 = vperm.xlu0 %2182, %v1893
    %v2184 = vpop.permute.xlu0 %2183
    %2187 = vset.pattern.permute.xlu0 0
    %2188 = vperm.xlu0 %2187, %v1894
    %v2189 = vpop.permute.xlu0 %2188
    %2192 = vset.pattern.permute.xlu0 0
    %2193 = vperm.xlu0 %2192, %v1895
    %v2194 = vpop.permute.xlu0 %2193
    %2197 = vset.pattern.permute.xlu0 0
    %2198 = vperm.xlu0 %2197, %v1896
    %v2199 = vpop.permute.xlu0 %2198
    %2202 = vset.pattern.permute.xlu0 0
    %2203 = vperm.xlu0 %2202, %v1897
    %v2204 = vpop.permute.xlu0 %2203
    %2207 = vset.pattern.permute.xlu0 0
    %2208 = vperm.xlu0 %2207, %v1898
    %v2209 = vpop.permute.xlu0 %2208
    %2212 = vset.pattern.permute.xlu0 0
    %2213 = vperm.xlu0 %2212, %v1899
    %v2214 = vpop.permute.xlu0 %2213
    %2217 = vset.pattern.permute.xlu0 0
    %2218 = vperm.xlu0 %2217, %v1900
    %v2219 = vpop.permute.xlu0 %2218
    %v2221 = vsub.f32 %v1132, %v1904
    %v2222 = vsub.f32 %v1133, %v1904
    %v2223 = vsub.f32 %v1134, %v1904
    %v2224 = vsub.f32 %v1135, %v1904
    %v2225 = vsub.f32 %v1136, %v1909
    %v2226 = vsub.f32 %v1137, %v1909
    %v2227 = vsub.f32 %v1138, %v1909
    %v2228 = vsub.f32 %v1139, %v1909
    %v2229 = vsub.f32 %v1140, %v1914
    %v2230 = vsub.f32 %v1141, %v1914
    %v2231 = vsub.f32 %v1142, %v1914
    %v2232 = vsub.f32 %v1143, %v1914
    %v2233 = vsub.f32 %v1144, %v1919
    %v2234 = vsub.f32 %v1145, %v1919
    %v2235 = vsub.f32 %v1146, %v1919
    %v2236 = vsub.f32 %v1147, %v1919
    %v2237 = vsub.f32 %v1148, %v1924
    %v2238 = vsub.f32 %v1149, %v1924
    %v2239 = vsub.f32 %v1150, %v1924
    %v2240 = vsub.f32 %v1151, %v1924
    %v2241 = vsub.f32 %v1152, %v1929
    %v2242 = vsub.f32 %v1153, %v1929
    %v2243 = vsub.f32 %v1154, %v1929
    %v2244 = vsub.f32 %v1155, %v1929
    %v2245 = vsub.f32 %v1156, %v1934
    %v2246 = vsub.f32 %v1157, %v1934
    %v2247 = vsub.f32 %v1158, %v1934
    %v2248 = vsub.f32 %v1159, %v1934
    %v2249 = vsub.f32 %v1160, %v1939
    %v2250 = vsub.f32 %v1161, %v1939
    %v2251 = vsub.f32 %v1162, %v1939
    %v2252 = vsub.f32 %v1163, %v1939
    %v2253 = vsub.f32 %v1164, %v1944
    %v2254 = vsub.f32 %v1165, %v1944
    %v2255 = vsub.f32 %v1166, %v1944
    %v2256 = vsub.f32 %v1167, %v1944
    %v2257 = vsub.f32 %v1168, %v1949
    %v2258 = vsub.f32 %v1169, %v1949
    %v2259 = vsub.f32 %v1170, %v1949
    %v2260 = vsub.f32 %v1171, %v1949
    %v2261 = vsub.f32 %v1172, %v1954
    %v2262 = vsub.f32 %v1173, %v1954
    %v2263 = vsub.f32 %v1174, %v1954
    %v2264 = vsub.f32 %v1175, %v1954
    %v2265 = vsub.f32 %v1176, %v1959
    %v2266 = vsub.f32 %v1177, %v1959
    %v2267 = vsub.f32 %v1178, %v1959
    %v2268 = vsub.f32 %v1179, %v1959
    %v2269 = vsub.f32 %v1180, %v1964
    %v2270 = vsub.f32 %v1181, %v1964
    %v2271 = vsub.f32 %v1182, %v1964
    %v2272 = vsub.f32 %v1183, %v1964
    %v2273 = vsub.f32 %v1184, %v1969
    %v2274 = vsub.f32 %v1185, %v1969
    %v2275 = vsub.f32 %v1186, %v1969
    %v2276 = vsub.f32 %v1187, %v1969
    %v2277 = vsub.f32 %v1188, %v1974
    %v2278 = vsub.f32 %v1189, %v1974
    %v2279 = vsub.f32 %v1190, %v1974
    %v2280 = vsub.f32 %v1191, %v1974
    %v2281 = vsub.f32 %v1192, %v1979
    %v2282 = vsub.f32 %v1193, %v1979
    %v2283 = vsub.f32 %v1194, %v1979
    %v2284 = vsub.f32 %v1195, %v1979
    %v2285 = vsub.f32 %v1196, %v1984
    %v2286 = vsub.f32 %v1197, %v1984
    %v2287 = vsub.f32 %v1198, %v1984
    %v2288 = vsub.f32 %v1199, %v1984
    %v2289 = vsub.f32 %v1200, %v1989
    %v2290 = vsub.f32 %v1201, %v1989
    %v2291 = vsub.f32 %v1202, %v1989
    %v2292 = vsub.f32 %v1203, %v1989
    %v2293 = vsub.f32 %v1204, %v1994
    %v2294 = vsub.f32 %v1205, %v1994
    %v2295 = vsub.f32 %v1206, %v1994
    %v2296 = vsub.f32 %v1207, %v1994
    %v2297 = vsub.f32 %v1208, %v1999
    %v2298 = vsub.f32 %v1209, %v1999
    %v2299 = vsub.f32 %v1210, %v1999
    %v2300 = vsub.f32 %v1211, %v1999
    %v2301 = vsub.f32 %v1212, %v2004
    %v2302 = vsub.f32 %v1213, %v2004
    %v2303 = vsub.f32 %v1214, %v2004
    %v2304 = vsub.f32 %v1215, %v2004
    %v2305 = vsub.f32 %v1216, %v2009
    %v2306 = vsub.f32 %v1217, %v2009
    %v2307 = vsub.f32 %v1218, %v2009
    %v2308 = vsub.f32 %v1219, %v2009
    %v2309 = vsub.f32 %v1220, %v2014
    %v2310 = vsub.f32 %v1221, %v2014
    %v2311 = vsub.f32 %v1222, %v2014
    %v2312 = vsub.f32 %v1223, %v2014
    %v2313 = vsub.f32 %v1224, %v2019
    %v2314 = vsub.f32 %v1225, %v2019
    %v2315 = vsub.f32 %v1226, %v2019
    %v2316 = vsub.f32 %v1227, %v2019
    %v2317 = vsub.f32 %v1228, %v2024
    %v2318 = vsub.f32 %v1229, %v2024
    %v2319 = vsub.f32 %v1230, %v2024
    %v2320 = vsub.f32 %v1231, %v2024
    %v2321 = vsub.f32 %v1232, %v2029
    %v2322 = vsub.f32 %v1233, %v2029
    %v2323 = vsub.f32 %v1234, %v2029
    %v2324 = vsub.f32 %v1235, %v2029
    %v2325 = vsub.f32 %v1236, %v2034
    %v2326 = vsub.f32 %v1237, %v2034
    %v2327 = vsub.f32 %v1238, %v2034
    %v2328 = vsub.f32 %v1239, %v2034
    %v2329 = vsub.f32 %v1240, %v2039
    %v2330 = vsub.f32 %v1241, %v2039
    %v2331 = vsub.f32 %v1242, %v2039
    %v2332 = vsub.f32 %v1243, %v2039
    %v2333 = vsub.f32 %v1244, %v2044
    %v2334 = vsub.f32 %v1245, %v2044
    %v2335 = vsub.f32 %v1246, %v2044
    %v2336 = vsub.f32 %v1247, %v2044
    %v2337 = vsub.f32 %v1248, %v2049
    %v2338 = vsub.f32 %v1249, %v2049
    %v2339 = vsub.f32 %v1250, %v2049
    %v2340 = vsub.f32 %v1251, %v2049
    %v2341 = vsub.f32 %v1252, %v2054
    %v2342 = vsub.f32 %v1253, %v2054
    %v2343 = vsub.f32 %v1254, %v2054
    %v2344 = vsub.f32 %v1255, %v2054
    %v2345 = vsub.f32 %v1256, %v2059
    %v2346 = vsub.f32 %v1257, %v2059
    %v2347 = vsub.f32 %v1258, %v2059
    %v2348 = vsub.f32 %v1259, %v2059
    %v2349 = vsub.f32 %v1260, %v2064
    %v2350 = vsub.f32 %v1261, %v2064
    %v2351 = vsub.f32 %v1262, %v2064
    %v2352 = vsub.f32 %v1263, %v2064
    %v2353 = vsub.f32 %v1264, %v2069
    %v2354 = vsub.f32 %v1265, %v2069
    %v2355 = vsub.f32 %v1266, %v2069
    %v2356 = vsub.f32 %v1267, %v2069
    %v2357 = vsub.f32 %v1268, %v2074
    %v2358 = vsub.f32 %v1269, %v2074
    %v2359 = vsub.f32 %v1270, %v2074
    %v2360 = vsub.f32 %v1271, %v2074
    %v2361 = vsub.f32 %v1272, %v2079
    %v2362 = vsub.f32 %v1273, %v2079
    %v2363 = vsub.f32 %v1274, %v2079
    %v2364 = vsub.f32 %v1275, %v2079
    %v2365 = vsub.f32 %v1276, %v2084
    %v2366 = vsub.f32 %v1277, %v2084
    %v2367 = vsub.f32 %v1278, %v2084
    %v2368 = vsub.f32 %v1279, %v2084
    %v2369 = vsub.f32 %v1280, %v2089
    %v2370 = vsub.f32 %v1281, %v2089
    %v2371 = vsub.f32 %v1282, %v2089
    %v2372 = vsub.f32 %v1283, %v2089
    %v2373 = vsub.f32 %v1284, %v2094
    %v2374 = vsub.f32 %v1285, %v2094
    %v2375 = vsub.f32 %v1286, %v2094
    %v2376 = vsub.f32 %v1287, %v2094
    %v2377 = vsub.f32 %v1288, %v2099
    %v2378 = vsub.f32 %v1289, %v2099
    %v2379 = vsub.f32 %v1290, %v2099
    %v2380 = vsub.f32 %v1291, %v2099
    %v2381 = vsub.f32 %v1292, %v2104
    %v2382 = vsub.f32 %v1293, %v2104
    %v2383 = vsub.f32 %v1294, %v2104
    %v2384 = vsub.f32 %v1295, %v2104
    %v2385 = vsub.f32 %v1296, %v2109
    %v2386 = vsub.f32 %v1297, %v2109
    %v2387 = vsub.f32 %v1298, %v2109
    %v2388 = vsub.f32 %v1299, %v2109
    %v2389 = vsub.f32 %v1300, %v2114
    %v2390 = vsub.f32 %v1301, %v2114
    %v2391 = vsub.f32 %v1302, %v2114
    %v2392 = vsub.f32 %v1303, %v2114
    %v2393 = vsub.f32 %v1304, %v2119
    %v2394 = vsub.f32 %v1305, %v2119
    %v2395 = vsub.f32 %v1306, %v2119
    %v2396 = vsub.f32 %v1307, %v2119
    %v2397 = vsub.f32 %v1308, %v2124
    %v2398 = vsub.f32 %v1309, %v2124
    %v2399 = vsub.f32 %v1310, %v2124
    %v2400 = vsub.f32 %v1311, %v2124
    %v2401 = vsub.f32 %v1312, %v2129
    %v2402 = vsub.f32 %v1313, %v2129
    %v2403 = vsub.f32 %v1314, %v2129
    %v2404 = vsub.f32 %v1315, %v2129
    %v2405 = vsub.f32 %v1316, %v2134
    %v2406 = vsub.f32 %v1317, %v2134
    %v2407 = vsub.f32 %v1318, %v2134
    %v2408 = vsub.f32 %v1319, %v2134
    %v2409 = vsub.f32 %v1320, %v2139
    %v2410 = vsub.f32 %v1321, %v2139
    %v2411 = vsub.f32 %v1322, %v2139
    %v2412 = vsub.f32 %v1323, %v2139
    %v2413 = vsub.f32 %v1324, %v2144
    %v2414 = vsub.f32 %v1325, %v2144
    %v2415 = vsub.f32 %v1326, %v2144
    %v2416 = vsub.f32 %v1327, %v2144
    %v2417 = vsub.f32 %v1328, %v2149
    %v2418 = vsub.f32 %v1329, %v2149
    %v2419 = vsub.f32 %v1330, %v2149
    %v2420 = vsub.f32 %v1331, %v2149
    %v2421 = vsub.f32 %v1332, %v2154
    %v2422 = vsub.f32 %v1333, %v2154
    %v2423 = vsub.f32 %v1334, %v2154
    %v2424 = vsub.f32 %v1335, %v2154
    %v2425 = vsub.f32 %v1336, %v2159
    %v2426 = vsub.f32 %v1337, %v2159
    %v2427 = vsub.f32 %v1338, %v2159
    %v2428 = vsub.f32 %v1339, %v2159
    %v2429 = vsub.f32 %v1340, %v2164
    %v2430 = vsub.f32 %v1341, %v2164
    %v2431 = vsub.f32 %v1342, %v2164
    %v2432 = vsub.f32 %v1343, %v2164
    %v2433 = vsub.f32 %v1344, %v2169
    %v2434 = vsub.f32 %v1345, %v2169
    %v2435 = vsub.f32 %v1346, %v2169
    %v2436 = vsub.f32 %v1347, %v2169
    %v2437 = vsub.f32 %v1348, %v2174
    %v2438 = vsub.f32 %v1349, %v2174
    %v2439 = vsub.f32 %v1350, %v2174
    %v2440 = vsub.f32 %v1351, %v2174
    %v2441 = vsub.f32 %v1352, %v2179
    %v2442 = vsub.f32 %v1353, %v2179
    %v2443 = vsub.f32 %v1354, %v2179
    %v2444 = vsub.f32 %v1355, %v2179
    %v2445 = vsub.f32 %v1356, %v2184
    %v2446 = vsub.f32 %v1357, %v2184
    %v2447 = vsub.f32 %v1358, %v2184
    %v2448 = vsub.f32 %v1359, %v2184
    %v2449 = vsub.f32 %v1360, %v2189
    %v2450 = vsub.f32 %v1361, %v2189
    %v2451 = vsub.f32 %v1362, %v2189
    %v2452 = vsub.f32 %v1363, %v2189
    %v2453 = vsub.f32 %v1364, %v2194
    %v2454 = vsub.f32 %v1365, %v2194
    %v2455 = vsub.f32 %v1366, %v2194
    %v2456 = vsub.f32 %v1367, %v2194
    %v2457 = vsub.f32 %v1368, %v2199
    %v2458 = vsub.f32 %v1369, %v2199
    %v2459 = vsub.f32 %v1370, %v2199
    %v2460 = vsub.f32 %v1371, %v2199
    %v2461 = vsub.f32 %v1372, %v2204
    %v2462 = vsub.f32 %v1373, %v2204
    %v2463 = vsub.f32 %v1374, %v2204
    %v2464 = vsub.f32 %v1375, %v2204
    %v2465 = vsub.f32 %v1376, %v2209
    %v2466 = vsub.f32 %v1377, %v2209
    %v2467 = vsub.f32 %v1378, %v2209
    %v2468 = vsub.f32 %v1379, %v2209
    %v2469 = vsub.f32 %v1380, %v2214
    %v2470 = vsub.f32 %v1381, %v2214
    %v2471 = vsub.f32 %v1382, %v2214
    %v2472 = vsub.f32 %v1383, %v2214
    %v2473 = vsub.f32 %v1384, %v2219
    %v2474 = vsub.f32 %v1385, %v2219
    %v2475 = vsub.f32 %v1386, %v2219
    %v2476 = vsub.f32 %v1387, %v2219
    %v2477 = vmul.f32 %v2221, 1.442695
    %v2478 = vpow.pop %v2477
    %v2479 = vmul.f32 %v2222, 1.442695
    %v2480 = vpow.pop %v2479
    %v2481 = vmul.f32 %v2223, 1.442695
    %v2482 = vpow.pop %v2481
    %v2483 = vmul.f32 %v2224, 1.442695
    %v2484 = vpow.pop %v2483
    %v2485 = vmul.f32 %v2225, 1.442695
    %v2486 = vpow.pop %v2485
    %v2487 = vmul.f32 %v2226, 1.442695
    %v2488 = vpow.pop %v2487
    %v2489 = vmul.f32 %v2227, 1.442695
    %v2490 = vpow.pop %v2489
    %v2491 = vmul.f32 %v2228, 1.442695
    %v2492 = vpow.pop %v2491
    %v2493 = vmul.f32 %v2229, 1.442695
    %v2494 = vpow.pop %v2493
    %v2495 = vmul.f32 %v2230, 1.442695
    %v2496 = vpow.pop %v2495
    %v2497 = vmul.f32 %v2231, 1.442695
    %v2498 = vpow.pop %v2497
    %v2499 = vmul.f32 %v2232, 1.442695
    %v2500 = vpow.pop %v2499
    %v2501 = vmul.f32 %v2233, 1.442695
    %v2502 = vpow.pop %v2501
    %v2503 = vmul.f32 %v2234, 1.442695
    %v2504 = vpow.pop %v2503
    %v2505 = vmul.f32 %v2235, 1.442695
    %v2506 = vpow.pop %v2505
    %v2507 = vmul.f32 %v2236, 1.442695
    %v2508 = vpow.pop %v2507
    %v2509 = vmul.f32 %v2237, 1.442695
    %v2510 = vpow.pop %v2509
    %v2511 = vmul.f32 %v2238, 1.442695
    %v2512 = vpow.pop %v2511
    %v2513 = vmul.f32 %v2239, 1.442695
    %v2514 = vpow.pop %v2513
    %v2515 = vmul.f32 %v2240, 1.442695
    %v2516 = vpow.pop %v2515
    %v2517 = vmul.f32 %v2241, 1.442695
    %v2518 = vpow.pop %v2517
    %v2519 = vmul.f32 %v2242, 1.442695
    %v2520 = vpow.pop %v2519
    %v2521 = vmul.f32 %v2243, 1.442695
    %v2522 = vpow.pop %v2521
    %v2523 = vmul.f32 %v2244, 1.442695
    %v2524 = vpow.pop %v2523
    %v2525 = vmul.f32 %v2245, 1.442695
    %v2526 = vpow.pop %v2525
    %v2527 = vmul.f32 %v2246, 1.442695
    %v2528 = vpow.pop %v2527
    %v2529 = vmul.f32 %v2247, 1.442695
    %v2530 = vpow.pop %v2529
    %v2531 = vmul.f32 %v2248, 1.442695
    %v2532 = vpow.pop %v2531
    %v2533 = vmul.f32 %v2249, 1.442695
    %v2534 = vpow.pop %v2533
    %v2535 = vmul.f32 %v2250, 1.442695
    %v2536 = vpow.pop %v2535
    %v2537 = vmul.f32 %v2251, 1.442695
    %v2538 = vpow.pop %v2537
    %v2539 = vmul.f32 %v2252, 1.442695
    %v2540 = vpow.pop %v2539
    %v2541 = vmul.f32 %v2253, 1.442695
    %v2542 = vpow.pop %v2541
    %v2543 = vmul.f32 %v2254, 1.442695
    %v2544 = vpow.pop %v2543
    %v2545 = vmul.f32 %v2255, 1.442695
    %v2546 = vpow.pop %v2545
    %v2547 = vmul.f32 %v2256, 1.442695
    %v2548 = vpow.pop %v2547
    %v2549 = vmul.f32 %v2257, 1.442695
    %v2550 = vpow.pop %v2549
    %v2551 = vmul.f32 %v2258, 1.442695
    %v2552 = vpow.pop %v2551
    %v2553 = vmul.f32 %v2259, 1.442695
    %v2554 = vpow.pop %v2553
    %v2555 = vmul.f32 %v2260, 1.442695
    %v2556 = vpow.pop %v2555
    %v2557 = vmul.f32 %v2261, 1.442695
    %v2558 = vpow.pop %v2557
    %v2559 = vmul.f32 %v2262, 1.442695
    %v2560 = vpow.pop %v2559
    %v2561 = vmul.f32 %v2263, 1.442695
    %v2562 = vpow.pop %v2561
    %v2563 = vmul.f32 %v2264, 1.442695
    %v2564 = vpow.pop %v2563
    %v2565 = vmul.f32 %v2265, 1.442695
    %v2566 = vpow.pop %v2565
    %v2567 = vmul.f32 %v2266, 1.442695
    %v2568 = vpow.pop %v2567
    %v2569 = vmul.f32 %v2267, 1.442695
    %v2570 = vpow.pop %v2569
    %v2571 = vmul.f32 %v2268, 1.442695
    %v2572 = vpow.pop %v2571
    %v2573 = vmul.f32 %v2269, 1.442695
    %v2574 = vpow.pop %v2573
    %v2575 = vmul.f32 %v2270, 1.442695
    %v2576 = vpow.pop %v2575
    %v2577 = vmul.f32 %v2271, 1.442695
    %v2578 = vpow.pop %v2577
    %v2579 = vmul.f32 %v2272, 1.442695
    %v2580 = vpow.pop %v2579
    %v2581 = vmul.f32 %v2273, 1.442695
    %v2582 = vpow.pop %v2581
    %v2583 = vmul.f32 %v2274, 1.442695
    %v2584 = vpow.pop %v2583
    %v2585 = vmul.f32 %v2275, 1.442695
    %v2586 = vpow.pop %v2585
    %v2587 = vmul.f32 %v2276, 1.442695
    %v2588 = vpow.pop %v2587
    %v2589 = vmul.f32 %v2277, 1.442695
    %v2590 = vpow.pop %v2589
    %v2591 = vmul.f32 %v2278, 1.442695
    %v2592 = vpow.pop %v2591
    %v2593 = vmul.f32 %v2279, 1.442695
    %v2594 = vpow.pop %v2593
    %v2595 = vmul.f32 %v2280, 1.442695
    %v2596 = vpow.pop %v2595
    %v2597 = vmul.f32 %v2281, 1.442695
    %v2598 = vpow.pop %v2597
    %v2599 = vmul.f32 %v2282, 1.442695
    %v2600 = vpow.pop %v2599
    %v2601 = vmul.f32 %v2283, 1.442695
    %v2602 = vpow.pop %v2601
    %v2603 = vmul.f32 %v2284, 1.442695
    %v2604 = vpow.pop %v2603
    %v2605 = vmul.f32 %v2285, 1.442695
    %v2606 = vpow.pop %v2605
    %v2607 = vmul.f32 %v2286, 1.442695
    %v2608 = vpow.pop %v2607
    %v2609 = vmul.f32 %v2287, 1.442695
    %v2610 = vpow.pop %v2609
    %v2611 = vmul.f32 %v2288, 1.442695
    %v2612 = vpow.pop %v2611
    %v2613 = vmul.f32 %v2289, 1.442695
    %v2614 = vpow.pop %v2613
    %v2615 = vmul.f32 %v2290, 1.442695
    %v2616 = vpow.pop %v2615
    %v2617 = vmul.f32 %v2291, 1.442695
    %v2618 = vpow.pop %v2617
    %v2619 = vmul.f32 %v2292, 1.442695
    %v2620 = vpow.pop %v2619
    %v2621 = vmul.f32 %v2293, 1.442695
    %v2622 = vpow.pop %v2621
    %v2623 = vmul.f32 %v2294, 1.442695
    %v2624 = vpow.pop %v2623
    %v2625 = vmul.f32 %v2295, 1.442695
    %v2626 = vpow.pop %v2625
    %v2627 = vmul.f32 %v2296, 1.442695
    %v2628 = vpow.pop %v2627
    %v2629 = vmul.f32 %v2297, 1.442695
    %v2630 = vpow.pop %v2629
    %v2631 = vmul.f32 %v2298, 1.442695
    %v2632 = vpow.pop %v2631
    %v2633 = vmul.f32 %v2299, 1.442695
    %v2634 = vpow.pop %v2633
    %v2635 = vmul.f32 %v2300, 1.442695
    %v2636 = vpow.pop %v2635
    %v2637 = vmul.f32 %v2301, 1.442695
    %v2638 = vpow.pop %v2637
    %v2639 = vmul.f32 %v2302, 1.442695
    %v2640 = vpow.pop %v2639
    %v2641 = vmul.f32 %v2303, 1.442695
    %v2642 = vpow.pop %v2641
    %v2643 = vmul.f32 %v2304, 1.442695
    %v2644 = vpow.pop %v2643
    %v2645 = vmul.f32 %v2305, 1.442695
    %v2646 = vpow.pop %v2645
    %v2647 = vmul.f32 %v2306, 1.442695
    %v2648 = vpow.pop %v2647
    %v2649 = vmul.f32 %v2307, 1.442695
    %v2650 = vpow.pop %v2649
    %v2651 = vmul.f32 %v2308, 1.442695
    %v2652 = vpow.pop %v2651
    %v2653 = vmul.f32 %v2309, 1.442695
    %v2654 = vpow.pop %v2653
    %v2655 = vmul.f32 %v2310, 1.442695
    %v2656 = vpow.pop %v2655
    %v2657 = vmul.f32 %v2311, 1.442695
    %v2658 = vpow.pop %v2657
    %v2659 = vmul.f32 %v2312, 1.442695
    %v2660 = vpow.pop %v2659
    %v2661 = vmul.f32 %v2313, 1.442695
    %v2662 = vpow.pop %v2661
    %v2663 = vmul.f32 %v2314, 1.442695
    %v2664 = vpow.pop %v2663
    %v2665 = vmul.f32 %v2315, 1.442695
    %v2666 = vpow.pop %v2665
    %v2667 = vmul.f32 %v2316, 1.442695
    %v2668 = vpow.pop %v2667
    %v2669 = vmul.f32 %v2317, 1.442695
    %v2670 = vpow.pop %v2669
    %v2671 = vmul.f32 %v2318, 1.442695
    %v2672 = vpow.pop %v2671
    %v2673 = vmul.f32 %v2319, 1.442695
    %v2674 = vpow.pop %v2673
    %v2675 = vmul.f32 %v2320, 1.442695
    %v2676 = vpow.pop %v2675
    %v2677 = vmul.f32 %v2321, 1.442695
    %v2678 = vpow.pop %v2677
    %v2679 = vmul.f32 %v2322, 1.442695
    %v2680 = vpow.pop %v2679
    %v2681 = vmul.f32 %v2323, 1.442695
    %v2682 = vpow.pop %v2681
    %v2683 = vmul.f32 %v2324, 1.442695
    %v2684 = vpow.pop %v2683
    %v2685 = vmul.f32 %v2325, 1.442695
    %v2686 = vpow.pop %v2685
    %v2687 = vmul.f32 %v2326, 1.442695
    %v2688 = vpow.pop %v2687
    %v2689 = vmul.f32 %v2327, 1.442695
    %v2690 = vpow.pop %v2689
    %v2691 = vmul.f32 %v2328, 1.442695
    %v2692 = vpow.pop %v2691
    %v2693 = vmul.f32 %v2329, 1.442695
    %v2694 = vpow.pop %v2693
    %v2695 = vmul.f32 %v2330, 1.442695
    %v2696 = vpow.pop %v2695
    %v2697 = vmul.f32 %v2331, 1.442695
    %v2698 = vpow.pop %v2697
    %v2699 = vmul.f32 %v2332, 1.442695
    %v2700 = vpow.pop %v2699
    %v2701 = vmul.f32 %v2333, 1.442695
    %v2702 = vpow.pop %v2701
    %v2703 = vmul.f32 %v2334, 1.442695
    %v2704 = vpow.pop %v2703
    %v2705 = vmul.f32 %v2335, 1.442695
    %v2706 = vpow.pop %v2705
    %v2707 = vmul.f32 %v2336, 1.442695
    %v2708 = vpow.pop %v2707
    %v2709 = vmul.f32 %v2337, 1.442695
    %v2710 = vpow.pop %v2709
    %v2711 = vmul.f32 %v2338, 1.442695
    %v2712 = vpow.pop %v2711
    %v2713 = vmul.f32 %v2339, 1.442695
    %v2714 = vpow.pop %v2713
    %v2715 = vmul.f32 %v2340, 1.442695
    %v2716 = vpow.pop %v2715
    %v2717 = vmul.f32 %v2341, 1.442695
    %v2718 = vpow.pop %v2717
    %v2719 = vmul.f32 %v2342, 1.442695
    %v2720 = vpow.pop %v2719
    %v2721 = vmul.f32 %v2343, 1.442695
    %v2722 = vpow.pop %v2721
    %v2723 = vmul.f32 %v2344, 1.442695
    %v2724 = vpow.pop %v2723
    %v2725 = vmul.f32 %v2345, 1.442695
    %v2726 = vpow.pop %v2725
    %v2727 = vmul.f32 %v2346, 1.442695
    %v2728 = vpow.pop %v2727
    %v2729 = vmul.f32 %v2347, 1.442695
    %v2730 = vpow.pop %v2729
    %v2731 = vmul.f32 %v2348, 1.442695
    %v2732 = vpow.pop %v2731
    %v2733 = vmul.f32 %v2349, 1.442695
    %v2734 = vpow.pop %v2733
    %v2735 = vmul.f32 %v2350, 1.442695
    %v2736 = vpow.pop %v2735
    %v2737 = vmul.f32 %v2351, 1.442695
    %v2738 = vpow.pop %v2737
    %v2739 = vmul.f32 %v2352, 1.442695
    %v2740 = vpow.pop %v2739
    %v2741 = vmul.f32 %v2353, 1.442695
    %v2742 = vpow.pop %v2741
    %v2743 = vmul.f32 %v2354, 1.442695
    %v2744 = vpow.pop %v2743
    %v2745 = vmul.f32 %v2355, 1.442695
    %v2746 = vpow.pop %v2745
    %v2747 = vmul.f32 %v2356, 1.442695
    %v2748 = vpow.pop %v2747
    %v2749 = vmul.f32 %v2357, 1.442695
    %v2750 = vpow.pop %v2749
    %v2751 = vmul.f32 %v2358, 1.442695
    %v2752 = vpow.pop %v2751
    %v2753 = vmul.f32 %v2359, 1.442695
    %v2754 = vpow.pop %v2753
    %v2755 = vmul.f32 %v2360, 1.442695
    %v2756 = vpow.pop %v2755
    %v2757 = vmul.f32 %v2361, 1.442695
    %v2758 = vpow.pop %v2757
    %v2759 = vmul.f32 %v2362, 1.442695
    %v2760 = vpow.pop %v2759
    %v2761 = vmul.f32 %v2363, 1.442695
    %v2762 = vpow.pop %v2761
    %v2763 = vmul.f32 %v2364, 1.442695
    %v2764 = vpow.pop %v2763
    %v2765 = vmul.f32 %v2365, 1.442695
    %v2766 = vpow.pop %v2765
    %v2767 = vmul.f32 %v2366, 1.442695
    %v2768 = vpow.pop %v2767
    %v2769 = vmul.f32 %v2367, 1.442695
    %v2770 = vpow.pop %v2769
    %v2771 = vmul.f32 %v2368, 1.442695
    %v2772 = vpow.pop %v2771
    %v2773 = vmul.f32 %v2369, 1.442695
    %v2774 = vpow.pop %v2773
    %v2775 = vmul.f32 %v2370, 1.442695
    %v2776 = vpow.pop %v2775
    %v2777 = vmul.f32 %v2371, 1.442695
    %v2778 = vpow.pop %v2777
    %v2779 = vmul.f32 %v2372, 1.442695
    %v2780 = vpow.pop %v2779
    %v2781 = vmul.f32 %v2373, 1.442695
    %v2782 = vpow.pop %v2781
    %v2783 = vmul.f32 %v2374, 1.442695
    %v2784 = vpow.pop %v2783
    %v2785 = vmul.f32 %v2375, 1.442695
    %v2786 = vpow.pop %v2785
    %v2787 = vmul.f32 %v2376, 1.442695
    %v2788 = vpow.pop %v2787
    %v2789 = vmul.f32 %v2377, 1.442695
    %v2790 = vpow.pop %v2789
    %v2791 = vmul.f32 %v2378, 1.442695
    %v2792 = vpow.pop %v2791
    %v2793 = vmul.f32 %v2379, 1.442695
    %v2794 = vpow.pop %v2793
    %v2795 = vmul.f32 %v2380, 1.442695
    %v2796 = vpow.pop %v2795
    %v2797 = vmul.f32 %v2381, 1.442695
    %v2798 = vpow.pop %v2797
    %v2799 = vmul.f32 %v2382, 1.442695
    %v2800 = vpow.pop %v2799
    %v2801 = vmul.f32 %v2383, 1.442695
    %v2802 = vpow.pop %v2801
    %v2803 = vmul.f32 %v2384, 1.442695
    %v2804 = vpow.pop %v2803
    %v2805 = vmul.f32 %v2385, 1.442695
    %v2806 = vpow.pop %v2805
    %v2807 = vmul.f32 %v2386, 1.442695
    %v2808 = vpow.pop %v2807
    %v2809 = vmul.f32 %v2387, 1.442695
    %v2810 = vpow.pop %v2809
    %v2811 = vmul.f32 %v2388, 1.442695
    %v2812 = vpow.pop %v2811
    %v2813 = vmul.f32 %v2389, 1.442695
    %v2814 = vpow.pop %v2813
    %v2815 = vmul.f32 %v2390, 1.442695
    %v2816 = vpow.pop %v2815
    %v2817 = vmul.f32 %v2391, 1.442695
    %v2818 = vpow.pop %v2817
    %v2819 = vmul.f32 %v2392, 1.442695
    %v2820 = vpow.pop %v2819
    %v2821 = vmul.f32 %v2393, 1.442695
    %v2822 = vpow.pop %v2821
    %v2823 = vmul.f32 %v2394, 1.442695
    %v2824 = vpow.pop %v2823
    %v2825 = vmul.f32 %v2395, 1.442695
    %v2826 = vpow.pop %v2825
    %v2827 = vmul.f32 %v2396, 1.442695
    %v2828 = vpow.pop %v2827
    %v2829 = vmul.f32 %v2397, 1.442695
    %v2830 = vpow.pop %v2829
    %v2831 = vmul.f32 %v2398, 1.442695
    %v2832 = vpow.pop %v2831
    %v2833 = vmul.f32 %v2399, 1.442695
    %v2834 = vpow.pop %v2833
    %v2835 = vmul.f32 %v2400, 1.442695
    %v2836 = vpow.pop %v2835
    %v2837 = vmul.f32 %v2401, 1.442695
    %v2838 = vpow.pop %v2837
    %v2839 = vmul.f32 %v2402, 1.442695
    %v2840 = vpow.pop %v2839
    %v2841 = vmul.f32 %v2403, 1.442695
    %v2842 = vpow.pop %v2841
    %v2843 = vmul.f32 %v2404, 1.442695
    %v2844 = vpow.pop %v2843
    %v2845 = vmul.f32 %v2405, 1.442695
    %v2846 = vpow.pop %v2845
    %v2847 = vmul.f32 %v2406, 1.442695
    %v2848 = vpow.pop %v2847
    %v2849 = vmul.f32 %v2407, 1.442695
    %v2850 = vpow.pop %v2849
    %v2851 = vmul.f32 %v2408, 1.442695
    %v2852 = vpow.pop %v2851
    %v2853 = vmul.f32 %v2409, 1.442695
    %v2854 = vpow.pop %v2853
    %v2855 = vmul.f32 %v2410, 1.442695
    %v2856 = vpow.pop %v2855
    %v2857 = vmul.f32 %v2411, 1.442695
    %v2858 = vpow.pop %v2857
    %v2859 = vmul.f32 %v2412, 1.442695
    %v2860 = vpow.pop %v2859
    %v2861 = vmul.f32 %v2413, 1.442695
    %v2862 = vpow.pop %v2861
    %v2863 = vmul.f32 %v2414, 1.442695
    %v2864 = vpow.pop %v2863
    %v2865 = vmul.f32 %v2415, 1.442695
    %v2866 = vpow.pop %v2865
    %v2867 = vmul.f32 %v2416, 1.442695
    %v2868 = vpow.pop %v2867
    %v2869 = vmul.f32 %v2417, 1.442695
    %v2870 = vpow.pop %v2869
    %v2871 = vmul.f32 %v2418, 1.442695
    %v2872 = vpow.pop %v2871
    %v2873 = vmul.f32 %v2419, 1.442695
    %v2874 = vpow.pop %v2873
    %v2875 = vmul.f32 %v2420, 1.442695
    %v2876 = vpow.pop %v2875
    %v2877 = vmul.f32 %v2421, 1.442695
    %v2878 = vpow.pop %v2877
    %v2879 = vmul.f32 %v2422, 1.442695
    %v2880 = vpow.pop %v2879
    %v2881 = vmul.f32 %v2423, 1.442695
    %v2882 = vpow.pop %v2881
    %v2883 = vmul.f32 %v2424, 1.442695
    %v2884 = vpow.pop %v2883
    %v2885 = vmul.f32 %v2425, 1.442695
    %v2886 = vpow.pop %v2885
    %v2887 = vmul.f32 %v2426, 1.442695
    %v2888 = vpow.pop %v2887
    %v2889 = vmul.f32 %v2427, 1.442695
    %v2890 = vpow.pop %v2889
    %v2891 = vmul.f32 %v2428, 1.442695
    %v2892 = vpow.pop %v2891
    %v2893 = vmul.f32 %v2429, 1.442695
    %v2894 = vpow.pop %v2893
    %v2895 = vmul.f32 %v2430, 1.442695
    %v2896 = vpow.pop %v2895
    %v2897 = vmul.f32 %v2431, 1.442695
    %v2898 = vpow.pop %v2897
    %v2899 = vmul.f32 %v2432, 1.442695
    %v2900 = vpow.pop %v2899
    %v2901 = vmul.f32 %v2433, 1.442695
    %v2902 = vpow.pop %v2901
    %v2903 = vmul.f32 %v2434, 1.442695
    %v2904 = vpow.pop %v2903
    %v2905 = vmul.f32 %v2435, 1.442695
    %v2906 = vpow.pop %v2905
    %v2907 = vmul.f32 %v2436, 1.442695
    %v2908 = vpow.pop %v2907
    %v2909 = vmul.f32 %v2437, 1.442695
    %v2910 = vpow.pop %v2909
    %v2911 = vmul.f32 %v2438, 1.442695
    %v2912 = vpow.pop %v2911
    %v2913 = vmul.f32 %v2439, 1.442695
    %v2914 = vpow.pop %v2913
    %v2915 = vmul.f32 %v2440, 1.442695
    %v2916 = vpow.pop %v2915
    %v2917 = vmul.f32 %v2441, 1.442695
    %v2918 = vpow.pop %v2917
    %v2919 = vmul.f32 %v2442, 1.442695
    %v2920 = vpow.pop %v2919
    %v2921 = vmul.f32 %v2443, 1.442695
    %v2922 = vpow.pop %v2921
    %v2923 = vmul.f32 %v2444, 1.442695
    %v2924 = vpow.pop %v2923
    %v2925 = vmul.f32 %v2445, 1.442695
    %v2926 = vpow.pop %v2925
    %v2927 = vmul.f32 %v2446, 1.442695
    %v2928 = vpow.pop %v2927
    %v2929 = vmul.f32 %v2447, 1.442695
    %v2930 = vpow.pop %v2929
    %v2931 = vmul.f32 %v2448, 1.442695
    %v2932 = vpow.pop %v2931
    %v2933 = vmul.f32 %v2449, 1.442695
    %v2934 = vpow.pop %v2933
    %v2935 = vmul.f32 %v2450, 1.442695
    %v2936 = vpow.pop %v2935
    %v2937 = vmul.f32 %v2451, 1.442695
    %v2938 = vpow.pop %v2937
    %v2939 = vmul.f32 %v2452, 1.442695
    %v2940 = vpow.pop %v2939
    %v2941 = vmul.f32 %v2453, 1.442695
    %v2942 = vpow.pop %v2941
    %v2943 = vmul.f32 %v2454, 1.442695
    %v2944 = vpow.pop %v2943
    %v2945 = vmul.f32 %v2455, 1.442695
    %v2946 = vpow.pop %v2945
    %v2947 = vmul.f32 %v2456, 1.442695
    %v2948 = vpow.pop %v2947
    %v2949 = vmul.f32 %v2457, 1.442695
    %v2950 = vpow.pop %v2949
    %v2951 = vmul.f32 %v2458, 1.442695
    %v2952 = vpow.pop %v2951
    %v2953 = vmul.f32 %v2459, 1.442695
    %v2954 = vpow.pop %v2953
    %v2955 = vmul.f32 %v2460, 1.442695
    %v2956 = vpow.pop %v2955
    %v2957 = vmul.f32 %v2461, 1.442695
    %v2958 = vpow.pop %v2957
    %v2959 = vmul.f32 %v2462, 1.442695
    %v2960 = vpow.pop %v2959
    %v2961 = vmul.f32 %v2463, 1.442695
    %v2962 = vpow.pop %v2961
    %v2963 = vmul.f32 %v2464, 1.442695
    %v2964 = vpow.pop %v2963
    %v2965 = vmul.f32 %v2465, 1.442695
    %v2966 = vpow.pop %v2965
    %v2967 = vmul.f32 %v2466, 1.442695
    %v2968 = vpow.pop %v2967
    %v2969 = vmul.f32 %v2467, 1.442695
    %v2970 = vpow.pop %v2969
    %v2971 = vmul.f32 %v2468, 1.442695
    %v2972 = vpow.pop %v2971
    %v2973 = vmul.f32 %v2469, 1.442695
    %v2974 = vpow.pop %v2973
    %v2975 = vmul.f32 %v2470, 1.442695
    %v2976 = vpow.pop %v2975
    %v2977 = vmul.f32 %v2471, 1.442695
    %v2978 = vpow.pop %v2977
    %v2979 = vmul.f32 %v2472, 1.442695
    %v2980 = vpow.pop %v2979
    %v2981 = vmul.f32 %v2473, 1.442695
    %v2982 = vpow.pop %v2981
    %v2983 = vmul.f32 %v2474, 1.442695
    %v2984 = vpow.pop %v2983
    %v2985 = vmul.f32 %v2475, 1.442695
    %v2986 = vpow.pop %v2985
    %v2987 = vmul.f32 %v2476, 1.442695
    %v2988 = vpow.pop %v2987
    %v2989 = vsub.f32 %v1453, %v1837
    %v2990 = vsub.f32 %v1454, %v1838
    %v2991 = vsub.f32 %v1455, %v1839
    %v2992 = vsub.f32 %v1456, %v1840
    %v2993 = vsub.f32 %v1457, %v1841
    %v2994 = vsub.f32 %v1458, %v1842
    %v2995 = vsub.f32 %v1459, %v1843
    %v2996 = vsub.f32 %v1460, %v1844
    %v2997 = vsub.f32 %v1461, %v1845
    %v2998 = vsub.f32 %v1462, %v1846
    %v2999 = vsub.f32 %v1463, %v1847
    %v3000 = vsub.f32 %v1464, %v1848
    %v3001 = vsub.f32 %v1465, %v1849
    %v3002 = vsub.f32 %v1466, %v1850
    %v3003 = vsub.f32 %v1467, %v1851
    %v3004 = vsub.f32 %v1468, %v1852
    %v3005 = vsub.f32 %v1469, %v1853
    %v3006 = vsub.f32 %v1470, %v1854
    %v3007 = vsub.f32 %v1471, %v1855
    %v3008 = vsub.f32 %v1472, %v1856
    %v3009 = vsub.f32 %v1473, %v1857
    %v3010 = vsub.f32 %v1474, %v1858
    %v3011 = vsub.f32 %v1475, %v1859
    %v3012 = vsub.f32 %v1476, %v1860
    %v3013 = vsub.f32 %v1477, %v1861
    %v3014 = vsub.f32 %v1478, %v1862
    %v3015 = vsub.f32 %v1479, %v1863
    %v3016 = vsub.f32 %v1480, %v1864
    %v3017 = vsub.f32 %v1481, %v1865
    %v3018 = vsub.f32 %v1482, %v1866
    %v3019 = vsub.f32 %v1483, %v1867
    %v3020 = vsub.f32 %v1484, %v1868
    %v3021 = vsub.f32 %v1485, %v1869
    %v3022 = vsub.f32 %v1486, %v1870
    %v3023 = vsub.f32 %v1487, %v1871
    %v3024 = vsub.f32 %v1488, %v1872
    %v3025 = vsub.f32 %v1489, %v1873
    %v3026 = vsub.f32 %v1490, %v1874
    %v3027 = vsub.f32 %v1491, %v1875
    %v3028 = vsub.f32 %v1492, %v1876
    %v3029 = vsub.f32 %v1493, %v1877
    %v3030 = vsub.f32 %v1494, %v1878
    %v3031 = vsub.f32 %v1495, %v1879
    %v3032 = vsub.f32 %v1496, %v1880
    %v3033 = vsub.f32 %v1497, %v1881
    %v3034 = vsub.f32 %v1498, %v1882
    %v3035 = vsub.f32 %v1499, %v1883
    %v3036 = vsub.f32 %v1500, %v1884
    %v3037 = vsub.f32 %v1501, %v1885
    %v3038 = vsub.f32 %v1502, %v1886
    %v3039 = vsub.f32 %v1503, %v1887
    %v3040 = vsub.f32 %v1504, %v1888
    %v3041 = vsub.f32 %v1505, %v1889
    %v3042 = vsub.f32 %v1506, %v1890
    %v3043 = vsub.f32 %v1507, %v1891
    %v3044 = vsub.f32 %v1508, %v1892
    %v3045 = vsub.f32 %v1509, %v1893
    %v3046 = vsub.f32 %v1510, %v1894
    %v3047 = vsub.f32 %v1511, %v1895
    %v3048 = vsub.f32 %v1512, %v1896
    %v3049 = vsub.f32 %v1513, %v1897
    %v3050 = vsub.f32 %v1514, %v1898
    %v3051 = vsub.f32 %v1515, %v1899
    %v3052 = vsub.f32 %v1516, %v1900
    %v3053 = vmul.f32 %v2989, 1.442695
    %v3054 = vpow.pop %v3053
    %v3055 = vmul.f32 %v2990, 1.442695
    %v3056 = vpow.pop %v3055
    %v3057 = vmul.f32 %v2991, 1.442695
    %v3058 = vpow.pop %v3057
    %v3059 = vmul.f32 %v2992, 1.442695
    %v3060 = vpow.pop %v3059
    %v3061 = vmul.f32 %v2993, 1.442695
    %v3062 = vpow.pop %v3061
    %v3063 = vmul.f32 %v2994, 1.442695
    %v3064 = vpow.pop %v3063
    %v3065 = vmul.f32 %v2995, 1.442695
    %v3066 = vpow.pop %v3065
    %v3067 = vmul.f32 %v2996, 1.442695
    %v3068 = vpow.pop %v3067
    %v3069 = vmul.f32 %v2997, 1.442695
    %v3070 = vpow.pop %v3069
    %v3071 = vmul.f32 %v2998, 1.442695
    %v3072 = vpow.pop %v3071
    %v3073 = vmul.f32 %v2999, 1.442695
    %v3074 = vpow.pop %v3073
    %v3075 = vmul.f32 %v3000, 1.442695
    %v3076 = vpow.pop %v3075
    %v3077 = vmul.f32 %v3001, 1.442695
    %v3078 = vpow.pop %v3077
    %v3079 = vmul.f32 %v3002, 1.442695
    %v3080 = vpow.pop %v3079
    %v3081 = vmul.f32 %v3003, 1.442695
    %v3082 = vpow.pop %v3081
    %v3083 = vmul.f32 %v3004, 1.442695
    %v3084 = vpow.pop %v3083
    %v3085 = vmul.f32 %v3005, 1.442695
    %v3086 = vpow.pop %v3085
    %v3087 = vmul.f32 %v3006, 1.442695
    %v3088 = vpow.pop %v3087
    %v3089 = vmul.f32 %v3007, 1.442695
    %v3090 = vpow.pop %v3089
    %v3091 = vmul.f32 %v3008, 1.442695
    %v3092 = vpow.pop %v3091
    %v3093 = vmul.f32 %v3009, 1.442695
    %v3094 = vpow.pop %v3093
    %v3095 = vmul.f32 %v3010, 1.442695
    %v3096 = vpow.pop %v3095
    %v3097 = vmul.f32 %v3011, 1.442695
    %v3098 = vpow.pop %v3097
    %v3099 = vmul.f32 %v3012, 1.442695
    %v3100 = vpow.pop %v3099
    %v3101 = vmul.f32 %v3013, 1.442695
    %v3102 = vpow.pop %v3101
    %v3103 = vmul.f32 %v3014, 1.442695
    %v3104 = vpow.pop %v3103
    %v3105 = vmul.f32 %v3015, 1.442695
    %v3106 = vpow.pop %v3105
    %v3107 = vmul.f32 %v3016, 1.442695
    %v3108 = vpow.pop %v3107
    %v3109 = vmul.f32 %v3017, 1.442695
    %v3110 = vpow.pop %v3109
    %v3111 = vmul.f32 %v3018, 1.442695
    %v3112 = vpow.pop %v3111
    %v3113 = vmul.f32 %v3019, 1.442695
    %v3114 = vpow.pop %v3113
    %v3115 = vmul.f32 %v3020, 1.442695
    %v3116 = vpow.pop %v3115
    %v3117 = vmul.f32 %v3021, 1.442695
    %v3118 = vpow.pop %v3117
    %v3119 = vmul.f32 %v3022, 1.442695
    %v3120 = vpow.pop %v3119
    %v3121 = vmul.f32 %v3023, 1.442695
    %v3122 = vpow.pop %v3121
    %v3123 = vmul.f32 %v3024, 1.442695
    %v3124 = vpow.pop %v3123
    %v3125 = vmul.f32 %v3025, 1.442695
    %v3126 = vpow.pop %v3125
    %v3127 = vmul.f32 %v3026, 1.442695
    %v3128 = vpow.pop %v3127
    %v3129 = vmul.f32 %v3027, 1.442695
    %v3130 = vpow.pop %v3129
    %v3131 = vmul.f32 %v3028, 1.442695
    %v3132 = vpow.pop %v3131
    %v3133 = vmul.f32 %v3029, 1.442695
    %v3134 = vpow.pop %v3133
    %v3135 = vmul.f32 %v3030, 1.442695
    %v3136 = vpow.pop %v3135
    %v3137 = vmul.f32 %v3031, 1.442695
    %v3138 = vpow.pop %v3137
    %v3139 = vmul.f32 %v3032, 1.442695
    %v3140 = vpow.pop %v3139
    %v3141 = vmul.f32 %v3033, 1.442695
    %v3142 = vpow.pop %v3141
    %v3143 = vmul.f32 %v3034, 1.442695
    %v3144 = vpow.pop %v3143
    %v3145 = vmul.f32 %v3035, 1.442695
    %v3146 = vpow.pop %v3145
    %v3147 = vmul.f32 %v3036, 1.442695
    %v3148 = vpow.pop %v3147
    %v3149 = vmul.f32 %v3037, 1.442695
    %v3150 = vpow.pop %v3149
    %v3151 = vmul.f32 %v3038, 1.442695
    %v3152 = vpow.pop %v3151
    %v3153 = vmul.f32 %v3039, 1.442695
    %v3154 = vpow.pop %v3153
    %v3155 = vmul.f32 %v3040, 1.442695
    %v3156 = vpow.pop %v3155
    %v3157 = vmul.f32 %v3041, 1.442695
    %v3158 = vpow.pop %v3157
    %v3159 = vmul.f32 %v3042, 1.442695
    %v3160 = vpow.pop %v3159
    %v3161 = vmul.f32 %v3043, 1.442695
    %v3162 = vpow.pop %v3161
    %v3163 = vmul.f32 %v3044, 1.442695
    %v3164 = vpow.pop %v3163
    %v3165 = vmul.f32 %v3045, 1.442695
    %v3166 = vpow.pop %v3165
    %v3167 = vmul.f32 %v3046, 1.442695
    %v3168 = vpow.pop %v3167
    %v3169 = vmul.f32 %v3047, 1.442695
    %v3170 = vpow.pop %v3169
    %v3171 = vmul.f32 %v3048, 1.442695
    %v3172 = vpow.pop %v3171
    %v3173 = vmul.f32 %v3049, 1.442695
    %v3174 = vpow.pop %v3173
    %v3175 = vmul.f32 %v3050, 1.442695
    %v3176 = vpow.pop %v3175
    %v3177 = vmul.f32 %v3051, 1.442695
    %v3178 = vpow.pop %v3177
    %v3179 = vmul.f32 %v3052, 1.442695
    %v3180 = vpow.pop %v3179
    %3245 = vrot.lane.b32.xlu0 %v1453, 127
    %v3246 = vpop.permute.xlu0 %3245
    %3247 = vrot.lane.b32.xlu0 %v1454, 127
    %v3248 = vpop.permute.xlu0 %3247
    %3249 = vrot.lane.b32.xlu0 %v1455, 127
    %v3250 = vpop.permute.xlu0 %3249
    %3251 = vrot.lane.b32.xlu0 %v1456, 127
    %v3252 = vpop.permute.xlu0 %3251
    %3253 = vrot.lane.b32.xlu0 %v1457, 127
    %v3254 = vpop.permute.xlu0 %3253
    %3255 = vrot.lane.b32.xlu0 %v1458, 127
    %v3256 = vpop.permute.xlu0 %3255
    %3257 = vrot.lane.b32.xlu0 %v1459, 127
    %v3258 = vpop.permute.xlu0 %3257
    %3259 = vrot.lane.b32.xlu0 %v1460, 127
    %v3260 = vpop.permute.xlu0 %3259
    %3261 = vrot.lane.b32.xlu0 %v1461, 127
    %v3262 = vpop.permute.xlu0 %3261
    %3263 = vrot.lane.b32.xlu0 %v1462, 127
    %v3264 = vpop.permute.xlu0 %3263
    %3265 = vrot.lane.b32.xlu0 %v1463, 127
    %v3266 = vpop.permute.xlu0 %3265
    %3267 = vrot.lane.b32.xlu0 %v1464, 127
    %v3268 = vpop.permute.xlu0 %3267
    %3269 = vrot.lane.b32.xlu0 %v1465, 127
    %v3270 = vpop.permute.xlu0 %3269
    %3271 = vrot.lane.b32.xlu0 %v1466, 127
    %v3272 = vpop.permute.xlu0 %3271
    %3273 = vrot.lane.b32.xlu0 %v1467, 127
    %v3274 = vpop.permute.xlu0 %3273
    %3275 = vrot.lane.b32.xlu0 %v1468, 127
    %v3276 = vpop.permute.xlu0 %3275
    %3277 = vrot.lane.b32.xlu0 %v1469, 127
    %v3278 = vpop.permute.xlu0 %3277
    %3279 = vrot.lane.b32.xlu0 %v1470, 127
    %v3280 = vpop.permute.xlu0 %3279
    %3281 = vrot.lane.b32.xlu0 %v1471, 127
    %v3282 = vpop.permute.xlu0 %3281
    %3283 = vrot.lane.b32.xlu0 %v1472, 127
    %v3284 = vpop.permute.xlu0 %3283
    %3285 = vrot.lane.b32.xlu0 %v1473, 127
    %v3286 = vpop.permute.xlu0 %3285
    %3287 = vrot.lane.b32.xlu0 %v1474, 127
    %v3288 = vpop.permute.xlu0 %3287
    %3289 = vrot.lane.b32.xlu0 %v1475, 127
    %v3290 = vpop.permute.xlu0 %3289
    %3291 = vrot.lane.b32.xlu0 %v1476, 127
    %v3292 = vpop.permute.xlu0 %3291
    %3293 = vrot.lane.b32.xlu0 %v1477, 127
    %v3294 = vpop.permute.xlu0 %3293
    %3295 = vrot.lane.b32.xlu0 %v1478, 127
    %v3296 = vpop.permute.xlu0 %3295
    %3297 = vrot.lane.b32.xlu0 %v1479, 127
    %v3298 = vpop.permute.xlu0 %3297
    %3299 = vrot.lane.b32.xlu0 %v1480, 127
    %v3300 = vpop.permute.xlu0 %3299
    %3301 = vrot.lane.b32.xlu0 %v1481, 127
    %v3302 = vpop.permute.xlu0 %3301
    %3303 = vrot.lane.b32.xlu0 %v1482, 127
    %v3304 = vpop.permute.xlu0 %3303
    %3305 = vrot.lane.b32.xlu0 %v1483, 127
    %v3306 = vpop.permute.xlu0 %3305
    %3307 = vrot.lane.b32.xlu0 %v1484, 127
    %v3308 = vpop.permute.xlu0 %3307
    %3309 = vrot.lane.b32.xlu0 %v1485, 127
    %v3310 = vpop.permute.xlu0 %3309
    %3311 = vrot.lane.b32.xlu0 %v1486, 127
    %v3312 = vpop.permute.xlu0 %3311
    %3313 = vrot.lane.b32.xlu0 %v1487, 127
    %v3314 = vpop.permute.xlu0 %3313
    %3315 = vrot.lane.b32.xlu0 %v1488, 127
    %v3316 = vpop.permute.xlu0 %3315
    %3317 = vrot.lane.b32.xlu0 %v1489, 127
    %v3318 = vpop.permute.xlu0 %3317
    %3319 = vrot.lane.b32.xlu0 %v1490, 127
    %v3320 = vpop.permute.xlu0 %3319
    %3321 = vrot.lane.b32.xlu0 %v1491, 127
    %v3322 = vpop.permute.xlu0 %3321
    %3323 = vrot.lane.b32.xlu0 %v1492, 127
    %v3324 = vpop.permute.xlu0 %3323
    %3325 = vrot.lane.b32.xlu0 %v1493, 127
    %v3326 = vpop.permute.xlu0 %3325
    %3327 = vrot.lane.b32.xlu0 %v1494, 127
    %v3328 = vpop.permute.xlu0 %3327
    %3329 = vrot.lane.b32.xlu0 %v1495, 127
    %v3330 = vpop.permute.xlu0 %3329
    %3331 = vrot.lane.b32.xlu0 %v1496, 127
    %v3332 = vpop.permute.xlu0 %3331
    %3333 = vrot.lane.b32.xlu0 %v1497, 127
    %v3334 = vpop.permute.xlu0 %3333
    %3335 = vrot.lane.b32.xlu0 %v1498, 127
    %v3336 = vpop.permute.xlu0 %3335
    %3337 = vrot.lane.b32.xlu0 %v1499, 127
    %v3338 = vpop.permute.xlu0 %3337
    %3339 = vrot.lane.b32.xlu0 %v1500, 127
    %v3340 = vpop.permute.xlu0 %3339
    %3341 = vrot.lane.b32.xlu0 %v1501, 127
    %v3342 = vpop.permute.xlu0 %3341
    %3343 = vrot.lane.b32.xlu0 %v1502, 127
    %v3344 = vpop.permute.xlu0 %3343
    %3345 = vrot.lane.b32.xlu0 %v1503, 127
    %v3346 = vpop.permute.xlu0 %3345
    %3347 = vrot.lane.b32.xlu0 %v1504, 127
    %v3348 = vpop.permute.xlu0 %3347
    %3349 = vrot.lane.b32.xlu0 %v1505, 127
    %v3350 = vpop.permute.xlu0 %3349
    %3351 = vrot.lane.b32.xlu0 %v1506, 127
    %v3352 = vpop.permute.xlu0 %3351
    %3353 = vrot.lane.b32.xlu0 %v1507, 127
    %v3354 = vpop.permute.xlu0 %3353
    %3355 = vrot.lane.b32.xlu0 %v1508, 127
    %v3356 = vpop.permute.xlu0 %3355
    %3357 = vrot.lane.b32.xlu0 %v1509, 127
    %v3358 = vpop.permute.xlu0 %3357
    %3359 = vrot.lane.b32.xlu0 %v1510, 127
    %v3360 = vpop.permute.xlu0 %3359
    %3361 = vrot.lane.b32.xlu0 %v1511, 127
    %v3362 = vpop.permute.xlu0 %3361
    %3363 = vrot.lane.b32.xlu0 %v1512, 127
    %v3364 = vpop.permute.xlu0 %3363
    %3365 = vrot.lane.b32.xlu0 %v1513, 127
    %v3366 = vpop.permute.xlu0 %3365
    %3367 = vrot.lane.b32.xlu0 %v1514, 127
    %v3368 = vpop.permute.xlu0 %3367
    %3369 = vrot.lane.b32.xlu0 %v1515, 127
    %v3370 = vpop.permute.xlu0 %3369
    %3371 = vrot.lane.b32.xlu0 %v1516, 127
    %v3372 = vpop.permute.xlu0 %3371
    %v3437 = vmul.f32 %v3054, %v3246
    %v3438 = vmul.f32 %v3056, %v3248
    %v3439 = vmul.f32 %v3058, %v3250
    %v3440 = vmul.f32 %v3060, %v3252
    %v3441 = vmul.f32 %v3062, %v3254
    %v3442 = vmul.f32 %v3064, %v3256
    %v3443 = vmul.f32 %v3066, %v3258
    %v3444 = vmul.f32 %v3068, %v3260
    %v3445 = vmul.f32 %v3070, %v3262
    %v3446 = vmul.f32 %v3072, %v3264
    %v3447 = vmul.f32 %v3074, %v3266
    %v3448 = vmul.f32 %v3076, %v3268
    %v3449 = vmul.f32 %v3078, %v3270
    %v3450 = vmul.f32 %v3080, %v3272
    %v3451 = vmul.f32 %v3082, %v3274
    %v3452 = vmul.f32 %v3084, %v3276
    %v3453 = vmul.f32 %v3086, %v3278
    %v3454 = vmul.f32 %v3088, %v3280
    %v3455 = vmul.f32 %v3090, %v3282
    %v3456 = vmul.f32 %v3092, %v3284
    %v3457 = vmul.f32 %v3094, %v3286
    %v3458 = vmul.f32 %v3096, %v3288
    %v3459 = vmul.f32 %v3098, %v3290
    %v3460 = vmul.f32 %v3100, %v3292
    %v3461 = vmul.f32 %v3102, %v3294
    %v3462 = vmul.f32 %v3104, %v3296
    %v3463 = vmul.f32 %v3106, %v3298
    %v3464 = vmul.f32 %v3108, %v3300
    %v3465 = vmul.f32 %v3110, %v3302
    %v3466 = vmul.f32 %v3112, %v3304
    %v3467 = vmul.f32 %v3114, %v3306
    %v3468 = vmul.f32 %v3116, %v3308
    %v3469 = vmul.f32 %v3118, %v3310
    %v3470 = vmul.f32 %v3120, %v3312
    %v3471 = vmul.f32 %v3122, %v3314
    %v3472 = vmul.f32 %v3124, %v3316
    %v3473 = vmul.f32 %v3126, %v3318
    %v3474 = vmul.f32 %v3128, %v3320
    %v3475 = vmul.f32 %v3130, %v3322
    %v3476 = vmul.f32 %v3132, %v3324
    %v3477 = vmul.f32 %v3134, %v3326
    %v3478 = vmul.f32 %v3136, %v3328
    %v3479 = vmul.f32 %v3138, %v3330
    %v3480 = vmul.f32 %v3140, %v3332
    %v3481 = vmul.f32 %v3142, %v3334
    %v3482 = vmul.f32 %v3144, %v3336
    %v3483 = vmul.f32 %v3146, %v3338
    %v3484 = vmul.f32 %v3148, %v3340
    %v3485 = vmul.f32 %v3150, %v3342
    %v3486 = vmul.f32 %v3152, %v3344
    %v3487 = vmul.f32 %v3154, %v3346
    %v3488 = vmul.f32 %v3156, %v3348
    %v3489 = vmul.f32 %v3158, %v3350
    %v3490 = vmul.f32 %v3160, %v3352
    %v3491 = vmul.f32 %v3162, %v3354
    %v3492 = vmul.f32 %v3164, %v3356
    %v3493 = vmul.f32 %v3166, %v3358
    %v3494 = vmul.f32 %v3168, %v3360
    %v3495 = vmul.f32 %v3170, %v3362
    %v3496 = vmul.f32 %v3172, %v3364
    %v3497 = vmul.f32 %v3174, %v3366
    %v3498 = vmul.f32 %v3176, %v3368
    %v3499 = vmul.f32 %v3178, %v3370
    %v3500 = vmul.f32 %v3180, %v3372
    %v3501 = vadd.f32 %v2478, %v2480
    %v3502 = vadd.f32 %v3501, %v2482
    %v3503 = vadd.f32 %v3502, %v2484
    %3504 = vadd.xlane.f32.xlu0 %v3503
    %v3505 = vpop.xlane.xlu0 %3504
    %v3506 = vadd.f32 %v2486, %v2488
    %v3507 = vadd.f32 %v3506, %v2490
    %v3508 = vadd.f32 %v3507, %v2492
    %3509 = vadd.xlane.f32.xlu0 %v3508
    %v3510 = vpop.xlane.xlu0 %3509
    %v3511 = vadd.f32 %v2494, %v2496
    %v3512 = vadd.f32 %v3511, %v2498
    %v3513 = vadd.f32 %v3512, %v2500
    %3514 = vadd.xlane.f32.xlu0 %v3513
    %v3515 = vpop.xlane.xlu0 %3514
    %v3516 = vadd.f32 %v2502, %v2504
    %v3517 = vadd.f32 %v3516, %v2506
    %v3518 = vadd.f32 %v3517, %v2508
    %3519 = vadd.xlane.f32.xlu0 %v3518
    %v3520 = vpop.xlane.xlu0 %3519
    %v3521 = vadd.f32 %v2510, %v2512
    %v3522 = vadd.f32 %v3521, %v2514
    %v3523 = vadd.f32 %v3522, %v2516
    %3524 = vadd.xlane.f32.xlu0 %v3523
    %v3525 = vpop.xlane.xlu0 %3524
    %v3526 = vadd.f32 %v2518, %v2520
    %v3527 = vadd.f32 %v3526, %v2522
    %v3528 = vadd.f32 %v3527, %v2524
    %3529 = vadd.xlane.f32.xlu0 %v3528
    %v3530 = vpop.xlane.xlu0 %3529
    %v3531 = vadd.f32 %v2526, %v2528
    %v3532 = vadd.f32 %v3531, %v2530
    %v3533 = vadd.f32 %v3532, %v2532
    %3534 = vadd.xlane.f32.xlu0 %v3533
    %v3535 = vpop.xlane.xlu0 %3534
    %v3536 = vadd.f32 %v2534, %v2536
    %v3537 = vadd.f32 %v3536, %v2538
    %v3538 = vadd.f32 %v3537, %v2540
    %3539 = vadd.xlane.f32.xlu0 %v3538
    %v3540 = vpop.xlane.xlu0 %3539
    %v3541 = vadd.f32 %v2542, %v2544
    %v3542 = vadd.f32 %v3541, %v2546
    %v3543 = vadd.f32 %v3542, %v2548
    %3544 = vadd.xlane.f32.xlu0 %v3543
    %v3545 = vpop.xlane.xlu0 %3544
    %v3546 = vadd.f32 %v2550, %v2552
    %v3547 = vadd.f32 %v3546, %v2554
    %v3548 = vadd.f32 %v3547, %v2556
    %3549 = vadd.xlane.f32.xlu0 %v3548
    %v3550 = vpop.xlane.xlu0 %3549
    %v3551 = vadd.f32 %v2558, %v2560
    %v3552 = vadd.f32 %v3551, %v2562
    %v3553 = vadd.f32 %v3552, %v2564
    %3554 = vadd.xlane.f32.xlu0 %v3553
    %v3555 = vpop.xlane.xlu0 %3554
    %v3556 = vadd.f32 %v2566, %v2568
    %v3557 = vadd.f32 %v3556, %v2570
    %v3558 = vadd.f32 %v3557, %v2572
    %3559 = vadd.xlane.f32.xlu0 %v3558
    %v3560 = vpop.xlane.xlu0 %3559
    %v3561 = vadd.f32 %v2574, %v2576
    %v3562 = vadd.f32 %v3561, %v2578
    %v3563 = vadd.f32 %v3562, %v2580
    %3564 = vadd.xlane.f32.xlu0 %v3563
    %v3565 = vpop.xlane.xlu0 %3564
    %v3566 = vadd.f32 %v2582, %v2584
    %v3567 = vadd.f32 %v3566, %v2586
    %v3568 = vadd.f32 %v3567, %v2588
    %3569 = vadd.xlane.f32.xlu0 %v3568
    %v3570 = vpop.xlane.xlu0 %3569
    %v3571 = vadd.f32 %v2590, %v2592
    %v3572 = vadd.f32 %v3571, %v2594
    %v3573 = vadd.f32 %v3572, %v2596
    %3574 = vadd.xlane.f32.xlu0 %v3573
    %v3575 = vpop.xlane.xlu0 %3574
    %v3576 = vadd.f32 %v2598, %v2600
    %v3577 = vadd.f32 %v3576, %v2602
    %v3578 = vadd.f32 %v3577, %v2604
    %3579 = vadd.xlane.f32.xlu0 %v3578
    %v3580 = vpop.xlane.xlu0 %3579
    %v3581 = vadd.f32 %v2606, %v2608
    %v3582 = vadd.f32 %v3581, %v2610
    %v3583 = vadd.f32 %v3582, %v2612
    %3584 = vadd.xlane.f32.xlu0 %v3583
    %v3585 = vpop.xlane.xlu0 %3584
    %v3586 = vadd.f32 %v2614, %v2616
    %v3587 = vadd.f32 %v3586, %v2618
    %v3588 = vadd.f32 %v3587, %v2620
    %3589 = vadd.xlane.f32.xlu0 %v3588
    %v3590 = vpop.xlane.xlu0 %3589
    %v3591 = vadd.f32 %v2622, %v2624
    %v3592 = vadd.f32 %v3591, %v2626
    %v3593 = vadd.f32 %v3592, %v2628
    %3594 = vadd.xlane.f32.xlu0 %v3593
    %v3595 = vpop.xlane.xlu0 %3594
    %v3596 = vadd.f32 %v2630, %v2632
    %v3597 = vadd.f32 %v3596, %v2634
    %v3598 = vadd.f32 %v3597, %v2636
    %3599 = vadd.xlane.f32.xlu0 %v3598
    %v3600 = vpop.xlane.xlu0 %3599
    %v3601 = vadd.f32 %v2638, %v2640
    %v3602 = vadd.f32 %v3601, %v2642
    %v3603 = vadd.f32 %v3602, %v2644
    %3604 = vadd.xlane.f32.xlu0 %v3603
    %v3605 = vpop.xlane.xlu0 %3604
    %v3606 = vadd.f32 %v2646, %v2648
    %v3607 = vadd.f32 %v3606, %v2650
    %v3608 = vadd.f32 %v3607, %v2652
    %3609 = vadd.xlane.f32.xlu0 %v3608
    %v3610 = vpop.xlane.xlu0 %3609
    %v3611 = vadd.f32 %v2654, %v2656
    %v3612 = vadd.f32 %v3611, %v2658
    %v3613 = vadd.f32 %v3612, %v2660
    %3614 = vadd.xlane.f32.xlu0 %v3613
    %v3615 = vpop.xlane.xlu0 %3614
    %v3616 = vadd.f32 %v2662, %v2664
    %v3617 = vadd.f32 %v3616, %v2666
    %v3618 = vadd.f32 %v3617, %v2668
    %3619 = vadd.xlane.f32.xlu0 %v3618
    %v3620 = vpop.xlane.xlu0 %3619
    %v3621 = vadd.f32 %v2670, %v2672
    %v3622 = vadd.f32 %v3621, %v2674
    %v3623 = vadd.f32 %v3622, %v2676
    %3624 = vadd.xlane.f32.xlu0 %v3623
    %v3625 = vpop.xlane.xlu0 %3624
    %v3626 = vadd.f32 %v2678, %v2680
    %v3627 = vadd.f32 %v3626, %v2682
    %v3628 = vadd.f32 %v3627, %v2684
    %3629 = vadd.xlane.f32.xlu0 %v3628
    %v3630 = vpop.xlane.xlu0 %3629
    %v3631 = vadd.f32 %v2686, %v2688
    %v3632 = vadd.f32 %v3631, %v2690
    %v3633 = vadd.f32 %v3632, %v2692
    %3634 = vadd.xlane.f32.xlu0 %v3633
    %v3635 = vpop.xlane.xlu0 %3634
    %v3636 = vadd.f32 %v2694, %v2696
    %v3637 = vadd.f32 %v3636, %v2698
    %v3638 = vadd.f32 %v3637, %v2700
    %3639 = vadd.xlane.f32.xlu0 %v3638
    %v3640 = vpop.xlane.xlu0 %3639
    %v3641 = vadd.f32 %v2702, %v2704
    %v3642 = vadd.f32 %v3641, %v2706
    %v3643 = vadd.f32 %v3642, %v2708
    %3644 = vadd.xlane.f32.xlu0 %v3643
    %v3645 = vpop.xlane.xlu0 %3644
    %v3646 = vadd.f32 %v2710, %v2712
    %v3647 = vadd.f32 %v3646, %v2714
    %v3648 = vadd.f32 %v3647, %v2716
    %3649 = vadd.xlane.f32.xlu0 %v3648
    %v3650 = vpop.xlane.xlu0 %3649
    %v3651 = vadd.f32 %v2718, %v2720
    %v3652 = vadd.f32 %v3651, %v2722
    %v3653 = vadd.f32 %v3652, %v2724
    %3654 = vadd.xlane.f32.xlu0 %v3653
    %v3655 = vpop.xlane.xlu0 %3654
    %v3656 = vadd.f32 %v2726, %v2728
    %v3657 = vadd.f32 %v3656, %v2730
    %v3658 = vadd.f32 %v3657, %v2732
    %3659 = vadd.xlane.f32.xlu0 %v3658
    %v3660 = vpop.xlane.xlu0 %3659
    %v3661 = vadd.f32 %v2734, %v2736
    %v3662 = vadd.f32 %v3661, %v2738
    %v3663 = vadd.f32 %v3662, %v2740
    %3664 = vadd.xlane.f32.xlu0 %v3663
    %v3665 = vpop.xlane.xlu0 %3664
    %v3666 = vadd.f32 %v2742, %v2744
    %v3667 = vadd.f32 %v3666, %v2746
    %v3668 = vadd.f32 %v3667, %v2748
    %3669 = vadd.xlane.f32.xlu0 %v3668
    %v3670 = vpop.xlane.xlu0 %3669
    %v3671 = vadd.f32 %v2750, %v2752
    %v3672 = vadd.f32 %v3671, %v2754
    %v3673 = vadd.f32 %v3672, %v2756
    %3674 = vadd.xlane.f32.xlu0 %v3673
    %v3675 = vpop.xlane.xlu0 %3674
    %v3676 = vadd.f32 %v2758, %v2760
    %v3677 = vadd.f32 %v3676, %v2762
    %v3678 = vadd.f32 %v3677, %v2764
    %3679 = vadd.xlane.f32.xlu0 %v3678
    %v3680 = vpop.xlane.xlu0 %3679
    %v3681 = vadd.f32 %v2766, %v2768
    %v3682 = vadd.f32 %v3681, %v2770
    %v3683 = vadd.f32 %v3682, %v2772
    %3684 = vadd.xlane.f32.xlu0 %v3683
    %v3685 = vpop.xlane.xlu0 %3684
    %v3686 = vadd.f32 %v2774, %v2776
    %v3687 = vadd.f32 %v3686, %v2778
    %v3688 = vadd.f32 %v3687, %v2780
    %3689 = vadd.xlane.f32.xlu0 %v3688
    %v3690 = vpop.xlane.xlu0 %3689
    %v3691 = vadd.f32 %v2782, %v2784
    %v3692 = vadd.f32 %v3691, %v2786
    %v3693 = vadd.f32 %v3692, %v2788
    %3694 = vadd.xlane.f32.xlu0 %v3693
    %v3695 = vpop.xlane.xlu0 %3694
    %v3696 = vadd.f32 %v2790, %v2792
    %v3697 = vadd.f32 %v3696, %v2794
    %v3698 = vadd.f32 %v3697, %v2796
    %3699 = vadd.xlane.f32.xlu0 %v3698
    %v3700 = vpop.xlane.xlu0 %3699
    %v3701 = vadd.f32 %v2798, %v2800
    %v3702 = vadd.f32 %v3701, %v2802
    %v3703 = vadd.f32 %v3702, %v2804
    %3704 = vadd.xlane.f32.xlu0 %v3703
    %v3705 = vpop.xlane.xlu0 %3704
    %v3706 = vadd.f32 %v2806, %v2808
    %v3707 = vadd.f32 %v3706, %v2810
    %v3708 = vadd.f32 %v3707, %v2812
    %3709 = vadd.xlane.f32.xlu0 %v3708
    %v3710 = vpop.xlane.xlu0 %3709
    %v3711 = vadd.f32 %v2814, %v2816
    %v3712 = vadd.f32 %v3711, %v2818
    %v3713 = vadd.f32 %v3712, %v2820
    %3714 = vadd.xlane.f32.xlu0 %v3713
    %v3715 = vpop.xlane.xlu0 %3714
    %v3716 = vadd.f32 %v2822, %v2824
    %v3717 = vadd.f32 %v3716, %v2826
    %v3718 = vadd.f32 %v3717, %v2828
    %3719 = vadd.xlane.f32.xlu0 %v3718
    %v3720 = vpop.xlane.xlu0 %3719
    %v3721 = vadd.f32 %v2830, %v2832
    %v3722 = vadd.f32 %v3721, %v2834
    %v3723 = vadd.f32 %v3722, %v2836
    %3724 = vadd.xlane.f32.xlu0 %v3723
    %v3725 = vpop.xlane.xlu0 %3724
    %v3726 = vadd.f32 %v2838, %v2840
    %v3727 = vadd.f32 %v3726, %v2842
    %v3728 = vadd.f32 %v3727, %v2844
    %3729 = vadd.xlane.f32.xlu0 %v3728
    %v3730 = vpop.xlane.xlu0 %3729
    %v3731 = vadd.f32 %v2846, %v2848
    %v3732 = vadd.f32 %v3731, %v2850
    %v3733 = vadd.f32 %v3732, %v2852
    %3734 = vadd.xlane.f32.xlu0 %v3733
    %v3735 = vpop.xlane.xlu0 %3734
    %v3736 = vadd.f32 %v2854, %v2856
    %v3737 = vadd.f32 %v3736, %v2858
    %v3738 = vadd.f32 %v3737, %v2860
    %3739 = vadd.xlane.f32.xlu0 %v3738
    %v3740 = vpop.xlane.xlu0 %3739
    %v3741 = vadd.f32 %v2862, %v2864
    %v3742 = vadd.f32 %v3741, %v2866
    %v3743 = vadd.f32 %v3742, %v2868
    %3744 = vadd.xlane.f32.xlu0 %v3743
    %v3745 = vpop.xlane.xlu0 %3744
    %v3746 = vadd.f32 %v2870, %v2872
    %v3747 = vadd.f32 %v3746, %v2874
    %v3748 = vadd.f32 %v3747, %v2876
    %3749 = vadd.xlane.f32.xlu0 %v3748
    %v3750 = vpop.xlane.xlu0 %3749
    %v3751 = vadd.f32 %v2878, %v2880
    %v3752 = vadd.f32 %v3751, %v2882
    %v3753 = vadd.f32 %v3752, %v2884
    %3754 = vadd.xlane.f32.xlu0 %v3753
    %v3755 = vpop.xlane.xlu0 %3754
    %v3756 = vadd.f32 %v2886, %v2888
    %v3757 = vadd.f32 %v3756, %v2890
    %v3758 = vadd.f32 %v3757, %v2892
    %3759 = vadd.xlane.f32.xlu0 %v3758
    %v3760 = vpop.xlane.xlu0 %3759
    %v3761 = vadd.f32 %v2894, %v2896
    %v3762 = vadd.f32 %v3761, %v2898
    %v3763 = vadd.f32 %v3762, %v2900
    %3764 = vadd.xlane.f32.xlu0 %v3763
    %v3765 = vpop.xlane.xlu0 %3764
    %v3766 = vadd.f32 %v2902, %v2904
    %v3767 = vadd.f32 %v3766, %v2906
    %v3768 = vadd.f32 %v3767, %v2908
    %3769 = vadd.xlane.f32.xlu0 %v3768
    %v3770 = vpop.xlane.xlu0 %3769
    %v3771 = vadd.f32 %v2910, %v2912
    %v3772 = vadd.f32 %v3771, %v2914
    %v3773 = vadd.f32 %v3772, %v2916
    %3774 = vadd.xlane.f32.xlu0 %v3773
    %v3775 = vpop.xlane.xlu0 %3774
    %v3776 = vadd.f32 %v2918, %v2920
    %v3777 = vadd.f32 %v3776, %v2922
    %v3778 = vadd.f32 %v3777, %v2924
    %3779 = vadd.xlane.f32.xlu0 %v3778
    %v3780 = vpop.xlane.xlu0 %3779
    %v3781 = vadd.f32 %v2926, %v2928
    %v3782 = vadd.f32 %v3781, %v2930
    %v3783 = vadd.f32 %v3782, %v2932
    %3784 = vadd.xlane.f32.xlu0 %v3783
    %v3785 = vpop.xlane.xlu0 %3784
    %v3786 = vadd.f32 %v2934, %v2936
    %v3787 = vadd.f32 %v3786, %v2938
    %v3788 = vadd.f32 %v3787, %v2940
    %3789 = vadd.xlane.f32.xlu0 %v3788
    %v3790 = vpop.xlane.xlu0 %3789
    %v3791 = vadd.f32 %v2942, %v2944
    %v3792 = vadd.f32 %v3791, %v2946
    %v3793 = vadd.f32 %v3792, %v2948
    %3794 = vadd.xlane.f32.xlu0 %v3793
    %v3795 = vpop.xlane.xlu0 %3794
    %v3796 = vadd.f32 %v2950, %v2952
    %v3797 = vadd.f32 %v3796, %v2954
    %v3798 = vadd.f32 %v3797, %v2956
    %3799 = vadd.xlane.f32.xlu0 %v3798
    %v3800 = vpop.xlane.xlu0 %3799
    %v3801 = vadd.f32 %v2958, %v2960
    %v3802 = vadd.f32 %v3801, %v2962
    %v3803 = vadd.f32 %v3802, %v2964
    %3804 = vadd.xlane.f32.xlu0 %v3803
    %v3805 = vpop.xlane.xlu0 %3804
    %v3806 = vadd.f32 %v2966, %v2968
    %v3807 = vadd.f32 %v3806, %v2970
    %v3808 = vadd.f32 %v3807, %v2972
    %3809 = vadd.xlane.f32.xlu0 %v3808
    %v3810 = vpop.xlane.xlu0 %3809
    %v3811 = vadd.f32 %v2974, %v2976
    %v3812 = vadd.f32 %v3811, %v2978
    %v3813 = vadd.f32 %v3812, %v2980
    %3814 = vadd.xlane.f32.xlu0 %v3813
    %v3815 = vpop.xlane.xlu0 %3814
    %v3816 = vadd.f32 %v2982, %v2984
    %v3817 = vadd.f32 %v3816, %v2986
    %v3818 = vadd.f32 %v3817, %v2988
    %3819 = vadd.xlane.f32.xlu0 %v3818
    %v3820 = vpop.xlane.xlu0 %3819
    %v3821 = vadd.f32 %v3437, %v3505
    %v3822 = vadd.f32 %v3438, %v3510
    %v3823 = vadd.f32 %v3439, %v3515
    %v3824 = vadd.f32 %v3440, %v3520
    %v3825 = vadd.f32 %v3441, %v3525
    %v3826 = vadd.f32 %v3442, %v3530
    %v3827 = vadd.f32 %v3443, %v3535
    %v3828 = vadd.f32 %v3444, %v3540
    %v3829 = vadd.f32 %v3445, %v3545
    %v3830 = vadd.f32 %v3446, %v3550
    %v3831 = vadd.f32 %v3447, %v3555
    %v3832 = vadd.f32 %v3448, %v3560
    %v3833 = vadd.f32 %v3449, %v3565
    %v3834 = vadd.f32 %v3450, %v3570
    %v3835 = vadd.f32 %v3451, %v3575
    %v3836 = vadd.f32 %v3452, %v3580
    %v3837 = vadd.f32 %v3453, %v3585
    %v3838 = vadd.f32 %v3454, %v3590
    %v3839 = vadd.f32 %v3455, %v3595
    %v3840 = vadd.f32 %v3456, %v3600
    %v3841 = vadd.f32 %v3457, %v3605
    %v3842 = vadd.f32 %v3458, %v3610
    %v3843 = vadd.f32 %v3459, %v3615
    %v3844 = vadd.f32 %v3460, %v3620
    %v3845 = vadd.f32 %v3461, %v3625
    %v3846 = vadd.f32 %v3462, %v3630
    %v3847 = vadd.f32 %v3463, %v3635
    %v3848 = vadd.f32 %v3464, %v3640
    %v3849 = vadd.f32 %v3465, %v3645
    %v3850 = vadd.f32 %v3466, %v3650
    %v3851 = vadd.f32 %v3467, %v3655
    %v3852 = vadd.f32 %v3468, %v3660
    %v3853 = vadd.f32 %v3469, %v3665
    %v3854 = vadd.f32 %v3470, %v3670
    %v3855 = vadd.f32 %v3471, %v3675
    %v3856 = vadd.f32 %v3472, %v3680
    %v3857 = vadd.f32 %v3473, %v3685
    %v3858 = vadd.f32 %v3474, %v3690
    %v3859 = vadd.f32 %v3475, %v3695
    %v3860 = vadd.f32 %v3476, %v3700
    %v3861 = vadd.f32 %v3477, %v3705
    %v3862 = vadd.f32 %v3478, %v3710
    %v3863 = vadd.f32 %v3479, %v3715
    %v3864 = vadd.f32 %v3480, %v3720
    %v3865 = vadd.f32 %v3481, %v3725
    %v3866 = vadd.f32 %v3482, %v3730
    %v3867 = vadd.f32 %v3483, %v3735
    %v3868 = vadd.f32 %v3484, %v3740
    %v3869 = vadd.f32 %v3485, %v3745
    %v3870 = vadd.f32 %v3486, %v3750
    %v3871 = vadd.f32 %v3487, %v3755
    %v3872 = vadd.f32 %v3488, %v3760
    %v3873 = vadd.f32 %v3489, %v3765
    %v3874 = vadd.f32 %v3490, %v3770
    %v3875 = vadd.f32 %v3491, %v3775
    %v3876 = vadd.f32 %v3492, %v3780
    %v3877 = vadd.f32 %v3493, %v3785
    %v3878 = vadd.f32 %v3494, %v3790
    %v3879 = vadd.f32 %v3495, %v3795
    %v3880 = vadd.f32 %v3496, %v3800
    %v3881 = vadd.f32 %v3497, %v3805
    %v3882 = vadd.f32 %v3498, %v3810
    %v3883 = vadd.f32 %v3499, %v3815
    %v3884 = vadd.f32 %v3500, %v3820
    %s3885 = smul.u32 0, 512
    %v3886 = vlaneseq
    %v3887 = vand.u32 %v3886, 127
    %v3888 = vadd.s32 %v3887, 128
    %v3889 = vadd.s32 %v3887, 256
    %v3890 = vadd.s32 %v3887, 384
    %v3891 = vstv %s3885
    %v3892 = vadd.s32 %v3891, %v3887
    %v3893 = vadd.s32 %v3891, %v3888
    %v3894 = vadd.s32 %v3891, %v3889
    %v3895 = vadd.s32 %v3891, %v3890
    %3896 = vset.pattern.permute.xlu0 0
    %3897 = vperm.xlu0 %3896, %v1388
    %v3898 = vpop.permute.xlu0 %3897
    %3899 = vset.pattern.permute.xlu0 0
    %3900 = vperm.xlu0 %3899, %v1389
    %v3901 = vpop.permute.xlu0 %3900
    %3902 = vset.pattern.permute.xlu0 0
    %3903 = vperm.xlu0 %3902, %v1390
    %v3904 = vpop.permute.xlu0 %3903
    %3905 = vset.pattern.permute.xlu0 0
    %3906 = vperm.xlu0 %3905, %v1391
    %v3907 = vpop.permute.xlu0 %3906
    %3908 = vset.pattern.permute.xlu0 0
    %3909 = vperm.xlu0 %3908, %v1392
    %v3910 = vpop.permute.xlu0 %3909
    %3911 = vset.pattern.permute.xlu0 0
    %3912 = vperm.xlu0 %3911, %v1393
    %v3913 = vpop.permute.xlu0 %3912
    %3914 = vset.pattern.permute.xlu0 0
    %3915 = vperm.xlu0 %3914, %v1394
    %v3916 = vpop.permute.xlu0 %3915
    %3917 = vset.pattern.permute.xlu0 0
    %3918 = vperm.xlu0 %3917, %v1395
    %v3919 = vpop.permute.xlu0 %3918
    %3920 = vset.pattern.permute.xlu0 0
    %3921 = vperm.xlu0 %3920, %v1396
    %v3922 = vpop.permute.xlu0 %3921
    %3923 = vset.pattern.permute.xlu0 0
    %3924 = vperm.xlu0 %3923, %v1397
    %v3925 = vpop.permute.xlu0 %3924
    %3926 = vset.pattern.permute.xlu0 0
    %3927 = vperm.xlu0 %3926, %v1398
    %v3928 = vpop.permute.xlu0 %3927
    %3929 = vset.pattern.permute.xlu0 0
    %3930 = vperm.xlu0 %3929, %v1399
    %v3931 = vpop.permute.xlu0 %3930
    %3932 = vset.pattern.permute.xlu0 0
    %3933 = vperm.xlu0 %3932, %v1400
    %v3934 = vpop.permute.xlu0 %3933
    %3935 = vset.pattern.permute.xlu0 0
    %3936 = vperm.xlu0 %3935, %v1401
    %v3937 = vpop.permute.xlu0 %3936
    %3938 = vset.pattern.permute.xlu0 0
    %3939 = vperm.xlu0 %3938, %v1402
    %v3940 = vpop.permute.xlu0 %3939
    %3941 = vset.pattern.permute.xlu0 0
    %3942 = vperm.xlu0 %3941, %v1403
    %v3943 = vpop.permute.xlu0 %3942
    %3944 = vset.pattern.permute.xlu0 0
    %3945 = vperm.xlu0 %3944, %v1404
    %v3946 = vpop.permute.xlu0 %3945
    %3947 = vset.pattern.permute.xlu0 0
    %3948 = vperm.xlu0 %3947, %v1405
    %v3949 = vpop.permute.xlu0 %3948
    %3950 = vset.pattern.permute.xlu0 0
    %3951 = vperm.xlu0 %3950, %v1406
    %v3952 = vpop.permute.xlu0 %3951
    %3953 = vset.pattern.permute.xlu0 0
    %3954 = vperm.xlu0 %3953, %v1407
    %v3955 = vpop.permute.xlu0 %3954
    %3956 = vset.pattern.permute.xlu0 0
    %3957 = vperm.xlu0 %3956, %v1408
    %v3958 = vpop.permute.xlu0 %3957
    %3959 = vset.pattern.permute.xlu0 0
    %3960 = vperm.xlu0 %3959, %v1409
    %v3961 = vpop.permute.xlu0 %3960
    %3962 = vset.pattern.permute.xlu0 0
    %3963 = vperm.xlu0 %3962, %v1410
    %v3964 = vpop.permute.xlu0 %3963
    %3965 = vset.pattern.permute.xlu0 0
    %3966 = vperm.xlu0 %3965, %v1411
    %v3967 = vpop.permute.xlu0 %3966
    %3968 = vset.pattern.permute.xlu0 0
    %3969 = vperm.xlu0 %3968, %v1412
    %v3970 = vpop.permute.xlu0 %3969
    %3971 = vset.pattern.permute.xlu0 0
    %3972 = vperm.xlu0 %3971, %v1413
    %v3973 = vpop.permute.xlu0 %3972
    %3974 = vset.pattern.permute.xlu0 0
    %3975 = vperm.xlu0 %3974, %v1414
    %v3976 = vpop.permute.xlu0 %3975
    %3977 = vset.pattern.permute.xlu0 0
    %3978 = vperm.xlu0 %3977, %v1415
    %v3979 = vpop.permute.xlu0 %3978
    %3980 = vset.pattern.permute.xlu0 0
    %3981 = vperm.xlu0 %3980, %v1416
    %v3982 = vpop.permute.xlu0 %3981
    %3983 = vset.pattern.permute.xlu0 0
    %3984 = vperm.xlu0 %3983, %v1417
    %v3985 = vpop.permute.xlu0 %3984
    %3986 = vset.pattern.permute.xlu0 0
    %3987 = vperm.xlu0 %3986, %v1418
    %v3988 = vpop.permute.xlu0 %3987
    %3989 = vset.pattern.permute.xlu0 0
    %3990 = vperm.xlu0 %3989, %v1419
    %v3991 = vpop.permute.xlu0 %3990
    %3992 = vset.pattern.permute.xlu0 0
    %3993 = vperm.xlu0 %3992, %v1420
    %v3994 = vpop.permute.xlu0 %3993
    %3995 = vset.pattern.permute.xlu0 0
    %3996 = vperm.xlu0 %3995, %v1421
    %v3997 = vpop.permute.xlu0 %3996
    %3998 = vset.pattern.permute.xlu0 0
    %3999 = vperm.xlu0 %3998, %v1422
    %v4000 = vpop.permute.xlu0 %3999
    %4001 = vset.pattern.permute.xlu0 0
    %4002 = vperm.xlu0 %4001, %v1423
    %v4003 = vpop.permute.xlu0 %4002
    %4004 = vset.pattern.permute.xlu0 0
    %4005 = vperm.xlu0 %4004, %v1424
    %v4006 = vpop.permute.xlu0 %4005
    %4007 = vset.pattern.permute.xlu0 0
    %4008 = vperm.xlu0 %4007, %v1425
    %v4009 = vpop.permute.xlu0 %4008
    %4010 = vset.pattern.permute.xlu0 0
    %4011 = vperm.xlu0 %4010, %v1426
    %v4012 = vpop.permute.xlu0 %4011
    %4013 = vset.pattern.permute.xlu0 0
    %4014 = vperm.xlu0 %4013, %v1427
    %v4015 = vpop.permute.xlu0 %4014
    %4016 = vset.pattern.permute.xlu0 0
    %4017 = vperm.xlu0 %4016, %v1428
    %v4018 = vpop.permute.xlu0 %4017
    %4019 = vset.pattern.permute.xlu0 0
    %4020 = vperm.xlu0 %4019, %v1429
    %v4021 = vpop.permute.xlu0 %4020
    %4022 = vset.pattern.permute.xlu0 0
    %4023 = vperm.xlu0 %4022, %v1430
    %v4024 = vpop.permute.xlu0 %4023
    %4025 = vset.pattern.permute.xlu0 0
    %4026 = vperm.xlu0 %4025, %v1431
    %v4027 = vpop.permute.xlu0 %4026
    %4028 = vset.pattern.permute.xlu0 0
    %4029 = vperm.xlu0 %4028, %v1432
    %v4030 = vpop.permute.xlu0 %4029
    %4031 = vset.pattern.permute.xlu0 0
    %4032 = vperm.xlu0 %4031, %v1433
    %v4033 = vpop.permute.xlu0 %4032
    %4034 = vset.pattern.permute.xlu0 0
    %4035 = vperm.xlu0 %4034, %v1434
    %v4036 = vpop.permute.xlu0 %4035
    %4037 = vset.pattern.permute.xlu0 0
    %4038 = vperm.xlu0 %4037, %v1435
    %v4039 = vpop.permute.xlu0 %4038
    %4040 = vset.pattern.permute.xlu0 0
    %4041 = vperm.xlu0 %4040, %v1436
    %v4042 = vpop.permute.xlu0 %4041
    %4043 = vset.pattern.permute.xlu0 0
    %4044 = vperm.xlu0 %4043, %v1437
    %v4045 = vpop.permute.xlu0 %4044
    %4046 = vset.pattern.permute.xlu0 0
    %4047 = vperm.xlu0 %4046, %v1438
    %v4048 = vpop.permute.xlu0 %4047
    %4049 = vset.pattern.permute.xlu0 0
    %4050 = vperm.xlu0 %4049, %v1439
    %v4051 = vpop.permute.xlu0 %4050
    %4052 = vset.pattern.permute.xlu0 0
    %4053 = vperm.xlu0 %4052, %v1440
    %v4054 = vpop.permute.xlu0 %4053
    %4055 = vset.pattern.permute.xlu0 0
    %4056 = vperm.xlu0 %4055, %v1441
    %v4057 = vpop.permute.xlu0 %4056
    %4058 = vset.pattern.permute.xlu0 0
    %4059 = vperm.xlu0 %4058, %v1442
    %v4060 = vpop.permute.xlu0 %4059
    %4061 = vset.pattern.permute.xlu0 0
    %4062 = vperm.xlu0 %4061, %v1443
    %v4063 = vpop.permute.xlu0 %4062
    %4064 = vset.pattern.permute.xlu0 0
    %4065 = vperm.xlu0 %4064, %v1444
    %v4066 = vpop.permute.xlu0 %4065
    %4067 = vset.pattern.permute.xlu0 0
    %4068 = vperm.xlu0 %4067, %v1445
    %v4069 = vpop.permute.xlu0 %4068
    %4070 = vset.pattern.permute.xlu0 0
    %4071 = vperm.xlu0 %4070, %v1446
    %v4072 = vpop.permute.xlu0 %4071
    %4073 = vset.pattern.permute.xlu0 0
    %4074 = vperm.xlu0 %4073, %v1447
    %v4075 = vpop.permute.xlu0 %4074
    %4076 = vset.pattern.permute.xlu0 0
    %4077 = vperm.xlu0 %4076, %v1448
    %v4078 = vpop.permute.xlu0 %4077
    %4079 = vset.pattern.permute.xlu0 0
    %4080 = vperm.xlu0 %4079, %v1449
    %v4081 = vpop.permute.xlu0 %4080
    %4082 = vset.pattern.permute.xlu0 0
    %4083 = vperm.xlu0 %4082, %v1450
    %v4084 = vpop.permute.xlu0 %4083
    %4085 = vset.pattern.permute.xlu0 0
    %4086 = vperm.xlu0 %4085, %v1451
    %v4087 = vpop.permute.xlu0 %4086
    %vm4088 = vcmp.eq.s32.totalorder %v3892, %v3898
    %vm4089 = vcmp.eq.s32.totalorder %v3893, %v3898
    %vm4090 = vcmp.eq.s32.totalorder %v3894, %v3898
    %vm4091 = vcmp.eq.s32.totalorder %v3895, %v3898
    %vm4092 = vcmp.eq.s32.totalorder %v3892, %v3901
    %vm4093 = vcmp.eq.s32.totalorder %v3893, %v3901
    %vm4094 = vcmp.eq.s32.totalorder %v3894, %v3901
    %vm4095 = vcmp.eq.s32.totalorder %v3895, %v3901
    %vm4096 = vcmp.eq.s32.totalorder %v3892, %v3904
    %vm4097 = vcmp.eq.s32.totalorder %v3893, %v3904
    %vm4098 = vcmp.eq.s32.totalorder %v3894, %v3904
    %vm4099 = vcmp.eq.s32.totalorder %v3895, %v3904
    %vm4100 = vcmp.eq.s32.totalorder %v3892, %v3907
    %vm4101 = vcmp.eq.s32.totalorder %v3893, %v3907
    %vm4102 = vcmp.eq.s32.totalorder %v3894, %v3907
    %vm4103 = vcmp.eq.s32.totalorder %v3895, %v3907
    %vm4104 = vcmp.eq.s32.totalorder %v3892, %v3910
    %vm4105 = vcmp.eq.s32.totalorder %v3893, %v3910
    %vm4106 = vcmp.eq.s32.totalorder %v3894, %v3910
    %vm4107 = vcmp.eq.s32.totalorder %v3895, %v3910
    %vm4108 = vcmp.eq.s32.totalorder %v3892, %v3913
    %vm4109 = vcmp.eq.s32.totalorder %v3893, %v3913
    %vm4110 = vcmp.eq.s32.totalorder %v3894, %v3913
    %vm4111 = vcmp.eq.s32.totalorder %v3895, %v3913
    %vm4112 = vcmp.eq.s32.totalorder %v3892, %v3916
    %vm4113 = vcmp.eq.s32.totalorder %v3893, %v3916
    %vm4114 = vcmp.eq.s32.totalorder %v3894, %v3916
    %vm4115 = vcmp.eq.s32.totalorder %v3895, %v3916
    %vm4116 = vcmp.eq.s32.totalorder %v3892, %v3919
    %vm4117 = vcmp.eq.s32.totalorder %v3893, %v3919
    %vm4118 = vcmp.eq.s32.totalorder %v3894, %v3919
    %vm4119 = vcmp.eq.s32.totalorder %v3895, %v3919
    %vm4120 = vcmp.eq.s32.totalorder %v3892, %v3922
    %vm4121 = vcmp.eq.s32.totalorder %v3893, %v3922
    %vm4122 = vcmp.eq.s32.totalorder %v3894, %v3922
    %vm4123 = vcmp.eq.s32.totalorder %v3895, %v3922
    %vm4124 = vcmp.eq.s32.totalorder %v3892, %v3925
    %vm4125 = vcmp.eq.s32.totalorder %v3893, %v3925
    %vm4126 = vcmp.eq.s32.totalorder %v3894, %v3925
    %vm4127 = vcmp.eq.s32.totalorder %v3895, %v3925
    %vm4128 = vcmp.eq.s32.totalorder %v3892, %v3928
    %vm4129 = vcmp.eq.s32.totalorder %v3893, %v3928
    %vm4130 = vcmp.eq.s32.totalorder %v3894, %v3928
    %vm4131 = vcmp.eq.s32.totalorder %v3895, %v3928
    %vm4132 = vcmp.eq.s32.totalorder %v3892, %v3931
    %vm4133 = vcmp.eq.s32.totalorder %v3893, %v3931
    %vm4134 = vcmp.eq.s32.totalorder %v3894, %v3931
    %vm4135 = vcmp.eq.s32.totalorder %v3895, %v3931
    %vm4136 = vcmp.eq.s32.totalorder %v3892, %v3934
    %vm4137 = vcmp.eq.s32.totalorder %v3893, %v3934
    %vm4138 = vcmp.eq.s32.totalorder %v3894, %v3934
    %vm4139 = vcmp.eq.s32.totalorder %v3895, %v3934
    %vm4140 = vcmp.eq.s32.totalorder %v3892, %v3937
    %vm4141 = vcmp.eq.s32.totalorder %v3893, %v3937
    %vm4142 = vcmp.eq.s32.totalorder %v3894, %v3937
    %vm4143 = vcmp.eq.s32.totalorder %v3895, %v3937
    %vm4144 = vcmp.eq.s32.totalorder %v3892, %v3940
    %vm4145 = vcmp.eq.s32.totalorder %v3893, %v3940
    %vm4146 = vcmp.eq.s32.totalorder %v3894, %v3940
    %vm4147 = vcmp.eq.s32.totalorder %v3895, %v3940
    %vm4148 = vcmp.eq.s32.totalorder %v3892, %v3943
    %vm4149 = vcmp.eq.s32.totalorder %v3893, %v3943
    %vm4150 = vcmp.eq.s32.totalorder %v3894, %v3943
    %vm4151 = vcmp.eq.s32.totalorder %v3895, %v3943
    %vm4152 = vcmp.eq.s32.totalorder %v3892, %v3946
    %vm4153 = vcmp.eq.s32.totalorder %v3893, %v3946
    %vm4154 = vcmp.eq.s32.totalorder %v3894, %v3946
    %vm4155 = vcmp.eq.s32.totalorder %v3895, %v3946
    %vm4156 = vcmp.eq.s32.totalorder %v3892, %v3949
    %vm4157 = vcmp.eq.s32.totalorder %v3893, %v3949
    %vm4158 = vcmp.eq.s32.totalorder %v3894, %v3949
    %vm4159 = vcmp.eq.s32.totalorder %v3895, %v3949
    %vm4160 = vcmp.eq.s32.totalorder %v3892, %v3952
    %vm4161 = vcmp.eq.s32.totalorder %v3893, %v3952
    %vm4162 = vcmp.eq.s32.totalorder %v3894, %v3952
    %vm4163 = vcmp.eq.s32.totalorder %v3895, %v3952
    %vm4164 = vcmp.eq.s32.totalorder %v3892, %v3955
    %vm4165 = vcmp.eq.s32.totalorder %v3893, %v3955
    %vm4166 = vcmp.eq.s32.totalorder %v3894, %v3955
    %vm4167 = vcmp.eq.s32.totalorder %v3895, %v3955
    %vm4168 = vcmp.eq.s32.totalorder %v3892, %v3958
    %vm4169 = vcmp.eq.s32.totalorder %v3893, %v3958
    %vm4170 = vcmp.eq.s32.totalorder %v3894, %v3958
    %vm4171 = vcmp.eq.s32.totalorder %v3895, %v3958
    %vm4172 = vcmp.eq.s32.totalorder %v3892, %v3961
    %vm4173 = vcmp.eq.s32.totalorder %v3893, %v3961
    %vm4174 = vcmp.eq.s32.totalorder %v3894, %v3961
    %vm4175 = vcmp.eq.s32.totalorder %v3895, %v3961
    %vm4176 = vcmp.eq.s32.totalorder %v3892, %v3964
    %vm4177 = vcmp.eq.s32.totalorder %v3893, %v3964
    %vm4178 = vcmp.eq.s32.totalorder %v3894, %v3964
    %vm4179 = vcmp.eq.s32.totalorder %v3895, %v3964
    %vm4180 = vcmp.eq.s32.totalorder %v3892, %v3967
    %vm4181 = vcmp.eq.s32.totalorder %v3893, %v3967
    %vm4182 = vcmp.eq.s32.totalorder %v3894, %v3967
    %vm4183 = vcmp.eq.s32.totalorder %v3895, %v3967
    %vm4184 = vcmp.eq.s32.totalorder %v3892, %v3970
    %vm4185 = vcmp.eq.s32.totalorder %v3893, %v3970
    %vm4186 = vcmp.eq.s32.totalorder %v3894, %v3970
    %vm4187 = vcmp.eq.s32.totalorder %v3895, %v3970
    %vm4188 = vcmp.eq.s32.totalorder %v3892, %v3973
    %vm4189 = vcmp.eq.s32.totalorder %v3893, %v3973
    %vm4190 = vcmp.eq.s32.totalorder %v3894, %v3973
    %vm4191 = vcmp.eq.s32.totalorder %v3895, %v3973
    %vm4192 = vcmp.eq.s32.totalorder %v3892, %v3976
    %vm4193 = vcmp.eq.s32.totalorder %v3893, %v3976
    %vm4194 = vcmp.eq.s32.totalorder %v3894, %v3976
    %vm4195 = vcmp.eq.s32.totalorder %v3895, %v3976
    %vm4196 = vcmp.eq.s32.totalorder %v3892, %v3979
    %vm4197 = vcmp.eq.s32.totalorder %v3893, %v3979
    %vm4198 = vcmp.eq.s32.totalorder %v3894, %v3979
    %vm4199 = vcmp.eq.s32.totalorder %v3895, %v3979
    %vm4200 = vcmp.eq.s32.totalorder %v3892, %v3982
    %vm4201 = vcmp.eq.s32.totalorder %v3893, %v3982
    %vm4202 = vcmp.eq.s32.totalorder %v3894, %v3982
    %vm4203 = vcmp.eq.s32.totalorder %v3895, %v3982
    %vm4204 = vcmp.eq.s32.totalorder %v3892, %v3985
    %vm4205 = vcmp.eq.s32.totalorder %v3893, %v3985
    %vm4206 = vcmp.eq.s32.totalorder %v3894, %v3985
    %vm4207 = vcmp.eq.s32.totalorder %v3895, %v3985
    %vm4208 = vcmp.eq.s32.totalorder %v3892, %v3988
    %vm4209 = vcmp.eq.s32.totalorder %v3893, %v3988
    %vm4210 = vcmp.eq.s32.totalorder %v3894, %v3988
    %vm4211 = vcmp.eq.s32.totalorder %v3895, %v3988
    %vm4212 = vcmp.eq.s32.totalorder %v3892, %v3991
    %vm4213 = vcmp.eq.s32.totalorder %v3893, %v3991
    %vm4214 = vcmp.eq.s32.totalorder %v3894, %v3991
    %vm4215 = vcmp.eq.s32.totalorder %v3895, %v3991
    %vm4216 = vcmp.eq.s32.totalorder %v3892, %v3994
    %vm4217 = vcmp.eq.s32.totalorder %v3893, %v3994
    %vm4218 = vcmp.eq.s32.totalorder %v3894, %v3994
    %vm4219 = vcmp.eq.s32.totalorder %v3895, %v3994
    %vm4220 = vcmp.eq.s32.totalorder %v3892, %v3997
    %vm4221 = vcmp.eq.s32.totalorder %v3893, %v3997
    %vm4222 = vcmp.eq.s32.totalorder %v3894, %v3997
    %vm4223 = vcmp.eq.s32.totalorder %v3895, %v3997
    %vm4224 = vcmp.eq.s32.totalorder %v3892, %v4000
    %vm4225 = vcmp.eq.s32.totalorder %v3893, %v4000
    %vm4226 = vcmp.eq.s32.totalorder %v3894, %v4000
    %vm4227 = vcmp.eq.s32.totalorder %v3895, %v4000
    %vm4228 = vcmp.eq.s32.totalorder %v3892, %v4003
    %vm4229 = vcmp.eq.s32.totalorder %v3893, %v4003
    %vm4230 = vcmp.eq.s32.totalorder %v3894, %v4003
    %vm4231 = vcmp.eq.s32.totalorder %v3895, %v4003
    %vm4232 = vcmp.eq.s32.totalorder %v3892, %v4006
    %vm4233 = vcmp.eq.s32.totalorder %v3893, %v4006
    %vm4234 = vcmp.eq.s32.totalorder %v3894, %v4006
    %vm4235 = vcmp.eq.s32.totalorder %v3895, %v4006
    %vm4236 = vcmp.eq.s32.totalorder %v3892, %v4009
    %vm4237 = vcmp.eq.s32.totalorder %v3893, %v4009
    %vm4238 = vcmp.eq.s32.totalorder %v3894, %v4009
    %vm4239 = vcmp.eq.s32.totalorder %v3895, %v4009
    %vm4240 = vcmp.eq.s32.totalorder %v3892, %v4012
    %vm4241 = vcmp.eq.s32.totalorder %v3893, %v4012
    %vm4242 = vcmp.eq.s32.totalorder %v3894, %v4012
    %vm4243 = vcmp.eq.s32.totalorder %v3895, %v4012
    %vm4244 = vcmp.eq.s32.totalorder %v3892, %v4015
    %vm4245 = vcmp.eq.s32.totalorder %v3893, %v4015
    %vm4246 = vcmp.eq.s32.totalorder %v3894, %v4015
    %vm4247 = vcmp.eq.s32.totalorder %v3895, %v4015
    %vm4248 = vcmp.eq.s32.totalorder %v3892, %v4018
    %vm4249 = vcmp.eq.s32.totalorder %v3893, %v4018
    %vm4250 = vcmp.eq.s32.totalorder %v3894, %v4018
    %vm4251 = vcmp.eq.s32.totalorder %v3895, %v4018
    %vm4252 = vcmp.eq.s32.totalorder %v3892, %v4021
    %vm4253 = vcmp.eq.s32.totalorder %v3893, %v4021
    %vm4254 = vcmp.eq.s32.totalorder %v3894, %v4021
    %vm4255 = vcmp.eq.s32.totalorder %v3895, %v4021
    %vm4256 = vcmp.eq.s32.totalorder %v3892, %v4024
    %vm4257 = vcmp.eq.s32.totalorder %v3893, %v4024
    %vm4258 = vcmp.eq.s32.totalorder %v3894, %v4024
    %vm4259 = vcmp.eq.s32.totalorder %v3895, %v4024
    %vm4260 = vcmp.eq.s32.totalorder %v3892, %v4027
    %vm4261 = vcmp.eq.s32.totalorder %v3893, %v4027
    %vm4262 = vcmp.eq.s32.totalorder %v3894, %v4027
    %vm4263 = vcmp.eq.s32.totalorder %v3895, %v4027
    %vm4264 = vcmp.eq.s32.totalorder %v3892, %v4030
    %vm4265 = vcmp.eq.s32.totalorder %v3893, %v4030
    %vm4266 = vcmp.eq.s32.totalorder %v3894, %v4030
    %vm4267 = vcmp.eq.s32.totalorder %v3895, %v4030
    %vm4268 = vcmp.eq.s32.totalorder %v3892, %v4033
    %vm4269 = vcmp.eq.s32.totalorder %v3893, %v4033
    %vm4270 = vcmp.eq.s32.totalorder %v3894, %v4033
    %vm4271 = vcmp.eq.s32.totalorder %v3895, %v4033
    %vm4272 = vcmp.eq.s32.totalorder %v3892, %v4036
    %vm4273 = vcmp.eq.s32.totalorder %v3893, %v4036
    %vm4274 = vcmp.eq.s32.totalorder %v3894, %v4036
    %vm4275 = vcmp.eq.s32.totalorder %v3895, %v4036
    %vm4276 = vcmp.eq.s32.totalorder %v3892, %v4039
    %vm4277 = vcmp.eq.s32.totalorder %v3893, %v4039
    %vm4278 = vcmp.eq.s32.totalorder %v3894, %v4039
    %vm4279 = vcmp.eq.s32.totalorder %v3895, %v4039
    %vm4280 = vcmp.eq.s32.totalorder %v3892, %v4042
    %vm4281 = vcmp.eq.s32.totalorder %v3893, %v4042
    %vm4282 = vcmp.eq.s32.totalorder %v3894, %v4042
    %vm4283 = vcmp.eq.s32.totalorder %v3895, %v4042
    %vm4284 = vcmp.eq.s32.totalorder %v3892, %v4045
    %vm4285 = vcmp.eq.s32.totalorder %v3893, %v4045
    %vm4286 = vcmp.eq.s32.totalorder %v3894, %v4045
    %vm4287 = vcmp.eq.s32.totalorder %v3895, %v4045
    %vm4288 = vcmp.eq.s32.totalorder %v3892, %v4048
    %vm4289 = vcmp.eq.s32.totalorder %v3893, %v4048
    %vm4290 = vcmp.eq.s32.totalorder %v3894, %v4048
    %vm4291 = vcmp.eq.s32.totalorder %v3895, %v4048
    %vm4292 = vcmp.eq.s32.totalorder %v3892, %v4051
    %vm4293 = vcmp.eq.s32.totalorder %v3893, %v4051
    %vm4294 = vcmp.eq.s32.totalorder %v3894, %v4051
    %vm4295 = vcmp.eq.s32.totalorder %v3895, %v4051
    %vm4296 = vcmp.eq.s32.totalorder %v3892, %v4054
    %vm4297 = vcmp.eq.s32.totalorder %v3893, %v4054
    %vm4298 = vcmp.eq.s32.totalorder %v3894, %v4054
    %vm4299 = vcmp.eq.s32.totalorder %v3895, %v4054
    %vm4300 = vcmp.eq.s32.totalorder %v3892, %v4057
    %vm4301 = vcmp.eq.s32.totalorder %v3893, %v4057
    %vm4302 = vcmp.eq.s32.totalorder %v3894, %v4057
    %vm4303 = vcmp.eq.s32.totalorder %v3895, %v4057
    %vm4304 = vcmp.eq.s32.totalorder %v3892, %v4060
    %vm4305 = vcmp.eq.s32.totalorder %v3893, %v4060
    %vm4306 = vcmp.eq.s32.totalorder %v3894, %v4060
    %vm4307 = vcmp.eq.s32.totalorder %v3895, %v4060
    %vm4308 = vcmp.eq.s32.totalorder %v3892, %v4063
    %vm4309 = vcmp.eq.s32.totalorder %v3893, %v4063
    %vm4310 = vcmp.eq.s32.totalorder %v3894, %v4063
    %vm4311 = vcmp.eq.s32.totalorder %v3895, %v4063
    %vm4312 = vcmp.eq.s32.totalorder %v3892, %v4066
    %vm4313 = vcmp.eq.s32.totalorder %v3893, %v4066
    %vm4314 = vcmp.eq.s32.totalorder %v3894, %v4066
    %vm4315 = vcmp.eq.s32.totalorder %v3895, %v4066
    %vm4316 = vcmp.eq.s32.totalorder %v3892, %v4069
    %vm4317 = vcmp.eq.s32.totalorder %v3893, %v4069
    %vm4318 = vcmp.eq.s32.totalorder %v3894, %v4069
    %vm4319 = vcmp.eq.s32.totalorder %v3895, %v4069
    %vm4320 = vcmp.eq.s32.totalorder %v3892, %v4072
    %vm4321 = vcmp.eq.s32.totalorder %v3893, %v4072
    %vm4322 = vcmp.eq.s32.totalorder %v3894, %v4072
    %vm4323 = vcmp.eq.s32.totalorder %v3895, %v4072
    %vm4324 = vcmp.eq.s32.totalorder %v3892, %v4075
    %vm4325 = vcmp.eq.s32.totalorder %v3893, %v4075
    %vm4326 = vcmp.eq.s32.totalorder %v3894, %v4075
    %vm4327 = vcmp.eq.s32.totalorder %v3895, %v4075
    %vm4328 = vcmp.eq.s32.totalorder %v3892, %v4078
    %vm4329 = vcmp.eq.s32.totalorder %v3893, %v4078
    %vm4330 = vcmp.eq.s32.totalorder %v3894, %v4078
    %vm4331 = vcmp.eq.s32.totalorder %v3895, %v4078
    %vm4332 = vcmp.eq.s32.totalorder %v3892, %v4081
    %vm4333 = vcmp.eq.s32.totalorder %v3893, %v4081
    %vm4334 = vcmp.eq.s32.totalorder %v3894, %v4081
    %vm4335 = vcmp.eq.s32.totalorder %v3895, %v4081
    %vm4336 = vcmp.eq.s32.totalorder %v3892, %v4084
    %vm4337 = vcmp.eq.s32.totalorder %v3893, %v4084
    %vm4338 = vcmp.eq.s32.totalorder %v3894, %v4084
    %vm4339 = vcmp.eq.s32.totalorder %v3895, %v4084
    %vm4340 = vcmp.eq.s32.totalorder %v3892, %v4087
    %vm4341 = vcmp.eq.s32.totalorder %v3893, %v4087
    %vm4342 = vcmp.eq.s32.totalorder %v3894, %v4087
    %vm4343 = vcmp.eq.s32.totalorder %v3895, %v4087
    %v4344 = vsel %vm4088, %v1132, 0.0
    %v4345 = vsel %vm4089, %v1133, 0.0
    %v4346 = vsel %vm4090, %v1134, 0.0
    %v4347 = vsel %vm4091, %v1135, 0.0
    %v4348 = vsel %vm4092, %v1136, 0.0
    %v4349 = vsel %vm4093, %v1137, 0.0
    %v4350 = vsel %vm4094, %v1138, 0.0
    %v4351 = vsel %vm4095, %v1139, 0.0
    %v4352 = vsel %vm4096, %v1140, 0.0
    %v4353 = vsel %vm4097, %v1141, 0.0
    %v4354 = vsel %vm4098, %v1142, 0.0
    %v4355 = vsel %vm4099, %v1143, 0.0
    %v4356 = vsel %vm4100, %v1144, 0.0
    %v4357 = vsel %vm4101, %v1145, 0.0
    %v4358 = vsel %vm4102, %v1146, 0.0
    %v4359 = vsel %vm4103, %v1147, 0.0
    %v4360 = vsel %vm4104, %v1148, 0.0
    %v4361 = vsel %vm4105, %v1149, 0.0
    %v4362 = vsel %vm4106, %v1150, 0.0
    %v4363 = vsel %vm4107, %v1151, 0.0
    %v4364 = vsel %vm4108, %v1152, 0.0
    %v4365 = vsel %vm4109, %v1153, 0.0
    %v4366 = vsel %vm4110, %v1154, 0.0
    %v4367 = vsel %vm4111, %v1155, 0.0
    %v4368 = vsel %vm4112, %v1156, 0.0
    %v4369 = vsel %vm4113, %v1157, 0.0
    %v4370 = vsel %vm4114, %v1158, 0.0
    %v4371 = vsel %vm4115, %v1159, 0.0
    %v4372 = vsel %vm4116, %v1160, 0.0
    %v4373 = vsel %vm4117, %v1161, 0.0
    %v4374 = vsel %vm4118, %v1162, 0.0
    %v4375 = vsel %vm4119, %v1163, 0.0
    %v4376 = vsel %vm4120, %v1164, 0.0
    %v4377 = vsel %vm4121, %v1165, 0.0
    %v4378 = vsel %vm4122, %v1166, 0.0
    %v4379 = vsel %vm4123, %v1167, 0.0
    %v4380 = vsel %vm4124, %v1168, 0.0
    %v4381 = vsel %vm4125, %v1169, 0.0
    %v4382 = vsel %vm4126, %v1170, 0.0
    %v4383 = vsel %vm4127, %v1171, 0.0
    %v4384 = vsel %vm4128, %v1172, 0.0
    %v4385 = vsel %vm4129, %v1173, 0.0
    %v4386 = vsel %vm4130, %v1174, 0.0
    %v4387 = vsel %vm4131, %v1175, 0.0
    %v4388 = vsel %vm4132, %v1176, 0.0
    %v4389 = vsel %vm4133, %v1177, 0.0
    %v4390 = vsel %vm4134, %v1178, 0.0
    %v4391 = vsel %vm4135, %v1179, 0.0
    %v4392 = vsel %vm4136, %v1180, 0.0
    %v4393 = vsel %vm4137, %v1181, 0.0
    %v4394 = vsel %vm4138, %v1182, 0.0
    %v4395 = vsel %vm4139, %v1183, 0.0
    %v4396 = vsel %vm4140, %v1184, 0.0
    %v4397 = vsel %vm4141, %v1185, 0.0
    %v4398 = vsel %vm4142, %v1186, 0.0
    %v4399 = vsel %vm4143, %v1187, 0.0
    %v4400 = vsel %vm4144, %v1188, 0.0
    %v4401 = vsel %vm4145, %v1189, 0.0
    %v4402 = vsel %vm4146, %v1190, 0.0
    %v4403 = vsel %vm4147, %v1191, 0.0
    %v4404 = vsel %vm4148, %v1192, 0.0
    %v4405 = vsel %vm4149, %v1193, 0.0
    %v4406 = vsel %vm4150, %v1194, 0.0
    %v4407 = vsel %vm4151, %v1195, 0.0
    %v4408 = vsel %vm4152, %v1196, 0.0
    %v4409 = vsel %vm4153, %v1197, 0.0
    %v4410 = vsel %vm4154, %v1198, 0.0
    %v4411 = vsel %vm4155, %v1199, 0.0
    %v4412 = vsel %vm4156, %v1200, 0.0
    %v4413 = vsel %vm4157, %v1201, 0.0
    %v4414 = vsel %vm4158, %v1202, 0.0
    %v4415 = vsel %vm4159, %v1203, 0.0
    %v4416 = vsel %vm4160, %v1204, 0.0
    %v4417 = vsel %vm4161, %v1205, 0.0
    %v4418 = vsel %vm4162, %v1206, 0.0
    %v4419 = vsel %vm4163, %v1207, 0.0
    %v4420 = vsel %vm4164, %v1208, 0.0
    %v4421 = vsel %vm4165, %v1209, 0.0
    %v4422 = vsel %vm4166, %v1210, 0.0
    %v4423 = vsel %vm4167, %v1211, 0.0
    %v4424 = vsel %vm4168, %v1212, 0.0
    %v4425 = vsel %vm4169, %v1213, 0.0
    %v4426 = vsel %vm4170, %v1214, 0.0
    %v4427 = vsel %vm4171, %v1215, 0.0
    %v4428 = vsel %vm4172, %v1216, 0.0
    %v4429 = vsel %vm4173, %v1217, 0.0
    %v4430 = vsel %vm4174, %v1218, 0.0
    %v4431 = vsel %vm4175, %v1219, 0.0
    %v4432 = vsel %vm4176, %v1220, 0.0
    %v4433 = vsel %vm4177, %v1221, 0.0
    %v4434 = vsel %vm4178, %v1222, 0.0
    %v4435 = vsel %vm4179, %v1223, 0.0
    %v4436 = vsel %vm4180, %v1224, 0.0
    %v4437 = vsel %vm4181, %v1225, 0.0
    %v4438 = vsel %vm4182, %v1226, 0.0
    %v4439 = vsel %vm4183, %v1227, 0.0
    %v4440 = vsel %vm4184, %v1228, 0.0
    %v4441 = vsel %vm4185, %v1229, 0.0
    %v4442 = vsel %vm4186, %v1230, 0.0
    %v4443 = vsel %vm4187, %v1231, 0.0
    %v4444 = vsel %vm4188, %v1232, 0.0
    %v4445 = vsel %vm4189, %v1233, 0.0
    %v4446 = vsel %vm4190, %v1234, 0.0
    %v4447 = vsel %vm4191, %v1235, 0.0
    %v4448 = vsel %vm4192, %v1236, 0.0
    %v4449 = vsel %vm4193, %v1237, 0.0
    %v4450 = vsel %vm4194, %v1238, 0.0
    %v4451 = vsel %vm4195, %v1239, 0.0
    %v4452 = vsel %vm4196, %v1240, 0.0
    %v4453 = vsel %vm4197, %v1241, 0.0
    %v4454 = vsel %vm4198, %v1242, 0.0
    %v4455 = vsel %vm4199, %v1243, 0.0
    %v4456 = vsel %vm4200, %v1244, 0.0
    %v4457 = vsel %vm4201, %v1245, 0.0
    %v4458 = vsel %vm4202, %v1246, 0.0
    %v4459 = vsel %vm4203, %v1247, 0.0
    %v4460 = vsel %vm4204, %v1248, 0.0
    %v4461 = vsel %vm4205, %v1249, 0.0
    %v4462 = vsel %vm4206, %v1250, 0.0
    %v4463 = vsel %vm4207, %v1251, 0.0
    %v4464 = vsel %vm4208, %v1252, 0.0
    %v4465 = vsel %vm4209, %v1253, 0.0
    %v4466 = vsel %vm4210, %v1254, 0.0
    %v4467 = vsel %vm4211, %v1255, 0.0
    %v4468 = vsel %vm4212, %v1256, 0.0
    %v4469 = vsel %vm4213, %v1257, 0.0
    %v4470 = vsel %vm4214, %v1258, 0.0
    %v4471 = vsel %vm4215, %v1259, 0.0
    %v4472 = vsel %vm4216, %v1260, 0.0
    %v4473 = vsel %vm4217, %v1261, 0.0
    %v4474 = vsel %vm4218, %v1262, 0.0
    %v4475 = vsel %vm4219, %v1263, 0.0
    %v4476 = vsel %vm4220, %v1264, 0.0
    %v4477 = vsel %vm4221, %v1265, 0.0
    %v4478 = vsel %vm4222, %v1266, 0.0
    %v4479 = vsel %vm4223, %v1267, 0.0
    %v4480 = vsel %vm4224, %v1268, 0.0
    %v4481 = vsel %vm4225, %v1269, 0.0
    %v4482 = vsel %vm4226, %v1270, 0.0
    %v4483 = vsel %vm4227, %v1271, 0.0
    %v4484 = vsel %vm4228, %v1272, 0.0
    %v4485 = vsel %vm4229, %v1273, 0.0
    %v4486 = vsel %vm4230, %v1274, 0.0
    %v4487 = vsel %vm4231, %v1275, 0.0
    %v4488 = vsel %vm4232, %v1276, 0.0
    %v4489 = vsel %vm4233, %v1277, 0.0
    %v4490 = vsel %vm4234, %v1278, 0.0
    %v4491 = vsel %vm4235, %v1279, 0.0
    %v4492 = vsel %vm4236, %v1280, 0.0
    %v4493 = vsel %vm4237, %v1281, 0.0
    %v4494 = vsel %vm4238, %v1282, 0.0
    %v4495 = vsel %vm4239, %v1283, 0.0
    %v4496 = vsel %vm4240, %v1284, 0.0
    %v4497 = vsel %vm4241, %v1285, 0.0
    %v4498 = vsel %vm4242, %v1286, 0.0
    %v4499 = vsel %vm4243, %v1287, 0.0
    %v4500 = vsel %vm4244, %v1288, 0.0
    %v4501 = vsel %vm4245, %v1289, 0.0
    %v4502 = vsel %vm4246, %v1290, 0.0
    %v4503 = vsel %vm4247, %v1291, 0.0
    %v4504 = vsel %vm4248, %v1292, 0.0
    %v4505 = vsel %vm4249, %v1293, 0.0
    %v4506 = vsel %vm4250, %v1294, 0.0
    %v4507 = vsel %vm4251, %v1295, 0.0
    %v4508 = vsel %vm4252, %v1296, 0.0
    %v4509 = vsel %vm4253, %v1297, 0.0
    %v4510 = vsel %vm4254, %v1298, 0.0
    %v4511 = vsel %vm4255, %v1299, 0.0
    %v4512 = vsel %vm4256, %v1300, 0.0
    %v4513 = vsel %vm4257, %v1301, 0.0
    %v4514 = vsel %vm4258, %v1302, 0.0
    %v4515 = vsel %vm4259, %v1303, 0.0
    %v4516 = vsel %vm4260, %v1304, 0.0
    %v4517 = vsel %vm4261, %v1305, 0.0
    %v4518 = vsel %vm4262, %v1306, 0.0
    %v4519 = vsel %vm4263, %v1307, 0.0
    %v4520 = vsel %vm4264, %v1308, 0.0
    %v4521 = vsel %vm4265, %v1309, 0.0
    %v4522 = vsel %vm4266, %v1310, 0.0
    %v4523 = vsel %vm4267, %v1311, 0.0
    %v4524 = vsel %vm4268, %v1312, 0.0
    %v4525 = vsel %vm4269, %v1313, 0.0
    %v4526 = vsel %vm4270, %v1314, 0.0
    %v4527 = vsel %vm4271, %v1315, 0.0
    %v4528 = vsel %vm4272, %v1316, 0.0
    %v4529 = vsel %vm4273, %v1317, 0.0
    %v4530 = vsel %vm4274, %v1318, 0.0
    %v4531 = vsel %vm4275, %v1319, 0.0
    %v4532 = vsel %vm4276, %v1320, 0.0
    %v4533 = vsel %vm4277, %v1321, 0.0
    %v4534 = vsel %vm4278, %v1322, 0.0
    %v4535 = vsel %vm4279, %v1323, 0.0
    %v4536 = vsel %vm4280, %v1324, 0.0
    %v4537 = vsel %vm4281, %v1325, 0.0
    %v4538 = vsel %vm4282, %v1326, 0.0
    %v4539 = vsel %vm4283, %v1327, 0.0
    %v4540 = vsel %vm4284, %v1328, 0.0
    %v4541 = vsel %vm4285, %v1329, 0.0
    %v4542 = vsel %vm4286, %v1330, 0.0
    %v4543 = vsel %vm4287, %v1331, 0.0
    %v4544 = vsel %vm4288, %v1332, 0.0
    %v4545 = vsel %vm4289, %v1333, 0.0
    %v4546 = vsel %vm4290, %v1334, 0.0
    %v4547 = vsel %vm4291, %v1335, 0.0
    %v4548 = vsel %vm4292, %v1336, 0.0
    %v4549 = vsel %vm4293, %v1337, 0.0
    %v4550 = vsel %vm4294, %v1338, 0.0
    %v4551 = vsel %vm4295, %v1339, 0.0
    %v4552 = vsel %vm4296, %v1340, 0.0
    %v4553 = vsel %vm4297, %v1341, 0.0
    %v4554 = vsel %vm4298, %v1342, 0.0
    %v4555 = vsel %vm4299, %v1343, 0.0
    %v4556 = vsel %vm4300, %v1344, 0.0
    %v4557 = vsel %vm4301, %v1345, 0.0
    %v4558 = vsel %vm4302, %v1346, 0.0
    %v4559 = vsel %vm4303, %v1347, 0.0
    %v4560 = vsel %vm4304, %v1348, 0.0
    %v4561 = vsel %vm4305, %v1349, 0.0
    %v4562 = vsel %vm4306, %v1350, 0.0
    %v4563 = vsel %vm4307, %v1351, 0.0
    %v4564 = vsel %vm4308, %v1352, 0.0
    %v4565 = vsel %vm4309, %v1353, 0.0
    %v4566 = vsel %vm4310, %v1354, 0.0
    %v4567 = vsel %vm4311, %v1355, 0.0
    %v4568 = vsel %vm4312, %v1356, 0.0
    %v4569 = vsel %vm4313, %v1357, 0.0
    %v4570 = vsel %vm4314, %v1358, 0.0
    %v4571 = vsel %vm4315, %v1359, 0.0
    %v4572 = vsel %vm4316, %v1360, 0.0
    %v4573 = vsel %vm4317, %v1361, 0.0
    %v4574 = vsel %vm4318, %v1362, 0.0
    %v4575 = vsel %vm4319, %v1363, 0.0
    %v4576 = vsel %vm4320, %v1364, 0.0
    %v4577 = vsel %vm4321, %v1365, 0.0
    %v4578 = vsel %vm4322, %v1366, 0.0
    %v4579 = vsel %vm4323, %v1367, 0.0
    %v4580 = vsel %vm4324, %v1368, 0.0
    %v4581 = vsel %vm4325, %v1369, 0.0
    %v4582 = vsel %vm4326, %v1370, 0.0
    %v4583 = vsel %vm4327, %v1371, 0.0
    %v4584 = vsel %vm4328, %v1372, 0.0
    %v4585 = vsel %vm4329, %v1373, 0.0
    %v4586 = vsel %vm4330, %v1374, 0.0
    %v4587 = vsel %vm4331, %v1375, 0.0
    %v4588 = vsel %vm4332, %v1376, 0.0
    %v4589 = vsel %vm4333, %v1377, 0.0
    %v4590 = vsel %vm4334, %v1378, 0.0
    %v4591 = vsel %vm4335, %v1379, 0.0
    %v4592 = vsel %vm4336, %v1380, 0.0
    %v4593 = vsel %vm4337, %v1381, 0.0
    %v4594 = vsel %vm4338, %v1382, 0.0
    %v4595 = vsel %vm4339, %v1383, 0.0
    %v4596 = vsel %vm4340, %v1384, 0.0
    %v4597 = vsel %vm4341, %v1385, 0.0
    %v4598 = vsel %vm4342, %v1386, 0.0
    %v4599 = vsel %vm4343, %v1387, 0.0
    %v4600 = vadd.f32 %v4344, %v4345
    %v4601 = vadd.f32 %v4600, %v4346
    %v4602 = vadd.f32 %v4601, %v4347
    %4603 = vadd.xlane.f32.xlu0 %v4602
    %v4604 = vpop.xlane.xlu0 %4603
    %v4605 = vadd.f32 %v4348, %v4349
    %v4606 = vadd.f32 %v4605, %v4350
    %v4607 = vadd.f32 %v4606, %v4351
    %4608 = vadd.xlane.f32.xlu0 %v4607
    %v4609 = vpop.xlane.xlu0 %4608
    %v4610 = vadd.f32 %v4352, %v4353
    %v4611 = vadd.f32 %v4610, %v4354
    %v4612 = vadd.f32 %v4611, %v4355
    %4613 = vadd.xlane.f32.xlu0 %v4612
    %v4614 = vpop.xlane.xlu0 %4613
    %v4615 = vadd.f32 %v4356, %v4357
    %v4616 = vadd.f32 %v4615, %v4358
    %v4617 = vadd.f32 %v4616, %v4359
    %4618 = vadd.xlane.f32.xlu0 %v4617
    %v4619 = vpop.xlane.xlu0 %4618
    %v4620 = vadd.f32 %v4360, %v4361
    %v4621 = vadd.f32 %v4620, %v4362
    %v4622 = vadd.f32 %v4621, %v4363
    %4623 = vadd.xlane.f32.xlu0 %v4622
    %v4624 = vpop.xlane.xlu0 %4623
    %v4625 = vadd.f32 %v4364, %v4365
    %v4626 = vadd.f32 %v4625, %v4366
    %v4627 = vadd.f32 %v4626, %v4367
    %4628 = vadd.xlane.f32.xlu0 %v4627
    %v4629 = vpop.xlane.xlu0 %4628
    %v4630 = vadd.f32 %v4368, %v4369
    %v4631 = vadd.f32 %v4630, %v4370
    %v4632 = vadd.f32 %v4631, %v4371
    %4633 = vadd.xlane.f32.xlu0 %v4632
    %v4634 = vpop.xlane.xlu0 %4633
    %v4635 = vadd.f32 %v4372, %v4373
    %v4636 = vadd.f32 %v4635, %v4374
    %v4637 = vadd.f32 %v4636, %v4375
    %4638 = vadd.xlane.f32.xlu0 %v4637
    %v4639 = vpop.xlane.xlu0 %4638
    %v4640 = vadd.f32 %v4376, %v4377
    %v4641 = vadd.f32 %v4640, %v4378
    %v4642 = vadd.f32 %v4641, %v4379
    %4643 = vadd.xlane.f32.xlu0 %v4642
    %v4644 = vpop.xlane.xlu0 %4643
    %v4645 = vadd.f32 %v4380, %v4381
    %v4646 = vadd.f32 %v4645, %v4382
    %v4647 = vadd.f32 %v4646, %v4383
    %4648 = vadd.xlane.f32.xlu0 %v4647
    %v4649 = vpop.xlane.xlu0 %4648
    %v4650 = vadd.f32 %v4384, %v4385
    %v4651 = vadd.f32 %v4650, %v4386
    %v4652 = vadd.f32 %v4651, %v4387
    %4653 = vadd.xlane.f32.xlu0 %v4652
    %v4654 = vpop.xlane.xlu0 %4653
    %v4655 = vadd.f32 %v4388, %v4389
    %v4656 = vadd.f32 %v4655, %v4390
    %v4657 = vadd.f32 %v4656, %v4391
    %4658 = vadd.xlane.f32.xlu0 %v4657
    %v4659 = vpop.xlane.xlu0 %4658
    %v4660 = vadd.f32 %v4392, %v4393
    %v4661 = vadd.f32 %v4660, %v4394
    %v4662 = vadd.f32 %v4661, %v4395
    %4663 = vadd.xlane.f32.xlu0 %v4662
    %v4664 = vpop.xlane.xlu0 %4663
    %v4665 = vadd.f32 %v4396, %v4397
    %v4666 = vadd.f32 %v4665, %v4398
    %v4667 = vadd.f32 %v4666, %v4399
    %4668 = vadd.xlane.f32.xlu0 %v4667
    %v4669 = vpop.xlane.xlu0 %4668
    %v4670 = vadd.f32 %v4400, %v4401
    %v4671 = vadd.f32 %v4670, %v4402
    %v4672 = vadd.f32 %v4671, %v4403
    %4673 = vadd.xlane.f32.xlu0 %v4672
    %v4674 = vpop.xlane.xlu0 %4673
    %v4675 = vadd.f32 %v4404, %v4405
    %v4676 = vadd.f32 %v4675, %v4406
    %v4677 = vadd.f32 %v4676, %v4407
    %4678 = vadd.xlane.f32.xlu0 %v4677
    %v4679 = vpop.xlane.xlu0 %4678
    %v4680 = vadd.f32 %v4408, %v4409
    %v4681 = vadd.f32 %v4680, %v4410
    %v4682 = vadd.f32 %v4681, %v4411
    %4683 = vadd.xlane.f32.xlu0 %v4682
    %v4684 = vpop.xlane.xlu0 %4683
    %v4685 = vadd.f32 %v4412, %v4413
    %v4686 = vadd.f32 %v4685, %v4414
    %v4687 = vadd.f32 %v4686, %v4415
    %4688 = vadd.xlane.f32.xlu0 %v4687
    %v4689 = vpop.xlane.xlu0 %4688
    %v4690 = vadd.f32 %v4416, %v4417
    %v4691 = vadd.f32 %v4690, %v4418
    %v4692 = vadd.f32 %v4691, %v4419
    %4693 = vadd.xlane.f32.xlu0 %v4692
    %v4694 = vpop.xlane.xlu0 %4693
    %v4695 = vadd.f32 %v4420, %v4421
    %v4696 = vadd.f32 %v4695, %v4422
    %v4697 = vadd.f32 %v4696, %v4423
    %4698 = vadd.xlane.f32.xlu0 %v4697
    %v4699 = vpop.xlane.xlu0 %4698
    %v4700 = vadd.f32 %v4424, %v4425
    %v4701 = vadd.f32 %v4700, %v4426
    %v4702 = vadd.f32 %v4701, %v4427
    %4703 = vadd.xlane.f32.xlu0 %v4702
    %v4704 = vpop.xlane.xlu0 %4703
    %v4705 = vadd.f32 %v4428, %v4429
    %v4706 = vadd.f32 %v4705, %v4430
    %v4707 = vadd.f32 %v4706, %v4431
    %4708 = vadd.xlane.f32.xlu0 %v4707
    %v4709 = vpop.xlane.xlu0 %4708
    %v4710 = vadd.f32 %v4432, %v4433
    %v4711 = vadd.f32 %v4710, %v4434
    %v4712 = vadd.f32 %v4711, %v4435
    %4713 = vadd.xlane.f32.xlu0 %v4712
    %v4714 = vpop.xlane.xlu0 %4713
    %v4715 = vadd.f32 %v4436, %v4437
    %v4716 = vadd.f32 %v4715, %v4438
    %v4717 = vadd.f32 %v4716, %v4439
    %4718 = vadd.xlane.f32.xlu0 %v4717
    %v4719 = vpop.xlane.xlu0 %4718
    %v4720 = vadd.f32 %v4440, %v4441
    %v4721 = vadd.f32 %v4720, %v4442
    %v4722 = vadd.f32 %v4721, %v4443
    %4723 = vadd.xlane.f32.xlu0 %v4722
    %v4724 = vpop.xlane.xlu0 %4723
    %v4725 = vadd.f32 %v4444, %v4445
    %v4726 = vadd.f32 %v4725, %v4446
    %v4727 = vadd.f32 %v4726, %v4447
    %4728 = vadd.xlane.f32.xlu0 %v4727
    %v4729 = vpop.xlane.xlu0 %4728
    %v4730 = vadd.f32 %v4448, %v4449
    %v4731 = vadd.f32 %v4730, %v4450
    %v4732 = vadd.f32 %v4731, %v4451
    %4733 = vadd.xlane.f32.xlu0 %v4732
    %v4734 = vpop.xlane.xlu0 %4733
    %v4735 = vadd.f32 %v4452, %v4453
    %v4736 = vadd.f32 %v4735, %v4454
    %v4737 = vadd.f32 %v4736, %v4455
    %4738 = vadd.xlane.f32.xlu0 %v4737
    %v4739 = vpop.xlane.xlu0 %4738
    %v4740 = vadd.f32 %v4456, %v4457
    %v4741 = vadd.f32 %v4740, %v4458
    %v4742 = vadd.f32 %v4741, %v4459
    %4743 = vadd.xlane.f32.xlu0 %v4742
    %v4744 = vpop.xlane.xlu0 %4743
    %v4745 = vadd.f32 %v4460, %v4461
    %v4746 = vadd.f32 %v4745, %v4462
    %v4747 = vadd.f32 %v4746, %v4463
    %4748 = vadd.xlane.f32.xlu0 %v4747
    %v4749 = vpop.xlane.xlu0 %4748
    %v4750 = vadd.f32 %v4464, %v4465
    %v4751 = vadd.f32 %v4750, %v4466
    %v4752 = vadd.f32 %v4751, %v4467
    %4753 = vadd.xlane.f32.xlu0 %v4752
    %v4754 = vpop.xlane.xlu0 %4753
    %v4755 = vadd.f32 %v4468, %v4469
    %v4756 = vadd.f32 %v4755, %v4470
    %v4757 = vadd.f32 %v4756, %v4471
    %4758 = vadd.xlane.f32.xlu0 %v4757
    %v4759 = vpop.xlane.xlu0 %4758
    %v4760 = vadd.f32 %v4472, %v4473
    %v4761 = vadd.f32 %v4760, %v4474
    %v4762 = vadd.f32 %v4761, %v4475
    %4763 = vadd.xlane.f32.xlu0 %v4762
    %v4764 = vpop.xlane.xlu0 %4763
    %v4765 = vadd.f32 %v4476, %v4477
    %v4766 = vadd.f32 %v4765, %v4478
    %v4767 = vadd.f32 %v4766, %v4479
    %4768 = vadd.xlane.f32.xlu0 %v4767
    %v4769 = vpop.xlane.xlu0 %4768
    %v4770 = vadd.f32 %v4480, %v4481
    %v4771 = vadd.f32 %v4770, %v4482
    %v4772 = vadd.f32 %v4771, %v4483
    %4773 = vadd.xlane.f32.xlu0 %v4772
    %v4774 = vpop.xlane.xlu0 %4773
    %v4775 = vadd.f32 %v4484, %v4485
    %v4776 = vadd.f32 %v4775, %v4486
    %v4777 = vadd.f32 %v4776, %v4487
    %4778 = vadd.xlane.f32.xlu0 %v4777
    %v4779 = vpop.xlane.xlu0 %4778
    %v4780 = vadd.f32 %v4488, %v4489
    %v4781 = vadd.f32 %v4780, %v4490
    %v4782 = vadd.f32 %v4781, %v4491
    %4783 = vadd.xlane.f32.xlu0 %v4782
    %v4784 = vpop.xlane.xlu0 %4783
    %v4785 = vadd.f32 %v4492, %v4493
    %v4786 = vadd.f32 %v4785, %v4494
    %v4787 = vadd.f32 %v4786, %v4495
    %4788 = vadd.xlane.f32.xlu0 %v4787
    %v4789 = vpop.xlane.xlu0 %4788
    %v4790 = vadd.f32 %v4496, %v4497
    %v4791 = vadd.f32 %v4790, %v4498
    %v4792 = vadd.f32 %v4791, %v4499
    %4793 = vadd.xlane.f32.xlu0 %v4792
    %v4794 = vpop.xlane.xlu0 %4793
    %v4795 = vadd.f32 %v4500, %v4501
    %v4796 = vadd.f32 %v4795, %v4502
    %v4797 = vadd.f32 %v4796, %v4503
    %4798 = vadd.xlane.f32.xlu0 %v4797
    %v4799 = vpop.xlane.xlu0 %4798
    %v4800 = vadd.f32 %v4504, %v4505
    %v4801 = vadd.f32 %v4800, %v4506
    %v4802 = vadd.f32 %v4801, %v4507
    %4803 = vadd.xlane.f32.xlu0 %v4802
    %v4804 = vpop.xlane.xlu0 %4803
    %v4805 = vadd.f32 %v4508, %v4509
    %v4806 = vadd.f32 %v4805, %v4510
    %v4807 = vadd.f32 %v4806, %v4511
    %4808 = vadd.xlane.f32.xlu0 %v4807
    %v4809 = vpop.xlane.xlu0 %4808
    %v4810 = vadd.f32 %v4512, %v4513
    %v4811 = vadd.f32 %v4810, %v4514
    %v4812 = vadd.f32 %v4811, %v4515
    %4813 = vadd.xlane.f32.xlu0 %v4812
    %v4814 = vpop.xlane.xlu0 %4813
    %v4815 = vadd.f32 %v4516, %v4517
    %v4816 = vadd.f32 %v4815, %v4518
    %v4817 = vadd.f32 %v4816, %v4519
    %4818 = vadd.xlane.f32.xlu0 %v4817
    %v4819 = vpop.xlane.xlu0 %4818
    %v4820 = vadd.f32 %v4520, %v4521
    %v4821 = vadd.f32 %v4820, %v4522
    %v4822 = vadd.f32 %v4821, %v4523
    %4823 = vadd.xlane.f32.xlu0 %v4822
    %v4824 = vpop.xlane.xlu0 %4823
    %v4825 = vadd.f32 %v4524, %v4525
    %v4826 = vadd.f32 %v4825, %v4526
    %v4827 = vadd.f32 %v4826, %v4527
    %4828 = vadd.xlane.f32.xlu0 %v4827
    %v4829 = vpop.xlane.xlu0 %4828
    %v4830 = vadd.f32 %v4528, %v4529
    %v4831 = vadd.f32 %v4830, %v4530
    %v4832 = vadd.f32 %v4831, %v4531
    %4833 = vadd.xlane.f32.xlu0 %v4832
    %v4834 = vpop.xlane.xlu0 %4833
    %v4835 = vadd.f32 %v4532, %v4533
    %v4836 = vadd.f32 %v4835, %v4534
    %v4837 = vadd.f32 %v4836, %v4535
    %4838 = vadd.xlane.f32.xlu0 %v4837
    %v4839 = vpop.xlane.xlu0 %4838
    %v4840 = vadd.f32 %v4536, %v4537
    %v4841 = vadd.f32 %v4840, %v4538
    %v4842 = vadd.f32 %v4841, %v4539
    %4843 = vadd.xlane.f32.xlu0 %v4842
    %v4844 = vpop.xlane.xlu0 %4843
    %v4845 = vadd.f32 %v4540, %v4541
    %v4846 = vadd.f32 %v4845, %v4542
    %v4847 = vadd.f32 %v4846, %v4543
    %4848 = vadd.xlane.f32.xlu0 %v4847
    %v4849 = vpop.xlane.xlu0 %4848
    %v4850 = vadd.f32 %v4544, %v4545
    %v4851 = vadd.f32 %v4850, %v4546
    %v4852 = vadd.f32 %v4851, %v4547
    %4853 = vadd.xlane.f32.xlu0 %v4852
    %v4854 = vpop.xlane.xlu0 %4853
    %v4855 = vadd.f32 %v4548, %v4549
    %v4856 = vadd.f32 %v4855, %v4550
    %v4857 = vadd.f32 %v4856, %v4551
    %4858 = vadd.xlane.f32.xlu0 %v4857
    %v4859 = vpop.xlane.xlu0 %4858
    %v4860 = vadd.f32 %v4552, %v4553
    %v4861 = vadd.f32 %v4860, %v4554
    %v4862 = vadd.f32 %v4861, %v4555
    %4863 = vadd.xlane.f32.xlu0 %v4862
    %v4864 = vpop.xlane.xlu0 %4863
    %v4865 = vadd.f32 %v4556, %v4557
    %v4866 = vadd.f32 %v4865, %v4558
    %v4867 = vadd.f32 %v4866, %v4559
    %4868 = vadd.xlane.f32.xlu0 %v4867
    %v4869 = vpop.xlane.xlu0 %4868
    %v4870 = vadd.f32 %v4560, %v4561
    %v4871 = vadd.f32 %v4870, %v4562
    %v4872 = vadd.f32 %v4871, %v4563
    %4873 = vadd.xlane.f32.xlu0 %v4872
    %v4874 = vpop.xlane.xlu0 %4873
    %v4875 = vadd.f32 %v4564, %v4565
    %v4876 = vadd.f32 %v4875, %v4566
    %v4877 = vadd.f32 %v4876, %v4567
    %4878 = vadd.xlane.f32.xlu0 %v4877
    %v4879 = vpop.xlane.xlu0 %4878
    %v4880 = vadd.f32 %v4568, %v4569
    %v4881 = vadd.f32 %v4880, %v4570
    %v4882 = vadd.f32 %v4881, %v4571
    %4883 = vadd.xlane.f32.xlu0 %v4882
    %v4884 = vpop.xlane.xlu0 %4883
    %v4885 = vadd.f32 %v4572, %v4573
    %v4886 = vadd.f32 %v4885, %v4574
    %v4887 = vadd.f32 %v4886, %v4575
    %4888 = vadd.xlane.f32.xlu0 %v4887
    %v4889 = vpop.xlane.xlu0 %4888
    %v4890 = vadd.f32 %v4576, %v4577
    %v4891 = vadd.f32 %v4890, %v4578
    %v4892 = vadd.f32 %v4891, %v4579
    %4893 = vadd.xlane.f32.xlu0 %v4892
    %v4894 = vpop.xlane.xlu0 %4893
    %v4895 = vadd.f32 %v4580, %v4581
    %v4896 = vadd.f32 %v4895, %v4582
    %v4897 = vadd.f32 %v4896, %v4583
    %4898 = vadd.xlane.f32.xlu0 %v4897
    %v4899 = vpop.xlane.xlu0 %4898
    %v4900 = vadd.f32 %v4584, %v4585
    %v4901 = vadd.f32 %v4900, %v4586
    %v4902 = vadd.f32 %v4901, %v4587
    %4903 = vadd.xlane.f32.xlu0 %v4902
    %v4904 = vpop.xlane.xlu0 %4903
    %v4905 = vadd.f32 %v4588, %v4589
    %v4906 = vadd.f32 %v4905, %v4590
    %v4907 = vadd.f32 %v4906, %v4591
    %4908 = vadd.xlane.f32.xlu0 %v4907
    %v4909 = vpop.xlane.xlu0 %4908
    %v4910 = vadd.f32 %v4592, %v4593
    %v4911 = vadd.f32 %v4910, %v4594
    %v4912 = vadd.f32 %v4911, %v4595
    %4913 = vadd.xlane.f32.xlu0 %v4912
    %v4914 = vpop.xlane.xlu0 %4913
    %v4915 = vadd.f32 %v4596, %v4597
    %v4916 = vadd.f32 %v4915, %v4598
    %v4917 = vadd.f32 %v4916, %v4599
    %4918 = vadd.xlane.f32.xlu0 %v4917
    %v4919 = vpop.xlane.xlu0 %4918
    %v4920 = vadd.f32 %v1453, %v4604
    %v4921 = vadd.f32 %v1454, %v4609
    %v4922 = vadd.f32 %v1455, %v4614
    %v4923 = vadd.f32 %v1456, %v4619
    %v4924 = vadd.f32 %v1457, %v4624
    %v4925 = vadd.f32 %v1458, %v4629
    %v4926 = vadd.f32 %v1459, %v4634
    %v4927 = vadd.f32 %v1460, %v4639
    %v4928 = vadd.f32 %v1461, %v4644
    %v4929 = vadd.f32 %v1462, %v4649
    %v4930 = vadd.f32 %v1463, %v4654
    %v4931 = vadd.f32 %v1464, %v4659
    %v4932 = vadd.f32 %v1465, %v4664
    %v4933 = vadd.f32 %v1466, %v4669
    %v4934 = vadd.f32 %v1467, %v4674
    %v4935 = vadd.f32 %v1468, %v4679
    %v4936 = vadd.f32 %v1469, %v4684
    %v4937 = vadd.f32 %v1470, %v4689
    %v4938 = vadd.f32 %v1471, %v4694
    %v4939 = vadd.f32 %v1472, %v4699
    %v4940 = vadd.f32 %v1473, %v4704
    %v4941 = vadd.f32 %v1474, %v4709
    %v4942 = vadd.f32 %v1475, %v4714
    %v4943 = vadd.f32 %v1476, %v4719
    %v4944 = vadd.f32 %v1477, %v4724
    %v4945 = vadd.f32 %v1478, %v4729
    %v4946 = vadd.f32 %v1479, %v4734
    %v4947 = vadd.f32 %v1480, %v4739
    %v4948 = vadd.f32 %v1481, %v4744
    %v4949 = vadd.f32 %v1482, %v4749
    %v4950 = vadd.f32 %v1483, %v4754
    %v4951 = vadd.f32 %v1484, %v4759
    %v4952 = vadd.f32 %v1485, %v4764
    %v4953 = vadd.f32 %v1486, %v4769
    %v4954 = vadd.f32 %v1487, %v4774
    %v4955 = vadd.f32 %v1488, %v4779
    %v4956 = vadd.f32 %v1489, %v4784
    %v4957 = vadd.f32 %v1490, %v4789
    %v4958 = vadd.f32 %v1491, %v4794
    %v4959 = vadd.f32 %v1492, %v4799
    %v4960 = vadd.f32 %v1493, %v4804
    %v4961 = vadd.f32 %v1494, %v4809
    %v4962 = vadd.f32 %v1495, %v4814
    %v4963 = vadd.f32 %v1496, %v4819
    %v4964 = vadd.f32 %v1497, %v4824
    %v4965 = vadd.f32 %v1498, %v4829
    %v4966 = vadd.f32 %v1499, %v4834
    %v4967 = vadd.f32 %v1500, %v4839
    %v4968 = vadd.f32 %v1501, %v4844
    %v4969 = vadd.f32 %v1502, %v4849
    %v4970 = vadd.f32 %v1503, %v4854
    %v4971 = vadd.f32 %v1504, %v4859
    %v4972 = vadd.f32 %v1505, %v4864
    %v4973 = vadd.f32 %v1506, %v4869
    %v4974 = vadd.f32 %v1507, %v4874
    %v4975 = vadd.f32 %v1508, %v4879
    %v4976 = vadd.f32 %v1509, %v4884
    %v4977 = vadd.f32 %v1510, %v4889
    %v4978 = vadd.f32 %v1511, %v4894
    %v4979 = vadd.f32 %v1512, %v4899
    %v4980 = vadd.f32 %v1513, %v4904
    %v4981 = vadd.f32 %v1514, %v4909
    %v4982 = vadd.f32 %v1515, %v4914
    %v4983 = vadd.f32 %v1516, %v4919
    %vm4984 = vcmask 7168
    %4985 = vst.msk [vmem:[#allocation2] sm:$0xff] %vm4984, %v1837
    %4986 = vst.msk [vmem:[#allocation2 + $0x8] sm:$0xff] %vm4984, %v1838
    %4987 = vst.msk [vmem:[#allocation2 + $0x10] sm:$0xff] %vm4984, %v1839
    %4988 = vst.msk [vmem:[#allocation2 + $0x18] sm:$0xff] %vm4984, %v1840
    %4989 = vst.msk [vmem:[#allocation2 + $0x20] sm:$0xff] %vm4984, %v1841
    %4990 = vst.msk [vmem:[#allocation2 + $0x28] sm:$0xff] %vm4984, %v1842
    %4991 = vst.msk [vmem:[#allocation2 + $0x30] sm:$0xff] %vm4984, %v1843
    %4992 = vst.msk [vmem:[#allocation2 + $0x38] sm:$0xff] %vm4984, %v1844
    %4993 = vst.msk [vmem:[#allocation2 + $0x40] sm:$0xff] %vm4984, %v1845
    %4994 = vst.msk [vmem:[#allocation2 + $0x48] sm:$0xff] %vm4984, %v1846
    %4995 = vst.msk [vmem:[#allocation2 + $0x50] sm:$0xff] %vm4984, %v1847
    %4996 = vst.msk [vmem:[#allocation2 + $0x58] sm:$0xff] %vm4984, %v1848
    %4997 = vst.msk [vmem:[#allocation2 + $0x60] sm:$0xff] %vm4984, %v1849
    %4998 = vst.msk [vmem:[#allocation2 + $0x68] sm:$0xff] %vm4984, %v1850
    %4999 = vst.msk [vmem:[#allocation2 + $0x70] sm:$0xff] %vm4984, %v1851
    %5000 = vst.msk [vmem:[#allocation2 + $0x78] sm:$0xff] %vm4984, %v1852
    %5001 = vst.msk [vmem:[#allocation2 + $0x80] sm:$0xff] %vm4984, %v1853
    %5002 = vst.msk [vmem:[#allocation2 + $0x88] sm:$0xff] %vm4984, %v1854
    %5003 = vst.msk [vmem:[#allocation2 + $0x90] sm:$0xff] %vm4984, %v1855
    %5004 = vst.msk [vmem:[#allocation2 + $0x98] sm:$0xff] %vm4984, %v1856
    %5005 = vst.msk [vmem:[#allocation2 + $0xa0] sm:$0xff] %vm4984, %v1857
    %5006 = vst.msk [vmem:[#allocation2 + $0xa8] sm:$0xff] %vm4984, %v1858
    %5007 = vst.msk [vmem:[#allocation2 + $0xb0] sm:$0xff] %vm4984, %v1859
    %5008 = vst.msk [vmem:[#allocation2 + $0xb8] sm:$0xff] %vm4984, %v1860
    %5009 = vst.msk [vmem:[#allocation2 + $0xc0] sm:$0xff] %vm4984, %v1861
    %5010 = vst.msk [vmem:[#allocation2 + $0xc8] sm:$0xff] %vm4984, %v1862
    %5011 = vst.msk [vmem:[#allocation2 + $0xd0] sm:$0xff] %vm4984, %v1863
    %5012 = vst.msk [vmem:[#allocation2 + $0xd8] sm:$0xff] %vm4984, %v1864
    %5013 = vst.msk [vmem:[#allocation2 + $0xe0] sm:$0xff] %vm4984, %v1865
    %5014 = vst.msk [vmem:[#allocation2 + $0xe8] sm:$0xff] %vm4984, %v1866
    %5015 = vst.msk [vmem:[#allocation2 + $0xf0] sm:$0xff] %vm4984, %v1867
    %5016 = vst.msk [vmem:[#allocation2 + $0xf8] sm:$0xff] %vm4984, %v1868
    %5017 = vst.msk [vmem:[#allocation2 + $0x100] sm:$0xff] %vm4984, %v1869
    %5018 = vst.msk [vmem:[#allocation2 + $0x108] sm:$0xff] %vm4984, %v1870
    %5019 = vst.msk [vmem:[#allocation2 + $0x110] sm:$0xff] %vm4984, %v1871
    %5020 = vst.msk [vmem:[#allocation2 + $0x118] sm:$0xff] %vm4984, %v1872
    %5021 = vst.msk [vmem:[#allocation2 + $0x120] sm:$0xff] %vm4984, %v1873
    %5022 = vst.msk [vmem:[#allocation2 + $0x128] sm:$0xff] %vm4984, %v1874
    %5023 = vst.msk [vmem:[#allocation2 + $0x130] sm:$0xff] %vm4984, %v1875
    %5024 = vst.msk [vmem:[#allocation2 + $0x138] sm:$0xff] %vm4984, %v1876
    %5025 = vst.msk [vmem:[#allocation2 + $0x140] sm:$0xff] %vm4984, %v1877
    %5026 = vst.msk [vmem:[#allocation2 + $0x148] sm:$0xff] %vm4984, %v1878
    %5027 = vst.msk [vmem:[#allocation2 + $0x150] sm:$0xff] %vm4984, %v1879
    %5028 = vst.msk [vmem:[#allocation2 + $0x158] sm:$0xff] %vm4984, %v1880
    %5029 = vst.msk [vmem:[#allocation2 + $0x160] sm:$0xff] %vm4984, %v1881
    %5030 = vst.msk [vmem:[#allocation2 + $0x168] sm:$0xff] %vm4984, %v1882
    %5031 = vst.msk [vmem:[#allocation2 + $0x170] sm:$0xff] %vm4984, %v1883
    %5032 = vst.msk [vmem:[#allocation2 + $0x178] sm:$0xff] %vm4984, %v1884
    %5033 = vst.msk [vmem:[#allocation2 + $0x180] sm:$0xff] %vm4984, %v1885
    %5034 = vst.msk [vmem:[#allocation2 + $0x188] sm:$0xff] %vm4984, %v1886
    %5035 = vst.msk [vmem:[#allocation2 + $0x190] sm:$0xff] %vm4984, %v1887
    %5036 = vst.msk [vmem:[#allocation2 + $0x198] sm:$0xff] %vm4984, %v1888
    %5037 = vst.msk [vmem:[#allocation2 + $0x1a0] sm:$0xff] %vm4984, %v1889
    %5038 = vst.msk [vmem:[#allocation2 + $0x1a8] sm:$0xff] %vm4984, %v1890
    %5039 = vst.msk [vmem:[#allocation2 + $0x1b0] sm:$0xff] %vm4984, %v1891
    %5040 = vst.msk [vmem:[#allocation2 + $0x1b8] sm:$0xff] %vm4984, %v1892
    %5041 = vst.msk [vmem:[#allocation2 + $0x1c0] sm:$0xff] %vm4984, %v1893
    %5042 = vst.msk [vmem:[#allocation2 + $0x1c8] sm:$0xff] %vm4984, %v1894
    %5043 = vst.msk [vmem:[#allocation2 + $0x1d0] sm:$0xff] %vm4984, %v1895
    %5044 = vst.msk [vmem:[#allocation2 + $0x1d8] sm:$0xff] %vm4984, %v1896
    %5045 = vst.msk [vmem:[#allocation2 + $0x1e0] sm:$0xff] %vm4984, %v1897
    %5046 = vst.msk [vmem:[#allocation2 + $0x1e8] sm:$0xff] %vm4984, %v1898
    %5047 = vst.msk [vmem:[#allocation2 + $0x1f0] sm:$0xff] %vm4984, %v1899
    %5048 = vst.msk [vmem:[#allocation2 + $0x1f8] sm:$0xff] %vm4984, %v1900
    %5113 = vrot.lane.b32.xlu0 %v3821, 1
    %v5114 = vpop.permute.xlu0 %5113
    %5115 = vrot.lane.b32.xlu0 %v3822, 1
    %v5116 = vpop.permute.xlu0 %5115
    %5117 = vrot.lane.b32.xlu0 %v3823, 1
    %v5118 = vpop.permute.xlu0 %5117
    %5119 = vrot.lane.b32.xlu0 %v3824, 1
    %v5120 = vpop.permute.xlu0 %5119
    %5121 = vrot.lane.b32.xlu0 %v3825, 1
    %v5122 = vpop.permute.xlu0 %5121
    %5123 = vrot.lane.b32.xlu0 %v3826, 1
    %v5124 = vpop.permute.xlu0 %5123
    %5125 = vrot.lane.b32.xlu0 %v3827, 1
    %v5126 = vpop.permute.xlu0 %5125
    %5127 = vrot.lane.b32.xlu0 %v3828, 1
    %v5128 = vpop.permute.xlu0 %5127
    %5129 = vrot.lane.b32.xlu0 %v3829, 1
    %v5130 = vpop.permute.xlu0 %5129
    %5131 = vrot.lane.b32.xlu0 %v3830, 1
    %v5132 = vpop.permute.xlu0 %5131
    %5133 = vrot.lane.b32.xlu0 %v3831, 1
    %v5134 = vpop.permute.xlu0 %5133
    %5135 = vrot.lane.b32.xlu0 %v3832, 1
    %v5136 = vpop.permute.xlu0 %5135
    %5137 = vrot.lane.b32.xlu0 %v3833, 1
    %v5138 = vpop.permute.xlu0 %5137
    %5139 = vrot.lane.b32.xlu0 %v3834, 1
    %v5140 = vpop.permute.xlu0 %5139
    %5141 = vrot.lane.b32.xlu0 %v3835, 1
    %v5142 = vpop.permute.xlu0 %5141
    %5143 = vrot.lane.b32.xlu0 %v3836, 1
    %v5144 = vpop.permute.xlu0 %5143
    %5145 = vrot.lane.b32.xlu0 %v3837, 1
    %v5146 = vpop.permute.xlu0 %5145
    %5147 = vrot.lane.b32.xlu0 %v3838, 1
    %v5148 = vpop.permute.xlu0 %5147
    %5149 = vrot.lane.b32.xlu0 %v3839, 1
    %v5150 = vpop.permute.xlu0 %5149
    %5151 = vrot.lane.b32.xlu0 %v3840, 1
    %v5152 = vpop.permute.xlu0 %5151
    %5153 = vrot.lane.b32.xlu0 %v3841, 1
    %v5154 = vpop.permute.xlu0 %5153
    %5155 = vrot.lane.b32.xlu0 %v3842, 1
    %v5156 = vpop.permute.xlu0 %5155
    %5157 = vrot.lane.b32.xlu0 %v3843, 1
    %v5158 = vpop.permute.xlu0 %5157
    %5159 = vrot.lane.b32.xlu0 %v3844, 1
    %v5160 = vpop.permute.xlu0 %5159
    %5161 = vrot.lane.b32.xlu0 %v3845, 1
    %v5162 = vpop.permute.xlu0 %5161
    %5163 = vrot.lane.b32.xlu0 %v3846, 1
    %v5164 = vpop.permute.xlu0 %5163
    %5165 = vrot.lane.b32.xlu0 %v3847, 1
    %v5166 = vpop.permute.xlu0 %5165
    %5167 = vrot.lane.b32.xlu0 %v3848, 1
    %v5168 = vpop.permute.xlu0 %5167
    %5169 = vrot.lane.b32.xlu0 %v3849, 1
    %v5170 = vpop.permute.xlu0 %5169
    %5171 = vrot.lane.b32.xlu0 %v3850, 1
    %v5172 = vpop.permute.xlu0 %5171
    %5173 = vrot.lane.b32.xlu0 %v3851, 1
    %v5174 = vpop.permute.xlu0 %5173
    %5175 = vrot.lane.b32.xlu0 %v3852, 1
    %v5176 = vpop.permute.xlu0 %5175
    %5177 = vrot.lane.b32.xlu0 %v3853, 1
    %v5178 = vpop.permute.xlu0 %5177
    %5179 = vrot.lane.b32.xlu0 %v3854, 1
    %v5180 = vpop.permute.xlu0 %5179
    %5181 = vrot.lane.b32.xlu0 %v3855, 1
    %v5182 = vpop.permute.xlu0 %5181
    %5183 = vrot.lane.b32.xlu0 %v3856, 1
    %v5184 = vpop.permute.xlu0 %5183
    %5185 = vrot.lane.b32.xlu0 %v3857, 1
    %v5186 = vpop.permute.xlu0 %5185
    %5187 = vrot.lane.b32.xlu0 %v3858, 1
    %v5188 = vpop.permute.xlu0 %5187
    %5189 = vrot.lane.b32.xlu0 %v3859, 1
    %v5190 = vpop.permute.xlu0 %5189
    %5191 = vrot.lane.b32.xlu0 %v3860, 1
    %v5192 = vpop.permute.xlu0 %5191
    %5193 = vrot.lane.b32.xlu0 %v3861, 1
    %v5194 = vpop.permute.xlu0 %5193
    %5195 = vrot.lane.b32.xlu0 %v3862, 1
    %v5196 = vpop.permute.xlu0 %5195
    %5197 = vrot.lane.b32.xlu0 %v3863, 1
    %v5198 = vpop.permute.xlu0 %5197
    %5199 = vrot.lane.b32.xlu0 %v3864, 1
    %v5200 = vpop.permute.xlu0 %5199
    %5201 = vrot.lane.b32.xlu0 %v3865, 1
    %v5202 = vpop.permute.xlu0 %5201
    %5203 = vrot.lane.b32.xlu0 %v3866, 1
    %v5204 = vpop.permute.xlu0 %5203
    %5205 = vrot.lane.b32.xlu0 %v3867, 1
    %v5206 = vpop.permute.xlu0 %5205
    %5207 = vrot.lane.b32.xlu0 %v3868, 1
    %v5208 = vpop.permute.xlu0 %5207
    %5209 = vrot.lane.b32.xlu0 %v3869, 1
    %v5210 = vpop.permute.xlu0 %5209
    %5211 = vrot.lane.b32.xlu0 %v3870, 1
    %v5212 = vpop.permute.xlu0 %5211
    %5213 = vrot.lane.b32.xlu0 %v3871, 1
    %v5214 = vpop.permute.xlu0 %5213
    %5215 = vrot.lane.b32.xlu0 %v3872, 1
    %v5216 = vpop.permute.xlu0 %5215
    %5217 = vrot.lane.b32.xlu0 %v3873, 1
    %v5218 = vpop.permute.xlu0 %5217
    %5219 = vrot.lane.b32.xlu0 %v3874, 1
    %v5220 = vpop.permute.xlu0 %5219
    %5221 = vrot.lane.b32.xlu0 %v3875, 1
    %v5222 = vpop.permute.xlu0 %5221
    %5223 = vrot.lane.b32.xlu0 %v3876, 1
    %v5224 = vpop.permute.xlu0 %5223
    %5225 = vrot.lane.b32.xlu0 %v3877, 1
    %v5226 = vpop.permute.xlu0 %5225
    %5227 = vrot.lane.b32.xlu0 %v3878, 1
    %v5228 = vpop.permute.xlu0 %5227
    %5229 = vrot.lane.b32.xlu0 %v3879, 1
    %v5230 = vpop.permute.xlu0 %5229
    %5231 = vrot.lane.b32.xlu0 %v3880, 1
    %v5232 = vpop.permute.xlu0 %5231
    %5233 = vrot.lane.b32.xlu0 %v3881, 1
    %v5234 = vpop.permute.xlu0 %5233
    %5235 = vrot.lane.b32.xlu0 %v3882, 1
    %v5236 = vpop.permute.xlu0 %5235
    %5237 = vrot.lane.b32.xlu0 %v3883, 1
    %v5238 = vpop.permute.xlu0 %5237
    %5239 = vrot.lane.b32.xlu0 %v3884, 1
    %v5240 = vpop.permute.xlu0 %5239
    %vm5305 = vcmask 15368
    %5306 = vst.msk [vmem:[#allocation2] sm:$0xff] %vm5305, %v5114
    %5307 = vst.msk [vmem:[#allocation2 + $0x8] sm:$0xff] %vm5305, %v5116
    %5308 = vst.msk [vmem:[#allocation2 + $0x10] sm:$0xff] %vm5305, %v5118
    %5309 = vst.msk [vmem:[#allocation2 + $0x18] sm:$0xff] %vm5305, %v5120
    %5310 = vst.msk [vmem:[#allocation2 + $0x20] sm:$0xff] %vm5305, %v5122
    %5311 = vst.msk [vmem:[#allocation2 + $0x28] sm:$0xff] %vm5305, %v5124
    %5312 = vst.msk [vmem:[#allocation2 + $0x30] sm:$0xff] %vm5305, %v5126
    %5313 = vst.msk [vmem:[#allocation2 + $0x38] sm:$0xff] %vm5305, %v5128
    %5314 = vst.msk [vmem:[#allocation2 + $0x40] sm:$0xff] %vm5305, %v5130
    %5315 = vst.msk [vmem:[#allocation2 + $0x48] sm:$0xff] %vm5305, %v5132
    %5316 = vst.msk [vmem:[#allocation2 + $0x50] sm:$0xff] %vm5305, %v5134
    %5317 = vst.msk [vmem:[#allocation2 + $0x58] sm:$0xff] %vm5305, %v5136
    %5318 = vst.msk [vmem:[#allocation2 + $0x60] sm:$0xff] %vm5305, %v5138
    %5319 = vst.msk [vmem:[#allocation2 + $0x68] sm:$0xff] %vm5305, %v5140
    %5320 = vst.msk [vmem:[#allocation2 + $0x70] sm:$0xff] %vm5305, %v5142
    %5321 = vst.msk [vmem:[#allocation2 + $0x78] sm:$0xff] %vm5305, %v5144
    %5322 = vst.msk [vmem:[#allocation2 + $0x80] sm:$0xff] %vm5305, %v5146
    %5323 = vst.msk [vmem:[#allocation2 + $0x88] sm:$0xff] %vm5305, %v5148
    %5324 = vst.msk [vmem:[#allocation2 + $0x90] sm:$0xff] %vm5305, %v5150
    %5325 = vst.msk [vmem:[#allocation2 + $0x98] sm:$0xff] %vm5305, %v5152
    %5326 = vst.msk [vmem:[#allocation2 + $0xa0] sm:$0xff] %vm5305, %v5154
    %5327 = vst.msk [vmem:[#allocation2 + $0xa8] sm:$0xff] %vm5305, %v5156
    %5328 = vst.msk [vmem:[#allocation2 + $0xb0] sm:$0xff] %vm5305, %v5158
    %5329 = vst.msk [vmem:[#allocation2 + $0xb8] sm:$0xff] %vm5305, %v5160
    %5330 = vst.msk [vmem:[#allocation2 + $0xc0] sm:$0xff] %vm5305, %v5162
    %5331 = vst.msk [vmem:[#allocation2 + $0xc8] sm:$0xff] %vm5305, %v5164
    %5332 = vst.msk [vmem:[#allocation2 + $0xd0] sm:$0xff] %vm5305, %v5166
    %5333 = vst.msk [vmem:[#allocation2 + $0xd8] sm:$0xff] %vm5305, %v5168
    %5334 = vst.msk [vmem:[#allocation2 + $0xe0] sm:$0xff] %vm5305, %v5170
    %5335 = vst.msk [vmem:[#allocation2 + $0xe8] sm:$0xff] %vm5305, %v5172
    %5336 = vst.msk [vmem:[#allocation2 + $0xf0] sm:$0xff] %vm5305, %v5174
    %5337 = vst.msk [vmem:[#allocation2 + $0xf8] sm:$0xff] %vm5305, %v5176
    %5338 = vst.msk [vmem:[#allocation2 + $0x100] sm:$0xff] %vm5305, %v5178
    %5339 = vst.msk [vmem:[#allocation2 + $0x108] sm:$0xff] %vm5305, %v5180
    %5340 = vst.msk [vmem:[#allocation2 + $0x110] sm:$0xff] %vm5305, %v5182
    %5341 = vst.msk [vmem:[#allocation2 + $0x118] sm:$0xff] %vm5305, %v5184
    %5342 = vst.msk [vmem:[#allocation2 + $0x120] sm:$0xff] %vm5305, %v5186
    %5343 = vst.msk [vmem:[#allocation2 + $0x128] sm:$0xff] %vm5305, %v5188
    %5344 = vst.msk [vmem:[#allocation2 + $0x130] sm:$0xff] %vm5305, %v5190
    %5345 = vst.msk [vmem:[#allocation2 + $0x138] sm:$0xff] %vm5305, %v5192
    %5346 = vst.msk [vmem:[#allocation2 + $0x140] sm:$0xff] %vm5305, %v5194
    %5347 = vst.msk [vmem:[#allocation2 + $0x148] sm:$0xff] %vm5305, %v5196
    %5348 = vst.msk [vmem:[#allocation2 + $0x150] sm:$0xff] %vm5305, %v5198
    %5349 = vst.msk [vmem:[#allocation2 + $0x158] sm:$0xff] %vm5305, %v5200
    %5350 = vst.msk [vmem:[#allocation2 + $0x160] sm:$0xff] %vm5305, %v5202
    %5351 = vst.msk [vmem:[#allocation2 + $0x168] sm:$0xff] %vm5305, %v5204
    %5352 = vst.msk [vmem:[#allocation2 + $0x170] sm:$0xff] %vm5305, %v5206
    %5353 = vst.msk [vmem:[#allocation2 + $0x178] sm:$0xff] %vm5305, %v5208
    %5354 = vst.msk [vmem:[#allocation2 + $0x180] sm:$0xff] %vm5305, %v5210
    %5355 = vst.msk [vmem:[#allocation2 + $0x188] sm:$0xff] %vm5305, %v5212
    %5356 = vst.msk [vmem:[#allocation2 + $0x190] sm:$0xff] %vm5305, %v5214
    %5357 = vst.msk [vmem:[#allocation2 + $0x198] sm:$0xff] %vm5305, %v5216
    %5358 = vst.msk [vmem:[#allocation2 + $0x1a0] sm:$0xff] %vm5305, %v5218
    %5359 = vst.msk [vmem:[#allocation2 + $0x1a8] sm:$0xff] %vm5305, %v5220
    %5360 = vst.msk [vmem:[#allocation2 + $0x1b0] sm:$0xff] %vm5305, %v5222
    %5361 = vst.msk [vmem:[#allocation2 + $0x1b8] sm:$0xff] %vm5305, %v5224
    %5362 = vst.msk [vmem:[#allocation2 + $0x1c0] sm:$0xff] %vm5305, %v5226
    %5363 = vst.msk [vmem:[#allocation2 + $0x1c8] sm:$0xff] %vm5305, %v5228
    %5364 = vst.msk [vmem:[#allocation2 + $0x1d0] sm:$0xff] %vm5305, %v5230
    %5365 = vst.msk [vmem:[#allocation2 + $0x1d8] sm:$0xff] %vm5305, %v5232
    %5366 = vst.msk [vmem:[#allocation2 + $0x1e0] sm:$0xff] %vm5305, %v5234
    %5367 = vst.msk [vmem:[#allocation2 + $0x1e8] sm:$0xff] %vm5305, %v5236
    %5368 = vst.msk [vmem:[#allocation2 + $0x1f0] sm:$0xff] %vm5305, %v5238
    %5369 = vst.msk [vmem:[#allocation2 + $0x1f8] sm:$0xff] %vm5305, %v5240
    %vm5370 = vcmask 23568
    %5371 = vst.msk [vmem:[#allocation2] sm:$0xff] %vm5370, %v4920
    %5372 = vst.msk [vmem:[#allocation2 + $0x8] sm:$0xff] %vm5370, %v4921
    %5373 = vst.msk [vmem:[#allocation2 + $0x10] sm:$0xff] %vm5370, %v4922
    %5374 = vst.msk [vmem:[#allocation2 + $0x18] sm:$0xff] %vm5370, %v4923
    %5375 = vst.msk [vmem:[#allocation2 + $0x20] sm:$0xff] %vm5370, %v4924
    %5376 = vst.msk [vmem:[#allocation2 + $0x28] sm:$0xff] %vm5370, %v4925
    %5377 = vst.msk [vmem:[#allocation2 + $0x30] sm:$0xff] %vm5370, %v4926
    %5378 = vst.msk [vmem:[#allocation2 + $0x38] sm:$0xff] %vm5370, %v4927
    %5379 = vst.msk [vmem:[#allocation2 + $0x40] sm:$0xff] %vm5370, %v4928
    %5380 = vst.msk [vmem:[#allocation2 + $0x48] sm:$0xff] %vm5370, %v4929
    %5381 = vst.msk [vmem:[#allocation2 + $0x50] sm:$0xff] %vm5370, %v4930
    %5382 = vst.msk [vmem:[#allocation2 + $0x58] sm:$0xff] %vm5370, %v4931
    %5383 = vst.msk [vmem:[#allocation2 + $0x60] sm:$0xff] %vm5370, %v4932
    %5384 = vst.msk [vmem:[#allocation2 + $0x68] sm:$0xff] %vm5370, %v4933
    %5385 = vst.msk [vmem:[#allocation2 + $0x70] sm:$0xff] %vm5370, %v4934
    %5386 = vst.msk [vmem:[#allocation2 + $0x78] sm:$0xff] %vm5370, %v4935
    %5387 = vst.msk [vmem:[#allocation2 + $0x80] sm:$0xff] %vm5370, %v4936
    %5388 = vst.msk [vmem:[#allocation2 + $0x88] sm:$0xff] %vm5370, %v4937
    %5389 = vst.msk [vmem:[#allocation2 + $0x90] sm:$0xff] %vm5370, %v4938
    %5390 = vst.msk [vmem:[#allocation2 + $0x98] sm:$0xff] %vm5370, %v4939
    %5391 = vst.msk [vmem:[#allocation2 + $0xa0] sm:$0xff] %vm5370, %v4940
    %5392 = vst.msk [vmem:[#allocation2 + $0xa8] sm:$0xff] %vm5370, %v4941
    %5393 = vst.msk [vmem:[#allocation2 + $0xb0] sm:$0xff] %vm5370, %v4942
    %5394 = vst.msk [vmem:[#allocation2 + $0xb8] sm:$0xff] %vm5370, %v4943
    %5395 = vst.msk [vmem:[#allocation2 + $0xc0] sm:$0xff] %vm5370, %v4944
    %5396 = vst.msk [vmem:[#allocation2 + $0xc8] sm:$0xff] %vm5370, %v4945
    %5397 = vst.msk [vmem:[#allocation2 + $0xd0] sm:$0xff] %vm5370, %v4946
    %5398 = vst.msk [vmem:[#allocation2 + $0xd8] sm:$0xff] %vm5370, %v4947
    %5399 = vst.msk [vmem:[#allocation2 + $0xe0] sm:$0xff] %vm5370, %v4948
    %5400 = vst.msk [vmem:[#allocation2 + $0xe8] sm:$0xff] %vm5370, %v4949
    %5401 = vst.msk [vmem:[#allocation2 + $0xf0] sm:$0xff] %vm5370, %v4950
    %5402 = vst.msk [vmem:[#allocation2 + $0xf8] sm:$0xff] %vm5370, %v4951
    %5403 = vst.msk [vmem:[#allocation2 + $0x100] sm:$0xff] %vm5370, %v4952
    %5404 = vst.msk [vmem:[#allocation2 + $0x108] sm:$0xff] %vm5370, %v4953
    %5405 = vst.msk [vmem:[#allocation2 + $0x110] sm:$0xff] %vm5370, %v4954
    %5406 = vst.msk [vmem:[#allocation2 + $0x118] sm:$0xff] %vm5370, %v4955
    %5407 = vst.msk [vmem:[#allocation2 + $0x120] sm:$0xff] %vm5370, %v4956
    %5408 = vst.msk [vmem:[#allocation2 + $0x128] sm:$0xff] %vm5370, %v4957
    %5409 = vst.msk [vmem:[#allocation2 + $0x130] sm:$0xff] %vm5370, %v4958
    %5410 = vst.msk [vmem:[#allocation2 + $0x138] sm:$0xff] %vm5370, %v4959
    %5411 = vst.msk [vmem:[#allocation2 + $0x140] sm:$0xff] %vm5370, %v4960
    %5412 = vst.msk [vmem:[#allocation2 + $0x148] sm:$0xff] %vm5370, %v4961
    %5413 = vst.msk [vmem:[#allocation2 + $0x150] sm:$0xff] %vm5370, %v4962
    %5414 = vst.msk [vmem:[#allocation2 + $0x158] sm:$0xff] %vm5370, %v4963
    %5415 = vst.msk [vmem:[#allocation2 + $0x160] sm:$0xff] %vm5370, %v4964
    %5416 = vst.msk [vmem:[#allocation2 + $0x168] sm:$0xff] %vm5370, %v4965
    %5417 = vst.msk [vmem:[#allocation2 + $0x170] sm:$0xff] %vm5370, %v4966
    %5418 = vst.msk [vmem:[#allocation2 + $0x178] sm:$0xff] %vm5370, %v4967
    %5419 = vst.msk [vmem:[#allocation2 + $0x180] sm:$0xff] %vm5370, %v4968
    %5420 = vst.msk [vmem:[#allocation2 + $0x188] sm:$0xff] %vm5370, %v4969
    %5421 = vst.msk [vmem:[#allocation2 + $0x190] sm:$0xff] %vm5370, %v4970
    %5422 = vst.msk [vmem:[#allocation2 + $0x198] sm:$0xff] %vm5370, %v4971
    %5423 = vst.msk [vmem:[#allocation2 + $0x1a0] sm:$0xff] %vm5370, %v4972
    %5424 = vst.msk [vmem:[#allocation2 + $0x1a8] sm:$0xff] %vm5370, %v4973
    %5425 = vst.msk [vmem:[#allocation2 + $0x1b0] sm:$0xff] %vm5370, %v4974
    %5426 = vst.msk [vmem:[#allocation2 + $0x1b8] sm:$0xff] %vm5370, %v4975
    %5427 = vst.msk [vmem:[#allocation2 + $0x1c0] sm:$0xff] %vm5370, %v4976
    %5428 = vst.msk [vmem:[#allocation2 + $0x1c8] sm:$0xff] %vm5370, %v4977
    %5429 = vst.msk [vmem:[#allocation2 + $0x1d0] sm:$0xff] %vm5370, %v4978
    %5430 = vst.msk [vmem:[#allocation2 + $0x1d8] sm:$0xff] %vm5370, %v4979
    %5431 = vst.msk [vmem:[#allocation2 + $0x1e0] sm:$0xff] %vm5370, %v4980
    %5432 = vst.msk [vmem:[#allocation2 + $0x1e8] sm:$0xff] %vm5370, %v4981
    %5433 = vst.msk [vmem:[#allocation2 + $0x1f0] sm:$0xff] %vm5370, %v4982
    %5434 = vst.msk [vmem:[#allocation2 + $0x1f8] sm:$0xff] %vm5370, %v4983
    %v5435 = vsel %vm4984, %v1837, -inf
    %v5436 = vsel %vm4984, %v1838, -inf
    %v5437 = vsel %vm4984, %v1839, -inf
    %v5438 = vsel %vm4984, %v1840, -inf
    %v5439 = vsel %vm4984, %v1841, -inf
    %v5440 = vmax.f32 %v5435, %v5439
    %v5441 = vsel %vm4984, %v1842, -inf
    %v5442 = vmax.f32 %v5436, %v5441
    %v5443 = vsel %vm4984, %v1843, -inf
    %v5444 = vmax.f32 %v5437, %v5443
    %v5445 = vsel %vm4984, %v1844, -inf
    %v5446 = vmax.f32 %v5438, %v5445
    %v5447 = vsel %vm4984, %v1845, -inf
    %v5448 = vmax.f32 %v5440, %v5447
    %v5449 = vsel %vm4984, %v1846, -inf
    %v5450 = vmax.f32 %v5442, %v5449
    %v5451 = vsel %vm4984, %v1847, -inf
    %v5452 = vmax.f32 %v5444, %v5451
    %v5453 = vsel %vm4984, %v1848, -inf
    %v5454 = vmax.f32 %v5446, %v5453
    %v5455 = vsel %vm4984, %v1849, -inf
    %v5456 = vmax.f32 %v5448, %v5455
    %v5457 = vsel %vm4984, %v1850, -inf
    %v5458 = vmax.f32 %v5450, %v5457
    %v5459 = vsel %vm4984, %v1851, -inf
    %v5460 = vmax.f32 %v5452, %v5459
    %v5461 = vsel %vm4984, %v1852, -inf
    %v5462 = vmax.f32 %v5454, %v5461
    %v5463 = vsel %vm4984, %v1853, -inf
    %v5464 = vmax.f32 %v5456, %v5463
    %v5465 = vsel %vm4984, %v1854, -inf
    %v5466 = vmax.f32 %v5458, %v5465
    %v5467 = vsel %vm4984, %v1855, -inf
    %v5468 = vmax.f32 %v5460, %v5467
    %v5469 = vsel %vm4984, %v1856, -inf
    %v5470 = vmax.f32 %v5462, %v5469
    %v5471 = vsel %vm4984, %v1857, -inf
    %v5472 = vmax.f32 %v5464, %v5471
    %v5473 = vsel %vm4984, %v1858, -inf
    %v5474 = vmax.f32 %v5466, %v5473
    %v5475 = vsel %vm4984, %v1859, -inf
    %v5476 = vmax.f32 %v5468, %v5475
    %v5477 = vsel %vm4984, %v1860, -inf
    %v5478 = vmax.f32 %v5470, %v5477
    %v5479 = vsel %vm4984, %v1861, -inf
    %v5480 = vmax.f32 %v5472, %v5479
    %v5481 = vsel %vm4984, %v1862, -inf
    %v5482 = vmax.f32 %v5474, %v5481
    %v5483 = vsel %vm4984, %v1863, -inf
    %v5484 = vmax.f32 %v5476, %v5483
    %v5485 = vsel %vm4984, %v1864, -inf
    %v5486 = vmax.f32 %v5478, %v5485
    %v5487 = vsel %vm4984, %v1865, -inf
    %v5488 = vmax.f32 %v5480, %v5487
    %v5489 = vsel %vm4984, %v1866, -inf
    %v5490 = vmax.f32 %v5482, %v5489
    %v5491 = vsel %vm4984, %v1867, -inf
    %v5492 = vmax.f32 %v5484, %v5491
    %v5493 = vsel %vm4984, %v1868, -inf
    %v5494 = vmax.f32 %v5486, %v5493
    %v5495 = vsel %vm4984, %v1869, -inf
    %v5496 = vmax.f32 %v5488, %v5495
    %v5497 = vsel %vm4984, %v1870, -inf
    %v5498 = vmax.f32 %v5490, %v5497
    %v5499 = vsel %vm4984, %v1871, -inf
    %v5500 = vmax.f32 %v5492, %v5499
    %v5501 = vsel %vm4984, %v1872, -inf
    %v5502 = vmax.f32 %v5494, %v5501
    %v5503 = vsel %vm4984, %v1873, -inf
    %v5504 = vmax.f32 %v5496, %v5503
    %v5505 = vsel %vm4984, %v1874, -inf
    %v5506 = vmax.f32 %v5498, %v5505
    %v5507 = vsel %vm4984, %v1875, -inf
    %v5508 = vmax.f32 %v5500, %v5507
    %v5509 = vsel %vm4984, %v1876, -inf
    %v5510 = vmax.f32 %v5502, %v5509
    %v5511 = vsel %vm4984, %v1877, -inf
    %v5512 = vmax.f32 %v5504, %v5511
    %v5513 = vsel %vm4984, %v1878, -inf
    %v5514 = vmax.f32 %v5506, %v5513
    %v5515 = vsel %vm4984, %v1879, -inf
    %v5516 = vmax.f32 %v5508, %v5515
    %v5517 = vsel %vm4984, %v1880, -inf
    %v5518 = vmax.f32 %v5510, %v5517
    %v5519 = vsel %vm4984, %v1881, -inf
    %v5520 = vmax.f32 %v5512, %v5519
    %v5521 = vsel %vm4984, %v1882, -inf
    %v5522 = vmax.f32 %v5514, %v5521
    %v5523 = vsel %vm4984, %v1883, -inf
    %v5524 = vmax.f32 %v5516, %v5523
    %v5525 = vsel %vm4984, %v1884, -inf
    %v5526 = vmax.f32 %v5518, %v5525
    %v5527 = vsel %vm4984, %v1885, -inf
    %v5528 = vmax.f32 %v5520, %v5527
    %v5529 = vsel %vm4984, %v1886, -inf
    %v5530 = vmax.f32 %v5522, %v5529
    %v5531 = vsel %vm4984, %v1887, -inf
    %v5532 = vmax.f32 %v5524, %v5531
    %v5533 = vsel %vm4984, %v1888, -inf
    %v5534 = vmax.f32 %v5526, %v5533
    %v5535 = vsel %vm4984, %v1889, -inf
    %v5536 = vmax.f32 %v5528, %v5535
    %v5537 = vsel %vm4984, %v1890, -inf
    %v5538 = vmax.f32 %v5530, %v5537
    %v5539 = vsel %vm4984, %v1891, -inf
    %v5540 = vmax.f32 %v5532, %v5539
    %v5541 = vsel %vm4984, %v1892, -inf
    %v5542 = vmax.f32 %v5534, %v5541
    %v5543 = vsel %vm4984, %v1893, -inf
    %v5544 = vmax.f32 %v5536, %v5543
    %v5545 = vsel %vm4984, %v1894, -inf
    %v5546 = vmax.f32 %v5538, %v5545
    %v5547 = vsel %vm4984, %v1895, -inf
    %v5548 = vmax.f32 %v5540, %v5547
    %v5549 = vsel %vm4984, %v1896, -inf
    %v5550 = vmax.f32 %v5542, %v5549
    %v5551 = vsel %vm4984, %v1897, -inf
    %v5552 = vmax.f32 %v5544, %v5551
    %v5553 = vsel %vm4984, %v1898, -inf
    %v5554 = vmax.f32 %v5546, %v5553
    %v5555 = vsel %vm4984, %v1899, -inf
    %v5556 = vmax.f32 %v5548, %v5555
    %v5557 = vsel %vm4984, %v1900, -inf
    %v5558 = vmax.f32 %v5550, %v5557
    %v5559 = vmax.f32 %v5552, %v5554
    %v5560 = vmax.f32 %v5556, %v5558
    %v5561 = vmax.f32 %v5559, %v5560
    %v5562 = vrot.slane %v5561, 4
    %v5563 = vmax.f32 %v5561, %v5562
    %v5564 = vrot.slane %v5563, 2
    %v5565 = vmax.f32 %v5563, %v5564
    %v5566 = vrot.slane %v5565, 1
    %v5567 = vmax.f32 %v5565, %v5566
    %v5568 = vsub.f32 %v1837, %v5567
    %v5569 = vsub.f32 %v1838, %v5567
    %v5570 = vsub.f32 %v1839, %v5567
    %v5571 = vsub.f32 %v1840, %v5567
    %v5572 = vsub.f32 %v1841, %v5567
    %v5573 = vsub.f32 %v1842, %v5567
    %v5574 = vsub.f32 %v1843, %v5567
    %v5575 = vsub.f32 %v1844, %v5567
    %v5576 = vsub.f32 %v1845, %v5567
    %v5577 = vsub.f32 %v1846, %v5567
    %v5578 = vsub.f32 %v1847, %v5567
    %v5579 = vsub.f32 %v1848, %v5567
    %v5580 = vsub.f32 %v1849, %v5567
    %v5581 = vsub.f32 %v1850, %v5567
    %v5582 = vsub.f32 %v1851, %v5567
    %v5583 = vsub.f32 %v1852, %v5567
    %v5584 = vsub.f32 %v1853, %v5567
    %v5585 = vsub.f32 %v1854, %v5567
    %v5586 = vsub.f32 %v1855, %v5567
    %v5587 = vsub.f32 %v1856, %v5567
    %v5588 = vsub.f32 %v1857, %v5567
    %v5589 = vsub.f32 %v1858, %v5567
    %v5590 = vsub.f32 %v1859, %v5567
    %v5591 = vsub.f32 %v1860, %v5567
    %v5592 = vsub.f32 %v1861, %v5567
    %v5593 = vsub.f32 %v1862, %v5567
    %v5594 = vsub.f32 %v1863, %v5567
    %v5595 = vsub.f32 %v1864, %v5567
    %v5596 = vsub.f32 %v1865, %v5567
    %v5597 = vsub.f32 %v1866, %v5567
    %v5598 = vsub.f32 %v1867, %v5567
    %v5599 = vsub.f32 %v1868, %v5567
    %v5600 = vsub.f32 %v1869, %v5567
    %v5601 = vsub.f32 %v1870, %v5567
    %v5602 = vsub.f32 %v1871, %v5567
    %v5603 = vsub.f32 %v1872, %v5567
    %v5604 = vsub.f32 %v1873, %v5567
    %v5605 = vsub.f32 %v1874, %v5567
    %v5606 = vsub.f32 %v1875, %v5567
    %v5607 = vsub.f32 %v1876, %v5567
    %v5608 = vsub.f32 %v1877, %v5567
    %v5609 = vsub.f32 %v1878, %v5567
    %v5610 = vsub.f32 %v1879, %v5567
    %v5611 = vsub.f32 %v1880, %v5567
    %v5612 = vsub.f32 %v1881, %v5567
    %v5613 = vsub.f32 %v1882, %v5567
    %v5614 = vsub.f32 %v1883, %v5567
    %v5615 = vsub.f32 %v1884, %v5567
    %v5616 = vsub.f32 %v1885, %v5567
    %v5617 = vsub.f32 %v1886, %v5567
    %v5618 = vsub.f32 %v1887, %v5567
    %v5619 = vsub.f32 %v1888, %v5567
    %v5620 = vsub.f32 %v1889, %v5567
    %v5621 = vsub.f32 %v1890, %v5567
    %v5622 = vsub.f32 %v1891, %v5567
    %v5623 = vsub.f32 %v1892, %v5567
    %v5624 = vsub.f32 %v1893, %v5567
    %v5625 = vsub.f32 %v1894, %v5567
    %v5626 = vsub.f32 %v1895, %v5567
    %v5627 = vsub.f32 %v1896, %v5567
    %v5628 = vsub.f32 %v1897, %v5567
    %v5629 = vsub.f32 %v1898, %v5567
    %v5630 = vsub.f32 %v1899, %v5567
    %v5631 = vsub.f32 %v1900, %v5567
    %v5632 = vmul.f32 %v5568, 1.442695
    %v5633 = vpow.pop %v5632
    %v5634 = vmul.f32 %v5569, 1.442695
    %v5635 = vpow.pop %v5634
    %v5636 = vmul.f32 %v5570, 1.442695
    %v5637 = vpow.pop %v5636
    %v5638 = vmul.f32 %v5571, 1.442695
    %v5639 = vpow.pop %v5638
    %v5640 = vmul.f32 %v5572, 1.442695
    %v5641 = vpow.pop %v5640
    %v5642 = vmul.f32 %v5573, 1.442695
    %v5643 = vpow.pop %v5642
    %v5644 = vmul.f32 %v5574, 1.442695
    %v5645 = vpow.pop %v5644
    %v5646 = vmul.f32 %v5575, 1.442695
    %v5647 = vpow.pop %v5646
    %v5648 = vmul.f32 %v5576, 1.442695
    %v5649 = vpow.pop %v5648
    %v5650 = vmul.f32 %v5577, 1.442695
    %v5651 = vpow.pop %v5650
    %v5652 = vmul.f32 %v5578, 1.442695
    %v5653 = vpow.pop %v5652
    %v5654 = vmul.f32 %v5579, 1.442695
    %v5655 = vpow.pop %v5654
    %v5656 = vmul.f32 %v5580, 1.442695
    %v5657 = vpow.pop %v5656
    %v5658 = vmul.f32 %v5581, 1.442695
    %v5659 = vpow.pop %v5658
    %v5660 = vmul.f32 %v5582, 1.442695
    %v5661 = vpow.pop %v5660
    %v5662 = vmul.f32 %v5583, 1.442695
    %v5663 = vpow.pop %v5662
    %v5664 = vmul.f32 %v5584, 1.442695
    %v5665 = vpow.pop %v5664
    %v5666 = vmul.f32 %v5585, 1.442695
    %v5667 = vpow.pop %v5666
    %v5668 = vmul.f32 %v5586, 1.442695
    %v5669 = vpow.pop %v5668
    %v5670 = vmul.f32 %v5587, 1.442695
    %v5671 = vpow.pop %v5670
    %v5672 = vmul.f32 %v5588, 1.442695
    %v5673 = vpow.pop %v5672
    %v5674 = vmul.f32 %v5589, 1.442695
    %v5675 = vpow.pop %v5674
    %v5676 = vmul.f32 %v5590, 1.442695
    %v5677 = vpow.pop %v5676
    %v5678 = vmul.f32 %v5591, 1.442695
    %v5679 = vpow.pop %v5678
    %v5680 = vmul.f32 %v5592, 1.442695
    %v5681 = vpow.pop %v5680
    %v5682 = vmul.f32 %v5593, 1.442695
    %v5683 = vpow.pop %v5682
    %v5684 = vmul.f32 %v5594, 1.442695
    %v5685 = vpow.pop %v5684
    %v5686 = vmul.f32 %v5595, 1.442695
    %v5687 = vpow.pop %v5686
    %v5688 = vmul.f32 %v5596, 1.442695
    %v5689 = vpow.pop %v5688
    %v5690 = vmul.f32 %v5597, 1.442695
    %v5691 = vpow.pop %v5690
    %v5692 = vmul.f32 %v5598, 1.442695
    %v5693 = vpow.pop %v5692
    %v5694 = vmul.f32 %v5599, 1.442695
    %v5695 = vpow.pop %v5694
    %v5696 = vmul.f32 %v5600, 1.442695
    %v5697 = vpow.pop %v5696
    %v5698 = vmul.f32 %v5601, 1.442695
    %v5699 = vpow.pop %v5698
    %v5700 = vmul.f32 %v5602, 1.442695
    %v5701 = vpow.pop %v5700
    %v5702 = vmul.f32 %v5603, 1.442695
    %v5703 = vpow.pop %v5702
    %v5704 = vmul.f32 %v5604, 1.442695
    %v5705 = vpow.pop %v5704
    %v5706 = vmul.f32 %v5605, 1.442695
    %v5707 = vpow.pop %v5706
    %v5708 = vmul.f32 %v5606, 1.442695
    %v5709 = vpow.pop %v5708
    %v5710 = vmul.f32 %v5607, 1.442695
    %v5711 = vpow.pop %v5710
    %v5712 = vmul.f32 %v5608, 1.442695
    %v5713 = vpow.pop %v5712
    %v5714 = vmul.f32 %v5609, 1.442695
    %v5715 = vpow.pop %v5714
    %v5716 = vmul.f32 %v5610, 1.442695
    %v5717 = vpow.pop %v5716
    %v5718 = vmul.f32 %v5611, 1.442695
    %v5719 = vpow.pop %v5718
    %v5720 = vmul.f32 %v5612, 1.442695
    %v5721 = vpow.pop %v5720
    %v5722 = vmul.f32 %v5613, 1.442695
    %v5723 = vpow.pop %v5722
    %v5724 = vmul.f32 %v5614, 1.442695
    %v5725 = vpow.pop %v5724
    %v5726 = vmul.f32 %v5615, 1.442695
    %v5727 = vpow.pop %v5726
    %v5728 = vmul.f32 %v5616, 1.442695
    %v5729 = vpow.pop %v5728
    %v5730 = vmul.f32 %v5617, 1.442695
    %v5731 = vpow.pop %v5730
    %v5732 = vmul.f32 %v5618, 1.442695
    %v5733 = vpow.pop %v5732
    %v5734 = vmul.f32 %v5619, 1.442695
    %v5735 = vpow.pop %v5734
    %v5736 = vmul.f32 %v5620, 1.442695
    %v5737 = vpow.pop %v5736
    %v5738 = vmul.f32 %v5621, 1.442695
    %v5739 = vpow.pop %v5738
    %v5740 = vmul.f32 %v5622, 1.442695
    %v5741 = vpow.pop %v5740
    %v5742 = vmul.f32 %v5623, 1.442695
    %v5743 = vpow.pop %v5742
    %v5744 = vmul.f32 %v5624, 1.442695
    %v5745 = vpow.pop %v5744
    %v5746 = vmul.f32 %v5625, 1.442695
    %v5747 = vpow.pop %v5746
    %v5748 = vmul.f32 %v5626, 1.442695
    %v5749 = vpow.pop %v5748
    %v5750 = vmul.f32 %v5627, 1.442695
    %v5751 = vpow.pop %v5750
    %v5752 = vmul.f32 %v5628, 1.442695
    %v5753 = vpow.pop %v5752
    %v5754 = vmul.f32 %v5629, 1.442695
    %v5755 = vpow.pop %v5754
    %v5756 = vmul.f32 %v5630, 1.442695
    %v5757 = vpow.pop %v5756
    %v5758 = vmul.f32 %v5631, 1.442695
    %v5759 = vpow.pop %v5758
    %5761 = vset.pattern.permute.xlu0 0
    %5762 = vperm.xlu0 %5761, %v5633
    %v5763 = vpop.permute.xlu0 %5762
    %5766 = vset.pattern.permute.xlu0 0
    %5767 = vperm.xlu0 %5766, %v5635
    %v5768 = vpop.permute.xlu0 %5767
    %5771 = vset.pattern.permute.xlu0 0
    %5772 = vperm.xlu0 %5771, %v5637
    %v5773 = vpop.permute.xlu0 %5772
    %5776 = vset.pattern.permute.xlu0 0
    %5777 = vperm.xlu0 %5776, %v5639
    %v5778 = vpop.permute.xlu0 %5777
    %5781 = vset.pattern.permute.xlu0 0
    %5782 = vperm.xlu0 %5781, %v5641
    %v5783 = vpop.permute.xlu0 %5782
    %5786 = vset.pattern.permute.xlu0 0
    %5787 = vperm.xlu0 %5786, %v5643
    %v5788 = vpop.permute.xlu0 %5787
    %5791 = vset.pattern.permute.xlu0 0
    %5792 = vperm.xlu0 %5791, %v5645
    %v5793 = vpop.permute.xlu0 %5792
    %5796 = vset.pattern.permute.xlu0 0
    %5797 = vperm.xlu0 %5796, %v5647
    %v5798 = vpop.permute.xlu0 %5797
    %5801 = vset.pattern.permute.xlu0 0
    %5802 = vperm.xlu0 %5801, %v5649
    %v5803 = vpop.permute.xlu0 %5802
    %5806 = vset.pattern.permute.xlu0 0
    %5807 = vperm.xlu0 %5806, %v5651
    %v5808 = vpop.permute.xlu0 %5807
    %5811 = vset.pattern.permute.xlu0 0
    %5812 = vperm.xlu0 %5811, %v5653
    %v5813 = vpop.permute.xlu0 %5812
    %5816 = vset.pattern.permute.xlu0 0
    %5817 = vperm.xlu0 %5816, %v5655
    %v5818 = vpop.permute.xlu0 %5817
    %5821 = vset.pattern.permute.xlu0 0
    %5822 = vperm.xlu0 %5821, %v5657
    %v5823 = vpop.permute.xlu0 %5822
    %5826 = vset.pattern.permute.xlu0 0
    %5827 = vperm.xlu0 %5826, %v5659
    %v5828 = vpop.permute.xlu0 %5827
    %5831 = vset.pattern.permute.xlu0 0
    %5832 = vperm.xlu0 %5831, %v5661
    %v5833 = vpop.permute.xlu0 %5832
    %5836 = vset.pattern.permute.xlu0 0
    %5837 = vperm.xlu0 %5836, %v5663
    %v5838 = vpop.permute.xlu0 %5837
    %5841 = vset.pattern.permute.xlu0 0
    %5842 = vperm.xlu0 %5841, %v5665
    %v5843 = vpop.permute.xlu0 %5842
    %5846 = vset.pattern.permute.xlu0 0
    %5847 = vperm.xlu0 %5846, %v5667
    %v5848 = vpop.permute.xlu0 %5847
    %5851 = vset.pattern.permute.xlu0 0
    %5852 = vperm.xlu0 %5851, %v5669
    %v5853 = vpop.permute.xlu0 %5852
    %5856 = vset.pattern.permute.xlu0 0
    %5857 = vperm.xlu0 %5856, %v5671
    %v5858 = vpop.permute.xlu0 %5857
    %5861 = vset.pattern.permute.xlu0 0
    %5862 = vperm.xlu0 %5861, %v5673
    %v5863 = vpop.permute.xlu0 %5862
    %5866 = vset.pattern.permute.xlu0 0
    %5867 = vperm.xlu0 %5866, %v5675
    %v5868 = vpop.permute.xlu0 %5867
    %5871 = vset.pattern.permute.xlu0 0
    %5872 = vperm.xlu0 %5871, %v5677
    %v5873 = vpop.permute.xlu0 %5872
    %5876 = vset.pattern.permute.xlu0 0
    %5877 = vperm.xlu0 %5876, %v5679
    %v5878 = vpop.permute.xlu0 %5877
    %5881 = vset.pattern.permute.xlu0 0
    %5882 = vperm.xlu0 %5881, %v5681
    %v5883 = vpop.permute.xlu0 %5882
    %5886 = vset.pattern.permute.xlu0 0
    %5887 = vperm.xlu0 %5886, %v5683
    %v5888 = vpop.permute.xlu0 %5887
    %5891 = vset.pattern.permute.xlu0 0
    %5892 = vperm.xlu0 %5891, %v5685
    %v5893 = vpop.permute.xlu0 %5892
    %5896 = vset.pattern.permute.xlu0 0
    %5897 = vperm.xlu0 %5896, %v5687
    %v5898 = vpop.permute.xlu0 %5897
    %5901 = vset.pattern.permute.xlu0 0
    %5902 = vperm.xlu0 %5901, %v5689
    %v5903 = vpop.permute.xlu0 %5902
    %5906 = vset.pattern.permute.xlu0 0
    %5907 = vperm.xlu0 %5906, %v5691
    %v5908 = vpop.permute.xlu0 %5907
    %5911 = vset.pattern.permute.xlu0 0
    %5912 = vperm.xlu0 %5911, %v5693
    %v5913 = vpop.permute.xlu0 %5912
    %5916 = vset.pattern.permute.xlu0 0
    %5917 = vperm.xlu0 %5916, %v5695
    %v5918 = vpop.permute.xlu0 %5917
    %5921 = vset.pattern.permute.xlu0 0
    %5922 = vperm.xlu0 %5921, %v5697
    %v5923 = vpop.permute.xlu0 %5922
    %5926 = vset.pattern.permute.xlu0 0
    %5927 = vperm.xlu0 %5926, %v5699
    %v5928 = vpop.permute.xlu0 %5927
    %5931 = vset.pattern.permute.xlu0 0
    %5932 = vperm.xlu0 %5931, %v5701
    %v5933 = vpop.permute.xlu0 %5932
    %5936 = vset.pattern.permute.xlu0 0
    %5937 = vperm.xlu0 %5936, %v5703
    %v5938 = vpop.permute.xlu0 %5937
    %5941 = vset.pattern.permute.xlu0 0
    %5942 = vperm.xlu0 %5941, %v5705
    %v5943 = vpop.permute.xlu0 %5942
    %5946 = vset.pattern.permute.xlu0 0
    %5947 = vperm.xlu0 %5946, %v5707
    %v5948 = vpop.permute.xlu0 %5947
    %5951 = vset.pattern.permute.xlu0 0
    %5952 = vperm.xlu0 %5951, %v5709
    %v5953 = vpop.permute.xlu0 %5952
    %5956 = vset.pattern.permute.xlu0 0
    %5957 = vperm.xlu0 %5956, %v5711
    %v5958 = vpop.permute.xlu0 %5957
    %5961 = vset.pattern.permute.xlu0 0
    %5962 = vperm.xlu0 %5961, %v5713
    %v5963 = vpop.permute.xlu0 %5962
    %5966 = vset.pattern.permute.xlu0 0
    %5967 = vperm.xlu0 %5966, %v5715
    %v5968 = vpop.permute.xlu0 %5967
    %5971 = vset.pattern.permute.xlu0 0
    %5972 = vperm.xlu0 %5971, %v5717
    %v5973 = vpop.permute.xlu0 %5972
    %5976 = vset.pattern.permute.xlu0 0
    %5977 = vperm.xlu0 %5976, %v5719
    %v5978 = vpop.permute.xlu0 %5977
    %5981 = vset.pattern.permute.xlu0 0
    %5982 = vperm.xlu0 %5981, %v5721
    %v5983 = vpop.permute.xlu0 %5982
    %5986 = vset.pattern.permute.xlu0 0
    %5987 = vperm.xlu0 %5986, %v5723
    %v5988 = vpop.permute.xlu0 %5987
    %5991 = vset.pattern.permute.xlu0 0
    %5992 = vperm.xlu0 %5991, %v5725
    %v5993 = vpop.permute.xlu0 %5992
    %5996 = vset.pattern.permute.xlu0 0
    %5997 = vperm.xlu0 %5996, %v5727
    %v5998 = vpop.permute.xlu0 %5997
    %6001 = vset.pattern.permute.xlu0 0
    %6002 = vperm.xlu0 %6001, %v5729
    %v6003 = vpop.permute.xlu0 %6002
    %6006 = vset.pattern.permute.xlu0 0
    %6007 = vperm.xlu0 %6006, %v5731
    %v6008 = vpop.permute.xlu0 %6007
    %6011 = vset.pattern.permute.xlu0 0
    %6012 = vperm.xlu0 %6011, %v5733
    %v6013 = vpop.permute.xlu0 %6012
    %6016 = vset.pattern.permute.xlu0 0
    %6017 = vperm.xlu0 %6016, %v5735
    %v6018 = vpop.permute.xlu0 %6017
    %6021 = vset.pattern.permute.xlu0 0
    %6022 = vperm.xlu0 %6021, %v5737
    %v6023 = vpop.permute.xlu0 %6022
    %6026 = vset.pattern.permute.xlu0 0
    %6027 = vperm.xlu0 %6026, %v5739
    %v6028 = vpop.permute.xlu0 %6027
    %6031 = vset.pattern.permute.xlu0 0
    %6032 = vperm.xlu0 %6031, %v5741
    %v6033 = vpop.permute.xlu0 %6032
    %6036 = vset.pattern.permute.xlu0 0
    %6037 = vperm.xlu0 %6036, %v5743
    %v6038 = vpop.permute.xlu0 %6037
    %6041 = vset.pattern.permute.xlu0 0
    %6042 = vperm.xlu0 %6041, %v5745
    %v6043 = vpop.permute.xlu0 %6042
    %6046 = vset.pattern.permute.xlu0 0
    %6047 = vperm.xlu0 %6046, %v5747
    %v6048 = vpop.permute.xlu0 %6047
    %6051 = vset.pattern.permute.xlu0 0
    %6052 = vperm.xlu0 %6051, %v5749
    %v6053 = vpop.permute.xlu0 %6052
    %6056 = vset.pattern.permute.xlu0 0
    %6057 = vperm.xlu0 %6056, %v5751
    %v6058 = vpop.permute.xlu0 %6057
    %6061 = vset.pattern.permute.xlu0 0
    %6062 = vperm.xlu0 %6061, %v5753
    %v6063 = vpop.permute.xlu0 %6062
    %6066 = vset.pattern.permute.xlu0 0
    %6067 = vperm.xlu0 %6066, %v5755
    %v6068 = vpop.permute.xlu0 %6067
    %6071 = vset.pattern.permute.xlu0 0
    %6072 = vperm.xlu0 %6071, %v5757
    %v6073 = vpop.permute.xlu0 %6072
    %6076 = vset.pattern.permute.xlu0 0
    %6077 = vperm.xlu0 %6076, %v5759
    %v6078 = vpop.permute.xlu0 %6077
    %v6080 = vmul.f32 %v2478, %v5763
    %v6081 = vmul.f32 %v2480, %v5763
    %v6082 = vmul.f32 %v2482, %v5763
    %v6083 = vmul.f32 %v2484, %v5763
    %v6084 = vmul.f32 %v2486, %v5768
    %v6085 = vmul.f32 %v2488, %v5768
    %v6086 = vmul.f32 %v2490, %v5768
    %v6087 = vmul.f32 %v2492, %v5768
    %v6088 = vmul.f32 %v2494, %v5773
    %v6089 = vmul.f32 %v2496, %v5773
    %v6090 = vmul.f32 %v2498, %v5773
    %v6091 = vmul.f32 %v2500, %v5773
    %v6092 = vmul.f32 %v2502, %v5778
    %v6093 = vmul.f32 %v2504, %v5778
    %v6094 = vmul.f32 %v2506, %v5778
    %v6095 = vmul.f32 %v2508, %v5778
    %v6096 = vmul.f32 %v2510, %v5783
    %v6097 = vmul.f32 %v2512, %v5783
    %v6098 = vmul.f32 %v2514, %v5783
    %v6099 = vmul.f32 %v2516, %v5783
    %v6100 = vmul.f32 %v2518, %v5788
    %v6101 = vmul.f32 %v2520, %v5788
    %v6102 = vmul.f32 %v2522, %v5788
    %v6103 = vmul.f32 %v2524, %v5788
    %v6104 = vmul.f32 %v2526, %v5793
    %v6105 = vmul.f32 %v2528, %v5793
    %v6106 = vmul.f32 %v2530, %v5793
    %v6107 = vmul.f32 %v2532, %v5793
    %v6108 = vmul.f32 %v2534, %v5798
    %v6109 = vmul.f32 %v2536, %v5798
    %v6110 = vmul.f32 %v2538, %v5798
    %v6111 = vmul.f32 %v2540, %v5798
    %v6112 = vmul.f32 %v2542, %v5803
    %v6113 = vmul.f32 %v2544, %v5803
    %v6114 = vmul.f32 %v2546, %v5803
    %v6115 = vmul.f32 %v2548, %v5803
    %v6116 = vmul.f32 %v2550, %v5808
    %v6117 = vmul.f32 %v2552, %v5808
    %v6118 = vmul.f32 %v2554, %v5808
    %v6119 = vmul.f32 %v2556, %v5808
    %v6120 = vmul.f32 %v2558, %v5813
    %v6121 = vmul.f32 %v2560, %v5813
    %v6122 = vmul.f32 %v2562, %v5813
    %v6123 = vmul.f32 %v2564, %v5813
    %v6124 = vmul.f32 %v2566, %v5818
    %v6125 = vmul.f32 %v2568, %v5818
    %v6126 = vmul.f32 %v2570, %v5818
    %v6127 = vmul.f32 %v2572, %v5818
    %v6128 = vmul.f32 %v2574, %v5823
    %v6129 = vmul.f32 %v2576, %v5823
    %v6130 = vmul.f32 %v2578, %v5823
    %v6131 = vmul.f32 %v2580, %v5823
    %v6132 = vmul.f32 %v2582, %v5828
    %v6133 = vmul.f32 %v2584, %v5828
    %v6134 = vmul.f32 %v2586, %v5828
    %v6135 = vmul.f32 %v2588, %v5828
    %v6136 = vmul.f32 %v2590, %v5833
    %v6137 = vmul.f32 %v2592, %v5833
    %v6138 = vmul.f32 %v2594, %v5833
    %v6139 = vmul.f32 %v2596, %v5833
    %v6140 = vmul.f32 %v2598, %v5838
    %v6141 = vmul.f32 %v2600, %v5838
    %v6142 = vmul.f32 %v2602, %v5838
    %v6143 = vmul.f32 %v2604, %v5838
    %v6144 = vmul.f32 %v2606, %v5843
    %v6145 = vmul.f32 %v2608, %v5843
    %v6146 = vmul.f32 %v2610, %v5843
    %v6147 = vmul.f32 %v2612, %v5843
    %v6148 = vmul.f32 %v2614, %v5848
    %v6149 = vmul.f32 %v2616, %v5848
    %v6150 = vmul.f32 %v2618, %v5848
    %v6151 = vmul.f32 %v2620, %v5848
    %v6152 = vmul.f32 %v2622, %v5853
    %v6153 = vmul.f32 %v2624, %v5853
    %v6154 = vmul.f32 %v2626, %v5853
    %v6155 = vmul.f32 %v2628, %v5853
    %v6156 = vmul.f32 %v2630, %v5858
    %v6157 = vmul.f32 %v2632, %v5858
    %v6158 = vmul.f32 %v2634, %v5858
    %v6159 = vmul.f32 %v2636, %v5858
    %v6160 = vmul.f32 %v2638, %v5863
    %v6161 = vmul.f32 %v2640, %v5863
    %v6162 = vmul.f32 %v2642, %v5863
    %v6163 = vmul.f32 %v2644, %v5863
    %v6164 = vmul.f32 %v2646, %v5868
    %v6165 = vmul.f32 %v2648, %v5868
    %v6166 = vmul.f32 %v2650, %v5868
    %v6167 = vmul.f32 %v2652, %v5868
    %v6168 = vmul.f32 %v2654, %v5873
    %v6169 = vmul.f32 %v2656, %v5873
    %v6170 = vmul.f32 %v2658, %v5873
    %v6171 = vmul.f32 %v2660, %v5873
    %v6172 = vmul.f32 %v2662, %v5878
    %v6173 = vmul.f32 %v2664, %v5878
    %v6174 = vmul.f32 %v2666, %v5878
    %v6175 = vmul.f32 %v2668, %v5878
    %v6176 = vmul.f32 %v2670, %v5883
    %v6177 = vmul.f32 %v2672, %v5883
    %v6178 = vmul.f32 %v2674, %v5883
    %v6179 = vmul.f32 %v2676, %v5883
    %v6180 = vmul.f32 %v2678, %v5888
    %v6181 = vmul.f32 %v2680, %v5888
    %v6182 = vmul.f32 %v2682, %v5888
    %v6183 = vmul.f32 %v2684, %v5888
    %v6184 = vmul.f32 %v2686, %v5893
    %v6185 = vmul.f32 %v2688, %v5893
    %v6186 = vmul.f32 %v2690, %v5893
    %v6187 = vmul.f32 %v2692, %v5893
    %v6188 = vmul.f32 %v2694, %v5898
    %v6189 = vmul.f32 %v2696, %v5898
    %v6190 = vmul.f32 %v2698, %v5898
    %v6191 = vmul.f32 %v2700, %v5898
    %v6192 = vmul.f32 %v2702, %v5903
    %v6193 = vmul.f32 %v2704, %v5903
    %v6194 = vmul.f32 %v2706, %v5903
    %v6195 = vmul.f32 %v2708, %v5903
    %v6196 = vmul.f32 %v2710, %v5908
    %v6197 = vmul.f32 %v2712, %v5908
    %v6198 = vmul.f32 %v2714, %v5908
    %v6199 = vmul.f32 %v2716, %v5908
    %v6200 = vmul.f32 %v2718, %v5913
    %v6201 = vmul.f32 %v2720, %v5913
    %v6202 = vmul.f32 %v2722, %v5913
    %v6203 = vmul.f32 %v2724, %v5913
    %v6204 = vmul.f32 %v2726, %v5918
    %v6205 = vmul.f32 %v2728, %v5918
    %v6206 = vmul.f32 %v2730, %v5918
    %v6207 = vmul.f32 %v2732, %v5918
    %v6208 = vmul.f32 %v2734, %v5923
    %v6209 = vmul.f32 %v2736, %v5923
    %v6210 = vmul.f32 %v2738, %v5923
    %v6211 = vmul.f32 %v2740, %v5923
    %v6212 = vmul.f32 %v2742, %v5928
    %v6213 = vmul.f32 %v2744, %v5928
    %v6214 = vmul.f32 %v2746, %v5928
    %v6215 = vmul.f32 %v2748, %v5928
    %v6216 = vmul.f32 %v2750, %v5933
    %v6217 = vmul.f32 %v2752, %v5933
    %v6218 = vmul.f32 %v2754, %v5933
    %v6219 = vmul.f32 %v2756, %v5933
    %v6220 = vmul.f32 %v2758, %v5938
    %v6221 = vmul.f32 %v2760, %v5938
    %v6222 = vmul.f32 %v2762, %v5938
    %v6223 = vmul.f32 %v2764, %v5938
    %v6224 = vmul.f32 %v2766, %v5943
    %v6225 = vmul.f32 %v2768, %v5943
    %v6226 = vmul.f32 %v2770, %v5943
    %v6227 = vmul.f32 %v2772, %v5943
    %v6228 = vmul.f32 %v2774, %v5948
    %v6229 = vmul.f32 %v2776, %v5948
    %v6230 = vmul.f32 %v2778, %v5948
    %v6231 = vmul.f32 %v2780, %v5948
    %v6232 = vmul.f32 %v2782, %v5953
    %v6233 = vmul.f32 %v2784, %v5953
    %v6234 = vmul.f32 %v2786, %v5953
    %v6235 = vmul.f32 %v2788, %v5953
    %v6236 = vmul.f32 %v2790, %v5958
    %v6237 = vmul.f32 %v2792, %v5958
    %v6238 = vmul.f32 %v2794, %v5958
    %v6239 = vmul.f32 %v2796, %v5958
    %v6240 = vmul.f32 %v2798, %v5963
    %v6241 = vmul.f32 %v2800, %v5963
    %v6242 = vmul.f32 %v2802, %v5963
    %v6243 = vmul.f32 %v2804, %v5963
    %v6244 = vmul.f32 %v2806, %v5968
    %v6245 = vmul.f32 %v2808, %v5968
    %v6246 = vmul.f32 %v2810, %v5968
    %v6247 = vmul.f32 %v2812, %v5968
    %v6248 = vmul.f32 %v2814, %v5973
    %v6249 = vmul.f32 %v2816, %v5973
    %v6250 = vmul.f32 %v2818, %v5973
    %v6251 = vmul.f32 %v2820, %v5973
    %v6252 = vmul.f32 %v2822, %v5978
    %v6253 = vmul.f32 %v2824, %v5978
    %v6254 = vmul.f32 %v2826, %v5978
    %v6255 = vmul.f32 %v2828, %v5978
    %v6256 = vmul.f32 %v2830, %v5983
    %v6257 = vmul.f32 %v2832, %v5983
    %v6258 = vmul.f32 %v2834, %v5983
    %v6259 = vmul.f32 %v2836, %v5983
    %v6260 = vmul.f32 %v2838, %v5988
    %v6261 = vmul.f32 %v2840, %v5988
    %v6262 = vmul.f32 %v2842, %v5988
    %v6263 = vmul.f32 %v2844, %v5988
    %v6264 = vmul.f32 %v2846, %v5993
    %v6265 = vmul.f32 %v2848, %v5993
    %v6266 = vmul.f32 %v2850, %v5993
    %v6267 = vmul.f32 %v2852, %v5993
    %v6268 = vmul.f32 %v2854, %v5998
    %v6269 = vmul.f32 %v2856, %v5998
    %v6270 = vmul.f32 %v2858, %v5998
    %v6271 = vmul.f32 %v2860, %v5998
    %v6272 = vmul.f32 %v2862, %v6003
    %v6273 = vmul.f32 %v2864, %v6003
    %v6274 = vmul.f32 %v2866, %v6003
    %v6275 = vmul.f32 %v2868, %v6003
    %v6276 = vmul.f32 %v2870, %v6008
    %v6277 = vmul.f32 %v2872, %v6008
    %v6278 = vmul.f32 %v2874, %v6008
    %v6279 = vmul.f32 %v2876, %v6008
    %v6280 = vmul.f32 %v2878, %v6013
    %v6281 = vmul.f32 %v2880, %v6013
    %v6282 = vmul.f32 %v2882, %v6013
    %v6283 = vmul.f32 %v2884, %v6013
    %v6284 = vmul.f32 %v2886, %v6018
    %v6285 = vmul.f32 %v2888, %v6018
    %v6286 = vmul.f32 %v2890, %v6018
    %v6287 = vmul.f32 %v2892, %v6018
    %v6288 = vmul.f32 %v2894, %v6023
    %v6289 = vmul.f32 %v2896, %v6023
    %v6290 = vmul.f32 %v2898, %v6023
    %v6291 = vmul.f32 %v2900, %v6023
    %v6292 = vmul.f32 %v2902, %v6028
    %v6293 = vmul.f32 %v2904, %v6028
    %v6294 = vmul.f32 %v2906, %v6028
    %v6295 = vmul.f32 %v2908, %v6028
    %v6296 = vmul.f32 %v2910, %v6033
    %v6297 = vmul.f32 %v2912, %v6033
    %v6298 = vmul.f32 %v2914, %v6033
    %v6299 = vmul.f32 %v2916, %v6033
    %v6300 = vmul.f32 %v2918, %v6038
    %v6301 = vmul.f32 %v2920, %v6038
    %v6302 = vmul.f32 %v2922, %v6038
    %v6303 = vmul.f32 %v2924, %v6038
    %v6304 = vmul.f32 %v2926, %v6043
    %v6305 = vmul.f32 %v2928, %v6043
    %v6306 = vmul.f32 %v2930, %v6043
    %v6307 = vmul.f32 %v2932, %v6043
    %v6308 = vmul.f32 %v2934, %v6048
    %v6309 = vmul.f32 %v2936, %v6048
    %v6310 = vmul.f32 %v2938, %v6048
    %v6311 = vmul.f32 %v2940, %v6048
    %v6312 = vmul.f32 %v2942, %v6053
    %v6313 = vmul.f32 %v2944, %v6053
    %v6314 = vmul.f32 %v2946, %v6053
    %v6315 = vmul.f32 %v2948, %v6053
    %v6316 = vmul.f32 %v2950, %v6058
    %v6317 = vmul.f32 %v2952, %v6058
    %v6318 = vmul.f32 %v2954, %v6058
    %v6319 = vmul.f32 %v2956, %v6058
    %v6320 = vmul.f32 %v2958, %v6063
    %v6321 = vmul.f32 %v2960, %v6063
    %v6322 = vmul.f32 %v2962, %v6063
    %v6323 = vmul.f32 %v2964, %v6063
    %v6324 = vmul.f32 %v2966, %v6068
    %v6325 = vmul.f32 %v2968, %v6068
    %v6326 = vmul.f32 %v2970, %v6068
    %v6327 = vmul.f32 %v2972, %v6068
    %v6328 = vmul.f32 %v2974, %v6073
    %v6329 = vmul.f32 %v2976, %v6073
    %v6330 = vmul.f32 %v2978, %v6073
    %v6331 = vmul.f32 %v2980, %v6073
    %v6332 = vmul.f32 %v2982, %v6078
    %v6333 = vmul.f32 %v2984, %v6078
    %v6334 = vmul.f32 %v2986, %v6078
    %v6335 = vmul.f32 %v2988, %v6078
    %v6336 = vadd.f32 %v6080, %v6084
    %v6337 = vadd.f32 %v6336, %v6088
    %v6338 = vadd.f32 %v6337, %v6092
    %v6339 = vadd.f32 %v6338, %v6096
    %v6340 = vadd.f32 %v6339, %v6100
    %v6341 = vadd.f32 %v6340, %v6104
    %v6342 = vadd.f32 %v6341, %v6108
    %v6343 = vadd.f32 %v6342, %v6112
    %v6344 = vadd.f32 %v6343, %v6116
    %v6345 = vadd.f32 %v6344, %v6120
    %v6346 = vadd.f32 %v6345, %v6124
    %v6347 = vadd.f32 %v6346, %v6128
    %v6348 = vadd.f32 %v6347, %v6132
    %v6349 = vadd.f32 %v6348, %v6136
    %v6350 = vadd.f32 %v6349, %v6140
    %v6351 = vadd.f32 %v6350, %v6144
    %v6352 = vadd.f32 %v6351, %v6148
    %v6353 = vadd.f32 %v6352, %v6152
    %v6354 = vadd.f32 %v6353, %v6156
    %v6355 = vadd.f32 %v6354, %v6160
    %v6356 = vadd.f32 %v6355, %v6164
    %v6357 = vadd.f32 %v6356, %v6168
    %v6358 = vadd.f32 %v6357, %v6172
    %v6359 = vadd.f32 %v6358, %v6176
    %v6360 = vadd.f32 %v6359, %v6180
    %v6361 = vadd.f32 %v6360, %v6184
    %v6362 = vadd.f32 %v6361, %v6188
    %v6363 = vadd.f32 %v6362, %v6192
    %v6364 = vadd.f32 %v6363, %v6196
    %v6365 = vadd.f32 %v6364, %v6200
    %v6366 = vadd.f32 %v6365, %v6204
    %v6367 = vadd.f32 %v6366, %v6208
    %v6368 = vadd.f32 %v6367, %v6212
    %v6369 = vadd.f32 %v6368, %v6216
    %v6370 = vadd.f32 %v6369, %v6220
    %v6371 = vadd.f32 %v6370, %v6224
    %v6372 = vadd.f32 %v6371, %v6228
    %v6373 = vadd.f32 %v6372, %v6232
    %v6374 = vadd.f32 %v6373, %v6236
    %v6375 = vadd.f32 %v6374, %v6240
    %v6376 = vadd.f32 %v6375, %v6244
    %v6377 = vadd.f32 %v6376, %v6248
    %v6378 = vadd.f32 %v6377, %v6252
    %v6379 = vadd.f32 %v6378, %v6256
    %v6380 = vadd.f32 %v6379, %v6260
    %v6381 = vadd.f32 %v6380, %v6264
    %v6382 = vadd.f32 %v6381, %v6268
    %v6383 = vadd.f32 %v6382, %v6272
    %v6384 = vadd.f32 %v6383, %v6276
    %v6385 = vadd.f32 %v6384, %v6280
    %v6386 = vadd.f32 %v6385, %v6284
    %v6387 = vadd.f32 %v6386, %v6288
    %v6388 = vadd.f32 %v6387, %v6292
    %v6389 = vadd.f32 %v6388, %v6296
    %v6390 = vadd.f32 %v6389, %v6300
    %v6391 = vadd.f32 %v6390, %v6304
    %v6392 = vadd.f32 %v6391, %v6308
    %v6393 = vadd.f32 %v6392, %v6312
    %v6394 = vadd.f32 %v6393, %v6316
    %v6395 = vadd.f32 %v6394, %v6320
    %v6396 = vadd.f32 %v6395, %v6324
    %v6397 = vadd.f32 %v6396, %v6328
    %v6398 = vadd.f32 %v6397, %v6332
    %v6399 = vrot.slane %v6398, 4
    %v6400 = vadd.f32 %v6398, %v6399
    %v6401 = vrot.slane %v6400, 2
    %v6402 = vadd.f32 %v6400, %v6401
    %v6403 = vrot.slane %v6402, 1
    %v6404 = vadd.f32 %v6402, %v6403
    %v6405 = vadd.f32 %v6081, %v6085
    %v6406 = vadd.f32 %v6405, %v6089
    %v6407 = vadd.f32 %v6406, %v6093
    %v6408 = vadd.f32 %v6407, %v6097
    %v6409 = vadd.f32 %v6408, %v6101
    %v6410 = vadd.f32 %v6409, %v6105
    %v6411 = vadd.f32 %v6410, %v6109
    %v6412 = vadd.f32 %v6411, %v6113
    %v6413 = vadd.f32 %v6412, %v6117
    %v6414 = vadd.f32 %v6413, %v6121
    %v6415 = vadd.f32 %v6414, %v6125
    %v6416 = vadd.f32 %v6415, %v6129
    %v6417 = vadd.f32 %v6416, %v6133
    %v6418 = vadd.f32 %v6417, %v6137
    %v6419 = vadd.f32 %v6418, %v6141
    %v6420 = vadd.f32 %v6419, %v6145
    %v6421 = vadd.f32 %v6420, %v6149
    %v6422 = vadd.f32 %v6421, %v6153
    %v6423 = vadd.f32 %v6422, %v6157
    %v6424 = vadd.f32 %v6423, %v6161
    %v6425 = vadd.f32 %v6424, %v6165
    %v6426 = vadd.f32 %v6425, %v6169
    %v6427 = vadd.f32 %v6426, %v6173
    %v6428 = vadd.f32 %v6427, %v6177
    %v6429 = vadd.f32 %v6428, %v6181
    %v6430 = vadd.f32 %v6429, %v6185
    %v6431 = vadd.f32 %v6430, %v6189
    %v6432 = vadd.f32 %v6431, %v6193
    %v6433 = vadd.f32 %v6432, %v6197
    %v6434 = vadd.f32 %v6433, %v6201
    %v6435 = vadd.f32 %v6434, %v6205
    %v6436 = vadd.f32 %v6435, %v6209
    %v6437 = vadd.f32 %v6436, %v6213
    %v6438 = vadd.f32 %v6437, %v6217
    %v6439 = vadd.f32 %v6438, %v6221
    %v6440 = vadd.f32 %v6439, %v6225
    %v6441 = vadd.f32 %v6440, %v6229
    %v6442 = vadd.f32 %v6441, %v6233
    %v6443 = vadd.f32 %v6442, %v6237
    %v6444 = vadd.f32 %v6443, %v6241
    %v6445 = vadd.f32 %v6444, %v6245
    %v6446 = vadd.f32 %v6445, %v6249
    %v6447 = vadd.f32 %v6446, %v6253
    %v6448 = vadd.f32 %v6447, %v6257
    %v6449 = vadd.f32 %v6448, %v6261
    %v6450 = vadd.f32 %v6449, %v6265
    %v6451 = vadd.f32 %v6450, %v6269
    %v6452 = vadd.f32 %v6451, %v6273
    %v6453 = vadd.f32 %v6452, %v6277
    %v6454 = vadd.f32 %v6453, %v6281
    %v6455 = vadd.f32 %v6454, %v6285
    %v6456 = vadd.f32 %v6455, %v6289
    %v6457 = vadd.f32 %v6456, %v6293
    %v6458 = vadd.f32 %v6457, %v6297
    %v6459 = vadd.f32 %v6458, %v6301
    %v6460 = vadd.f32 %v6459, %v6305
    %v6461 = vadd.f32 %v6460, %v6309
    %v6462 = vadd.f32 %v6461, %v6313
    %v6463 = vadd.f32 %v6462, %v6317
    %v6464 = vadd.f32 %v6463, %v6321
    %v6465 = vadd.f32 %v6464, %v6325
    %v6466 = vadd.f32 %v6465, %v6329
    %v6467 = vadd.f32 %v6466, %v6333
    %v6468 = vrot.slane %v6467, 4
    %v6469 = vadd.f32 %v6467, %v6468
    %v6470 = vrot.slane %v6469, 2
    %v6471 = vadd.f32 %v6469, %v6470
    %v6472 = vrot.slane %v6471, 1
    %v6473 = vadd.f32 %v6471, %v6472
    %v6474 = vadd.f32 %v6082, %v6086
    %v6475 = vadd.f32 %v6474, %v6090
    %v6476 = vadd.f32 %v6475, %v6094
    %v6477 = vadd.f32 %v6476, %v6098
    %v6478 = vadd.f32 %v6477, %v6102
    %v6479 = vadd.f32 %v6478, %v6106
    %v6480 = vadd.f32 %v6479, %v6110
    %v6481 = vadd.f32 %v6480, %v6114
    %v6482 = vadd.f32 %v6481, %v6118
    %v6483 = vadd.f32 %v6482, %v6122
    %v6484 = vadd.f32 %v6483, %v6126
    %v6485 = vadd.f32 %v6484, %v6130
    %v6486 = vadd.f32 %v6485, %v6134
    %v6487 = vadd.f32 %v6486, %v6138
    %v6488 = vadd.f32 %v6487, %v6142
    %v6489 = vadd.f32 %v6488, %v6146
    %v6490 = vadd.f32 %v6489, %v6150
    %v6491 = vadd.f32 %v6490, %v6154
    %v6492 = vadd.f32 %v6491, %v6158
    %v6493 = vadd.f32 %v6492, %v6162
    %v6494 = vadd.f32 %v6493, %v6166
    %v6495 = vadd.f32 %v6494, %v6170
    %v6496 = vadd.f32 %v6495, %v6174
    %v6497 = vadd.f32 %v6496, %v6178
    %v6498 = vadd.f32 %v6497, %v6182
    %v6499 = vadd.f32 %v6498, %v6186
    %v6500 = vadd.f32 %v6499, %v6190
    %v6501 = vadd.f32 %v6500, %v6194
    %v6502 = vadd.f32 %v6501, %v6198
    %v6503 = vadd.f32 %v6502, %v6202
    %v6504 = vadd.f32 %v6503, %v6206
    %v6505 = vadd.f32 %v6504, %v6210
    %v6506 = vadd.f32 %v6505, %v6214
    %v6507 = vadd.f32 %v6506, %v6218
    %v6508 = vadd.f32 %v6507, %v6222
    %v6509 = vadd.f32 %v6508, %v6226
    %v6510 = vadd.f32 %v6509, %v6230
    %v6511 = vadd.f32 %v6510, %v6234
    %v6512 = vadd.f32 %v6511, %v6238
    %v6513 = vadd.f32 %v6512, %v6242
    %v6514 = vadd.f32 %v6513, %v6246
    %v6515 = vadd.f32 %v6514, %v6250
    %v6516 = vadd.f32 %v6515, %v6254
    %v6517 = vadd.f32 %v6516, %v6258
    %v6518 = vadd.f32 %v6517, %v6262
    %v6519 = vadd.f32 %v6518, %v6266
    %v6520 = vadd.f32 %v6519, %v6270
    %v6521 = vadd.f32 %v6520, %v6274
    %v6522 = vadd.f32 %v6521, %v6278
    %v6523 = vadd.f32 %v6522, %v6282
    %v6524 = vadd.f32 %v6523, %v6286
    %v6525 = vadd.f32 %v6524, %v6290
    %v6526 = vadd.f32 %v6525, %v6294
    %v6527 = vadd.f32 %v6526, %v6298
    %v6528 = vadd.f32 %v6527, %v6302
    %v6529 = vadd.f32 %v6528, %v6306
    %v6530 = vadd.f32 %v6529, %v6310
    %v6531 = vadd.f32 %v6530, %v6314
    %v6532 = vadd.f32 %v6531, %v6318
    %v6533 = vadd.f32 %v6532, %v6322
    %v6534 = vadd.f32 %v6533, %v6326
    %v6535 = vadd.f32 %v6534, %v6330
    %v6536 = vadd.f32 %v6535, %v6334
    %v6537 = vrot.slane %v6536, 4
    %v6538 = vadd.f32 %v6536, %v6537
    %v6539 = vrot.slane %v6538, 2
    %v6540 = vadd.f32 %v6538, %v6539
    %v6541 = vrot.slane %v6540, 1
    %v6542 = vadd.f32 %v6540, %v6541
    %v6543 = vadd.f32 %v6083, %v6087
    %v6544 = vadd.f32 %v6543, %v6091
    %v6545 = vadd.f32 %v6544, %v6095
    %v6546 = vadd.f32 %v6545, %v6099
    %v6547 = vadd.f32 %v6546, %v6103
    %v6548 = vadd.f32 %v6547, %v6107
    %v6549 = vadd.f32 %v6548, %v6111
    %v6550 = vadd.f32 %v6549, %v6115
    %v6551 = vadd.f32 %v6550, %v6119
    %v6552 = vadd.f32 %v6551, %v6123
    %v6553 = vadd.f32 %v6552, %v6127
    %v6554 = vadd.f32 %v6553, %v6131
    %v6555 = vadd.f32 %v6554, %v6135
    %v6556 = vadd.f32 %v6555, %v6139
    %v6557 = vadd.f32 %v6556, %v6143
    %v6558 = vadd.f32 %v6557, %v6147
    %v6559 = vadd.f32 %v6558, %v6151
    %v6560 = vadd.f32 %v6559, %v6155
    %v6561 = vadd.f32 %v6560, %v6159
    %v6562 = vadd.f32 %v6561, %v6163
    %v6563 = vadd.f32 %v6562, %v6167
    %v6564 = vadd.f32 %v6563, %v6171
    %v6565 = vadd.f32 %v6564, %v6175
    %v6566 = vadd.f32 %v6565, %v6179
    %v6567 = vadd.f32 %v6566, %v6183
    %v6568 = vadd.f32 %v6567, %v6187
    %v6569 = vadd.f32 %v6568, %v6191
    %v6570 = vadd.f32 %v6569, %v6195
    %v6571 = vadd.f32 %v6570, %v6199
    %v6572 = vadd.f32 %v6571, %v6203
    %v6573 = vadd.f32 %v6572, %v6207
    %v6574 = vadd.f32 %v6573, %v6211
    %v6575 = vadd.f32 %v6574, %v6215
    %v6576 = vadd.f32 %v6575, %v6219
    %v6577 = vadd.f32 %v6576, %v6223
    %v6578 = vadd.f32 %v6577, %v6227
    %v6579 = vadd.f32 %v6578, %v6231
    %v6580 = vadd.f32 %v6579, %v6235
    %v6581 = vadd.f32 %v6580, %v6239
    %v6582 = vadd.f32 %v6581, %v6243
    %v6583 = vadd.f32 %v6582, %v6247
    %v6584 = vadd.f32 %v6583, %v6251
    %v6585 = vadd.f32 %v6584, %v6255
    %v6586 = vadd.f32 %v6585, %v6259
    %v6587 = vadd.f32 %v6586, %v6263
    %v6588 = vadd.f32 %v6587, %v6267
    %v6589 = vadd.f32 %v6588, %v6271
    %v6590 = vadd.f32 %v6589, %v6275
    %v6591 = vadd.f32 %v6590, %v6279
    %v6592 = vadd.f32 %v6591, %v6283
    %v6593 = vadd.f32 %v6592, %v6287
    %v6594 = vadd.f32 %v6593, %v6291
    %v6595 = vadd.f32 %v6594, %v6295
    %v6596 = vadd.f32 %v6595, %v6299
    %v6597 = vadd.f32 %v6596, %v6303
    %v6598 = vadd.f32 %v6597, %v6307
    %v6599 = vadd.f32 %v6598, %v6311
    %v6600 = vadd.f32 %v6599, %v6315
    %v6601 = vadd.f32 %v6600, %v6319
    %v6602 = vadd.f32 %v6601, %v6323
    %v6603 = vadd.f32 %v6602, %v6327
    %v6604 = vadd.f32 %v6603, %v6331
    %v6605 = vadd.f32 %v6604, %v6335
    %v6606 = vrot.slane %v6605, 4
    %v6607 = vadd.f32 %v6605, %v6606
    %v6608 = vrot.slane %v6607, 2
    %v6609 = vadd.f32 %v6607, %v6608
    %v6610 = vrot.slane %v6609, 1
    %v6611 = vadd.f32 %v6609, %v6610
    %v6612 = vlog2.pop %v6404
    %v6613 = vmul.f32 %v6612, 0.6931472
    %v6614 = vlog2.pop %v6473
    %v6615 = vmul.f32 %v6614, 0.6931472
    %v6616 = vlog2.pop %v6542
    %v6617 = vmul.f32 %v6616, 0.6931472
    %v6618 = vlog2.pop %v6611
    %v6619 = vmul.f32 %v6618, 0.6931472
    %6621 = vset.pattern.permute.xlu0 0
    %6622 = vperm.xlu0 %6621, %v5567
    %v6623 = vpop.permute.xlu0 %6622
    %v6625 = vadd.f32 %v6623, %v6613
    %v6626 = vadd.f32 %v6623, %v6615
    %v6627 = vadd.f32 %v6623, %v6617
    %v6628 = vadd.f32 %v6623, %v6619
    %v6629 = vlaneseq
    %v6630 = vshrl.u32 %v6629, 7
    %v6631 = vadd.s32 %v6630, 8
    %v6632 = vadd.s32 %v6630, 16
    %v6633 = vadd.s32 %v6630, 24
    %v6634 = vadd.s32 %v6630, 32
    %v6635 = vadd.s32 %v6630, 40
    %v6636 = vadd.s32 %v6630, 48
    %v6637 = vadd.s32 %v6630, 56
    %v6638 = vadd.s32 %v6630, 64
    %v6639 = vadd.s32 %v6630, 72
    %v6640 = vadd.s32 %v6630, 80
    %v6641 = vadd.s32 %v6630, 88
    %v6642 = vadd.s32 %v6630, 96
    %v6643 = vadd.s32 %v6630, 104
    %v6644 = vadd.s32 %v6630, 112
    %v6645 = vadd.s32 %v6630, 120
    %v6646 = vadd.s32 %v6630, 128
    %v6647 = vadd.s32 %v6630, 136
    %v6648 = vadd.s32 %v6630, 144
    %v6649 = vadd.s32 %v6630, 152
    %v6650 = vadd.s32 %v6630, 160
    %v6651 = vadd.s32 %v6630, 168
    %v6652 = vadd.s32 %v6630, 176
    %v6653 = vadd.s32 %v6630, 184
    %v6654 = vadd.s32 %v6630, 192
    %v6655 = vadd.s32 %v6630, 200
    %v6656 = vadd.s32 %v6630, 208
    %v6657 = vadd.s32 %v6630, 216
    %v6658 = vadd.s32 %v6630, 224
    %v6659 = vadd.s32 %v6630, 232
    %v6660 = vadd.s32 %v6630, 240
    %v6661 = vadd.s32 %v6630, 248
    %v6662 = vadd.s32 %v6630, 256
    %v6663 = vadd.s32 %v6630, 264
    %v6664 = vadd.s32 %v6630, 272
    %v6665 = vadd.s32 %v6630, 280
    %v6666 = vadd.s32 %v6630, 288
    %v6667 = vadd.s32 %v6630, 296
    %v6668 = vadd.s32 %v6630, 304
    %v6669 = vadd.s32 %v6630, 312
    %v6670 = vadd.s32 %v6630, 320
    %v6671 = vadd.s32 %v6630, 328
    %v6672 = vadd.s32 %v6630, 336
    %v6673 = vadd.s32 %v6630, 344
    %v6674 = vadd.s32 %v6630, 352
    %v6675 = vadd.s32 %v6630, 360
    %v6676 = vadd.s32 %v6630, 368
    %v6677 = vadd.s32 %v6630, 376
    %v6678 = vadd.s32 %v6630, 384
    %v6679 = vadd.s32 %v6630, 392
    %v6680 = vadd.s32 %v6630, 400
    %v6681 = vadd.s32 %v6630, 408
    %v6682 = vadd.s32 %v6630, 416
    %v6683 = vadd.s32 %v6630, 424
    %v6684 = vadd.s32 %v6630, 432
    %v6685 = vadd.s32 %v6630, 440
    %v6686 = vadd.s32 %v6630, 448
    %v6687 = vadd.s32 %v6630, 456
    %v6688 = vadd.s32 %v6630, 464
    %v6689 = vadd.s32 %v6630, 472
    %v6690 = vadd.s32 %v6630, 480
    %v6691 = vadd.s32 %v6630, 488
    %v6692 = vadd.s32 %v6630, 496
    %v6693 = vadd.s32 %v6630, 504
    %v6694 = vlaneseq
    %v6695 = vshrl.u32 %v6694, 7
    %v6696 = vsub.s32 0, %v6695
    %v6697 = vrot.slane %v1452, %v6696
    %v6698 = vlaneseq
    %v6699 = vshrl.u32 %v6698, 7
    %v6700 = vsub.s32 1, %v6699
    %v6701 = vrot.slane %v1452, %v6700
    %v6702 = vlaneseq
    %v6703 = vshrl.u32 %v6702, 7
    %v6704 = vsub.s32 2, %v6703
    %v6705 = vrot.slane %v1452, %v6704
    %v6706 = vlaneseq
    %v6707 = vshrl.u32 %v6706, 7
    %v6708 = vsub.s32 3, %v6707
    %v6709 = vrot.slane %v1452, %v6708
    %vm6710 = vcmp.eq.s32.totalorder %v6630, %v6697
    %vm6711 = vcmp.eq.s32.totalorder %v6630, %v6701
    %vm6712 = vcmp.eq.s32.totalorder %v6630, %v6705
    %vm6713 = vcmp.eq.s32.totalorder %v6630, %v6709
    %vm6714 = vcmp.eq.s32.totalorder %v6631, %v6697
    %vm6715 = vcmp.eq.s32.totalorder %v6631, %v6701
    %vm6716 = vcmp.eq.s32.totalorder %v6631, %v6705
    %vm6717 = vcmp.eq.s32.totalorder %v6631, %v6709
    %vm6718 = vcmp.eq.s32.totalorder %v6632, %v6697
    %vm6719 = vcmp.eq.s32.totalorder %v6632, %v6701
    %vm6720 = vcmp.eq.s32.totalorder %v6632, %v6705
    %vm6721 = vcmp.eq.s32.totalorder %v6632, %v6709
    %vm6722 = vcmp.eq.s32.totalorder %v6633, %v6697
    %vm6723 = vcmp.eq.s32.totalorder %v6633, %v6701
    %vm6724 = vcmp.eq.s32.totalorder %v6633, %v6705
    %vm6725 = vcmp.eq.s32.totalorder %v6633, %v6709
    %vm6726 = vcmp.eq.s32.totalorder %v6634, %v6697
    %vm6727 = vcmp.eq.s32.totalorder %v6634, %v6701
    %vm6728 = vcmp.eq.s32.totalorder %v6634, %v6705
    %vm6729 = vcmp.eq.s32.totalorder %v6634, %v6709
    %vm6730 = vcmp.eq.s32.totalorder %v6635, %v6697
    %vm6731 = vcmp.eq.s32.totalorder %v6635, %v6701
    %vm6732 = vcmp.eq.s32.totalorder %v6635, %v6705
    %vm6733 = vcmp.eq.s32.totalorder %v6635, %v6709
    %vm6734 = vcmp.eq.s32.totalorder %v6636, %v6697
    %vm6735 = vcmp.eq.s32.totalorder %v6636, %v6701
    %vm6736 = vcmp.eq.s32.totalorder %v6636, %v6705
    %vm6737 = vcmp.eq.s32.totalorder %v6636, %v6709
    %vm6738 = vcmp.eq.s32.totalorder %v6637, %v6697
    %vm6739 = vcmp.eq.s32.totalorder %v6637, %v6701
    %vm6740 = vcmp.eq.s32.totalorder %v6637, %v6705
    %vm6741 = vcmp.eq.s32.totalorder %v6637, %v6709
    %vm6742 = vcmp.eq.s32.totalorder %v6638, %v6697
    %vm6743 = vcmp.eq.s32.totalorder %v6638, %v6701
    %vm6744 = vcmp.eq.s32.totalorder %v6638, %v6705
    %vm6745 = vcmp.eq.s32.totalorder %v6638, %v6709
    %vm6746 = vcmp.eq.s32.totalorder %v6639, %v6697
    %vm6747 = vcmp.eq.s32.totalorder %v6639, %v6701
    %vm6748 = vcmp.eq.s32.totalorder %v6639, %v6705
    %vm6749 = vcmp.eq.s32.totalorder %v6639, %v6709
    %vm6750 = vcmp.eq.s32.totalorder %v6640, %v6697
    %vm6751 = vcmp.eq.s32.totalorder %v6640, %v6701
    %vm6752 = vcmp.eq.s32.totalorder %v6640, %v6705
    %vm6753 = vcmp.eq.s32.totalorder %v6640, %v6709
    %vm6754 = vcmp.eq.s32.totalorder %v6641, %v6697
    %vm6755 = vcmp.eq.s32.totalorder %v6641, %v6701
    %vm6756 = vcmp.eq.s32.totalorder %v6641, %v6705
    %vm6757 = vcmp.eq.s32.totalorder %v6641, %v6709
    %vm6758 = vcmp.eq.s32.totalorder %v6642, %v6697
    %vm6759 = vcmp.eq.s32.totalorder %v6642, %v6701
    %vm6760 = vcmp.eq.s32.totalorder %v6642, %v6705
    %vm6761 = vcmp.eq.s32.totalorder %v6642, %v6709
    %vm6762 = vcmp.eq.s32.totalorder %v6643, %v6697
    %vm6763 = vcmp.eq.s32.totalorder %v6643, %v6701
    %vm6764 = vcmp.eq.s32.totalorder %v6643, %v6705
    %vm6765 = vcmp.eq.s32.totalorder %v6643, %v6709
    %vm6766 = vcmp.eq.s32.totalorder %v6644, %v6697
    %vm6767 = vcmp.eq.s32.totalorder %v6644, %v6701
    %vm6768 = vcmp.eq.s32.totalorder %v6644, %v6705
    %vm6769 = vcmp.eq.s32.totalorder %v6644, %v6709
    %vm6770 = vcmp.eq.s32.totalorder %v6645, %v6697
    %vm6771 = vcmp.eq.s32.totalorder %v6645, %v6701
    %vm6772 = vcmp.eq.s32.totalorder %v6645, %v6705
    %vm6773 = vcmp.eq.s32.totalorder %v6645, %v6709
    %vm6774 = vcmp.eq.s32.totalorder %v6646, %v6697
    %vm6775 = vcmp.eq.s32.totalorder %v6646, %v6701
    %vm6776 = vcmp.eq.s32.totalorder %v6646, %v6705
    %vm6777 = vcmp.eq.s32.totalorder %v6646, %v6709
    %vm6778 = vcmp.eq.s32.totalorder %v6647, %v6697
    %vm6779 = vcmp.eq.s32.totalorder %v6647, %v6701
    %vm6780 = vcmp.eq.s32.totalorder %v6647, %v6705
    %vm6781 = vcmp.eq.s32.totalorder %v6647, %v6709
    %vm6782 = vcmp.eq.s32.totalorder %v6648, %v6697
    %vm6783 = vcmp.eq.s32.totalorder %v6648, %v6701
    %vm6784 = vcmp.eq.s32.totalorder %v6648, %v6705
    %vm6785 = vcmp.eq.s32.totalorder %v6648, %v6709
    %vm6786 = vcmp.eq.s32.totalorder %v6649, %v6697
    %vm6787 = vcmp.eq.s32.totalorder %v6649, %v6701
    %vm6788 = vcmp.eq.s32.totalorder %v6649, %v6705
    %vm6789 = vcmp.eq.s32.totalorder %v6649, %v6709
    %vm6790 = vcmp.eq.s32.totalorder %v6650, %v6697
    %vm6791 = vcmp.eq.s32.totalorder %v6650, %v6701
    %vm6792 = vcmp.eq.s32.totalorder %v6650, %v6705
    %vm6793 = vcmp.eq.s32.totalorder %v6650, %v6709
    %vm6794 = vcmp.eq.s32.totalorder %v6651, %v6697
    %vm6795 = vcmp.eq.s32.totalorder %v6651, %v6701
    %vm6796 = vcmp.eq.s32.totalorder %v6651, %v6705
    %vm6797 = vcmp.eq.s32.totalorder %v6651, %v6709
    %vm6798 = vcmp.eq.s32.totalorder %v6652, %v6697
    %vm6799 = vcmp.eq.s32.totalorder %v6652, %v6701
    %vm6800 = vcmp.eq.s32.totalorder %v6652, %v6705
    %vm6801 = vcmp.eq.s32.totalorder %v6652, %v6709
    %vm6802 = vcmp.eq.s32.totalorder %v6653, %v6697
    %vm6803 = vcmp.eq.s32.totalorder %v6653, %v6701
    %vm6804 = vcmp.eq.s32.totalorder %v6653, %v6705
    %vm6805 = vcmp.eq.s32.totalorder %v6653, %v6709
    %vm6806 = vcmp.eq.s32.totalorder %v6654, %v6697
    %vm6807 = vcmp.eq.s32.totalorder %v6654, %v6701
    %vm6808 = vcmp.eq.s32.totalorder %v6654, %v6705
    %vm6809 = vcmp.eq.s32.totalorder %v6654, %v6709
    %vm6810 = vcmp.eq.s32.totalorder %v6655, %v6697
    %vm6811 = vcmp.eq.s32.totalorder %v6655, %v6701
    %vm6812 = vcmp.eq.s32.totalorder %v6655, %v6705
    %vm6813 = vcmp.eq.s32.totalorder %v6655, %v6709
    %vm6814 = vcmp.eq.s32.totalorder %v6656, %v6697
    %vm6815 = vcmp.eq.s32.totalorder %v6656, %v6701
    %vm6816 = vcmp.eq.s32.totalorder %v6656, %v6705
    %vm6817 = vcmp.eq.s32.totalorder %v6656, %v6709
    %vm6818 = vcmp.eq.s32.totalorder %v6657, %v6697
    %vm6819 = vcmp.eq.s32.totalorder %v6657, %v6701
    %vm6820 = vcmp.eq.s32.totalorder %v6657, %v6705
    %vm6821 = vcmp.eq.s32.totalorder %v6657, %v6709
    %vm6822 = vcmp.eq.s32.totalorder %v6658, %v6697
    %vm6823 = vcmp.eq.s32.totalorder %v6658, %v6701
    %vm6824 = vcmp.eq.s32.totalorder %v6658, %v6705
    %vm6825 = vcmp.eq.s32.totalorder %v6658, %v6709
    %vm6826 = vcmp.eq.s32.totalorder %v6659, %v6697
    %vm6827 = vcmp.eq.s32.totalorder %v6659, %v6701
    %vm6828 = vcmp.eq.s32.totalorder %v6659, %v6705
    %vm6829 = vcmp.eq.s32.totalorder %v6659, %v6709
    %vm6830 = vcmp.eq.s32.totalorder %v6660, %v6697
    %vm6831 = vcmp.eq.s32.totalorder %v6660, %v6701
    %vm6832 = vcmp.eq.s32.totalorder %v6660, %v6705
    %vm6833 = vcmp.eq.s32.totalorder %v6660, %v6709
    %vm6834 = vcmp.eq.s32.totalorder %v6661, %v6697
    %vm6835 = vcmp.eq.s32.totalorder %v6661, %v6701
    %vm6836 = vcmp.eq.s32.totalorder %v6661, %v6705
    %vm6837 = vcmp.eq.s32.totalorder %v6661, %v6709
    %vm6838 = vcmp.eq.s32.totalorder %v6662, %v6697
    %vm6839 = vcmp.eq.s32.totalorder %v6662, %v6701
    %vm6840 = vcmp.eq.s32.totalorder %v6662, %v6705
    %vm6841 = vcmp.eq.s32.totalorder %v6662, %v6709
    %vm6842 = vcmp.eq.s32.totalorder %v6663, %v6697
    %vm6843 = vcmp.eq.s32.totalorder %v6663, %v6701
    %vm6844 = vcmp.eq.s32.totalorder %v6663, %v6705
    %vm6845 = vcmp.eq.s32.totalorder %v6663, %v6709
    %vm6846 = vcmp.eq.s32.totalorder %v6664, %v6697
    %vm6847 = vcmp.eq.s32.totalorder %v6664, %v6701
    %vm6848 = vcmp.eq.s32.totalorder %v6664, %v6705
    %vm6849 = vcmp.eq.s32.totalorder %v6664, %v6709
    %vm6850 = vcmp.eq.s32.totalorder %v6665, %v6697
    %vm6851 = vcmp.eq.s32.totalorder %v6665, %v6701
    %vm6852 = vcmp.eq.s32.totalorder %v6665, %v6705
    %vm6853 = vcmp.eq.s32.totalorder %v6665, %v6709
    %vm6854 = vcmp.eq.s32.totalorder %v6666, %v6697
    %vm6855 = vcmp.eq.s32.totalorder %v6666, %v6701
    %vm6856 = vcmp.eq.s32.totalorder %v6666, %v6705
    %vm6857 = vcmp.eq.s32.totalorder %v6666, %v6709
    %vm6858 = vcmp.eq.s32.totalorder %v6667, %v6697
    %vm6859 = vcmp.eq.s32.totalorder %v6667, %v6701
    %vm6860 = vcmp.eq.s32.totalorder %v6667, %v6705
    %vm6861 = vcmp.eq.s32.totalorder %v6667, %v6709
    %vm6862 = vcmp.eq.s32.totalorder %v6668, %v6697
    %vm6863 = vcmp.eq.s32.totalorder %v6668, %v6701
    %vm6864 = vcmp.eq.s32.totalorder %v6668, %v6705
    %vm6865 = vcmp.eq.s32.totalorder %v6668, %v6709
    %vm6866 = vcmp.eq.s32.totalorder %v6669, %v6697
    %vm6867 = vcmp.eq.s32.totalorder %v6669, %v6701
    %vm6868 = vcmp.eq.s32.totalorder %v6669, %v6705
    %vm6869 = vcmp.eq.s32.totalorder %v6669, %v6709
    %vm6870 = vcmp.eq.s32.totalorder %v6670, %v6697
    %vm6871 = vcmp.eq.s32.totalorder %v6670, %v6701
    %vm6872 = vcmp.eq.s32.totalorder %v6670, %v6705
    %vm6873 = vcmp.eq.s32.totalorder %v6670, %v6709
    %vm6874 = vcmp.eq.s32.totalorder %v6671, %v6697
    %vm6875 = vcmp.eq.s32.totalorder %v6671, %v6701
    %vm6876 = vcmp.eq.s32.totalorder %v6671, %v6705
    %vm6877 = vcmp.eq.s32.totalorder %v6671, %v6709
    %vm6878 = vcmp.eq.s32.totalorder %v6672, %v6697
    %vm6879 = vcmp.eq.s32.totalorder %v6672, %v6701
    %vm6880 = vcmp.eq.s32.totalorder %v6672, %v6705
    %vm6881 = vcmp.eq.s32.totalorder %v6672, %v6709
    %vm6882 = vcmp.eq.s32.totalorder %v6673, %v6697
    %vm6883 = vcmp.eq.s32.totalorder %v6673, %v6701
    %vm6884 = vcmp.eq.s32.totalorder %v6673, %v6705
    %vm6885 = vcmp.eq.s32.totalorder %v6673, %v6709
    %vm6886 = vcmp.eq.s32.totalorder %v6674, %v6697
    %vm6887 = vcmp.eq.s32.totalorder %v6674, %v6701
    %vm6888 = vcmp.eq.s32.totalorder %v6674, %v6705
    %vm6889 = vcmp.eq.s32.totalorder %v6674, %v6709
    %vm6890 = vcmp.eq.s32.totalorder %v6675, %v6697
    %vm6891 = vcmp.eq.s32.totalorder %v6675, %v6701
    %vm6892 = vcmp.eq.s32.totalorder %v6675, %v6705
    %vm6893 = vcmp.eq.s32.totalorder %v6675, %v6709
    %vm6894 = vcmp.eq.s32.totalorder %v6676, %v6697
    %vm6895 = vcmp.eq.s32.totalorder %v6676, %v6701
    %vm6896 = vcmp.eq.s32.totalorder %v6676, %v6705
    %vm6897 = vcmp.eq.s32.totalorder %v6676, %v6709
    %vm6898 = vcmp.eq.s32.totalorder %v6677, %v6697
    %vm6899 = vcmp.eq.s32.totalorder %v6677, %v6701
    %vm6900 = vcmp.eq.s32.totalorder %v6677, %v6705
    %vm6901 = vcmp.eq.s32.totalorder %v6677, %v6709
    %vm6902 = vcmp.eq.s32.totalorder %v6678, %v6697
    %vm6903 = vcmp.eq.s32.totalorder %v6678, %v6701
    %vm6904 = vcmp.eq.s32.totalorder %v6678, %v6705
    %vm6905 = vcmp.eq.s32.totalorder %v6678, %v6709
    %vm6906 = vcmp.eq.s32.totalorder %v6679, %v6697
    %vm6907 = vcmp.eq.s32.totalorder %v6679, %v6701
    %vm6908 = vcmp.eq.s32.totalorder %v6679, %v6705
    %vm6909 = vcmp.eq.s32.totalorder %v6679, %v6709
    %vm6910 = vcmp.eq.s32.totalorder %v6680, %v6697
    %vm6911 = vcmp.eq.s32.totalorder %v6680, %v6701
    %vm6912 = vcmp.eq.s32.totalorder %v6680, %v6705
    %vm6913 = vcmp.eq.s32.totalorder %v6680, %v6709
    %vm6914 = vcmp.eq.s32.totalorder %v6681, %v6697
    %vm6915 = vcmp.eq.s32.totalorder %v6681, %v6701
    %vm6916 = vcmp.eq.s32.totalorder %v6681, %v6705
    %vm6917 = vcmp.eq.s32.totalorder %v6681, %v6709
    %vm6918 = vcmp.eq.s32.totalorder %v6682, %v6697
    %vm6919 = vcmp.eq.s32.totalorder %v6682, %v6701
    %vm6920 = vcmp.eq.s32.totalorder %v6682, %v6705
    %vm6921 = vcmp.eq.s32.totalorder %v6682, %v6709
    %vm6922 = vcmp.eq.s32.totalorder %v6683, %v6697
    %vm6923 = vcmp.eq.s32.totalorder %v6683, %v6701
    %vm6924 = vcmp.eq.s32.totalorder %v6683, %v6705
    %vm6925 = vcmp.eq.s32.totalorder %v6683, %v6709
    %vm6926 = vcmp.eq.s32.totalorder %v6684, %v6697
    %vm6927 = vcmp.eq.s32.totalorder %v6684, %v6701
    %vm6928 = vcmp.eq.s32.totalorder %v6684, %v6705
    %vm6929 = vcmp.eq.s32.totalorder %v6684, %v6709
    %vm6930 = vcmp.eq.s32.totalorder %v6685, %v6697
    %vm6931 = vcmp.eq.s32.totalorder %v6685, %v6701
    %vm6932 = vcmp.eq.s32.totalorder %v6685, %v6705
    %vm6933 = vcmp.eq.s32.totalorder %v6685, %v6709
    %vm6934 = vcmp.eq.s32.totalorder %v6686, %v6697
    %vm6935 = vcmp.eq.s32.totalorder %v6686, %v6701
    %vm6936 = vcmp.eq.s32.totalorder %v6686, %v6705
    %vm6937 = vcmp.eq.s32.totalorder %v6686, %v6709
    %vm6938 = vcmp.eq.s32.totalorder %v6687, %v6697
    %vm6939 = vcmp.eq.s32.totalorder %v6687, %v6701
    %vm6940 = vcmp.eq.s32.totalorder %v6687, %v6705
    %vm6941 = vcmp.eq.s32.totalorder %v6687, %v6709
    %vm6942 = vcmp.eq.s32.totalorder %v6688, %v6697
    %vm6943 = vcmp.eq.s32.totalorder %v6688, %v6701
    %vm6944 = vcmp.eq.s32.totalorder %v6688, %v6705
    %vm6945 = vcmp.eq.s32.totalorder %v6688, %v6709
    %vm6946 = vcmp.eq.s32.totalorder %v6689, %v6697
    %vm6947 = vcmp.eq.s32.totalorder %v6689, %v6701
    %vm6948 = vcmp.eq.s32.totalorder %v6689, %v6705
    %vm6949 = vcmp.eq.s32.totalorder %v6689, %v6709
    %vm6950 = vcmp.eq.s32.totalorder %v6690, %v6697
    %vm6951 = vcmp.eq.s32.totalorder %v6690, %v6701
    %vm6952 = vcmp.eq.s32.totalorder %v6690, %v6705
    %vm6953 = vcmp.eq.s32.totalorder %v6690, %v6709
    %vm6954 = vcmp.eq.s32.totalorder %v6691, %v6697
    %vm6955 = vcmp.eq.s32.totalorder %v6691, %v6701
    %vm6956 = vcmp.eq.s32.totalorder %v6691, %v6705
    %vm6957 = vcmp.eq.s32.totalorder %v6691, %v6709
    %vm6958 = vcmp.eq.s32.totalorder %v6692, %v6697
    %vm6959 = vcmp.eq.s32.totalorder %v6692, %v6701
    %vm6960 = vcmp.eq.s32.totalorder %v6692, %v6705
    %vm6961 = vcmp.eq.s32.totalorder %v6692, %v6709
    %vm6962 = vcmp.eq.s32.totalorder %v6693, %v6697
    %vm6963 = vcmp.eq.s32.totalorder %v6693, %v6701
    %vm6964 = vcmp.eq.s32.totalorder %v6693, %v6705
    %vm6965 = vcmp.eq.s32.totalorder %v6693, %v6709
    %v6966 = vsel %vm6710, %v1132, 0.0
    %v6967 = vsel %vm6711, %v1133, 0.0
    %v6968 = vsel %vm6712, %v1134, 0.0
    %v6969 = vsel %vm6713, %v1135, 0.0
    %v6970 = vsel %vm6714, %v1136, 0.0
    %v6971 = vsel %vm6715, %v1137, 0.0
    %v6972 = vsel %vm6716, %v1138, 0.0
    %v6973 = vsel %vm6717, %v1139, 0.0
    %v6974 = vsel %vm6718, %v1140, 0.0
    %v6975 = vsel %vm6719, %v1141, 0.0
    %v6976 = vsel %vm6720, %v1142, 0.0
    %v6977 = vsel %vm6721, %v1143, 0.0
    %v6978 = vsel %vm6722, %v1144, 0.0
    %v6979 = vsel %vm6723, %v1145, 0.0
    %v6980 = vsel %vm6724, %v1146, 0.0
    %v6981 = vsel %vm6725, %v1147, 0.0
    %v6982 = vsel %vm6726, %v1148, 0.0
    %v6983 = vsel %vm6727, %v1149, 0.0
    %v6984 = vsel %vm6728, %v1150, 0.0
    %v6985 = vsel %vm6729, %v1151, 0.0
    %v6986 = vsel %vm6730, %v1152, 0.0
    %v6987 = vsel %vm6731, %v1153, 0.0
    %v6988 = vsel %vm6732, %v1154, 0.0
    %v6989 = vsel %vm6733, %v1155, 0.0
    %v6990 = vsel %vm6734, %v1156, 0.0
    %v6991 = vsel %vm6735, %v1157, 0.0
    %v6992 = vsel %vm6736, %v1158, 0.0
    %v6993 = vsel %vm6737, %v1159, 0.0
    %v6994 = vsel %vm6738, %v1160, 0.0
    %v6995 = vsel %vm6739, %v1161, 0.0
    %v6996 = vsel %vm6740, %v1162, 0.0
    %v6997 = vsel %vm6741, %v1163, 0.0
    %v6998 = vsel %vm6742, %v1164, 0.0
    %v6999 = vsel %vm6743, %v1165, 0.0
    %v7000 = vsel %vm6744, %v1166, 0.0
    %v7001 = vsel %vm6745, %v1167, 0.0
    %v7002 = vsel %vm6746, %v1168, 0.0
    %v7003 = vsel %vm6747, %v1169, 0.0
    %v7004 = vsel %vm6748, %v1170, 0.0
    %v7005 = vsel %vm6749, %v1171, 0.0
    %v7006 = vsel %vm6750, %v1172, 0.0
    %v7007 = vsel %vm6751, %v1173, 0.0
    %v7008 = vsel %vm6752, %v1174, 0.0
    %v7009 = vsel %vm6753, %v1175, 0.0
    %v7010 = vsel %vm6754, %v1176, 0.0
    %v7011 = vsel %vm6755, %v1177, 0.0
    %v7012 = vsel %vm6756, %v1178, 0.0
    %v7013 = vsel %vm6757, %v1179, 0.0
    %v7014 = vsel %vm6758, %v1180, 0.0
    %v7015 = vsel %vm6759, %v1181, 0.0
    %v7016 = vsel %vm6760, %v1182, 0.0
    %v7017 = vsel %vm6761, %v1183, 0.0
    %v7018 = vsel %vm6762, %v1184, 0.0
    %v7019 = vsel %vm6763, %v1185, 0.0
    %v7020 = vsel %vm6764, %v1186, 0.0
    %v7021 = vsel %vm6765, %v1187, 0.0
    %v7022 = vsel %vm6766, %v1188, 0.0
    %v7023 = vsel %vm6767, %v1189, 0.0
    %v7024 = vsel %vm6768, %v1190, 0.0
    %v7025 = vsel %vm6769, %v1191, 0.0
    %v7026 = vsel %vm6770, %v1192, 0.0
    %v7027 = vsel %vm6771, %v1193, 0.0
    %v7028 = vsel %vm6772, %v1194, 0.0
    %v7029 = vsel %vm6773, %v1195, 0.0
    %v7030 = vsel %vm6774, %v1196, 0.0
    %v7031 = vsel %vm6775, %v1197, 0.0
    %v7032 = vsel %vm6776, %v1198, 0.0
    %v7033 = vsel %vm6777, %v1199, 0.0
    %v7034 = vsel %vm6778, %v1200, 0.0
    %v7035 = vsel %vm6779, %v1201, 0.0
    %v7036 = vsel %vm6780, %v1202, 0.0
    %v7037 = vsel %vm6781, %v1203, 0.0
    %v7038 = vsel %vm6782, %v1204, 0.0
    %v7039 = vsel %vm6783, %v1205, 0.0
    %v7040 = vsel %vm6784, %v1206, 0.0
    %v7041 = vsel %vm6785, %v1207, 0.0
    %v7042 = vsel %vm6786, %v1208, 0.0
    %v7043 = vsel %vm6787, %v1209, 0.0
    %v7044 = vsel %vm6788, %v1210, 0.0
    %v7045 = vsel %vm6789, %v1211, 0.0
    %v7046 = vsel %vm6790, %v1212, 0.0
    %v7047 = vsel %vm6791, %v1213, 0.0
    %v7048 = vsel %vm6792, %v1214, 0.0
    %v7049 = vsel %vm6793, %v1215, 0.0
    %v7050 = vsel %vm6794, %v1216, 0.0
    %v7051 = vsel %vm6795, %v1217, 0.0
    %v7052 = vsel %vm6796, %v1218, 0.0
    %v7053 = vsel %vm6797, %v1219, 0.0
    %v7054 = vsel %vm6798, %v1220, 0.0
    %v7055 = vsel %vm6799, %v1221, 0.0
    %v7056 = vsel %vm6800, %v1222, 0.0
    %v7057 = vsel %vm6801, %v1223, 0.0
    %v7058 = vsel %vm6802, %v1224, 0.0
    %v7059 = vsel %vm6803, %v1225, 0.0
    %v7060 = vsel %vm6804, %v1226, 0.0
    %v7061 = vsel %vm6805, %v1227, 0.0
    %v7062 = vsel %vm6806, %v1228, 0.0
    %v7063 = vsel %vm6807, %v1229, 0.0
    %v7064 = vsel %vm6808, %v1230, 0.0
    %v7065 = vsel %vm6809, %v1231, 0.0
    %v7066 = vsel %vm6810, %v1232, 0.0
    %v7067 = vsel %vm6811, %v1233, 0.0
    %v7068 = vsel %vm6812, %v1234, 0.0
    %v7069 = vsel %vm6813, %v1235, 0.0
    %v7070 = vsel %vm6814, %v1236, 0.0
    %v7071 = vsel %vm6815, %v1237, 0.0
    %v7072 = vsel %vm6816, %v1238, 0.0
    %v7073 = vsel %vm6817, %v1239, 0.0
    %v7074 = vsel %vm6818, %v1240, 0.0
    %v7075 = vsel %vm6819, %v1241, 0.0
    %v7076 = vsel %vm6820, %v1242, 0.0
    %v7077 = vsel %vm6821, %v1243, 0.0
    %v7078 = vsel %vm6822, %v1244, 0.0
    %v7079 = vsel %vm6823, %v1245, 0.0
    %v7080 = vsel %vm6824, %v1246, 0.0
    %v7081 = vsel %vm6825, %v1247, 0.0
    %v7082 = vsel %vm6826, %v1248, 0.0
    %v7083 = vsel %vm6827, %v1249, 0.0
    %v7084 = vsel %vm6828, %v1250, 0.0
    %v7085 = vsel %vm6829, %v1251, 0.0
    %v7086 = vsel %vm6830, %v1252, 0.0
    %v7087 = vsel %vm6831, %v1253, 0.0
    %v7088 = vsel %vm6832, %v1254, 0.0
    %v7089 = vsel %vm6833, %v1255, 0.0
    %v7090 = vsel %vm6834, %v1256, 0.0
    %v7091 = vsel %vm6835, %v1257, 0.0
    %v7092 = vsel %vm6836, %v1258, 0.0
    %v7093 = vsel %vm6837, %v1259, 0.0
    %v7094 = vsel %vm6838, %v1260, 0.0
    %v7095 = vsel %vm6839, %v1261, 0.0
    %v7096 = vsel %vm6840, %v1262, 0.0
    %v7097 = vsel %vm6841, %v1263, 0.0
    %v7098 = vsel %vm6842, %v1264, 0.0
    %v7099 = vsel %vm6843, %v1265, 0.0
    %v7100 = vsel %vm6844, %v1266, 0.0
    %v7101 = vsel %vm6845, %v1267, 0.0
    %v7102 = vsel %vm6846, %v1268, 0.0
    %v7103 = vsel %vm6847, %v1269, 0.0
    %v7104 = vsel %vm6848, %v1270, 0.0
    %v7105 = vsel %vm6849, %v1271, 0.0
    %v7106 = vsel %vm6850, %v1272, 0.0
    %v7107 = vsel %vm6851, %v1273, 0.0
    %v7108 = vsel %vm6852, %v1274, 0.0
    %v7109 = vsel %vm6853, %v1275, 0.0
    %v7110 = vsel %vm6854, %v1276, 0.0
    %v7111 = vsel %vm6855, %v1277, 0.0
    %v7112 = vsel %vm6856, %v1278, 0.0
    %v7113 = vsel %vm6857, %v1279, 0.0
    %v7114 = vsel %vm6858, %v1280, 0.0
    %v7115 = vsel %vm6859, %v1281, 0.0
    %v7116 = vsel %vm6860, %v1282, 0.0
    %v7117 = vsel %vm6861, %v1283, 0.0
    %v7118 = vsel %vm6862, %v1284, 0.0
    %v7119 = vsel %vm6863, %v1285, 0.0
    %v7120 = vsel %vm6864, %v1286, 0.0
    %v7121 = vsel %vm6865, %v1287, 0.0
    %v7122 = vsel %vm6866, %v1288, 0.0
    %v7123 = vsel %vm6867, %v1289, 0.0
    %v7124 = vsel %vm6868, %v1290, 0.0
    %v7125 = vsel %vm6869, %v1291, 0.0
    %v7126 = vsel %vm6870, %v1292, 0.0
    %v7127 = vsel %vm6871, %v1293, 0.0
    %v7128 = vsel %vm6872, %v1294, 0.0
    %v7129 = vsel %vm6873, %v1295, 0.0
    %v7130 = vsel %vm6874, %v1296, 0.0
    %v7131 = vsel %vm6875, %v1297, 0.0
    %v7132 = vsel %vm6876, %v1298, 0.0
    %v7133 = vsel %vm6877, %v1299, 0.0
    %v7134 = vsel %vm6878, %v1300, 0.0
    %v7135 = vsel %vm6879, %v1301, 0.0
    %v7136 = vsel %vm6880, %v1302, 0.0
    %v7137 = vsel %vm6881, %v1303, 0.0
    %v7138 = vsel %vm6882, %v1304, 0.0
    %v7139 = vsel %vm6883, %v1305, 0.0
    %v7140 = vsel %vm6884, %v1306, 0.0
    %v7141 = vsel %vm6885, %v1307, 0.0
    %v7142 = vsel %vm6886, %v1308, 0.0
    %v7143 = vsel %vm6887, %v1309, 0.0
    %v7144 = vsel %vm6888, %v1310, 0.0
    %v7145 = vsel %vm6889, %v1311, 0.0
    %v7146 = vsel %vm6890, %v1312, 0.0
    %v7147 = vsel %vm6891, %v1313, 0.0
    %v7148 = vsel %vm6892, %v1314, 0.0
    %v7149 = vsel %vm6893, %v1315, 0.0
    %v7150 = vsel %vm6894, %v1316, 0.0
    %v7151 = vsel %vm6895, %v1317, 0.0
    %v7152 = vsel %vm6896, %v1318, 0.0
    %v7153 = vsel %vm6897, %v1319, 0.0
    %v7154 = vsel %vm6898, %v1320, 0.0
    %v7155 = vsel %vm6899, %v1321, 0.0
    %v7156 = vsel %vm6900, %v1322, 0.0
    %v7157 = vsel %vm6901, %v1323, 0.0
    %v7158 = vsel %vm6902, %v1324, 0.0
    %v7159 = vsel %vm6903, %v1325, 0.0
    %v7160 = vsel %vm6904, %v1326, 0.0
    %v7161 = vsel %vm6905, %v1327, 0.0
    %v7162 = vsel %vm6906, %v1328, 0.0
    %v7163 = vsel %vm6907, %v1329, 0.0
    %v7164 = vsel %vm6908, %v1330, 0.0
    %v7165 = vsel %vm6909, %v1331, 0.0
    %v7166 = vsel %vm6910, %v1332, 0.0
    %v7167 = vsel %vm6911, %v1333, 0.0
    %v7168 = vsel %vm6912, %v1334, 0.0
    %v7169 = vsel %vm6913, %v1335, 0.0
    %v7170 = vsel %vm6914, %v1336, 0.0
    %v7171 = vsel %vm6915, %v1337, 0.0
    %v7172 = vsel %vm6916, %v1338, 0.0
    %v7173 = vsel %vm6917, %v1339, 0.0
    %v7174 = vsel %vm6918, %v1340, 0.0
    %v7175 = vsel %vm6919, %v1341, 0.0
    %v7176 = vsel %vm6920, %v1342, 0.0
    %v7177 = vsel %vm6921, %v1343, 0.0
    %v7178 = vsel %vm6922, %v1344, 0.0
    %v7179 = vsel %vm6923, %v1345, 0.0
    %v7180 = vsel %vm6924, %v1346, 0.0
    %v7181 = vsel %vm6925, %v1347, 0.0
    %v7182 = vsel %vm6926, %v1348, 0.0
    %v7183 = vsel %vm6927, %v1349, 0.0
    %v7184 = vsel %vm6928, %v1350, 0.0
    %v7185 = vsel %vm6929, %v1351, 0.0
    %v7186 = vsel %vm6930, %v1352, 0.0
    %v7187 = vsel %vm6931, %v1353, 0.0
    %v7188 = vsel %vm6932, %v1354, 0.0
    %v7189 = vsel %vm6933, %v1355, 0.0
    %v7190 = vsel %vm6934, %v1356, 0.0
    %v7191 = vsel %vm6935, %v1357, 0.0
    %v7192 = vsel %vm6936, %v1358, 0.0
    %v7193 = vsel %vm6937, %v1359, 0.0
    %v7194 = vsel %vm6938, %v1360, 0.0
    %v7195 = vsel %vm6939, %v1361, 0.0
    %v7196 = vsel %vm6940, %v1362, 0.0
    %v7197 = vsel %vm6941, %v1363, 0.0
    %v7198 = vsel %vm6942, %v1364, 0.0
    %v7199 = vsel %vm6943, %v1365, 0.0
    %v7200 = vsel %vm6944, %v1366, 0.0
    %v7201 = vsel %vm6945, %v1367, 0.0
    %v7202 = vsel %vm6946, %v1368, 0.0
    %v7203 = vsel %vm6947, %v1369, 0.0
    %v7204 = vsel %vm6948, %v1370, 0.0
    %v7205 = vsel %vm6949, %v1371, 0.0
    %v7206 = vsel %vm6950, %v1372, 0.0
    %v7207 = vsel %vm6951, %v1373, 0.0
    %v7208 = vsel %vm6952, %v1374, 0.0
    %v7209 = vsel %vm6953, %v1375, 0.0
    %v7210 = vsel %vm6954, %v1376, 0.0
    %v7211 = vsel %vm6955, %v1377, 0.0
    %v7212 = vsel %vm6956, %v1378, 0.0
    %v7213 = vsel %vm6957, %v1379, 0.0
    %v7214 = vsel %vm6958, %v1380, 0.0
    %v7215 = vsel %vm6959, %v1381, 0.0
    %v7216 = vsel %vm6960, %v1382, 0.0
    %v7217 = vsel %vm6961, %v1383, 0.0
    %v7218 = vsel %vm6962, %v1384, 0.0
    %v7219 = vsel %vm6963, %v1385, 0.0
    %v7220 = vsel %vm6964, %v1386, 0.0
    %v7221 = vsel %vm6965, %v1387, 0.0
    %v7222 = vadd.f32 %v6966, %v6970
    %v7223 = vadd.f32 %v7222, %v6974
    %v7224 = vadd.f32 %v7223, %v6978
    %v7225 = vadd.f32 %v7224, %v6982
    %v7226 = vadd.f32 %v7225, %v6986
    %v7227 = vadd.f32 %v7226, %v6990
    %v7228 = vadd.f32 %v7227, %v6994
    %v7229 = vadd.f32 %v7228, %v6998
    %v7230 = vadd.f32 %v7229, %v7002
    %v7231 = vadd.f32 %v7230, %v7006
    %v7232 = vadd.f32 %v7231, %v7010
    %v7233 = vadd.f32 %v7232, %v7014
    %v7234 = vadd.f32 %v7233, %v7018
    %v7235 = vadd.f32 %v7234, %v7022
    %v7236 = vadd.f32 %v7235, %v7026
    %v7237 = vadd.f32 %v7236, %v7030
    %v7238 = vadd.f32 %v7237, %v7034
    %v7239 = vadd.f32 %v7238, %v7038
    %v7240 = vadd.f32 %v7239, %v7042
    %v7241 = vadd.f32 %v7240, %v7046
    %v7242 = vadd.f32 %v7241, %v7050
    %v7243 = vadd.f32 %v7242, %v7054
    %v7244 = vadd.f32 %v7243, %v7058
    %v7245 = vadd.f32 %v7244, %v7062
    %v7246 = vadd.f32 %v7245, %v7066
    %v7247 = vadd.f32 %v7246, %v7070
    %v7248 = vadd.f32 %v7247, %v7074
    %v7249 = vadd.f32 %v7248, %v7078
    %v7250 = vadd.f32 %v7249, %v7082
    %v7251 = vadd.f32 %v7250, %v7086
    %v7252 = vadd.f32 %v7251, %v7090
    %v7253 = vadd.f32 %v7252, %v7094
    %v7254 = vadd.f32 %v7253, %v7098
    %v7255 = vadd.f32 %v7254, %v7102
    %v7256 = vadd.f32 %v7255, %v7106
    %v7257 = vadd.f32 %v7256, %v7110
    %v7258 = vadd.f32 %v7257, %v7114
    %v7259 = vadd.f32 %v7258, %v7118
    %v7260 = vadd.f32 %v7259, %v7122
    %v7261 = vadd.f32 %v7260, %v7126
    %v7262 = vadd.f32 %v7261, %v7130
    %v7263 = vadd.f32 %v7262, %v7134
    %v7264 = vadd.f32 %v7263, %v7138
    %v7265 = vadd.f32 %v7264, %v7142
    %v7266 = vadd.f32 %v7265, %v7146
    %v7267 = vadd.f32 %v7266, %v7150
    %v7268 = vadd.f32 %v7267, %v7154
    %v7269 = vadd.f32 %v7268, %v7158
    %v7270 = vadd.f32 %v7269, %v7162
    %v7271 = vadd.f32 %v7270, %v7166
    %v7272 = vadd.f32 %v7271, %v7170
    %v7273 = vadd.f32 %v7272, %v7174
    %v7274 = vadd.f32 %v7273, %v7178
    %v7275 = vadd.f32 %v7274, %v7182
    %v7276 = vadd.f32 %v7275, %v7186
    %v7277 = vadd.f32 %v7276, %v7190
    %v7278 = vadd.f32 %v7277, %v7194
    %v7279 = vadd.f32 %v7278, %v7198
    %v7280 = vadd.f32 %v7279, %v7202
    %v7281 = vadd.f32 %v7280, %v7206
    %v7282 = vadd.f32 %v7281, %v7210
    %v7283 = vadd.f32 %v7282, %v7214
    %v7284 = vadd.f32 %v7283, %v7218
    %v7285 = vrot.slane %v7284, 4
    %v7286 = vadd.f32 %v7284, %v7285
    %v7287 = vrot.slane %v7286, 2
    %v7288 = vadd.f32 %v7286, %v7287
    %v7289 = vrot.slane %v7288, 1
    %v7290 = vadd.f32 %v7288, %v7289
    %v7291 = vadd.f32 %v6967, %v6971
    %v7292 = vadd.f32 %v7291, %v6975
    %v7293 = vadd.f32 %v7292, %v6979
    %v7294 = vadd.f32 %v7293, %v6983
    %v7295 = vadd.f32 %v7294, %v6987
    %v7296 = vadd.f32 %v7295, %v6991
    %v7297 = vadd.f32 %v7296, %v6995
    %v7298 = vadd.f32 %v7297, %v6999
    %v7299 = vadd.f32 %v7298, %v7003
    %v7300 = vadd.f32 %v7299, %v7007
    %v7301 = vadd.f32 %v7300, %v7011
    %v7302 = vadd.f32 %v7301, %v7015
    %v7303 = vadd.f32 %v7302, %v7019
    %v7304 = vadd.f32 %v7303, %v7023
    %v7305 = vadd.f32 %v7304, %v7027
    %v7306 = vadd.f32 %v7305, %v7031
    %v7307 = vadd.f32 %v7306, %v7035
    %v7308 = vadd.f32 %v7307, %v7039
    %v7309 = vadd.f32 %v7308, %v7043
    %v7310 = vadd.f32 %v7309, %v7047
    %v7311 = vadd.f32 %v7310, %v7051
    %v7312 = vadd.f32 %v7311, %v7055
    %v7313 = vadd.f32 %v7312, %v7059
    %v7314 = vadd.f32 %v7313, %v7063
    %v7315 = vadd.f32 %v7314, %v7067
    %v7316 = vadd.f32 %v7315, %v7071
    %v7317 = vadd.f32 %v7316, %v7075
    %v7318 = vadd.f32 %v7317, %v7079
    %v7319 = vadd.f32 %v7318, %v7083
    %v7320 = vadd.f32 %v7319, %v7087
    %v7321 = vadd.f32 %v7320, %v7091
    %v7322 = vadd.f32 %v7321, %v7095
    %v7323 = vadd.f32 %v7322, %v7099
    %v7324 = vadd.f32 %v7323, %v7103
    %v7325 = vadd.f32 %v7324, %v7107
    %v7326 = vadd.f32 %v7325, %v7111
    %v7327 = vadd.f32 %v7326, %v7115
    %v7328 = vadd.f32 %v7327, %v7119
    %v7329 = vadd.f32 %v7328, %v7123
    %v7330 = vadd.f32 %v7329, %v7127
    %v7331 = vadd.f32 %v7330, %v7131
    %v7332 = vadd.f32 %v7331, %v7135
    %v7333 = vadd.f32 %v7332, %v7139
    %v7334 = vadd.f32 %v7333, %v7143
    %v7335 = vadd.f32 %v7334, %v7147
    %v7336 = vadd.f32 %v7335, %v7151
    %v7337 = vadd.f32 %v7336, %v7155
    %v7338 = vadd.f32 %v7337, %v7159
    %v7339 = vadd.f32 %v7338, %v7163
    %v7340 = vadd.f32 %v7339, %v7167
    %v7341 = vadd.f32 %v7340, %v7171
    %v7342 = vadd.f32 %v7341, %v7175
    %v7343 = vadd.f32 %v7342, %v7179
    %v7344 = vadd.f32 %v7343, %v7183
    %v7345 = vadd.f32 %v7344, %v7187
    %v7346 = vadd.f32 %v7345, %v7191
    %v7347 = vadd.f32 %v7346, %v7195
    %v7348 = vadd.f32 %v7347, %v7199
    %v7349 = vadd.f32 %v7348, %v7203
    %v7350 = vadd.f32 %v7349, %v7207
    %v7351 = vadd.f32 %v7350, %v7211
    %v7352 = vadd.f32 %v7351, %v7215
    %v7353 = vadd.f32 %v7352, %v7219
    %v7354 = vrot.slane %v7353, 4
    %v7355 = vadd.f32 %v7353, %v7354
    %v7356 = vrot.slane %v7355, 2
    %v7357 = vadd.f32 %v7355, %v7356
    %v7358 = vrot.slane %v7357, 1
    %v7359 = vadd.f32 %v7357, %v7358
    %v7360 = vadd.f32 %v6968, %v6972
    %v7361 = vadd.f32 %v7360, %v6976
    %v7362 = vadd.f32 %v7361, %v6980
    %v7363 = vadd.f32 %v7362, %v6984
    %v7364 = vadd.f32 %v7363, %v6988
    %v7365 = vadd.f32 %v7364, %v6992
    %v7366 = vadd.f32 %v7365, %v6996
    %v7367 = vadd.f32 %v7366, %v7000
    %v7368 = vadd.f32 %v7367, %v7004
    %v7369 = vadd.f32 %v7368, %v7008
    %v7370 = vadd.f32 %v7369, %v7012
    %v7371 = vadd.f32 %v7370, %v7016
    %v7372 = vadd.f32 %v7371, %v7020
    %v7373 = vadd.f32 %v7372, %v7024
    %v7374 = vadd.f32 %v7373, %v7028
    %v7375 = vadd.f32 %v7374, %v7032
    %v7376 = vadd.f32 %v7375, %v7036
    %v7377 = vadd.f32 %v7376, %v7040
    %v7378 = vadd.f32 %v7377, %v7044
    %v7379 = vadd.f32 %v7378, %v7048
    %v7380 = vadd.f32 %v7379, %v7052
    %v7381 = vadd.f32 %v7380, %v7056
    %v7382 = vadd.f32 %v7381, %v7060
    %v7383 = vadd.f32 %v7382, %v7064
    %v7384 = vadd.f32 %v7383, %v7068
    %v7385 = vadd.f32 %v7384, %v7072
    %v7386 = vadd.f32 %v7385, %v7076
    %v7387 = vadd.f32 %v7386, %v7080
    %v7388 = vadd.f32 %v7387, %v7084
    %v7389 = vadd.f32 %v7388, %v7088
    %v7390 = vadd.f32 %v7389, %v7092
    %v7391 = vadd.f32 %v7390, %v7096
    %v7392 = vadd.f32 %v7391, %v7100
    %v7393 = vadd.f32 %v7392, %v7104
    %v7394 = vadd.f32 %v7393, %v7108
    %v7395 = vadd.f32 %v7394, %v7112
    %v7396 = vadd.f32 %v7395, %v7116
    %v7397 = vadd.f32 %v7396, %v7120
    %v7398 = vadd.f32 %v7397, %v7124
    %v7399 = vadd.f32 %v7398, %v7128
    %v7400 = vadd.f32 %v7399, %v7132
    %v7401 = vadd.f32 %v7400, %v7136
    %v7402 = vadd.f32 %v7401, %v7140
    %v7403 = vadd.f32 %v7402, %v7144
    %v7404 = vadd.f32 %v7403, %v7148
    %v7405 = vadd.f32 %v7404, %v7152
    %v7406 = vadd.f32 %v7405, %v7156
    %v7407 = vadd.f32 %v7406, %v7160
    %v7408 = vadd.f32 %v7407, %v7164
    %v7409 = vadd.f32 %v7408, %v7168
    %v7410 = vadd.f32 %v7409, %v7172
    %v7411 = vadd.f32 %v7410, %v7176
    %v7412 = vadd.f32 %v7411, %v7180
    %v7413 = vadd.f32 %v7412, %v7184
    %v7414 = vadd.f32 %v7413, %v7188
    %v7415 = vadd.f32 %v7414, %v7192
    %v7416 = vadd.f32 %v7415, %v7196
    %v7417 = vadd.f32 %v7416, %v7200
    %v7418 = vadd.f32 %v7417, %v7204
    %v7419 = vadd.f32 %v7418, %v7208
    %v7420 = vadd.f32 %v7419, %v7212
    %v7421 = vadd.f32 %v7420, %v7216
    %v7422 = vadd.f32 %v7421, %v7220
    %v7423 = vrot.slane %v7422, 4
    %v7424 = vadd.f32 %v7422, %v7423
    %v7425 = vrot.slane %v7424, 2
    %v7426 = vadd.f32 %v7424, %v7425
    %v7427 = vrot.slane %v7426, 1
    %v7428 = vadd.f32 %v7426, %v7427
    %v7429 = vadd.f32 %v6969, %v6973
    %v7430 = vadd.f32 %v7429, %v6977
    %v7431 = vadd.f32 %v7430, %v6981
    %v7432 = vadd.f32 %v7431, %v6985
    %v7433 = vadd.f32 %v7432, %v6989
    %v7434 = vadd.f32 %v7433, %v6993
    %v7435 = vadd.f32 %v7434, %v6997
    %v7436 = vadd.f32 %v7435, %v7001
    %v7437 = vadd.f32 %v7436, %v7005
    %v7438 = vadd.f32 %v7437, %v7009
    %v7439 = vadd.f32 %v7438, %v7013
    %v7440 = vadd.f32 %v7439, %v7017
    %v7441 = vadd.f32 %v7440, %v7021
    %v7442 = vadd.f32 %v7441, %v7025
    %v7443 = vadd.f32 %v7442, %v7029
    %v7444 = vadd.f32 %v7443, %v7033
    %v7445 = vadd.f32 %v7444, %v7037
    %v7446 = vadd.f32 %v7445, %v7041
    %v7447 = vadd.f32 %v7446, %v7045
    %v7448 = vadd.f32 %v7447, %v7049
    %v7449 = vadd.f32 %v7448, %v7053
    %v7450 = vadd.f32 %v7449, %v7057
    %v7451 = vadd.f32 %v7450, %v7061
    %v7452 = vadd.f32 %v7451, %v7065
    %v7453 = vadd.f32 %v7452, %v7069
    %v7454 = vadd.f32 %v7453, %v7073
    %v7455 = vadd.f32 %v7454, %v7077
    %v7456 = vadd.f32 %v7455, %v7081
    %v7457 = vadd.f32 %v7456, %v7085
    %v7458 = vadd.f32 %v7457, %v7089
    %v7459 = vadd.f32 %v7458, %v7093
    %v7460 = vadd.f32 %v7459, %v7097
    %v7461 = vadd.f32 %v7460, %v7101
    %v7462 = vadd.f32 %v7461, %v7105
    %v7463 = vadd.f32 %v7462, %v7109
    %v7464 = vadd.f32 %v7463, %v7113
    %v7465 = vadd.f32 %v7464, %v7117
    %v7466 = vadd.f32 %v7465, %v7121
    %v7467 = vadd.f32 %v7466, %v7125
    %v7468 = vadd.f32 %v7467, %v7129
    %v7469 = vadd.f32 %v7468, %v7133
    %v7470 = vadd.f32 %v7469, %v7137
    %v7471 = vadd.f32 %v7470, %v7141
    %v7472 = vadd.f32 %v7471, %v7145
    %v7473 = vadd.f32 %v7472, %v7149
    %v7474 = vadd.f32 %v7473, %v7153
    %v7475 = vadd.f32 %v7474, %v7157
    %v7476 = vadd.f32 %v7475, %v7161
    %v7477 = vadd.f32 %v7476, %v7165
    %v7478 = vadd.f32 %v7477, %v7169
    %v7479 = vadd.f32 %v7478, %v7173
    %v7480 = vadd.f32 %v7479, %v7177
    %v7481 = vadd.f32 %v7480, %v7181
    %v7482 = vadd.f32 %v7481, %v7185
    %v7483 = vadd.f32 %v7482, %v7189
    %v7484 = vadd.f32 %v7483, %v7193
    %v7485 = vadd.f32 %v7484, %v7197
    %v7486 = vadd.f32 %v7485, %v7201
    %v7487 = vadd.f32 %v7486, %v7205
    %v7488 = vadd.f32 %v7487, %v7209
    %v7489 = vadd.f32 %v7488, %v7213
    %v7490 = vadd.f32 %v7489, %v7217
    %v7491 = vadd.f32 %v7490, %v7221
    %v7492 = vrot.slane %v7491, 4
    %v7493 = vadd.f32 %v7491, %v7492
    %v7494 = vrot.slane %v7493, 2
    %v7495 = vadd.f32 %v7493, %v7494
    %v7496 = vrot.slane %v7495, 1
    %v7497 = vadd.f32 %v7495, %v7496
    %v7498 = vld [vmem:[#allocation3] sm:$0x1]
    %v7499 = vsub.f32 %v6625, %v7290
    %v7500 = vsub.f32 %v6626, %v7359
    %v7501 = vsub.f32 %v6627, %v7428
    %v7502 = vsub.f32 %v6628, %v7497
    %v7503 = vadd.f32 %v7499, %v7500
    %v7504 = vadd.f32 %v7503, %v7501
    %v7505 = vadd.f32 %v7504, %v7502
    %7506 = vadd.xlane.f32.xlu0 %v7505
    %v7507 = vpop.xlane.xlu0 %7506
    %v7508 = vadd.f32 %v7498, %v7507
    %vm7509 = vcmask 0
    %7510 = vst.msk [vmem:[#allocation3] sm:$0x1] %vm7509, %v7508
    // Predicated region
    $region26: #{tpu_custom_call.1} parent=1 // pred_check
      %p7511 = pneg %p32
    $region27: #{tpu_custom_call.1} parent=1 // pred_check_branch
      %7513 = sbr.rel (%p7511) target = $region29
    $region28: #{tpu_custom_call.1} parent=1 // pred_region
      %v7514 = vld [vmem:[#allocation2] sm:$0xff]
      %v7515 = vld [vmem:[#allocation2 + $0x8] sm:$0xff]
      %v7516 = vld [vmem:[#allocation2 + $0x10] sm:$0xff]
      %v7517 = vld [vmem:[#allocation2 + $0x18] sm:$0xff]
      %v7518 = vld [vmem:[#allocation2 + $0x20] sm:$0xff]
      %v7519 = vld [vmem:[#allocation2 + $0x28] sm:$0xff]
      %v7520 = vld [vmem:[#allocation2 + $0x30] sm:$0xff]
      %v7521 = vld [vmem:[#allocation2 + $0x38] sm:$0xff]
      %v7522 = vld [vmem:[#allocation2 + $0x40] sm:$0xff]
      %v7523 = vld [vmem:[#allocation2 + $0x48] sm:$0xff]
      %v7524 = vld [vmem:[#allocation2 + $0x50] sm:$0xff]
      %v7525 = vld [vmem:[#allocation2 + $0x58] sm:$0xff]
      %v7526 = vld [vmem:[#allocation2 + $0x60] sm:$0xff]
      %v7527 = vld [vmem:[#allocation2 + $0x68] sm:$0xff]
      %v7528 = vld [vmem:[#allocation2 + $0x70] sm:$0xff]
      %v7529 = vld [vmem:[#allocation2 + $0x78] sm:$0xff]
      %v7530 = vld [vmem:[#allocation2 + $0x80] sm:$0xff]
      %v7531 = vld [vmem:[#allocation2 + $0x88] sm:$0xff]
      %v7532 = vld [vmem:[#allocation2 + $0x90] sm:$0xff]
      %v7533 = vld [vmem:[#allocation2 + $0x98] sm:$0xff]
      %v7534 = vld [vmem:[#allocation2 + $0xa0] sm:$0xff]
      %v7535 = vld [vmem:[#allocation2 + $0xa8] sm:$0xff]
      %v7536 = vld [vmem:[#allocation2 + $0xb0] sm:$0xff]
      %v7537 = vld [vmem:[#allocation2 + $0xb8] sm:$0xff]
      %v7538 = vld [vmem:[#allocation2 + $0xc0] sm:$0xff]
      %v7539 = vld [vmem:[#allocation2 + $0xc8] sm:$0xff]
      %v7540 = vld [vmem:[#allocation2 + $0xd0] sm:$0xff]
      %v7541 = vld [vmem:[#allocation2 + $0xd8] sm:$0xff]
      %v7542 = vld [vmem:[#allocation2 + $0xe0] sm:$0xff]
      %v7543 = vld [vmem:[#allocation2 + $0xe8] sm:$0xff]
      %v7544 = vld [vmem:[#allocation2 + $0xf0] sm:$0xff]
      %v7545 = vld [vmem:[#allocation2 + $0xf8] sm:$0xff]
      %v7546 = vld [vmem:[#allocation2 + $0x100] sm:$0xff]
      %v7547 = vld [vmem:[#allocation2 + $0x108] sm:$0xff]
      %v7548 = vld [vmem:[#allocation2 + $0x110] sm:$0xff]
      %v7549 = vld [vmem:[#allocation2 + $0x118] sm:$0xff]
      %v7550 = vld [vmem:[#allocation2 + $0x120] sm:$0xff]
      %v7551 = vld [vmem:[#allocation2 + $0x128] sm:$0xff]
      %v7552 = vld [vmem:[#allocation2 + $0x130] sm:$0xff]
      %v7553 = vld [vmem:[#allocation2 + $0x138] sm:$0xff]
      %v7554 = vld [vmem:[#allocation2 + $0x140] sm:$0xff]
      %v7555 = vld [vmem:[#allocation2 + $0x148] sm:$0xff]
      %v7556 = vld [vmem:[#allocation2 + $0x150] sm:$0xff]
      %v7557 = vld [vmem:[#allocation2 + $0x158] sm:$0xff]
      %v7558 = vld [vmem:[#allocation2 + $0x160] sm:$0xff]
      %v7559 = vld [vmem:[#allocation2 + $0x168] sm:$0xff]
      %v7560 = vld [vmem:[#allocation2 + $0x170] sm:$0xff]
      %v7561 = vld [vmem:[#allocation2 + $0x178] sm:$0xff]
      %v7562 = vld [vmem:[#allocation2 + $0x180] sm:$0xff]
      %v7563 = vld [vmem:[#allocation2 + $0x188] sm:$0xff]
      %v7564 = vld [vmem:[#allocation2 + $0x190] sm:$0xff]
      %v7565 = vld [vmem:[#allocation2 + $0x198] sm:$0xff]
      %v7566 = vld [vmem:[#allocation2 + $0x1a0] sm:$0xff]
      %v7567 = vld [vmem:[#allocation2 + $0x1a8] sm:$0xff]
      %v7568 = vld [vmem:[#allocation2 + $0x1b0] sm:$0xff]
      %v7569 = vld [vmem:[#allocation2 + $0x1b8] sm:$0xff]
      %v7570 = vld [vmem:[#allocation2 + $0x1c0] sm:$0xff]
      %v7571 = vld [vmem:[#allocation2 + $0x1c8] sm:$0xff]
      %v7572 = vld [vmem:[#allocation2 + $0x1d0] sm:$0xff]
      %v7573 = vld [vmem:[#allocation2 + $0x1d8] sm:$0xff]
      %v7574 = vld [vmem:[#allocation2 + $0x1e0] sm:$0xff]
      %v7575 = vld [vmem:[#allocation2 + $0x1e8] sm:$0xff]
      %v7576 = vld [vmem:[#allocation2 + $0x1f0] sm:$0xff]
      %v7577 = vld [vmem:[#allocation2 + $0x1f8] sm:$0xff]
      %v7578 = vlog2.pop %v7514
      %v7579 = vmul.f32 %v7578, 0.6931472
      %v7580 = vlog2.pop %v7515
      %v7581 = vmul.f32 %v7580, 0.6931472
      %v7582 = vlog2.pop %v7516
      %v7583 = vmul.f32 %v7582, 0.6931472
      %v7584 = vlog2.pop %v7517
      %v7585 = vmul.f32 %v7584, 0.6931472
      %v7586 = vlog2.pop %v7518
      %v7587 = vmul.f32 %v7586, 0.6931472
      %v7588 = vlog2.pop %v7519
      %v7589 = vmul.f32 %v7588, 0.6931472
      %v7590 = vlog2.pop %v7520
      %v7591 = vmul.f32 %v7590, 0.6931472
      %v7592 = vlog2.pop %v7521
      %v7593 = vmul.f32 %v7592, 0.6931472
      %v7594 = vlog2.pop %v7522
      %v7595 = vmul.f32 %v7594, 0.6931472
      %v7596 = vlog2.pop %v7523
      %v7597 = vmul.f32 %v7596, 0.6931472
      %v7598 = vlog2.pop %v7524
      %v7599 = vmul.f32 %v7598, 0.6931472
      %v7600 = vlog2.pop %v7525
      %v7601 = vmul.f32 %v7600, 0.6931472
      %v7602 = vlog2.pop %v7526
      %v7603 = vmul.f32 %v7602, 0.6931472
      %v7604 = vlog2.pop %v7527
      %v7605 = vmul.f32 %v7604, 0.6931472
      %v7606 = vlog2.pop %v7528
      %v7607 = vmul.f32 %v7606, 0.6931472
      %v7608 = vlog2.pop %v7529
      %v7609 = vmul.f32 %v7608, 0.6931472
      %v7610 = vlog2.pop %v7530
      %v7611 = vmul.f32 %v7610, 0.6931472
      %v7612 = vlog2.pop %v7531
      %v7613 = vmul.f32 %v7612, 0.6931472
      %v7614 = vlog2.pop %v7532
      %v7615 = vmul.f32 %v7614, 0.6931472
      %v7616 = vlog2.pop %v7533
      %v7617 = vmul.f32 %v7616, 0.6931472
      %v7618 = vlog2.pop %v7534
      %v7619 = vmul.f32 %v7618, 0.6931472
      %v7620 = vlog2.pop %v7535
      %v7621 = vmul.f32 %v7620, 0.6931472
      %v7622 = vlog2.pop %v7536
      %v7623 = vmul.f32 %v7622, 0.6931472
      %v7624 = vlog2.pop %v7537
      %v7625 = vmul.f32 %v7624, 0.6931472
      %v7626 = vlog2.pop %v7538
      %v7627 = vmul.f32 %v7626, 0.6931472
      %v7628 = vlog2.pop %v7539
      %v7629 = vmul.f32 %v7628, 0.6931472
      %v7630 = vlog2.pop %v7540
      %v7631 = vmul.f32 %v7630, 0.6931472
      %v7632 = vlog2.pop %v7541
      %v7633 = vmul.f32 %v7632, 0.6931472
      %v7634 = vlog2.pop %v7542
      %v7635 = vmul.f32 %v7634, 0.6931472
      %v7636 = vlog2.pop %v7543
      %v7637 = vmul.f32 %v7636, 0.6931472
      %v7638 = vlog2.pop %v7544
      %v7639 = vmul.f32 %v7638, 0.6931472
      %v7640 = vlog2.pop %v7545
      %v7641 = vmul.f32 %v7640, 0.6931472
      %v7642 = vlog2.pop %v7546
      %v7643 = vmul.f32 %v7642, 0.6931472
      %v7644 = vlog2.pop %v7547
      %v7645 = vmul.f32 %v7644, 0.6931472
      %v7646 = vlog2.pop %v7548
      %v7647 = vmul.f32 %v7646, 0.6931472
      %v7648 = vlog2.pop %v7549
      %v7649 = vmul.f32 %v7648, 0.6931472
      %v7650 = vlog2.pop %v7550
      %v7651 = vmul.f32 %v7650, 0.6931472
      %v7652 = vlog2.pop %v7551
      %v7653 = vmul.f32 %v7652, 0.6931472
      %v7654 = vlog2.pop %v7552
      %v7655 = vmul.f32 %v7654, 0.6931472
      %v7656 = vlog2.pop %v7553
      %v7657 = vmul.f32 %v7656, 0.6931472
      %v7658 = vlog2.pop %v7554
      %v7659 = vmul.f32 %v7658, 0.6931472
      %v7660 = vlog2.pop %v7555
      %v7661 = vmul.f32 %v7660, 0.6931472
      %v7662 = vlog2.pop %v7556
      %v7663 = vmul.f32 %v7662, 0.6931472
      %v7664 = vlog2.pop %v7557
      %v7665 = vmul.f32 %v7664, 0.6931472
      %v7666 = vlog2.pop %v7558
      %v7667 = vmul.f32 %v7666, 0.6931472
      %v7668 = vlog2.pop %v7559
      %v7669 = vmul.f32 %v7668, 0.6931472
      %v7670 = vlog2.pop %v7560
      %v7671 = vmul.f32 %v7670, 0.6931472
      %v7672 = vlog2.pop %v7561
      %v7673 = vmul.f32 %v7672, 0.6931472
      %v7674 = vlog2.pop %v7562
      %v7675 = vmul.f32 %v7674, 0.6931472
      %v7676 = vlog2.pop %v7563
      %v7677 = vmul.f32 %v7676, 0.6931472
      %v7678 = vlog2.pop %v7564
      %v7679 = vmul.f32 %v7678, 0.6931472
      %v7680 = vlog2.pop %v7565
      %v7681 = vmul.f32 %v7680, 0.6931472
      %v7682 = vlog2.pop %v7566
      %v7683 = vmul.f32 %v7682, 0.6931472
      %v7684 = vlog2.pop %v7567
      %v7685 = vmul.f32 %v7684, 0.6931472
      %v7686 = vlog2.pop %v7568
      %v7687 = vmul.f32 %v7686, 0.6931472
      %v7688 = vlog2.pop %v7569
      %v7689 = vmul.f32 %v7688, 0.6931472
      %v7690 = vlog2.pop %v7570
      %v7691 = vmul.f32 %v7690, 0.6931472
      %v7692 = vlog2.pop %v7571
      %v7693 = vmul.f32 %v7692, 0.6931472
      %v7694 = vlog2.pop %v7572
      %v7695 = vmul.f32 %v7694, 0.6931472
      %v7696 = vlog2.pop %v7573
      %v7697 = vmul.f32 %v7696, 0.6931472
      %v7698 = vlog2.pop %v7574
      %v7699 = vmul.f32 %v7698, 0.6931472
      %v7700 = vlog2.pop %v7575
      %v7701 = vmul.f32 %v7700, 0.6931472
      %v7702 = vlog2.pop %v7576
      %v7703 = vmul.f32 %v7702, 0.6931472
      %v7704 = vlog2.pop %v7577
      %v7705 = vmul.f32 %v7704, 0.6931472
      %7770 = vrot.lane.b32.xlu0 %v7579, 127
      %v7771 = vpop.permute.xlu0 %7770
      %7772 = vrot.lane.b32.xlu0 %v7581, 127
      %v7773 = vpop.permute.xlu0 %7772
      %7774 = vrot.lane.b32.xlu0 %v7583, 127
      %v7775 = vpop.permute.xlu0 %7774
      %7776 = vrot.lane.b32.xlu0 %v7585, 127
      %v7777 = vpop.permute.xlu0 %7776
      %7778 = vrot.lane.b32.xlu0 %v7587, 127
      %v7779 = vpop.permute.xlu0 %7778
      %7780 = vrot.lane.b32.xlu0 %v7589, 127
      %v7781 = vpop.permute.xlu0 %7780
      %7782 = vrot.lane.b32.xlu0 %v7591, 127
      %v7783 = vpop.permute.xlu0 %7782
      %7784 = vrot.lane.b32.xlu0 %v7593, 127
      %v7785 = vpop.permute.xlu0 %7784
      %7786 = vrot.lane.b32.xlu0 %v7595, 127
      %v7787 = vpop.permute.xlu0 %7786
      %7788 = vrot.lane.b32.xlu0 %v7597, 127
      %v7789 = vpop.permute.xlu0 %7788
      %7790 = vrot.lane.b32.xlu0 %v7599, 127
      %v7791 = vpop.permute.xlu0 %7790
      %7792 = vrot.lane.b32.xlu0 %v7601, 127
      %v7793 = vpop.permute.xlu0 %7792
      %7794 = vrot.lane.b32.xlu0 %v7603, 127
      %v7795 = vpop.permute.xlu0 %7794
      %7796 = vrot.lane.b32.xlu0 %v7605, 127
      %v7797 = vpop.permute.xlu0 %7796
      %7798 = vrot.lane.b32.xlu0 %v7607, 127
      %v7799 = vpop.permute.xlu0 %7798
      %7800 = vrot.lane.b32.xlu0 %v7609, 127
      %v7801 = vpop.permute.xlu0 %7800
      %7802 = vrot.lane.b32.xlu0 %v7611, 127
      %v7803 = vpop.permute.xlu0 %7802
      %7804 = vrot.lane.b32.xlu0 %v7613, 127
      %v7805 = vpop.permute.xlu0 %7804
      %7806 = vrot.lane.b32.xlu0 %v7615, 127
      %v7807 = vpop.permute.xlu0 %7806
      %7808 = vrot.lane.b32.xlu0 %v7617, 127
      %v7809 = vpop.permute.xlu0 %7808
      %7810 = vrot.lane.b32.xlu0 %v7619, 127
      %v7811 = vpop.permute.xlu0 %7810
      %7812 = vrot.lane.b32.xlu0 %v7621, 127
      %v7813 = vpop.permute.xlu0 %7812
      %7814 = vrot.lane.b32.xlu0 %v7623, 127
      %v7815 = vpop.permute.xlu0 %7814
      %7816 = vrot.lane.b32.xlu0 %v7625, 127
      %v7817 = vpop.permute.xlu0 %7816
      %7818 = vrot.lane.b32.xlu0 %v7627, 127
      %v7819 = vpop.permute.xlu0 %7818
      %7820 = vrot.lane.b32.xlu0 %v7629, 127
      %v7821 = vpop.permute.xlu0 %7820
      %7822 = vrot.lane.b32.xlu0 %v7631, 127
      %v7823 = vpop.permute.xlu0 %7822
      %7824 = vrot.lane.b32.xlu0 %v7633, 127
      %v7825 = vpop.permute.xlu0 %7824
      %7826 = vrot.lane.b32.xlu0 %v7635, 127
      %v7827 = vpop.permute.xlu0 %7826
      %7828 = vrot.lane.b32.xlu0 %v7637, 127
      %v7829 = vpop.permute.xlu0 %7828
      %7830 = vrot.lane.b32.xlu0 %v7639, 127
      %v7831 = vpop.permute.xlu0 %7830
      %7832 = vrot.lane.b32.xlu0 %v7641, 127
      %v7833 = vpop.permute.xlu0 %7832
      %7834 = vrot.lane.b32.xlu0 %v7643, 127
      %v7835 = vpop.permute.xlu0 %7834
      %7836 = vrot.lane.b32.xlu0 %v7645, 127
      %v7837 = vpop.permute.xlu0 %7836
      %7838 = vrot.lane.b32.xlu0 %v7647, 127
      %v7839 = vpop.permute.xlu0 %7838
      %7840 = vrot.lane.b32.xlu0 %v7649, 127
      %v7841 = vpop.permute.xlu0 %7840
      %7842 = vrot.lane.b32.xlu0 %v7651, 127
      %v7843 = vpop.permute.xlu0 %7842
      %7844 = vrot.lane.b32.xlu0 %v7653, 127
      %v7845 = vpop.permute.xlu0 %7844
      %7846 = vrot.lane.b32.xlu0 %v7655, 127
      %v7847 = vpop.permute.xlu0 %7846
      %7848 = vrot.lane.b32.xlu0 %v7657, 127
      %v7849 = vpop.permute.xlu0 %7848
      %7850 = vrot.lane.b32.xlu0 %v7659, 127
      %v7851 = vpop.permute.xlu0 %7850
      %7852 = vrot.lane.b32.xlu0 %v7661, 127
      %v7853 = vpop.permute.xlu0 %7852
      %7854 = vrot.lane.b32.xlu0 %v7663, 127
      %v7855 = vpop.permute.xlu0 %7854
      %7856 = vrot.lane.b32.xlu0 %v7665, 127
      %v7857 = vpop.permute.xlu0 %7856
      %7858 = vrot.lane.b32.xlu0 %v7667, 127
      %v7859 = vpop.permute.xlu0 %7858
      %7860 = vrot.lane.b32.xlu0 %v7669, 127
      %v7861 = vpop.permute.xlu0 %7860
      %7862 = vrot.lane.b32.xlu0 %v7671, 127
      %v7863 = vpop.permute.xlu0 %7862
      %7864 = vrot.lane.b32.xlu0 %v7673, 127
      %v7865 = vpop.permute.xlu0 %7864
      %7866 = vrot.lane.b32.xlu0 %v7675, 127
      %v7867 = vpop.permute.xlu0 %7866
      %7868 = vrot.lane.b32.xlu0 %v7677, 127
      %v7869 = vpop.permute.xlu0 %7868
      %7870 = vrot.lane.b32.xlu0 %v7679, 127
      %v7871 = vpop.permute.xlu0 %7870
      %7872 = vrot.lane.b32.xlu0 %v7681, 127
      %v7873 = vpop.permute.xlu0 %7872
      %7874 = vrot.lane.b32.xlu0 %v7683, 127
      %v7875 = vpop.permute.xlu0 %7874
      %7876 = vrot.lane.b32.xlu0 %v7685, 127
      %v7877 = vpop.permute.xlu0 %7876
      %7878 = vrot.lane.b32.xlu0 %v7687, 127
      %v7879 = vpop.permute.xlu0 %7878
      %7880 = vrot.lane.b32.xlu0 %v7689, 127
      %v7881 = vpop.permute.xlu0 %7880
      %7882 = vrot.lane.b32.xlu0 %v7691, 127
      %v7883 = vpop.permute.xlu0 %7882
      %7884 = vrot.lane.b32.xlu0 %v7693, 127
      %v7885 = vpop.permute.xlu0 %7884
      %7886 = vrot.lane.b32.xlu0 %v7695, 127
      %v7887 = vpop.permute.xlu0 %7886
      %7888 = vrot.lane.b32.xlu0 %v7697, 127
      %v7889 = vpop.permute.xlu0 %7888
      %7890 = vrot.lane.b32.xlu0 %v7699, 127
      %v7891 = vpop.permute.xlu0 %7890
      %7892 = vrot.lane.b32.xlu0 %v7701, 127
      %v7893 = vpop.permute.xlu0 %7892
      %7894 = vrot.lane.b32.xlu0 %v7703, 127
      %v7895 = vpop.permute.xlu0 %7894
      %7896 = vrot.lane.b32.xlu0 %v7705, 127
      %v7897 = vpop.permute.xlu0 %7896
      %v7962 = vadd.f32 %v7514, %v7771
      %v7963 = vadd.f32 %v7515, %v7773
      %v7964 = vadd.f32 %v7516, %v7775
      %v7965 = vadd.f32 %v7517, %v7777
      %v7966 = vadd.f32 %v7518, %v7779
      %v7967 = vadd.f32 %v7519, %v7781
      %v7968 = vadd.f32 %v7520, %v7783
      %v7969 = vadd.f32 %v7521, %v7785
      %v7970 = vadd.f32 %v7522, %v7787
      %v7971 = vadd.f32 %v7523, %v7789
      %v7972 = vadd.f32 %v7524, %v7791
      %v7973 = vadd.f32 %v7525, %v7793
      %v7974 = vadd.f32 %v7526, %v7795
      %v7975 = vadd.f32 %v7527, %v7797
      %v7976 = vadd.f32 %v7528, %v7799
      %v7977 = vadd.f32 %v7529, %v7801
      %v7978 = vadd.f32 %v7530, %v7803
      %v7979 = vadd.f32 %v7531, %v7805
      %v7980 = vadd.f32 %v7532, %v7807
      %v7981 = vadd.f32 %v7533, %v7809
      %v7982 = vadd.f32 %v7534, %v7811
      %v7983 = vadd.f32 %v7535, %v7813
      %v7984 = vadd.f32 %v7536, %v7815
      %v7985 = vadd.f32 %v7537, %v7817
      %v7986 = vadd.f32 %v7538, %v7819
      %v7987 = vadd.f32 %v7539, %v7821
      %v7988 = vadd.f32 %v7540, %v7823
      %v7989 = vadd.f32 %v7541, %v7825
      %v7990 = vadd.f32 %v7542, %v7827
      %v7991 = vadd.f32 %v7543, %v7829
      %v7992 = vadd.f32 %v7544, %v7831
      %v7993 = vadd.f32 %v7545, %v7833
      %v7994 = vadd.f32 %v7546, %v7835
      %v7995 = vadd.f32 %v7547, %v7837
      %v7996 = vadd.f32 %v7548, %v7839
      %v7997 = vadd.f32 %v7549, %v7841
      %v7998 = vadd.f32 %v7550, %v7843
      %v7999 = vadd.f32 %v7551, %v7845
      %v8000 = vadd.f32 %v7552, %v7847
      %v8001 = vadd.f32 %v7553, %v7849
      %v8002 = vadd.f32 %v7554, %v7851
      %v8003 = vadd.f32 %v7555, %v7853
      %v8004 = vadd.f32 %v7556, %v7855
      %v8005 = vadd.f32 %v7557, %v7857
      %v8006 = vadd.f32 %v7558, %v7859
      %v8007 = vadd.f32 %v7559, %v7861
      %v8008 = vadd.f32 %v7560, %v7863
      %v8009 = vadd.f32 %v7561, %v7865
      %v8010 = vadd.f32 %v7562, %v7867
      %v8011 = vadd.f32 %v7563, %v7869
      %v8012 = vadd.f32 %v7564, %v7871
      %v8013 = vadd.f32 %v7565, %v7873
      %v8014 = vadd.f32 %v7566, %v7875
      %v8015 = vadd.f32 %v7567, %v7877
      %v8016 = vadd.f32 %v7568, %v7879
      %v8017 = vadd.f32 %v7569, %v7881
      %v8018 = vadd.f32 %v7570, %v7883
      %v8019 = vadd.f32 %v7571, %v7885
      %v8020 = vadd.f32 %v7572, %v7887
      %v8021 = vadd.f32 %v7573, %v7889
      %v8022 = vadd.f32 %v7574, %v7891
      %v8023 = vadd.f32 %v7575, %v7893
      %v8024 = vadd.f32 %v7576, %v7895
      %v8025 = vadd.f32 %v7577, %v7897
      %8090 = vrot.lane.b32.xlu0 %v7514, 126
      %v8091 = vpop.permute.xlu0 %8090
      %8092 = vrot.lane.b32.xlu0 %v7515, 126
      %v8093 = vpop.permute.xlu0 %8092
      %8094 = vrot.lane.b32.xlu0 %v7516, 126
      %v8095 = vpop.permute.xlu0 %8094
      %8096 = vrot.lane.b32.xlu0 %v7517, 126
      %v8097 = vpop.permute.xlu0 %8096
      %8098 = vrot.lane.b32.xlu0 %v7518, 126
      %v8099 = vpop.permute.xlu0 %8098
      %8100 = vrot.lane.b32.xlu0 %v7519, 126
      %v8101 = vpop.permute.xlu0 %8100
      %8102 = vrot.lane.b32.xlu0 %v7520, 126
      %v8103 = vpop.permute.xlu0 %8102
      %8104 = vrot.lane.b32.xlu0 %v7521, 126
      %v8105 = vpop.permute.xlu0 %8104
      %8106 = vrot.lane.b32.xlu0 %v7522, 126
      %v8107 = vpop.permute.xlu0 %8106
      %8108 = vrot.lane.b32.xlu0 %v7523, 126
      %v8109 = vpop.permute.xlu0 %8108
      %8110 = vrot.lane.b32.xlu0 %v7524, 126
      %v8111 = vpop.permute.xlu0 %8110
      %8112 = vrot.lane.b32.xlu0 %v7525, 126
      %v8113 = vpop.permute.xlu0 %8112
      %8114 = vrot.lane.b32.xlu0 %v7526, 126
      %v8115 = vpop.permute.xlu0 %8114
      %8116 = vrot.lane.b32.xlu0 %v7527, 126
      %v8117 = vpop.permute.xlu0 %8116
      %8118 = vrot.lane.b32.xlu0 %v7528, 126
      %v8119 = vpop.permute.xlu0 %8118
      %8120 = vrot.lane.b32.xlu0 %v7529, 126
      %v8121 = vpop.permute.xlu0 %8120
      %8122 = vrot.lane.b32.xlu0 %v7530, 126
      %v8123 = vpop.permute.xlu0 %8122
      %8124 = vrot.lane.b32.xlu0 %v7531, 126
      %v8125 = vpop.permute.xlu0 %8124
      %8126 = vrot.lane.b32.xlu0 %v7532, 126
      %v8127 = vpop.permute.xlu0 %8126
      %8128 = vrot.lane.b32.xlu0 %v7533, 126
      %v8129 = vpop.permute.xlu0 %8128
      %8130 = vrot.lane.b32.xlu0 %v7534, 126
      %v8131 = vpop.permute.xlu0 %8130
      %8132 = vrot.lane.b32.xlu0 %v7535, 126
      %v8133 = vpop.permute.xlu0 %8132
      %8134 = vrot.lane.b32.xlu0 %v7536, 126
      %v8135 = vpop.permute.xlu0 %8134
      %8136 = vrot.lane.b32.xlu0 %v7537, 126
      %v8137 = vpop.permute.xlu0 %8136
      %8138 = vrot.lane.b32.xlu0 %v7538, 126
      %v8139 = vpop.permute.xlu0 %8138
      %8140 = vrot.lane.b32.xlu0 %v7539, 126
      %v8141 = vpop.permute.xlu0 %8140
      %8142 = vrot.lane.b32.xlu0 %v7540, 126
      %v8143 = vpop.permute.xlu0 %8142
      %8144 = vrot.lane.b32.xlu0 %v7541, 126
      %v8145 = vpop.permute.xlu0 %8144
      %8146 = vrot.lane.b32.xlu0 %v7542, 126
      %v8147 = vpop.permute.xlu0 %8146
      %8148 = vrot.lane.b32.xlu0 %v7543, 126
      %v8149 = vpop.permute.xlu0 %8148
      %8150 = vrot.lane.b32.xlu0 %v7544, 126
      %v8151 = vpop.permute.xlu0 %8150
      %8152 = vrot.lane.b32.xlu0 %v7545, 126
      %v8153 = vpop.permute.xlu0 %8152
      %8154 = vrot.lane.b32.xlu0 %v7546, 126
      %v8155 = vpop.permute.xlu0 %8154
      %8156 = vrot.lane.b32.xlu0 %v7547, 126
      %v8157 = vpop.permute.xlu0 %8156
      %8158 = vrot.lane.b32.xlu0 %v7548, 126
      %v8159 = vpop.permute.xlu0 %8158
      %8160 = vrot.lane.b32.xlu0 %v7549, 126
      %v8161 = vpop.permute.xlu0 %8160
      %8162 = vrot.lane.b32.xlu0 %v7550, 126
      %v8163 = vpop.permute.xlu0 %8162
      %8164 = vrot.lane.b32.xlu0 %v7551, 126
      %v8165 = vpop.permute.xlu0 %8164
      %8166 = vrot.lane.b32.xlu0 %v7552, 126
      %v8167 = vpop.permute.xlu0 %8166
      %8168 = vrot.lane.b32.xlu0 %v7553, 126
      %v8169 = vpop.permute.xlu0 %8168
      %8170 = vrot.lane.b32.xlu0 %v7554, 126
      %v8171 = vpop.permute.xlu0 %8170
      %8172 = vrot.lane.b32.xlu0 %v7555, 126
      %v8173 = vpop.permute.xlu0 %8172
      %8174 = vrot.lane.b32.xlu0 %v7556, 126
      %v8175 = vpop.permute.xlu0 %8174
      %8176 = vrot.lane.b32.xlu0 %v7557, 126
      %v8177 = vpop.permute.xlu0 %8176
      %8178 = vrot.lane.b32.xlu0 %v7558, 126
      %v8179 = vpop.permute.xlu0 %8178
      %8180 = vrot.lane.b32.xlu0 %v7559, 126
      %v8181 = vpop.permute.xlu0 %8180
      %8182 = vrot.lane.b32.xlu0 %v7560, 126
      %v8183 = vpop.permute.xlu0 %8182
      %8184 = vrot.lane.b32.xlu0 %v7561, 126
      %v8185 = vpop.permute.xlu0 %8184
      %8186 = vrot.lane.b32.xlu0 %v7562, 126
      %v8187 = vpop.permute.xlu0 %8186
      %8188 = vrot.lane.b32.xlu0 %v7563, 126
      %v8189 = vpop.permute.xlu0 %8188
      %8190 = vrot.lane.b32.xlu0 %v7564, 126
      %v8191 = vpop.permute.xlu0 %8190
      %8192 = vrot.lane.b32.xlu0 %v7565, 126
      %v8193 = vpop.permute.xlu0 %8192
      %8194 = vrot.lane.b32.xlu0 %v7566, 126
      %v8195 = vpop.permute.xlu0 %8194
      %8196 = vrot.lane.b32.xlu0 %v7567, 126
      %v8197 = vpop.permute.xlu0 %8196
      %8198 = vrot.lane.b32.xlu0 %v7568, 126
      %v8199 = vpop.permute.xlu0 %8198
      %8200 = vrot.lane.b32.xlu0 %v7569, 126
      %v8201 = vpop.permute.xlu0 %8200
      %8202 = vrot.lane.b32.xlu0 %v7570, 126
      %v8203 = vpop.permute.xlu0 %8202
      %8204 = vrot.lane.b32.xlu0 %v7571, 126
      %v8205 = vpop.permute.xlu0 %8204
      %8206 = vrot.lane.b32.xlu0 %v7572, 126
      %v8207 = vpop.permute.xlu0 %8206
      %8208 = vrot.lane.b32.xlu0 %v7573, 126
      %v8209 = vpop.permute.xlu0 %8208
      %8210 = vrot.lane.b32.xlu0 %v7574, 126
      %v8211 = vpop.permute.xlu0 %8210
      %8212 = vrot.lane.b32.xlu0 %v7575, 126
      %v8213 = vpop.permute.xlu0 %8212
      %8214 = vrot.lane.b32.xlu0 %v7576, 126
      %v8215 = vpop.permute.xlu0 %8214
      %8216 = vrot.lane.b32.xlu0 %v7577, 126
      %v8217 = vpop.permute.xlu0 %8216
      %v8282 = vsub.f32 %v7962, %v8091
      %v8283 = vsub.f32 %v7963, %v8093
      %v8284 = vsub.f32 %v7964, %v8095
      %v8285 = vsub.f32 %v7965, %v8097
      %v8286 = vsub.f32 %v7966, %v8099
      %v8287 = vsub.f32 %v7967, %v8101
      %v8288 = vsub.f32 %v7968, %v8103
      %v8289 = vsub.f32 %v7969, %v8105
      %v8290 = vsub.f32 %v7970, %v8107
      %v8291 = vsub.f32 %v7971, %v8109
      %v8292 = vsub.f32 %v7972, %v8111
      %v8293 = vsub.f32 %v7973, %v8113
      %v8294 = vsub.f32 %v7974, %v8115
      %v8295 = vsub.f32 %v7975, %v8117
      %v8296 = vsub.f32 %v7976, %v8119
      %v8297 = vsub.f32 %v7977, %v8121
      %v8298 = vsub.f32 %v7978, %v8123
      %v8299 = vsub.f32 %v7979, %v8125
      %v8300 = vsub.f32 %v7980, %v8127
      %v8301 = vsub.f32 %v7981, %v8129
      %v8302 = vsub.f32 %v7982, %v8131
      %v8303 = vsub.f32 %v7983, %v8133
      %v8304 = vsub.f32 %v7984, %v8135
      %v8305 = vsub.f32 %v7985, %v8137
      %v8306 = vsub.f32 %v7986, %v8139
      %v8307 = vsub.f32 %v7987, %v8141
      %v8308 = vsub.f32 %v7988, %v8143
      %v8309 = vsub.f32 %v7989, %v8145
      %v8310 = vsub.f32 %v7990, %v8147
      %v8311 = vsub.f32 %v7991, %v8149
      %v8312 = vsub.f32 %v7992, %v8151
      %v8313 = vsub.f32 %v7993, %v8153
      %v8314 = vsub.f32 %v7994, %v8155
      %v8315 = vsub.f32 %v7995, %v8157
      %v8316 = vsub.f32 %v7996, %v8159
      %v8317 = vsub.f32 %v7997, %v8161
      %v8318 = vsub.f32 %v7998, %v8163
      %v8319 = vsub.f32 %v7999, %v8165
      %v8320 = vsub.f32 %v8000, %v8167
      %v8321 = vsub.f32 %v8001, %v8169
      %v8322 = vsub.f32 %v8002, %v8171
      %v8323 = vsub.f32 %v8003, %v8173
      %v8324 = vsub.f32 %v8004, %v8175
      %v8325 = vsub.f32 %v8005, %v8177
      %v8326 = vsub.f32 %v8006, %v8179
      %v8327 = vsub.f32 %v8007, %v8181
      %v8328 = vsub.f32 %v8008, %v8183
      %v8329 = vsub.f32 %v8009, %v8185
      %v8330 = vsub.f32 %v8010, %v8187
      %v8331 = vsub.f32 %v8011, %v8189
      %v8332 = vsub.f32 %v8012, %v8191
      %v8333 = vsub.f32 %v8013, %v8193
      %v8334 = vsub.f32 %v8014, %v8195
      %v8335 = vsub.f32 %v8015, %v8197
      %v8336 = vsub.f32 %v8016, %v8199
      %v8337 = vsub.f32 %v8017, %v8201
      %v8338 = vsub.f32 %v8018, %v8203
      %v8339 = vsub.f32 %v8019, %v8205
      %v8340 = vsub.f32 %v8020, %v8207
      %v8341 = vsub.f32 %v8021, %v8209
      %v8342 = vsub.f32 %v8022, %v8211
      %v8343 = vsub.f32 %v8023, %v8213
      %v8344 = vsub.f32 %v8024, %v8215
      %v8345 = vsub.f32 %v8025, %v8217
      %v8346 = vsel %vm4984, %v8282, 0.0
      %v8347 = vsel %vm4984, %v8283, 0.0
      %v8348 = vadd.f32 %v8346, %v8347
      %v8349 = vsel %vm4984, %v8284, 0.0
      %v8350 = vadd.f32 %v8348, %v8349
      %v8351 = vsel %vm4984, %v8285, 0.0
      %v8352 = vadd.f32 %v8350, %v8351
      %v8353 = vsel %vm4984, %v8286, 0.0
      %v8354 = vadd.f32 %v8352, %v8353
      %v8355 = vsel %vm4984, %v8287, 0.0
      %v8356 = vadd.f32 %v8354, %v8355
      %v8357 = vsel %vm4984, %v8288, 0.0
      %v8358 = vadd.f32 %v8356, %v8357
      %v8359 = vsel %vm4984, %v8289, 0.0
      %v8360 = vadd.f32 %v8358, %v8359
      %v8361 = vsel %vm4984, %v8290, 0.0
      %v8362 = vadd.f32 %v8360, %v8361
      %v8363 = vsel %vm4984, %v8291, 0.0
      %v8364 = vadd.f32 %v8362, %v8363
      %v8365 = vsel %vm4984, %v8292, 0.0
      %v8366 = vadd.f32 %v8364, %v8365
      %v8367 = vsel %vm4984, %v8293, 0.0
      %v8368 = vadd.f32 %v8366, %v8367
      %v8369 = vsel %vm4984, %v8294, 0.0
      %v8370 = vadd.f32 %v8368, %v8369
      %v8371 = vsel %vm4984, %v8295, 0.0
      %v8372 = vadd.f32 %v8370, %v8371
      %v8373 = vsel %vm4984, %v8296, 0.0
      %v8374 = vadd.f32 %v8372, %v8373
      %v8375 = vsel %vm4984, %v8297, 0.0
      %v8376 = vadd.f32 %v8374, %v8375
      %v8377 = vsel %vm4984, %v8298, 0.0
      %v8378 = vadd.f32 %v8376, %v8377
      %v8379 = vsel %vm4984, %v8299, 0.0
      %v8380 = vadd.f32 %v8378, %v8379
      %v8381 = vsel %vm4984, %v8300, 0.0
      %v8382 = vadd.f32 %v8380, %v8381
      %v8383 = vsel %vm4984, %v8301, 0.0
      %v8384 = vadd.f32 %v8382, %v8383
      %v8385 = vsel %vm4984, %v8302, 0.0
      %v8386 = vadd.f32 %v8384, %v8385
      %v8387 = vsel %vm4984, %v8303, 0.0
      %v8388 = vadd.f32 %v8386, %v8387
      %v8389 = vsel %vm4984, %v8304, 0.0
      %v8390 = vadd.f32 %v8388, %v8389
      %v8391 = vsel %vm4984, %v8305, 0.0
      %v8392 = vadd.f32 %v8390, %v8391
      %v8393 = vsel %vm4984, %v8306, 0.0
      %v8394 = vadd.f32 %v8392, %v8393
      %v8395 = vsel %vm4984, %v8307, 0.0
      %v8396 = vadd.f32 %v8394, %v8395
      %v8397 = vsel %vm4984, %v8308, 0.0
      %v8398 = vadd.f32 %v8396, %v8397
      %v8399 = vsel %vm4984, %v8309, 0.0
      %v8400 = vadd.f32 %v8398, %v8399
      %v8401 = vsel %vm4984, %v8310, 0.0
      %v8402 = vadd.f32 %v8400, %v8401
      %v8403 = vsel %vm4984, %v8311, 0.0
      %v8404 = vadd.f32 %v8402, %v8403
      %v8405 = vsel %vm4984, %v8312, 0.0
      %v8406 = vadd.f32 %v8404, %v8405
      %v8407 = vsel %vm4984, %v8313, 0.0
      %v8408 = vadd.f32 %v8406, %v8407
      %v8409 = vsel %vm4984, %v8314, 0.0
      %v8410 = vadd.f32 %v8408, %v8409
      %v8411 = vsel %vm4984, %v8315, 0.0
      %v8412 = vadd.f32 %v8410, %v8411
      %v8413 = vsel %vm4984, %v8316, 0.0
      %v8414 = vadd.f32 %v8412, %v8413
      %v8415 = vsel %vm4984, %v8317, 0.0
      %v8416 = vadd.f32 %v8414, %v8415
      %v8417 = vsel %vm4984, %v8318, 0.0
      %v8418 = vadd.f32 %v8416, %v8417
      %v8419 = vsel %vm4984, %v8319, 0.0
      %v8420 = vadd.f32 %v8418, %v8419
      %v8421 = vsel %vm4984, %v8320, 0.0
      %v8422 = vadd.f32 %v8420, %v8421
      %v8423 = vsel %vm4984, %v8321, 0.0
      %v8424 = vadd.f32 %v8422, %v8423
      %v8425 = vsel %vm4984, %v8322, 0.0
      %v8426 = vadd.f32 %v8424, %v8425
      %v8427 = vsel %vm4984, %v8323, 0.0
      %v8428 = vadd.f32 %v8426, %v8427
      %v8429 = vsel %vm4984, %v8324, 0.0
      %v8430 = vadd.f32 %v8428, %v8429
      %v8431 = vsel %vm4984, %v8325, 0.0
      %v8432 = vadd.f32 %v8430, %v8431
      %v8433 = vsel %vm4984, %v8326, 0.0
      %v8434 = vadd.f32 %v8432, %v8433
      %v8435 = vsel %vm4984, %v8327, 0.0
      %v8436 = vadd.f32 %v8434, %v8435
      %v8437 = vsel %vm4984, %v8328, 0.0
      %v8438 = vadd.f32 %v8436, %v8437
      %v8439 = vsel %vm4984, %v8329, 0.0
      %v8440 = vadd.f32 %v8438, %v8439
      %v8441 = vsel %vm4984, %v8330, 0.0
      %v8442 = vadd.f32 %v8440, %v8441
      %v8443 = vsel %vm4984, %v8331, 0.0
      %v8444 = vadd.f32 %v8442, %v8443
      %v8445 = vsel %vm4984, %v8332, 0.0
      %v8446 = vadd.f32 %v8444, %v8445
      %v8447 = vsel %vm4984, %v8333, 0.0
      %v8448 = vadd.f32 %v8446, %v8447
      %v8449 = vsel %vm4984, %v8334, 0.0
      %v8450 = vadd.f32 %v8448, %v8449
      %v8451 = vsel %vm4984, %v8335, 0.0
      %v8452 = vadd.f32 %v8450, %v8451
      %v8453 = vsel %vm4984, %v8336, 0.0
      %v8454 = vadd.f32 %v8452, %v8453
      %v8455 = vsel %vm4984, %v8337, 0.0
      %v8456 = vadd.f32 %v8454, %v8455
      %v8457 = vsel %vm4984, %v8338, 0.0
      %v8458 = vadd.f32 %v8456, %v8457
      %v8459 = vsel %vm4984, %v8339, 0.0
      %v8460 = vadd.f32 %v8458, %v8459
      %v8461 = vsel %vm4984, %v8340, 0.0
      %v8462 = vadd.f32 %v8460, %v8461
      %v8463 = vsel %vm4984, %v8341, 0.0
      %v8464 = vadd.f32 %v8462, %v8463
      %v8465 = vsel %vm4984, %v8342, 0.0
      %v8466 = vadd.f32 %v8464, %v8465
      %v8467 = vsel %vm4984, %v8343, 0.0
      %v8468 = vadd.f32 %v8466, %v8467
      %v8469 = vsel %vm4984, %v8344, 0.0
      %v8470 = vadd.f32 %v8468, %v8469
      %v8471 = vsel %vm4984, %v8345, 0.0
      %v8472 = vadd.f32 %v8470, %v8471
      %v8473 = vrot.slane %v8472, 4
      %v8474 = vadd.f32 %v8472, %v8473
      %v8475 = vrot.slane %v8474, 2
      %v8476 = vadd.f32 %v8474, %v8475
      %v8477 = vrot.slane %v8476, 1
      %v8478 = vadd.f32 %v8476, %v8477
      %v8479 = vrcp.pop 512.0
      %v8480 = vmul.f32 %v8478, %v8479
      %v8481 = vld [vmem:[#allocation3] sm:$0x1]
      %v8482 = vmul.f32 %v8481, %v8479
      %v8483 = vadd.f32 %v8480, %v8482
      %v8484 = vmul.f32 %v8483, 0.5
      %vm8485 = vcmp.eq.s32.totalorder %v3887, 0
      %8487 = vset.pattern.permute.xlu0 0
      %8488 = vperm.xlu0 %8487, %v8484
      %v8489 = vpop.permute.xlu0 %8488
      %v8491 = vsel %vm8485, %v8489, 0.0
      %vm8492 = vcmp.eq.s32.totalorder %v3887, 1
      %8494 = vset.pattern.permute.xlu0 0
      %8495 = vperm.xlu0 %8494, %v8480
      %v8496 = vpop.permute.xlu0 %8495
      %v8498 = vsel %vm8492, %v8496, 0.0
      %v8499 = vadd.f32 %v8491, %v8498
      %vm8500 = vcmp.eq.s32.totalorder %v3887, 2
      %8502 = vset.pattern.permute.xlu0 0
      %8503 = vperm.xlu0 %8502, %v8482
      %v8504 = vpop.permute.xlu0 %8503
      %v8506 = vlaneseq
      %v8507 = vshrl.u32 %v8506, 7
      %v8508 = vsub.s32 0, %v8507
      %v8509 = vrot.slane %v8504, %v8508
      %v8510 = vsel %vm8500, %v8509, 0.0
      %v8511 = vadd.f32 %v8499, %v8510
      %8512 = vst [vmem:[#allocation7] sm:$0x1] %v8511
    $region29: #{tpu_custom_call.1} parent=1 // pred_fallthru
      _
    // Predicated region
    $region30: #{tpu_custom_call.1} parent=1 // pred_check
      _
    $region31: #{tpu_custom_call.1} parent=1 // pred_check_branch
      %8514 = sbr.rel (0) target = $region33
    $region32: #{tpu_custom_call.1} parent=1 // pred_region
      %s8516 = ssub.s32 16, 16
      %8517 = vsyncadd [#allocation6], %s8516
      %s8519 = sshll.u32 [#allocation7], 4
      %s8520 = int_to_ptr.vmem [resolvable:$true] %s8519
      %8522 = dma.vmem_to_hbm [thread:$0]  %s8520, 16, %s4, [#allocation6]
    $region33: #{tpu_custom_call.1} parent=1 // pred_fallthru
      _
    // Predicated region
    $region34: #{tpu_custom_call.1} parent=1 // pred_check
      _
    $region35: #{tpu_custom_call.1} parent=1 // pred_check_branch
      %8524 = sbr.rel (0) target = $region37
    $region36: #{tpu_custom_call.1} parent=1 // pred_region
      %8525 = dma.done [#allocation6], 16
    $region37: #{tpu_custom_call.1} parent=1 // pred_fallthru
      _
    %8526 = vsyncpa [#allocation5], 1
    %8527 = vsyncpa [#allocation6], 1

</llo_original>
